<compile_context>
chip_gen: v7x
topology: tpu7x:2x2x1
jax: 0.10.0
libtpu: 0.0.40
codegen_flags: <defaults>
</compile_context>

<pallas_src>
import functools

import jax
import jax.numpy as jnp
from jax.experimental import pallas as pl
from jax.experimental.pallas import tpu as pltpu

MODEL_DIM = 64
NUM_HEADS = 4
NUM_LAYERS = 2
FF_DIM = 2048            # nn.TransformerEncoderLayer default dim_feedforward
HEAD_DIM = MODEL_DIM // NUM_HEADS
LN_EPS = 1e-5            # nn.LayerNorm default eps

MAX_TILE_ROWS = 1024     # target rows (= tb*seq) per grid step
FF_CHUNK_ROWS = 1024     # bound on rows of the (rows, 2048) FF hidden held at once
VMEM_LIMIT_BYTES = 48 * 1024 * 1024   # safe on v5e/v6e (128 MiB) and v7x (64 MiB)


# ----------------------------- fused forward kernel ------------------------ #

def _fused_forward_kernel(
    src_ref, emb_w_ref, emb_b_ref,
    wqkv_ref, bqkv_ref, wo_ref, bo_ref,
    ln1_g_ref, ln1_b_ref,
    ff1_w_ref, ff1_b_ref, ff2_w_ref, ff2_b_ref,
    ln2_g_ref, ln2_b_ref,
    dec_w_ref, dec_b_ref,
    out_ref,
    *, tb, seq, num_layers, num_heads, head_dim):
  """One grid step = `tb` full sequences; whole model applied in VMEM."""
  d_model = num_heads * head_dim
  rows = tb * seq
  scale = 1.0 / (head_dim ** 0.5)

  def mxu(x_f32, w_bf16):
    # bf16 MXU inputs, f32 accumulation.
    return jnp.dot(x_f32.astype(jnp.bfloat16), w_bf16,
                   preferred_element_type=jnp.float32)

  def layer_norm(z, g, b):
    # biased variance + eps=1e-5, matching nn.LayerNorm (f32 VPU math).
    mu = jnp.mean(z, axis=-1, keepdims=True)
    var = jnp.mean((z - mu) * (z - mu), axis=-1, keepdims=True)
    return (z - mu) * jax.lax.rsqrt(var + LN_EPS) * g + b

  def split_heads(t_f32):
    # (rows, D) -> (tb*H, seq, dh) bf16, ready for batched MXU einsums.
    return (t_f32.astype(jnp.bfloat16)
            .reshape(tb, seq, num_heads, head_dim)
            .transpose(0, 2, 1, 3)
            .reshape(tb * num_heads, seq, head_dim))

  def ffn(z, w1, b1, w2, b2):
    # bf16 hidden right after the ReLU halves the largest live intermediate;
    # bias-add + ReLU stay f32 (v5e has no bf16 VPU).
    h = jnp.maximum(mxu(z, w1) + b1, 0.0).astype(jnp.bfloat16)
    return jnp.dot(h, w2, preferred_element_type=jnp.float32) + b2

  # ---------------- embedding: Linear(input_dim -> d_model) ---------------- #
  src = src_ref[...].reshape(rows, src_ref.shape[-1])           # (rows, F)
  x = mxu(src, emb_w_ref[...]) + emb_b_ref[...]                 # (rows, D) f32

  # ---------------- encoder layers (post-norm, eval-mode dropout) ---------- #
  for li in range(num_layers):
    # Fused QKV projection: one (D, 3D) matmul; x already resident in VMEM.
    qkv = mxu(x, wqkv_ref[li]) + bqkv_ref[li]                   # (rows, 3D)

    # Batched multi-head attention; 1/sqrt(dh) folded into q before the cast.
    qh = split_heads(qkv[:, 0 * d_model:1 * d_model] * scale)   # (tb*H, S, dh)
    kh = split_heads(qkv[:, 1 * d_model:2 * d_model])
    vh = split_heads(qkv[:, 2 * d_model:3 * d_model])

    s = jnp.einsum("bqd,bkd->bqk", qh, kh,
                   preferred_element_type=jnp.float32)          # (tb*H, S, S)
    s = s - jnp.max(s, axis=-1, keepdims=True)
    p = jnp.exp(s)
    p = p * pl.reciprocal(jnp.sum(p, axis=-1, keepdims=True), approx=True)
    o = jnp.einsum("bqk,bkd->bqd", p.astype(jnp.bfloat16), vh,
                   preferred_element_type=jnp.float32)          # (tb*H, S, dh)
    attn = (o.reshape(tb, num_heads, seq, head_dim)
            .transpose(0, 2, 1, 3)
            .reshape(rows, d_model))                            # lane-dense
    attn = mxu(attn, wo_ref[li]) + bo_ref[li]

    x = layer_norm(x + attn, ln1_g_ref[li], ln1_b_ref[li])

    # Feed-forward: hidden never leaves VMEM; chunked so the (chunk, 2048)
    # hidden stays bounded even when rows = seq is large (tb = 1 fallback).
    if rows <= FF_CHUNK_ROWS:
      ff = ffn(x, ff1_w_ref[li], ff1_b_ref[li], ff2_w_ref[li], ff2_b_ref[li])
    else:
      parts = []
      for r0 in range(0, rows, FF_CHUNK_ROWS):
        r1 = min(r0 + FF_CHUNK_ROWS, rows)
        parts.append(ffn(x[r0:r1], ff1_w_ref[li], ff1_b_ref[li],
                         ff2_w_ref[li], ff2_b_ref[li]))
      ff = jnp.concatenate(parts, axis=0)

    x = layer_norm(x + ff, ln2_g_ref[li], ln2_b_ref[li])
    # TODO(synk): for very long sequences the (tb*H, S, S) attention scores
    # would need a flash-style streaming formulation; fine for stock-prediction
    # sized sequences.

  # ---------------- decoder: Linear(d_model -> 1) as VPU mul + reduce ------ #
  y = (jnp.sum(x.reshape(tb, seq, d_model) * dec_w_ref[...], axis=-1)
       + dec_b_ref[...])                                        # (tb, seq)
  out_ref[...] = y.reshape(1, tb, seq).astype(out_ref.dtype)    # lane-dense store


# ------------------------------ Pallas wrapper ------------------------------ #

def _pick_batch_tile(batch, seq):
  """Large tiles to amortize per-step overhead, but keep >=2 grid steps so both
  v7x TensorCores get work whenever batch >= 2."""
  tb = max(1, min(batch, MAX_TILE_ROWS // max(seq, 1)))
  if batch >= 2:
    tb = min(tb, max(1, batch // 2))
  while batch % tb != 0:       # keep the grid exact (tiny search, batch is small)
    tb -= 1
  return tb


def _resident_spec(arr):
  """Full-array block with a constant block index -> DMA'd once, stays in VMEM."""
  nd = arr.ndim
  return pl.BlockSpec(arr.shape, lambda *_args, _nd=nd: (0,) * _nd)


def transformer_forward(params, src):
  # src: (B, S, input_dim), batch_first=True like the PyTorch module.
  batch, seq, in_dim = src.shape
  tb = _pick_batch_tile(batch, seq)
  grid_len = batch // tb

  kernel = functools.partial(
      _fused_forward_kernel,
      tb=tb, seq=seq,
      num_layers=NUM_LAYERS, num_heads=NUM_HEADS, head_dim=HEAD_DIM)

  weight_args = (
      params["emb_w"], params["emb_b"],
      params["wqkv"], params["bqkv"], params["wo"], params["bo"],
      params["ln1_g"], params["ln1_b"],
      params["ff1_w"], params["ff1_b"], params["ff2_w"], params["ff2_b"],
      params["ln2_g"], params["ln2_b"],
      params["dec_w"], params["dec_b"],
  )

  in_specs = [pl.BlockSpec((tb, seq, in_dim), lambda i: (i, 0, 0))]
  in_specs += [_resident_spec(a) for a in weight_args]

  # Only raise the scoped-VMEM limit when the tile is actually large.
  vmem_limit = VMEM_LIMIT_BYTES if tb * seq > 256 else None

  out = pl.pallas_call(
      kernel,
      out_shape=jax.ShapeDtypeStruct((grid_len, tb, seq), jnp.float32),
      grid=(grid_len,),
      in_specs=in_specs,
      out_specs=pl.BlockSpec((1, tb, seq), lambda i: (i, 0, 0)),
      compiler_params=pltpu.CompilerParams(
          dimension_semantics=("parallel",),    # megacore split on v7x
          vmem_limit_bytes=vmem_limit),
  )(src, *weight_args)
  # (grid, tb, seq) -> (B, S, 1); pure wrapper reshape, no extra kernel.
  return out.reshape(batch, seq, 1)


# ----------------------------- parameter setup ------------------------------ #

def init_params(input_dim, key):
  """Weights stored bf16 for the MXU matmuls; biases / LN / decoder kept f32."""
  L, D, FF = NUM_LAYERS, MODEL_DIM, FF_DIM

  def dense_bf16(k, shape):
    return (0.02 * jax.random.normal(k, shape, jnp.float32)).astype(jnp.bfloat16)

  ks = jax.random.split(key, 6)
  params = {
      "emb_w": dense_bf16(ks[0], (input_dim, D)),
      "emb_b": jnp.zeros((1, D), jnp.float32),
      # per-layer weights stacked along a leading layer axis
      "wqkv": dense_bf16(ks[1], (L, D, 3 * D)),
      "bqkv": jnp.zeros((L, 1, 3 * D), jnp.float32),
      "wo": dense_bf16(ks[2], (L, D, D)),
      "bo": jnp.zeros((L, 1, D), jnp.float32),
      "ln1_g": jnp.ones((L, 1, D), jnp.float32),
      "ln1_b": jnp.zeros((L, 1, D), jnp.float32),
      "ff1_w": dense_bf16(ks[3], (L, D, FF)),
      "ff1_b": jnp.zeros((L, 1, FF), jnp.float32),
      "ff2_w": dense_bf16(ks[4], (L, FF, D)),
      "ff2_b": jnp.zeros((L, 1, D), jnp.float32),
      "ln2_g": jnp.ones((L, 1, D), jnp.float32),
      "ln2_b": jnp.zeros((L, 1, D), jnp.float32),
      # decoder used on the VPU as multiply+reduce -> keep f32
      "dec_w": 0.02 * jax.random.normal(ks[5], (1, D), jnp.float32),
      "dec_b": jnp.zeros((1, 1), jnp.float32),
  }
  return params


# ---------------------------------- main ------------------------------------ #

if __name__ == "__main__":
  B, S, INPUT_DIM = 2, 8, 8
  key = jax.random.PRNGKey(0)
  x_key, p_key = jax.random.split(key)
  src = jax.random.normal(x_key, (B, S, INPUT_DIM), jnp.float32)
  params = init_params(INPUT_DIM, p_key)

  fwd = jax.jit(transformer_forward)
  out = fwd(params, src)
  jax.block_until_ready(out)

  assert out.shape == (B, S, 1), out.shape
  assert bool(jnp.all(jnp.isfinite(out)))
  # TODO(synk): dropout (p=0.1) is treated as identity (eval-mode semantics).
  print("KERNEL_OK")
</pallas_src>

<mosaic_0001>
module attributes {stable_mosaic.version = 11 : i64} {
  func.func @_fused_forward_kernel(%arg0: i32, %arg1: memref<1x8x8xf32, #tpu.memory_space<vmem>>, %arg2: memref<8x64xbf16, #tpu.memory_space<vmem>>, %arg3: memref<1x64xf32, #tpu.memory_space<vmem>>, %arg4: memref<2x64x192xbf16, #tpu.memory_space<vmem>>, %arg5: memref<2x1x192xf32, #tpu.memory_space<vmem>>, %arg6: memref<2x64x64xbf16, #tpu.memory_space<vmem>>, %arg7: memref<2x1x64xf32, #tpu.memory_space<vmem>>, %arg8: memref<2x1x64xf32, #tpu.memory_space<vmem>>, %arg9: memref<2x1x64xf32, #tpu.memory_space<vmem>>, %arg10: memref<2x64x2048xbf16, #tpu.memory_space<vmem>>, %arg11: memref<2x1x2048xf32, #tpu.memory_space<vmem>>, %arg12: memref<2x2048x64xbf16, #tpu.memory_space<vmem>>, %arg13: memref<2x1x64xf32, #tpu.memory_space<vmem>>, %arg14: memref<2x1x64xf32, #tpu.memory_space<vmem>>, %arg15: memref<2x1x64xf32, #tpu.memory_space<vmem>>, %arg16: memref<1x64xf32, #tpu.memory_space<vmem>>, %arg17: memref<1x1xf32, #tpu.memory_space<vmem>>, %arg18: memref<1x1x8xf32, #tpu.memory_space<vmem>>) attributes {dimension_semantics = [#tpu.dimension_semantics<parallel>], iteration_bounds = array<i64: 2>, scalar_prefetch = 0 : i64, scratch_operands = 0 : i64, tpu.core_type = #tpu.core_type<tc>, window_params = [{transform_indices = @transform_0, window_bounds = array<i64: 1, 8, 8>}, {pipeline_mode = #tpu.pipeline_mode<synchronous>, transform_indices = @transform_1, window_bounds = array<i64: 8, 64>}, {pipeline_mode = #tpu.pipeline_mode<synchronous>, transform_indices = @transform_2, window_bounds = array<i64: 1, 64>}, {pipeline_mode = #tpu.pipeline_mode<synchronous>, transform_indices = @transform_3, window_bounds = array<i64: 2, 64, 192>}, {pipeline_mode = #tpu.pipeline_mode<synchronous>, transform_indices = @transform_4, window_bounds = array<i64: 2, 1, 192>}, {pipeline_mode = #tpu.pipeline_mode<synchronous>, transform_indices = @transform_5, window_bounds = array<i64: 2, 64, 64>}, {pipeline_mode = #tpu.pipeline_mode<synchronous>, transform_indices = @transform_6, window_bounds = array<i64: 2, 1, 64>}, {pipeline_mode = #tpu.pipeline_mode<synchronous>, transform_indices = @transform_7, window_bounds = array<i64: 2, 1, 64>}, {pipeline_mode = #tpu.pipeline_mode<synchronous>, transform_indices = @transform_8, window_bounds = array<i64: 2, 1, 64>}, {pipeline_mode = #tpu.pipeline_mode<synchronous>, transform_indices = @transform_9, window_bounds = array<i64: 2, 64, 2048>}, {pipeline_mode = #tpu.pipeline_mode<synchronous>, transform_indices = @transform_10, window_bounds = array<i64: 2, 1, 2048>}, {pipeline_mode = #tpu.pipeline_mode<synchronous>, transform_indices = @transform_11, window_bounds = array<i64: 2, 2048, 64>}, {pipeline_mode = #tpu.pipeline_mode<synchronous>, transform_indices = @transform_12, window_bounds = array<i64: 2, 1, 64>}, {pipeline_mode = #tpu.pipeline_mode<synchronous>, transform_indices = @transform_13, window_bounds = array<i64: 2, 1, 64>}, {pipeline_mode = #tpu.pipeline_mode<synchronous>, transform_indices = @transform_14, window_bounds = array<i64: 2, 1, 64>}, {pipeline_mode = #tpu.pipeline_mode<synchronous>, transform_indices = @transform_15, window_bounds = array<i64: 1, 64>}, {pipeline_mode = #tpu.pipeline_mode<synchronous>, transform_indices = @transform_16, window_bounds = array<i64: 1, 1>}, {transform_indices = @transform_17, window_bounds = array<i64: 1, 1, 8>}]} {
    %c0 = arith.constant 0 : index
    %c0_0 = arith.constant 0 : index
    %c0_1 = arith.constant 0 : index
    %0 = vector.load %arg1[%c0, %c0_0, %c0_1] : memref<1x8x8xf32, #tpu.memory_space<vmem>>, vector<1x8x8xf32>
    %1 = vector.shape_cast %0 : vector<1x8x8xf32> to vector<8x8xf32>
    %c0_2 = arith.constant 0 : index
    %c0_3 = arith.constant 0 : index
    %2 = vector.load %arg2[%c0_2, %c0_3] : memref<8x64xbf16, #tpu.memory_space<vmem>>, vector<8x64xbf16>
    %3 = arith.truncf %1 : vector<8x8xf32> to vector<8x8xbf16>
    %cst = arith.constant dense<0.000000e+00> : vector<8x64xf32>
    %4 = tpu.matmul %3, %2, %cst {dimension_numbers = #tpu.dot_dimension_numbers<[1], [0], [0], [1], [0, 0, 1, 1], [], []>} : vector<8x8xbf16>, vector<8x64xbf16>, vector<8x64xf32> -> vector<8x64xf32>
    %c0_4 = arith.constant 0 : index
    %c0_5 = arith.constant 0 : index
    %5 = vector.load %arg3[%c0_4, %c0_5] : memref<1x64xf32, #tpu.memory_space<vmem>>, vector<1x64xf32>
    %6 = vector.broadcast %5 : vector<1x64xf32> to vector<8x64xf32>
    %7 = arith.addf %4, %6 : vector<8x64xf32>
    %c0_6 = arith.constant 0 : index
    %c0_7 = arith.constant 0 : index
    %c0_8 = arith.constant 0 : index
    %8 = vector.load %arg4[%c0_6, %c0_7, %c0_8] : memref<2x64x192xbf16, #tpu.memory_space<vmem>>, vector<1x64x192xbf16>
    %9 = vector.shape_cast %8 : vector<1x64x192xbf16> to vector<64x192xbf16>
    %10 = arith.truncf %7 : vector<8x64xf32> to vector<8x64xbf16>
    %cst_9 = arith.constant dense<0.000000e+00> : vector<8x192xf32>
    %11 = tpu.matmul %10, %9, %cst_9 {dimension_numbers = #tpu.dot_dimension_numbers<[1], [0], [0], [1], [0, 0, 1, 1], [], []>} : vector<8x64xbf16>, vector<64x192xbf16>, vector<8x192xf32> -> vector<8x192xf32>
    %c0_10 = arith.constant 0 : index
    %c0_11 = arith.constant 0 : index
    %c0_12 = arith.constant 0 : index
    %12 = vector.load %arg5[%c0_10, %c0_11, %c0_12] : memref<2x1x192xf32, #tpu.memory_space<vmem>>, vector<1x1x192xf32>
    %13 = vector.shape_cast %12 : vector<1x1x192xf32> to vector<1x192xf32>
    %14 = vector.broadcast %13 : vector<1x192xf32> to vector<8x192xf32>
    %15 = arith.addf %11, %14 : vector<8x192xf32>
    %16 = vector.extract_strided_slice %15 {offsets = [0, 0], sizes = [8, 64], strides = [1, 1]} : vector<8x192xf32> to vector<8x64xf32>
    %cst_13 = arith.constant 2.500000e-01 : f32
    %17 = vector.broadcast %cst_13 : f32 to vector<8x64xf32>
    %18 = arith.mulf %16, %17 : vector<8x64xf32>
    %19 = arith.truncf %18 : vector<8x64xf32> to vector<8x64xbf16>
    %20 = vector.shape_cast %19 : vector<8x64xbf16> to vector<1x8x4x16xbf16>
    %21 = tpu.transpose %20, [0, 2, 1, 3] : vector<1x8x4x16xbf16> -> vector<1x4x8x16xbf16>
    %22 = vector.shape_cast %21 : vector<1x4x8x16xbf16> to vector<4x8x16xbf16>
    %23 = vector.extract_strided_slice %15 {offsets = [0, 64], sizes = [8, 64], strides = [1, 1]} : vector<8x192xf32> to vector<8x64xf32>
    %24 = arith.truncf %23 : vector<8x64xf32> to vector<8x64xbf16>
    %25 = vector.shape_cast %24 : vector<8x64xbf16> to vector<1x8x4x16xbf16>
    %26 = tpu.transpose %25, [0, 2, 1, 3] : vector<1x8x4x16xbf16> -> vector<1x4x8x16xbf16>
    %27 = vector.shape_cast %26 : vector<1x4x8x16xbf16> to vector<4x8x16xbf16>
    %28 = vector.extract_strided_slice %15 {offsets = [0, 128], sizes = [8, 64], strides = [1, 1]} : vector<8x192xf32> to vector<8x64xf32>
    %29 = arith.truncf %28 : vector<8x64xf32> to vector<8x64xbf16>
    %30 = vector.shape_cast %29 : vector<8x64xbf16> to vector<1x8x4x16xbf16>
    %31 = tpu.transpose %30, [0, 2, 1, 3] : vector<1x8x4x16xbf16> -> vector<1x4x8x16xbf16>
    %32 = vector.shape_cast %31 : vector<1x4x8x16xbf16> to vector<4x8x16xbf16>
    "tpu.trace_start"() <{level = 10 : i32, message = "bqd,bkd->bqk"}> : () -> ()
    %cst_14 = arith.constant dense<0.000000e+00> : vector<4x8x8xf32>
    %33 = tpu.matmul %22, %27, %cst_14 {dimension_numbers = #tpu.dot_dimension_numbers<[2], [2], [1], [1], [0, 0, 0, 1, 1, 1], [0], [0]>} : vector<4x8x16xbf16>, vector<4x8x16xbf16>, vector<4x8x8xf32> -> vector<4x8x8xf32>
    "tpu.trace_stop"() : () -> ()
    %cst_15 = arith.constant dense<0xFF800000> : vector<4x8xf32>
    %34 = vector.multi_reduction <maximumf>, %33, %cst_15 [2] : vector<4x8x8xf32> to vector<4x8xf32>
    %35 = vector.shape_cast %34 : vector<4x8xf32> to vector<4x8x1xf32>
    %36 = vector.broadcast %35 : vector<4x8x1xf32> to vector<4x8x8xf32>
    %37 = arith.subf %33, %36 : vector<4x8x8xf32>
    %38 = math.exp %37 : vector<4x8x8xf32>
    %cst_16 = arith.constant dense<0.000000e+00> : vector<4x8xf32>
    %39 = vector.multi_reduction <add>, %38, %cst_16 [2] : vector<4x8x8xf32> to vector<4x8xf32>
    %40 = vector.shape_cast %39 : vector<4x8xf32> to vector<4x8x1xf32>
    %41 = tpu.reciprocal %40 {approx = true} : vector<4x8x1xf32> -> vector<4x8x1xf32>
    %42 = vector.broadcast %41 : vector<4x8x1xf32> to vector<4x8x8xf32>
    %43 = arith.mulf %38, %42 : vector<4x8x8xf32>
    %44 = arith.truncf %43 : vector<4x8x8xf32> to vector<4x8x8xbf16>
    "tpu.trace_start"() <{level = 10 : i32, message = "bqk,bkd->bqd"}> : () -> ()
    %cst_17 = arith.constant dense<0.000000e+00> : vector<4x8x16xf32>
    %45 = tpu.matmul %44, %32, %cst_17 {dimension_numbers = #tpu.dot_dimension_numbers<[2], [1], [1], [2], [0, 0, 0, 1, 1, 2], [0], [0]>} : vector<4x8x8xbf16>, vector<4x8x16xbf16>, vector<4x8x16xf32> -> vector<4x8x16xf32>
    "tpu.trace_stop"() : () -> ()
    %46 = vector.shape_cast %45 : vector<4x8x16xf32> to vector<1x4x8x16xf32>
    %47 = tpu.transpose %46, [0, 2, 1, 3] : vector<1x4x8x16xf32> -> vector<1x8x4x16xf32>
    %48 = vector.shape_cast %47 : vector<1x8x4x16xf32> to vector<8x64xf32>
    %c0_18 = arith.constant 0 : index
    %c0_19 = arith.constant 0 : index
    %c0_20 = arith.constant 0 : index
    %49 = vector.load %arg6[%c0_18, %c0_19, %c0_20] : memref<2x64x64xbf16, #tpu.memory_space<vmem>>, vector<1x64x64xbf16>
    %50 = vector.shape_cast %49 : vector<1x64x64xbf16> to vector<64x64xbf16>
    %51 = arith.truncf %48 : vector<8x64xf32> to vector<8x64xbf16>
    %cst_21 = arith.constant dense<0.000000e+00> : vector<8x64xf32>
    %52 = tpu.matmul %51, %50, %cst_21 {dimension_numbers = #tpu.dot_dimension_numbers<[1], [0], [0], [1], [0, 0, 1, 1], [], []>} : vector<8x64xbf16>, vector<64x64xbf16>, vector<8x64xf32> -> vector<8x64xf32>
    %c0_22 = arith.constant 0 : index
    %c0_23 = arith.constant 0 : index
    %c0_24 = arith.constant 0 : index
    %53 = vector.load %arg7[%c0_22, %c0_23, %c0_24] : memref<2x1x64xf32, #tpu.memory_space<vmem>>, vector<1x1x64xf32>
    %54 = vector.shape_cast %53 : vector<1x1x64xf32> to vector<1x64xf32>
    %55 = vector.broadcast %54 : vector<1x64xf32> to vector<8x64xf32>
    %56 = arith.addf %52, %55 : vector<8x64xf32>
    %57 = arith.addf %7, %56 : vector<8x64xf32>
    %c0_25 = arith.constant 0 : index
    %c0_26 = arith.constant 0 : index
    %c0_27 = arith.constant 0 : index
    %58 = vector.load %arg8[%c0_25, %c0_26, %c0_27] : memref<2x1x64xf32, #tpu.memory_space<vmem>>, vector<1x1x64xf32>
    %59 = vector.shape_cast %58 : vector<1x1x64xf32> to vector<1x64xf32>
    %c0_28 = arith.constant 0 : index
    %c0_29 = arith.constant 0 : index
    %c0_30 = arith.constant 0 : index
    %60 = vector.load %arg9[%c0_28, %c0_29, %c0_30] : memref<2x1x64xf32, #tpu.memory_space<vmem>>, vector<1x1x64xf32>
    %61 = vector.shape_cast %60 : vector<1x1x64xf32> to vector<1x64xf32>
    %cst_31 = arith.constant dense<0.000000e+00> : vector<8xf32>
    %62 = vector.multi_reduction <add>, %57, %cst_31 [1] : vector<8x64xf32> to vector<8xf32>
    %63 = vector.shape_cast %62 : vector<8xf32> to vector<8x1xf32>
    %cst_32 = arith.constant 6.400000e+01 : f32
    %64 = vector.broadcast %cst_32 : f32 to vector<8x1xf32>
    %65 = arith.divf %63, %64 : vector<8x1xf32>
    %66 = vector.broadcast %65 : vector<8x1xf32> to vector<8x64xf32>
    %67 = arith.subf %57, %66 : vector<8x64xf32>
    %68 = vector.broadcast %65 : vector<8x1xf32> to vector<8x64xf32>
    %69 = arith.subf %57, %68 : vector<8x64xf32>
    %70 = arith.mulf %67, %69 : vector<8x64xf32>
    %cst_33 = arith.constant dense<0.000000e+00> : vector<8xf32>
    %71 = vector.multi_reduction <add>, %70, %cst_33 [1] : vector<8x64xf32> to vector<8xf32>
    %72 = vector.shape_cast %71 : vector<8xf32> to vector<8x1xf32>
    %cst_34 = arith.constant 6.400000e+01 : f32
    %73 = vector.broadcast %cst_34 : f32 to vector<8x1xf32>
    %74 = arith.divf %72, %73 : vector<8x1xf32>
    %75 = vector.broadcast %65 : vector<8x1xf32> to vector<8x64xf32>
    %76 = arith.subf %57, %75 : vector<8x64xf32>
    %cst_35 = arith.constant 9.99999974E-6 : f32
    %77 = vector.broadcast %cst_35 : f32 to vector<8x1xf32>
    %78 = arith.addf %74, %77 : vector<8x1xf32>
    %79 = math.rsqrt %78 : vector<8x1xf32>
    %80 = vector.broadcast %79 : vector<8x1xf32> to vector<8x64xf32>
    %81 = arith.mulf %76, %80 : vector<8x64xf32>
    %82 = vector.broadcast %59 : vector<1x64xf32> to vector<8x64xf32>
    %83 = arith.mulf %81, %82 : vector<8x64xf32>
    %84 = vector.broadcast %61 : vector<1x64xf32> to vector<8x64xf32>
    %85 = arith.addf %83, %84 : vector<8x64xf32>
    %c0_36 = arith.constant 0 : index
    %c0_37 = arith.constant 0 : index
    %c0_38 = arith.constant 0 : index
    %86 = vector.load %arg10[%c0_36, %c0_37, %c0_38] : memref<2x64x2048xbf16, #tpu.memory_space<vmem>>, vector<1x64x2048xbf16>
    %87 = vector.shape_cast %86 : vector<1x64x2048xbf16> to vector<64x2048xbf16>
    %c0_39 = arith.constant 0 : index
    %c0_40 = arith.constant 0 : index
    %c0_41 = arith.constant 0 : index
    %88 = vector.load %arg11[%c0_39, %c0_40, %c0_41] : memref<2x1x2048xf32, #tpu.memory_space<vmem>>, vector<1x1x2048xf32>
    %89 = vector.shape_cast %88 : vector<1x1x2048xf32> to vector<1x2048xf32>
    %c0_42 = arith.constant 0 : index
    %c0_43 = arith.constant 0 : index
    %c0_44 = arith.constant 0 : index
    %90 = vector.load %arg12[%c0_42, %c0_43, %c0_44] : memref<2x2048x64xbf16, #tpu.memory_space<vmem>>, vector<1x2048x64xbf16>
    %91 = vector.shape_cast %90 : vector<1x2048x64xbf16> to vector<2048x64xbf16>
    %c0_45 = arith.constant 0 : index
    %c0_46 = arith.constant 0 : index
    %c0_47 = arith.constant 0 : index
    %92 = vector.load %arg13[%c0_45, %c0_46, %c0_47] : memref<2x1x64xf32, #tpu.memory_space<vmem>>, vector<1x1x64xf32>
    %93 = vector.shape_cast %92 : vector<1x1x64xf32> to vector<1x64xf32>
    %94 = arith.truncf %85 : vector<8x64xf32> to vector<8x64xbf16>
    %cst_48 = arith.constant dense<0.000000e+00> : vector<8x2048xf32>
    %95 = tpu.matmul %94, %87, %cst_48 {dimension_numbers = #tpu.dot_dimension_numbers<[1], [0], [0], [1], [0, 0, 1, 1], [], []>} : vector<8x64xbf16>, vector<64x2048xbf16>, vector<8x2048xf32> -> vector<8x2048xf32>
    %96 = vector.broadcast %89 : vector<1x2048xf32> to vector<8x2048xf32>
    %97 = arith.addf %95, %96 : vector<8x2048xf32>
    %cst_49 = arith.constant 0.000000e+00 : f32
    %98 = vector.broadcast %cst_49 : f32 to vector<8x2048xf32>
    %99 = arith.maximumf %97, %98 : vector<8x2048xf32>
    %100 = arith.truncf %99 : vector<8x2048xf32> to vector<8x2048xbf16>
    %cst_50 = arith.constant dense<0.000000e+00> : vector<8x64xf32>
    %101 = tpu.matmul %100, %91, %cst_50 {dimension_numbers = #tpu.dot_dimension_numbers<[1], [0], [0], [1], [0, 0, 1, 1], [], []>} : vector<8x2048xbf16>, vector<2048x64xbf16>, vector<8x64xf32> -> vector<8x64xf32>
    %102 = vector.broadcast %93 : vector<1x64xf32> to vector<8x64xf32>
    %103 = arith.addf %101, %102 : vector<8x64xf32>
    %104 = arith.addf %85, %103 : vector<8x64xf32>
    %c0_51 = arith.constant 0 : index
    %c0_52 = arith.constant 0 : index
    %c0_53 = arith.constant 0 : index
    %105 = vector.load %arg14[%c0_51, %c0_52, %c0_53] : memref<2x1x64xf32, #tpu.memory_space<vmem>>, vector<1x1x64xf32>
    %106 = vector.shape_cast %105 : vector<1x1x64xf32> to vector<1x64xf32>
    %c0_54 = arith.constant 0 : index
    %c0_55 = arith.constant 0 : index
    %c0_56 = arith.constant 0 : index
    %107 = vector.load %arg15[%c0_54, %c0_55, %c0_56] : memref<2x1x64xf32, #tpu.memory_space<vmem>>, vector<1x1x64xf32>
    %108 = vector.shape_cast %107 : vector<1x1x64xf32> to vector<1x64xf32>
    %cst_57 = arith.constant dense<0.000000e+00> : vector<8xf32>
    %109 = vector.multi_reduction <add>, %104, %cst_57 [1] : vector<8x64xf32> to vector<8xf32>
    %110 = vector.shape_cast %109 : vector<8xf32> to vector<8x1xf32>
    %cst_58 = arith.constant 6.400000e+01 : f32
    %111 = vector.broadcast %cst_58 : f32 to vector<8x1xf32>
    %112 = arith.divf %110, %111 : vector<8x1xf32>
    %113 = vector.broadcast %112 : vector<8x1xf32> to vector<8x64xf32>
    %114 = arith.subf %104, %113 : vector<8x64xf32>
    %115 = vector.broadcast %112 : vector<8x1xf32> to vector<8x64xf32>
    %116 = arith.subf %104, %115 : vector<8x64xf32>
    %117 = arith.mulf %114, %116 : vector<8x64xf32>
    %cst_59 = arith.constant dense<0.000000e+00> : vector<8xf32>
    %118 = vector.multi_reduction <add>, %117, %cst_59 [1] : vector<8x64xf32> to vector<8xf32>
    %119 = vector.shape_cast %118 : vector<8xf32> to vector<8x1xf32>
    %cst_60 = arith.constant 6.400000e+01 : f32
    %120 = vector.broadcast %cst_60 : f32 to vector<8x1xf32>
    %121 = arith.divf %119, %120 : vector<8x1xf32>
    %122 = vector.broadcast %112 : vector<8x1xf32> to vector<8x64xf32>
    %123 = arith.subf %104, %122 : vector<8x64xf32>
    %cst_61 = arith.constant 9.99999974E-6 : f32
    %124 = vector.broadcast %cst_61 : f32 to vector<8x1xf32>
    %125 = arith.addf %121, %124 : vector<8x1xf32>
    %126 = math.rsqrt %125 : vector<8x1xf32>
    %127 = vector.broadcast %126 : vector<8x1xf32> to vector<8x64xf32>
    %128 = arith.mulf %123, %127 : vector<8x64xf32>
    %129 = vector.broadcast %106 : vector<1x64xf32> to vector<8x64xf32>
    %130 = arith.mulf %128, %129 : vector<8x64xf32>
    %131 = vector.broadcast %108 : vector<1x64xf32> to vector<8x64xf32>
    %132 = arith.addf %130, %131 : vector<8x64xf32>
    %c1 = arith.constant 1 : index
    %c0_62 = arith.constant 0 : index
    %c0_63 = arith.constant 0 : index
    %133 = vector.load %arg4[%c1, %c0_62, %c0_63] : memref<2x64x192xbf16, #tpu.memory_space<vmem>>, vector<1x64x192xbf16>
    %134 = vector.shape_cast %133 : vector<1x64x192xbf16> to vector<64x192xbf16>
    %135 = arith.truncf %132 : vector<8x64xf32> to vector<8x64xbf16>
    %cst_64 = arith.constant dense<0.000000e+00> : vector<8x192xf32>
    %136 = tpu.matmul %135, %134, %cst_64 {dimension_numbers = #tpu.dot_dimension_numbers<[1], [0], [0], [1], [0, 0, 1, 1], [], []>} : vector<8x64xbf16>, vector<64x192xbf16>, vector<8x192xf32> -> vector<8x192xf32>
    %c1_65 = arith.constant 1 : index
    %c0_66 = arith.constant 0 : index
    %c0_67 = arith.constant 0 : index
    %137 = vector.load %arg5[%c1_65, %c0_66, %c0_67] : memref<2x1x192xf32, #tpu.memory_space<vmem>>, vector<1x1x192xf32>
    %138 = vector.shape_cast %137 : vector<1x1x192xf32> to vector<1x192xf32>
    %139 = vector.broadcast %138 : vector<1x192xf32> to vector<8x192xf32>
    %140 = arith.addf %136, %139 : vector<8x192xf32>
    %141 = vector.extract_strided_slice %140 {offsets = [0, 0], sizes = [8, 64], strides = [1, 1]} : vector<8x192xf32> to vector<8x64xf32>
    %cst_68 = arith.constant 2.500000e-01 : f32
    %142 = vector.broadcast %cst_68 : f32 to vector<8x64xf32>
    %143 = arith.mulf %141, %142 : vector<8x64xf32>
    %144 = arith.truncf %143 : vector<8x64xf32> to vector<8x64xbf16>
    %145 = vector.shape_cast %144 : vector<8x64xbf16> to vector<1x8x4x16xbf16>
    %146 = tpu.transpose %145, [0, 2, 1, 3] : vector<1x8x4x16xbf16> -> vector<1x4x8x16xbf16>
    %147 = vector.shape_cast %146 : vector<1x4x8x16xbf16> to vector<4x8x16xbf16>
    %148 = vector.extract_strided_slice %140 {offsets = [0, 64], sizes = [8, 64], strides = [1, 1]} : vector<8x192xf32> to vector<8x64xf32>
    %149 = arith.truncf %148 : vector<8x64xf32> to vector<8x64xbf16>
    %150 = vector.shape_cast %149 : vector<8x64xbf16> to vector<1x8x4x16xbf16>
    %151 = tpu.transpose %150, [0, 2, 1, 3] : vector<1x8x4x16xbf16> -> vector<1x4x8x16xbf16>
    %152 = vector.shape_cast %151 : vector<1x4x8x16xbf16> to vector<4x8x16xbf16>
    %153 = vector.extract_strided_slice %140 {offsets = [0, 128], sizes = [8, 64], strides = [1, 1]} : vector<8x192xf32> to vector<8x64xf32>
    %154 = arith.truncf %153 : vector<8x64xf32> to vector<8x64xbf16>
    %155 = vector.shape_cast %154 : vector<8x64xbf16> to vector<1x8x4x16xbf16>
    %156 = tpu.transpose %155, [0, 2, 1, 3] : vector<1x8x4x16xbf16> -> vector<1x4x8x16xbf16>
    %157 = vector.shape_cast %156 : vector<1x4x8x16xbf16> to vector<4x8x16xbf16>
    "tpu.trace_start"() <{level = 10 : i32, message = "bqd,bkd->bqk"}> : () -> ()
    %cst_69 = arith.constant dense<0.000000e+00> : vector<4x8x8xf32>
    %158 = tpu.matmul %147, %152, %cst_69 {dimension_numbers = #tpu.dot_dimension_numbers<[2], [2], [1], [1], [0, 0, 0, 1, 1, 1], [0], [0]>} : vector<4x8x16xbf16>, vector<4x8x16xbf16>, vector<4x8x8xf32> -> vector<4x8x8xf32>
    "tpu.trace_stop"() : () -> ()
    %cst_70 = arith.constant dense<0xFF800000> : vector<4x8xf32>
    %159 = vector.multi_reduction <maximumf>, %158, %cst_70 [2] : vector<4x8x8xf32> to vector<4x8xf32>
    %160 = vector.shape_cast %159 : vector<4x8xf32> to vector<4x8x1xf32>
    %161 = vector.broadcast %160 : vector<4x8x1xf32> to vector<4x8x8xf32>
    %162 = arith.subf %158, %161 : vector<4x8x8xf32>
    %163 = math.exp %162 : vector<4x8x8xf32>
    %cst_71 = arith.constant dense<0.000000e+00> : vector<4x8xf32>
    %164 = vector.multi_reduction <add>, %163, %cst_71 [2] : vector<4x8x8xf32> to vector<4x8xf32>
    %165 = vector.shape_cast %164 : vector<4x8xf32> to vector<4x8x1xf32>
    %166 = tpu.reciprocal %165 {approx = true} : vector<4x8x1xf32> -> vector<4x8x1xf32>
    %167 = vector.broadcast %166 : vector<4x8x1xf32> to vector<4x8x8xf32>
    %168 = arith.mulf %163, %167 : vector<4x8x8xf32>
    %169 = arith.truncf %168 : vector<4x8x8xf32> to vector<4x8x8xbf16>
    "tpu.trace_start"() <{level = 10 : i32, message = "bqk,bkd->bqd"}> : () -> ()
    %cst_72 = arith.constant dense<0.000000e+00> : vector<4x8x16xf32>
    %170 = tpu.matmul %169, %157, %cst_72 {dimension_numbers = #tpu.dot_dimension_numbers<[2], [1], [1], [2], [0, 0, 0, 1, 1, 2], [0], [0]>} : vector<4x8x8xbf16>, vector<4x8x16xbf16>, vector<4x8x16xf32> -> vector<4x8x16xf32>
    "tpu.trace_stop"() : () -> ()
    %171 = vector.shape_cast %170 : vector<4x8x16xf32> to vector<1x4x8x16xf32>
    %172 = tpu.transpose %171, [0, 2, 1, 3] : vector<1x4x8x16xf32> -> vector<1x8x4x16xf32>
    %173 = vector.shape_cast %172 : vector<1x8x4x16xf32> to vector<8x64xf32>
    %c1_73 = arith.constant 1 : index
    %c0_74 = arith.constant 0 : index
    %c0_75 = arith.constant 0 : index
    %174 = vector.load %arg6[%c1_73, %c0_74, %c0_75] : memref<2x64x64xbf16, #tpu.memory_space<vmem>>, vector<1x64x64xbf16>
    %175 = vector.shape_cast %174 : vector<1x64x64xbf16> to vector<64x64xbf16>
    %176 = arith.truncf %173 : vector<8x64xf32> to vector<8x64xbf16>
    %cst_76 = arith.constant dense<0.000000e+00> : vector<8x64xf32>
    %177 = tpu.matmul %176, %175, %cst_76 {dimension_numbers = #tpu.dot_dimension_numbers<[1], [0], [0], [1], [0, 0, 1, 1], [], []>} : vector<8x64xbf16>, vector<64x64xbf16>, vector<8x64xf32> -> vector<8x64xf32>
    %c1_77 = arith.constant 1 : index
    %c0_78 = arith.constant 0 : index
    %c0_79 = arith.constant 0 : index
    %178 = vector.load %arg7[%c1_77, %c0_78, %c0_79] : memref<2x1x64xf32, #tpu.memory_space<vmem>>, vector<1x1x64xf32>
    %179 = vector.shape_cast %178 : vector<1x1x64xf32> to vector<1x64xf32>
    %180 = vector.broadcast %179 : vector<1x64xf32> to vector<8x64xf32>
    %181 = arith.addf %177, %180 : vector<8x64xf32>
    %182 = arith.addf %132, %181 : vector<8x64xf32>
    %c1_80 = arith.constant 1 : index
    %c0_81 = arith.constant 0 : index
    %c0_82 = arith.constant 0 : index
    %183 = vector.load %arg8[%c1_80, %c0_81, %c0_82] : memref<2x1x64xf32, #tpu.memory_space<vmem>>, vector<1x1x64xf32>
    %184 = vector.shape_cast %183 : vector<1x1x64xf32> to vector<1x64xf32>
    %c1_83 = arith.constant 1 : index
    %c0_84 = arith.constant 0 : index
    %c0_85 = arith.constant 0 : index
    %185 = vector.load %arg9[%c1_83, %c0_84, %c0_85] : memref<2x1x64xf32, #tpu.memory_space<vmem>>, vector<1x1x64xf32>
    %186 = vector.shape_cast %185 : vector<1x1x64xf32> to vector<1x64xf32>
    %cst_86 = arith.constant dense<0.000000e+00> : vector<8xf32>
    %187 = vector.multi_reduction <add>, %182, %cst_86 [1] : vector<8x64xf32> to vector<8xf32>
    %188 = vector.shape_cast %187 : vector<8xf32> to vector<8x1xf32>
    %cst_87 = arith.constant 6.400000e+01 : f32
    %189 = vector.broadcast %cst_87 : f32 to vector<8x1xf32>
    %190 = arith.divf %188, %189 : vector<8x1xf32>
    %191 = vector.broadcast %190 : vector<8x1xf32> to vector<8x64xf32>
    %192 = arith.subf %182, %191 : vector<8x64xf32>
    %193 = vector.broadcast %190 : vector<8x1xf32> to vector<8x64xf32>
    %194 = arith.subf %182, %193 : vector<8x64xf32>
    %195 = arith.mulf %192, %194 : vector<8x64xf32>
    %cst_88 = arith.constant dense<0.000000e+00> : vector<8xf32>
    %196 = vector.multi_reduction <add>, %195, %cst_88 [1] : vector<8x64xf32> to vector<8xf32>
    %197 = vector.shape_cast %196 : vector<8xf32> to vector<8x1xf32>
    %cst_89 = arith.constant 6.400000e+01 : f32
    %198 = vector.broadcast %cst_89 : f32 to vector<8x1xf32>
    %199 = arith.divf %197, %198 : vector<8x1xf32>
    %200 = vector.broadcast %190 : vector<8x1xf32> to vector<8x64xf32>
    %201 = arith.subf %182, %200 : vector<8x64xf32>
    %cst_90 = arith.constant 9.99999974E-6 : f32
    %202 = vector.broadcast %cst_90 : f32 to vector<8x1xf32>
    %203 = arith.addf %199, %202 : vector<8x1xf32>
    %204 = math.rsqrt %203 : vector<8x1xf32>
    %205 = vector.broadcast %204 : vector<8x1xf32> to vector<8x64xf32>
    %206 = arith.mulf %201, %205 : vector<8x64xf32>
    %207 = vector.broadcast %184 : vector<1x64xf32> to vector<8x64xf32>
    %208 = arith.mulf %206, %207 : vector<8x64xf32>
    %209 = vector.broadcast %186 : vector<1x64xf32> to vector<8x64xf32>
    %210 = arith.addf %208, %209 : vector<8x64xf32>
    %c1_91 = arith.constant 1 : index
    %c0_92 = arith.constant 0 : index
    %c0_93 = arith.constant 0 : index
    %211 = vector.load %arg10[%c1_91, %c0_92, %c0_93] : memref<2x64x2048xbf16, #tpu.memory_space<vmem>>, vector<1x64x2048xbf16>
    %212 = vector.shape_cast %211 : vector<1x64x2048xbf16> to vector<64x2048xbf16>
    %c1_94 = arith.constant 1 : index
    %c0_95 = arith.constant 0 : index
    %c0_96 = arith.constant 0 : index
    %213 = vector.load %arg11[%c1_94, %c0_95, %c0_96] : memref<2x1x2048xf32, #tpu.memory_space<vmem>>, vector<1x1x2048xf32>
    %214 = vector.shape_cast %213 : vector<1x1x2048xf32> to vector<1x2048xf32>
    %c1_97 = arith.constant 1 : index
    %c0_98 = arith.constant 0 : index
    %c0_99 = arith.constant 0 : index
    %215 = vector.load %arg12[%c1_97, %c0_98, %c0_99] : memref<2x2048x64xbf16, #tpu.memory_space<vmem>>, vector<1x2048x64xbf16>
    %216 = vector.shape_cast %215 : vector<1x2048x64xbf16> to vector<2048x64xbf16>
    %c1_100 = arith.constant 1 : index
    %c0_101 = arith.constant 0 : index
    %c0_102 = arith.constant 0 : index
    %217 = vector.load %arg13[%c1_100, %c0_101, %c0_102] : memref<2x1x64xf32, #tpu.memory_space<vmem>>, vector<1x1x64xf32>
    %218 = vector.shape_cast %217 : vector<1x1x64xf32> to vector<1x64xf32>
    %219 = arith.truncf %210 : vector<8x64xf32> to vector<8x64xbf16>
    %cst_103 = arith.constant dense<0.000000e+00> : vector<8x2048xf32>
    %220 = tpu.matmul %219, %212, %cst_103 {dimension_numbers = #tpu.dot_dimension_numbers<[1], [0], [0], [1], [0, 0, 1, 1], [], []>} : vector<8x64xbf16>, vector<64x2048xbf16>, vector<8x2048xf32> -> vector<8x2048xf32>
    %221 = vector.broadcast %214 : vector<1x2048xf32> to vector<8x2048xf32>
    %222 = arith.addf %220, %221 : vector<8x2048xf32>
    %cst_104 = arith.constant 0.000000e+00 : f32
    %223 = vector.broadcast %cst_104 : f32 to vector<8x2048xf32>
    %224 = arith.maximumf %222, %223 : vector<8x2048xf32>
    %225 = arith.truncf %224 : vector<8x2048xf32> to vector<8x2048xbf16>
    %cst_105 = arith.constant dense<0.000000e+00> : vector<8x64xf32>
    %226 = tpu.matmul %225, %216, %cst_105 {dimension_numbers = #tpu.dot_dimension_numbers<[1], [0], [0], [1], [0, 0, 1, 1], [], []>} : vector<8x2048xbf16>, vector<2048x64xbf16>, vector<8x64xf32> -> vector<8x64xf32>
    %227 = vector.broadcast %218 : vector<1x64xf32> to vector<8x64xf32>
    %228 = arith.addf %226, %227 : vector<8x64xf32>
    %229 = arith.addf %210, %228 : vector<8x64xf32>
    %c1_106 = arith.constant 1 : index
    %c0_107 = arith.constant 0 : index
    %c0_108 = arith.constant 0 : index
    %230 = vector.load %arg14[%c1_106, %c0_107, %c0_108] : memref<2x1x64xf32, #tpu.memory_space<vmem>>, vector<1x1x64xf32>
    %231 = vector.shape_cast %230 : vector<1x1x64xf32> to vector<1x64xf32>
    %c1_109 = arith.constant 1 : index
    %c0_110 = arith.constant 0 : index
    %c0_111 = arith.constant 0 : index
    %232 = vector.load %arg15[%c1_109, %c0_110, %c0_111] : memref<2x1x64xf32, #tpu.memory_space<vmem>>, vector<1x1x64xf32>
    %233 = vector.shape_cast %232 : vector<1x1x64xf32> to vector<1x64xf32>
    %cst_112 = arith.constant dense<0.000000e+00> : vector<8xf32>
    %234 = vector.multi_reduction <add>, %229, %cst_112 [1] : vector<8x64xf32> to vector<8xf32>
    %235 = vector.shape_cast %234 : vector<8xf32> to vector<8x1xf32>
    %cst_113 = arith.constant 6.400000e+01 : f32
    %236 = vector.broadcast %cst_113 : f32 to vector<8x1xf32>
    %237 = arith.divf %235, %236 : vector<8x1xf32>
    %238 = vector.broadcast %237 : vector<8x1xf32> to vector<8x64xf32>
    %239 = arith.subf %229, %238 : vector<8x64xf32>
    %240 = vector.broadcast %237 : vector<8x1xf32> to vector<8x64xf32>
    %241 = arith.subf %229, %240 : vector<8x64xf32>
    %242 = arith.mulf %239, %241 : vector<8x64xf32>
    %cst_114 = arith.constant dense<0.000000e+00> : vector<8xf32>
    %243 = vector.multi_reduction <add>, %242, %cst_114 [1] : vector<8x64xf32> to vector<8xf32>
    %244 = vector.shape_cast %243 : vector<8xf32> to vector<8x1xf32>
    %cst_115 = arith.constant 6.400000e+01 : f32
    %245 = vector.broadcast %cst_115 : f32 to vector<8x1xf32>
    %246 = arith.divf %244, %245 : vector<8x1xf32>
    %247 = vector.broadcast %237 : vector<8x1xf32> to vector<8x64xf32>
    %248 = arith.subf %229, %247 : vector<8x64xf32>
    %cst_116 = arith.constant 9.99999974E-6 : f32
    %249 = vector.broadcast %cst_116 : f32 to vector<8x1xf32>
    %250 = arith.addf %246, %249 : vector<8x1xf32>
    %251 = math.rsqrt %250 : vector<8x1xf32>
    %252 = vector.broadcast %251 : vector<8x1xf32> to vector<8x64xf32>
    %253 = arith.mulf %248, %252 : vector<8x64xf32>
    %254 = vector.broadcast %231 : vector<1x64xf32> to vector<8x64xf32>
    %255 = arith.mulf %253, %254 : vector<8x64xf32>
    %256 = vector.broadcast %233 : vector<1x64xf32> to vector<8x64xf32>
    %257 = arith.addf %255, %256 : vector<8x64xf32>
    %258 = vector.shape_cast %257 : vector<8x64xf32> to vector<1x8x64xf32>
    %c0_117 = arith.constant 0 : index
    %c0_118 = arith.constant 0 : index
    %259 = vector.load %arg16[%c0_117, %c0_118] : memref<1x64xf32, #tpu.memory_space<vmem>>, vector<1x64xf32>
    %260 = vector.shape_cast %259 : vector<1x64xf32> to vector<1x1x64xf32>
    %261 = vector.broadcast %260 : vector<1x1x64xf32> to vector<1x8x64xf32>
    %262 = arith.mulf %258, %261 : vector<1x8x64xf32>
    %cst_119 = arith.constant dense<0.000000e+00> : vector<1x8xf32>
    %263 = vector.multi_reduction <add>, %262, %cst_119 [2] : vector<1x8x64xf32> to vector<1x8xf32>
    %c0_120 = arith.constant 0 : index
    %c0_121 = arith.constant 0 : index
    %264 = vector.load %arg17[%c0_120, %c0_121] : memref<1x1xf32, #tpu.memory_space<vmem>>, vector<1x1xf32>
    %265 = vector.broadcast %264 : vector<1x1xf32> to vector<1x8xf32>
    %266 = arith.addf %263, %265 : vector<1x8xf32>
    %267 = vector.shape_cast %266 : vector<1x8xf32> to vector<1x1x8xf32>
    %c0_122 = arith.constant 0 : index
    %c0_123 = arith.constant 0 : index
    %c0_124 = arith.constant 0 : index
    %268 = vector.load %arg18[%c0_122, %c0_123, %c0_124] : memref<1x1x8xf32, #tpu.memory_space<vmem>>, vector<1x1x8xf32>
    tpu.vector_store %arg18[%c0_122, %c0_123, %c0_124], %267 {strides = array<i32>} : memref<1x1x8xf32, #tpu.memory_space<vmem>>, vector<1x1x8xf32>,
    return
  }
  func.func @transform_0(%arg0: i32) -> (i32, i32, i32) {
    %c0_i32 = arith.constant 0 : i32
    %c0_i32_0 = arith.constant 0 : i32
    %c0_i32_1 = arith.constant 0 : i32
    return %arg0, %c0_i32, %c0_i32_0 : i32, i32, i32
  }
  func.func @transform_1(%arg0: i32) -> (i32, i32) {
    %c0_i32 = arith.constant 0 : i32
    %c0_i32_0 = arith.constant 0 : i32
    %c0_i32_1 = arith.constant 0 : i32
    return %c0_i32, %c0_i32_0 : i32, i32
  }
  func.func @transform_2(%arg0: i32) -> (i32, i32) {
    %c0_i32 = arith.constant 0 : i32
    %c0_i32_0 = arith.constant 0 : i32
    %c0_i32_1 = arith.constant 0 : i32
    return %c0_i32, %c0_i32_0 : i32, i32
  }
  func.func @transform_3(%arg0: i32) -> (i32, i32, i32) {
    %c0_i32 = arith.constant 0 : i32
    %c0_i32_0 = arith.constant 0 : i32
    %c0_i32_1 = arith.constant 0 : i32
    %c0_i32_2 = arith.constant 0 : i32
    return %c0_i32, %c0_i32_0, %c0_i32_1 : i32, i32, i32
  }
  func.func @transform_4(%arg0: i32) -> (i32, i32, i32) {
    %c0_i32 = arith.constant 0 : i32
    %c0_i32_0 = arith.constant 0 : i32
    %c0_i32_1 = arith.constant 0 : i32
    %c0_i32_2 = arith.constant 0 : i32
    return %c0_i32, %c0_i32_0, %c0_i32_1 : i32, i32, i32
  }
  func.func @transform_5(%arg0: i32) -> (i32, i32, i32) {
    %c0_i32 = arith.constant 0 : i32
    %c0_i32_0 = arith.constant 0 : i32
    %c0_i32_1 = arith.constant 0 : i32
    %c0_i32_2 = arith.constant 0 : i32
    return %c0_i32, %c0_i32_0, %c0_i32_1 : i32, i32, i32
  }
  func.func @transform_6(%arg0: i32) -> (i32, i32, i32) {
    %c0_i32 = arith.constant 0 : i32
    %c0_i32_0 = arith.constant 0 : i32
    %c0_i32_1 = arith.constant 0 : i32
    %c0_i32_2 = arith.constant 0 : i32
    return %c0_i32, %c0_i32_0, %c0_i32_1 : i32, i32, i32
  }
  func.func @transform_7(%arg0: i32) -> (i32, i32, i32) {
    %c0_i32 = arith.constant 0 : i32
    %c0_i32_0 = arith.constant 0 : i32
    %c0_i32_1 = arith.constant 0 : i32
    %c0_i32_2 = arith.constant 0 : i32
    return %c0_i32, %c0_i32_0, %c0_i32_1 : i32, i32, i32
  }
  func.func @transform_8(%arg0: i32) -> (i32, i32, i32) {
    %c0_i32 = arith.constant 0 : i32
    %c0_i32_0 = arith.constant 0 : i32
    %c0_i32_1 = arith.constant 0 : i32
    %c0_i32_2 = arith.constant 0 : i32
    return %c0_i32, %c0_i32_0, %c0_i32_1 : i32, i32, i32
  }
  func.func @transform_9(%arg0: i32) -> (i32, i32, i32) {
    %c0_i32 = arith.constant 0 : i32
    %c0_i32_0 = arith.constant 0 : i32
    %c0_i32_1 = arith.constant 0 : i32
    %c0_i32_2 = arith.constant 0 : i32
    return %c0_i32, %c0_i32_0, %c0_i32_1 : i32, i32, i32
  }
  func.func @transform_10(%arg0: i32) -> (i32, i32, i32) {
    %c0_i32 = arith.constant 0 : i32
    %c0_i32_0 = arith.constant 0 : i32
    %c0_i32_1 = arith.constant 0 : i32
    %c0_i32_2 = arith.constant 0 : i32
    return %c0_i32, %c0_i32_0, %c0_i32_1 : i32, i32, i32
  }
  func.func @transform_11(%arg0: i32) -> (i32, i32, i32) {
    %c0_i32 = arith.constant 0 : i32
    %c0_i32_0 = arith.constant 0 : i32
    %c0_i32_1 = arith.constant 0 : i32
    %c0_i32_2 = arith.constant 0 : i32
    return %c0_i32, %c0_i32_0, %c0_i32_1 : i32, i32, i32
  }
  func.func @transform_12(%arg0: i32) -> (i32, i32, i32) {
    %c0_i32 = arith.constant 0 : i32
    %c0_i32_0 = arith.constant 0 : i32
    %c0_i32_1 = arith.constant 0 : i32
    %c0_i32_2 = arith.constant 0 : i32
    return %c0_i32, %c0_i32_0, %c0_i32_1 : i32, i32, i32
  }
  func.func @transform_13(%arg0: i32) -> (i32, i32, i32) {
    %c0_i32 = arith.constant 0 : i32
    %c0_i32_0 = arith.constant 0 : i32
    %c0_i32_1 = arith.constant 0 : i32
    %c0_i32_2 = arith.constant 0 : i32
    return %c0_i32, %c0_i32_0, %c0_i32_1 : i32, i32, i32
  }
  func.func @transform_14(%arg0: i32) -> (i32, i32, i32) {
    %c0_i32 = arith.constant 0 : i32
    %c0_i32_0 = arith.constant 0 : i32
    %c0_i32_1 = arith.constant 0 : i32
    %c0_i32_2 = arith.constant 0 : i32
    return %c0_i32, %c0_i32_0, %c0_i32_1 : i32, i32, i32
  }
  func.func @transform_15(%arg0: i32) -> (i32, i32) {
    %c0_i32 = arith.constant 0 : i32
    %c0_i32_0 = arith.constant 0 : i32
    %c0_i32_1 = arith.constant 0 : i32
    return %c0_i32, %c0_i32_0 : i32, i32
  }
  func.func @transform_16(%arg0: i32) -> (i32, i32) {
    %c0_i32 = arith.constant 0 : i32
    %c0_i32_0 = arith.constant 0 : i32
    %c0_i32_1 = arith.constant 0 : i32
    return %c0_i32, %c0_i32_0 : i32, i32
  }
  func.func @transform_17(%arg0: i32) -> (i32, i32, i32) {
    %c0_i32 = arith.constant 0 : i32
    %c0_i32_0 = arith.constant 0 : i32
    %c0_i32_1 = arith.constant 0 : i32
    return %arg0, %c0_i32, %c0_i32_0 : i32, i32, i32
  }
}

</mosaic_0001>

<llo_original>
// kernel: transformer_forward.1
$region0: #{transformer_forward.1}
  #allocation0 [shape = 'u32[]', space=smem, size = 0x4, offset = 0x4, fixed_abs, tag = 'smem constant byte address 0x4 - core index']
  #allocation1 [shape = 'u32[144,128]{1,0:T(1,128)}', space=vmem, size = 0x12000, scoped, tag = 'internal scratch']
  #allocation2 [shape = 'f32[1,1]{1,0:T(1,128)S(1)}', space=vmem, size = 0x200, scoped, tag = 'scoped memory for transformer_forward.1']
  %s0 = inlined_call_operand.vmem [shape: f32[2,8,8], index: 0, kind: input, shape index: {}]
  %s1 = inlined_call_operand.vmem [shape: bf16[8,64], index: 1, kind: input, shape index: {}]
  %s2 = inlined_call_operand.vmem [shape: f32[1,64], index: 2, kind: input, shape index: {}]
  %s3 = inlined_call_operand.vmem [shape: bf16[2,64,192], index: 3, kind: input, shape index: {}]
  %s4 = inlined_call_operand.vmem [shape: f32[2,1,192], index: 4, kind: input, shape index: {}]
  %s5 = inlined_call_operand.vmem [shape: bf16[2,64,64], index: 5, kind: input, shape index: {}]
  %s6 = inlined_call_operand.vmem [shape: f32[2,1,64], index: 6, kind: input, shape index: {}]
  %s7 = inlined_call_operand.vmem [shape: f32[2,1,64], index: 7, kind: input, shape index: {}]
  %s8 = inlined_call_operand.vmem [shape: f32[2,1,64], index: 8, kind: input, shape index: {}]
  %s9 = inlined_call_operand.vmem [shape: bf16[2,64,2048], index: 9, kind: input, shape index: {}]
  %s10 = inlined_call_operand.vmem [shape: f32[2,1,2048], index: 10, kind: input, shape index: {}]
  %s11 = inlined_call_operand.vmem [shape: bf16[2,2048,64], index: 11, kind: input, shape index: {}]
  %s12 = inlined_call_operand.vmem [shape: f32[2,1,64], index: 12, kind: input, shape index: {}]
  %s13 = inlined_call_operand.vmem [shape: f32[2,1,64], index: 13, kind: input, shape index: {}]
  %s14 = inlined_call_operand.vmem [shape: f32[2,1,64], index: 14, kind: input, shape index: {}]
  %s15 = inlined_call_operand.vmem [shape: f32[1,64], index: 15, kind: input, shape index: {}]
  %s16 = inlined_call_operand.<no memory space> [shape: f32[1,1], index: 16, kind: input, shape index: {}]
  %s17 = inlined_call_operand.hbm [shape: f32[2,1,8], index: 17, kind: output, shape index: {}]
  %s18 = sld [smem:[#allocation0]]
  $region101: #{transformer_forward.1} parent=0
    _
  %s20 = ssub.s32 1, %s18
  %s21 = scalar_select 0, %s20, %s18
  %v22 = vstv %s16
  %23 = vst [vmem:[#allocation2] sm:$0x1] %v22
  $region1: #{transformer_forward.1} parent=0
    #allocation3 [shape = 'u8[1024]{0}', space=vmem, size = 0x400, scoped, tag = 'output window, operand 0']
    #allocation4 [shape = 's32[2]{0}', space=sflag, size = 0x8, scoped, tag = 'scoped memory for transformer_forward.1']
    %24 = vsyncpa [#allocation4], 0
    %s25 = scalar_lea.sflag [#allocation4], 1
    %26 = vsyncpa %s25, 0
    loop: start=0, step=1, limit=4
    $region2: #{transformer_forward.1} parent=1 // loop_pre_header
      _
    $region3: #{transformer_forward.1} parent=1 // loop_header
      %s28 = sphi 0, %s32
      %p29 = scmp.ge.s32.totalorder %s28, 4
      %s38 = sphi 0, %s40
      %s41 = sphi 0, %s38
      %s42 = sphi 0, %s41
      %s58 = sphi 0, %s42
      %s62 = sphi 0, %s62
      %s64 = sphi 0, %s62
      %s65 = sphi 0, %s64
      %s79 = sphi 0, %s65
      %s83 = sphi 0, %s83
      %s85 = sphi 0, %s83
      %s86 = sphi 0, %s85
      %s100 = sphi 0, %s86
      %s104 = sphi 0, %s104
      %s106 = sphi 0, %s104
      %s107 = sphi 0, %s106
      %s121 = sphi 0, %s107
      %s125 = sphi 0, %s125
      %s127 = sphi 0, %s125
      %s128 = sphi 0, %s127
      %s142 = sphi 0, %s128
      %s146 = sphi 0, %s146
      %s148 = sphi 0, %s146
      %s149 = sphi 0, %s148
      %s163 = sphi 0, %s149
      %s167 = sphi 0, %s167
      %s169 = sphi 0, %s167
      %s170 = sphi 0, %s169
      %s184 = sphi 0, %s170
      %s188 = sphi 0, %s188
      %s190 = sphi 0, %s188
      %s191 = sphi 0, %s190
      %s205 = sphi 0, %s191
      %s209 = sphi 0, %s209
      %s211 = sphi 0, %s209
      %s212 = sphi 0, %s211
      %s226 = sphi 0, %s212
      %s230 = sphi 0, %s230
      %s232 = sphi 0, %s230
      %s233 = sphi 0, %s232
      %s247 = sphi 0, %s233
      %s251 = sphi 0, %s251
      %s253 = sphi 0, %s251
      %s254 = sphi 0, %s253
      %s268 = sphi 0, %s254
      %s272 = sphi 0, %s272
      %s274 = sphi 0, %s272
      %s275 = sphi 0, %s274
      %s289 = sphi 0, %s275
      %s293 = sphi 0, %s293
      %s295 = sphi 0, %s293
      %s296 = sphi 0, %s295
      %s310 = sphi 0, %s296
      %s314 = sphi 0, %s314
      %s316 = sphi 0, %s314
      %s317 = sphi 0, %s316
      %s331 = sphi 0, %s317
      %s335 = sphi 0, %s335
      %s337 = sphi 0, %s335
      %s338 = sphi 0, %s337
      %s352 = sphi 0, %s338
      %s356 = sphi 0, %s356
      %s358 = sphi 0, %s356
      %s359 = sphi 0, %s358
      %s373 = sphi 0, %s359
      %s377 = sphi 0, %s377
      %s379 = sphi 0, %s377
      %s380 = sphi 0, %s379
      %s394 = sphi 0, %s380
      %s400 = sphi 0, %s402
      %s403 = sphi 0, %s400
      %s404 = sphi 0, %s403
      %s420 = sphi 0, %s404
    $region4: #{transformer_forward.1} parent=1 // loop_header_branch
      %31 = sbr.rel (%p29) target = $region8
    $region5: #{transformer_forward.1} parent=1 // loop_body
      %s33 = ssub.s32 %s28, 1
      %s34 = ssub.s32 %s28, 2
      %s35 = sadd.s32 %s28, 1
      %s36 = ssub.s32 %s28, %s35
      %p37 = scmp.eq.s32.totalorder %s36, 0
      %s39 = sadd.s32 %s38, 1
      %s40 = scalar_select %p37, %s38, %s39
      %p43 = pneg %p37
      %p44 = scmp.eq.s32.totalorder %s28, 1
      %p45 = por %p43, %p44
      %p46 = scmp.ne.s32.totalorder %s38, %s41
      %p47 = scmp.eq.s32.totalorder %s28, 0
      %p48 = por %p46, %p47
      %p49 = scmp.ne.s32.totalorder %s38, %s41
      %p50 = scmp.eq.s32.totalorder %s33, 1
      %p51 = por %p49, %p50
      %p52 = scmp.ne.s32.totalorder %s41, %s42
      %p53 = scmp.eq.s32.totalorder %s33, 0
      %p54 = por %p52, %p53
      %p55 = scmp.ne.s32.totalorder %s41, %s42
      %p56 = scmp.eq.s32.totalorder %s34, 1
      %p57 = por %p55, %p56
      %p59 = scmp.ne.s32.totalorder %s42, %s58
      %p60 = scmp.eq.s32.totalorder %s34, 0
      %p61 = por %p59, %p60
      %s63 = sadd.s32 %s62, 1
      %p66 = scmp.eq.s32.totalorder %s28, 1
      %p67 = scmp.ne.s32.totalorder %s62, %s64
      %p68 = scmp.eq.s32.totalorder %s28, 0
      %p69 = por %p67, %p68
      %p70 = scmp.ne.s32.totalorder %s62, %s64
      %p71 = scmp.eq.s32.totalorder %s33, 1
      %p72 = por %p70, %p71
      %p73 = scmp.ne.s32.totalorder %s64, %s65
      %p74 = scmp.eq.s32.totalorder %s33, 0
      %p75 = por %p73, %p74
      %p76 = scmp.ne.s32.totalorder %s64, %s65
      %p77 = scmp.eq.s32.totalorder %s34, 1
      %p78 = por %p76, %p77
      %p80 = scmp.ne.s32.totalorder %s65, %s79
      %p81 = scmp.eq.s32.totalorder %s34, 0
      %p82 = por %p80, %p81
      %s84 = sadd.s32 %s83, 1
      %p87 = scmp.eq.s32.totalorder %s28, 1
      %p88 = scmp.ne.s32.totalorder %s83, %s85
      %p89 = scmp.eq.s32.totalorder %s28, 0
      %p90 = por %p88, %p89
      %p91 = scmp.ne.s32.totalorder %s83, %s85
      %p92 = scmp.eq.s32.totalorder %s33, 1
      %p93 = por %p91, %p92
      %p94 = scmp.ne.s32.totalorder %s85, %s86
      %p95 = scmp.eq.s32.totalorder %s33, 0
      %p96 = por %p94, %p95
      %p97 = scmp.ne.s32.totalorder %s85, %s86
      %p98 = scmp.eq.s32.totalorder %s34, 1
      %p99 = por %p97, %p98
      %p101 = scmp.ne.s32.totalorder %s86, %s100
      %p102 = scmp.eq.s32.totalorder %s34, 0
      %p103 = por %p101, %p102
      %s105 = sadd.s32 %s104, 1
      %p108 = scmp.eq.s32.totalorder %s28, 1
      %p109 = scmp.ne.s32.totalorder %s104, %s106
      %p110 = scmp.eq.s32.totalorder %s28, 0
      %p111 = por %p109, %p110
      %p112 = scmp.ne.s32.totalorder %s104, %s106
      %p113 = scmp.eq.s32.totalorder %s33, 1
      %p114 = por %p112, %p113
      %p115 = scmp.ne.s32.totalorder %s106, %s107
      %p116 = scmp.eq.s32.totalorder %s33, 0
      %p117 = por %p115, %p116
      %p118 = scmp.ne.s32.totalorder %s106, %s107
      %p119 = scmp.eq.s32.totalorder %s34, 1
      %p120 = por %p118, %p119
      %p122 = scmp.ne.s32.totalorder %s107, %s121
      %p123 = scmp.eq.s32.totalorder %s34, 0
      %p124 = por %p122, %p123
      %s126 = sadd.s32 %s125, 1
      %p129 = scmp.eq.s32.totalorder %s28, 1
      %p130 = scmp.ne.s32.totalorder %s125, %s127
      %p131 = scmp.eq.s32.totalorder %s28, 0
      %p132 = por %p130, %p131
      %p133 = scmp.ne.s32.totalorder %s125, %s127
      %p134 = scmp.eq.s32.totalorder %s33, 1
      %p135 = por %p133, %p134
      %p136 = scmp.ne.s32.totalorder %s127, %s128
      %p137 = scmp.eq.s32.totalorder %s33, 0
      %p138 = por %p136, %p137
      %p139 = scmp.ne.s32.totalorder %s127, %s128
      %p140 = scmp.eq.s32.totalorder %s34, 1
      %p141 = por %p139, %p140
      %p143 = scmp.ne.s32.totalorder %s128, %s142
      %p144 = scmp.eq.s32.totalorder %s34, 0
      %p145 = por %p143, %p144
      %s147 = sadd.s32 %s146, 1
      %p150 = scmp.eq.s32.totalorder %s28, 1
      %p151 = scmp.ne.s32.totalorder %s146, %s148
      %p152 = scmp.eq.s32.totalorder %s28, 0
      %p153 = por %p151, %p152
      %p154 = scmp.ne.s32.totalorder %s146, %s148
      %p155 = scmp.eq.s32.totalorder %s33, 1
      %p156 = por %p154, %p155
      %p157 = scmp.ne.s32.totalorder %s148, %s149
      %p158 = scmp.eq.s32.totalorder %s33, 0
      %p159 = por %p157, %p158
      %p160 = scmp.ne.s32.totalorder %s148, %s149
      %p161 = scmp.eq.s32.totalorder %s34, 1
      %p162 = por %p160, %p161
      %p164 = scmp.ne.s32.totalorder %s149, %s163
      %p165 = scmp.eq.s32.totalorder %s34, 0
      %p166 = por %p164, %p165
      %s168 = sadd.s32 %s167, 1
      %p171 = scmp.eq.s32.totalorder %s28, 1
      %p172 = scmp.ne.s32.totalorder %s167, %s169
      %p173 = scmp.eq.s32.totalorder %s28, 0
      %p174 = por %p172, %p173
      %p175 = scmp.ne.s32.totalorder %s167, %s169
      %p176 = scmp.eq.s32.totalorder %s33, 1
      %p177 = por %p175, %p176
      %p178 = scmp.ne.s32.totalorder %s169, %s170
      %p179 = scmp.eq.s32.totalorder %s33, 0
      %p180 = por %p178, %p179
      %p181 = scmp.ne.s32.totalorder %s169, %s170
      %p182 = scmp.eq.s32.totalorder %s34, 1
      %p183 = por %p181, %p182
      %p185 = scmp.ne.s32.totalorder %s170, %s184
      %p186 = scmp.eq.s32.totalorder %s34, 0
      %p187 = por %p185, %p186
      %s189 = sadd.s32 %s188, 1
      %p192 = scmp.eq.s32.totalorder %s28, 1
      %p193 = scmp.ne.s32.totalorder %s188, %s190
      %p194 = scmp.eq.s32.totalorder %s28, 0
      %p195 = por %p193, %p194
      %p196 = scmp.ne.s32.totalorder %s188, %s190
      %p197 = scmp.eq.s32.totalorder %s33, 1
      %p198 = por %p196, %p197
      %p199 = scmp.ne.s32.totalorder %s190, %s191
      %p200 = scmp.eq.s32.totalorder %s33, 0
      %p201 = por %p199, %p200
      %p202 = scmp.ne.s32.totalorder %s190, %s191
      %p203 = scmp.eq.s32.totalorder %s34, 1
      %p204 = por %p202, %p203
      %p206 = scmp.ne.s32.totalorder %s191, %s205
      %p207 = scmp.eq.s32.totalorder %s34, 0
      %p208 = por %p206, %p207
      %s210 = sadd.s32 %s209, 1
      %p213 = scmp.eq.s32.totalorder %s28, 1
      %p214 = scmp.ne.s32.totalorder %s209, %s211
      %p215 = scmp.eq.s32.totalorder %s28, 0
      %p216 = por %p214, %p215
      %p217 = scmp.ne.s32.totalorder %s209, %s211
      %p218 = scmp.eq.s32.totalorder %s33, 1
      %p219 = por %p217, %p218
      %p220 = scmp.ne.s32.totalorder %s211, %s212
      %p221 = scmp.eq.s32.totalorder %s33, 0
      %p222 = por %p220, %p221
      %p223 = scmp.ne.s32.totalorder %s211, %s212
      %p224 = scmp.eq.s32.totalorder %s34, 1
      %p225 = por %p223, %p224
      %p227 = scmp.ne.s32.totalorder %s212, %s226
      %p228 = scmp.eq.s32.totalorder %s34, 0
      %p229 = por %p227, %p228
      %s231 = sadd.s32 %s230, 1
      %p234 = scmp.eq.s32.totalorder %s28, 1
      %p235 = scmp.ne.s32.totalorder %s230, %s232
      %p236 = scmp.eq.s32.totalorder %s28, 0
      %p237 = por %p235, %p236
      %p238 = scmp.ne.s32.totalorder %s230, %s232
      %p239 = scmp.eq.s32.totalorder %s33, 1
      %p240 = por %p238, %p239
      %p241 = scmp.ne.s32.totalorder %s232, %s233
      %p242 = scmp.eq.s32.totalorder %s33, 0
      %p243 = por %p241, %p242
      %p244 = scmp.ne.s32.totalorder %s232, %s233
      %p245 = scmp.eq.s32.totalorder %s34, 1
      %p246 = por %p244, %p245
      %p248 = scmp.ne.s32.totalorder %s233, %s247
      %p249 = scmp.eq.s32.totalorder %s34, 0
      %p250 = por %p248, %p249
      %s252 = sadd.s32 %s251, 1
      %p255 = scmp.eq.s32.totalorder %s28, 1
      %p256 = scmp.ne.s32.totalorder %s251, %s253
      %p257 = scmp.eq.s32.totalorder %s28, 0
      %p258 = por %p256, %p257
      %p259 = scmp.ne.s32.totalorder %s251, %s253
      %p260 = scmp.eq.s32.totalorder %s33, 1
      %p261 = por %p259, %p260
      %p262 = scmp.ne.s32.totalorder %s253, %s254
      %p263 = scmp.eq.s32.totalorder %s33, 0
      %p264 = por %p262, %p263
      %p265 = scmp.ne.s32.totalorder %s253, %s254
      %p266 = scmp.eq.s32.totalorder %s34, 1
      %p267 = por %p265, %p266
      %p269 = scmp.ne.s32.totalorder %s254, %s268
      %p270 = scmp.eq.s32.totalorder %s34, 0
      %p271 = por %p269, %p270
      %s273 = sadd.s32 %s272, 1
      %p276 = scmp.eq.s32.totalorder %s28, 1
      %p277 = scmp.ne.s32.totalorder %s272, %s274
      %p278 = scmp.eq.s32.totalorder %s28, 0
      %p279 = por %p277, %p278
      %p280 = scmp.ne.s32.totalorder %s272, %s274
      %p281 = scmp.eq.s32.totalorder %s33, 1
      %p282 = por %p280, %p281
      %p283 = scmp.ne.s32.totalorder %s274, %s275
      %p284 = scmp.eq.s32.totalorder %s33, 0
      %p285 = por %p283, %p284
      %p286 = scmp.ne.s32.totalorder %s274, %s275
      %p287 = scmp.eq.s32.totalorder %s34, 1
      %p288 = por %p286, %p287
      %p290 = scmp.ne.s32.totalorder %s275, %s289
      %p291 = scmp.eq.s32.totalorder %s34, 0
      %p292 = por %p290, %p291
      %s294 = sadd.s32 %s293, 1
      %p297 = scmp.eq.s32.totalorder %s28, 1
      %p298 = scmp.ne.s32.totalorder %s293, %s295
      %p299 = scmp.eq.s32.totalorder %s28, 0
      %p300 = por %p298, %p299
      %p301 = scmp.ne.s32.totalorder %s293, %s295
      %p302 = scmp.eq.s32.totalorder %s33, 1
      %p303 = por %p301, %p302
      %p304 = scmp.ne.s32.totalorder %s295, %s296
      %p305 = scmp.eq.s32.totalorder %s33, 0
      %p306 = por %p304, %p305
      %p307 = scmp.ne.s32.totalorder %s295, %s296
      %p308 = scmp.eq.s32.totalorder %s34, 1
      %p309 = por %p307, %p308
      %p311 = scmp.ne.s32.totalorder %s296, %s310
      %p312 = scmp.eq.s32.totalorder %s34, 0
      %p313 = por %p311, %p312
      %s315 = sadd.s32 %s314, 1
      %p318 = scmp.eq.s32.totalorder %s28, 1
      %p319 = scmp.ne.s32.totalorder %s314, %s316
      %p320 = scmp.eq.s32.totalorder %s28, 0
      %p321 = por %p319, %p320
      %p322 = scmp.ne.s32.totalorder %s314, %s316
      %p323 = scmp.eq.s32.totalorder %s33, 1
      %p324 = por %p322, %p323
      %p325 = scmp.ne.s32.totalorder %s316, %s317
      %p326 = scmp.eq.s32.totalorder %s33, 0
      %p327 = por %p325, %p326
      %p328 = scmp.ne.s32.totalorder %s316, %s317
      %p329 = scmp.eq.s32.totalorder %s34, 1
      %p330 = por %p328, %p329
      %p332 = scmp.ne.s32.totalorder %s317, %s331
      %p333 = scmp.eq.s32.totalorder %s34, 0
      %p334 = por %p332, %p333
      %s336 = sadd.s32 %s335, 1
      %p339 = scmp.eq.s32.totalorder %s28, 1
      %p340 = scmp.ne.s32.totalorder %s335, %s337
      %p341 = scmp.eq.s32.totalorder %s28, 0
      %p342 = por %p340, %p341
      %p343 = scmp.ne.s32.totalorder %s335, %s337
      %p344 = scmp.eq.s32.totalorder %s33, 1
      %p345 = por %p343, %p344
      %p346 = scmp.ne.s32.totalorder %s337, %s338
      %p347 = scmp.eq.s32.totalorder %s33, 0
      %p348 = por %p346, %p347
      %p349 = scmp.ne.s32.totalorder %s337, %s338
      %p350 = scmp.eq.s32.totalorder %s34, 1
      %p351 = por %p349, %p350
      %p353 = scmp.ne.s32.totalorder %s338, %s352
      %p354 = scmp.eq.s32.totalorder %s34, 0
      %p355 = por %p353, %p354
      %s357 = sadd.s32 %s356, 1
      %p360 = scmp.eq.s32.totalorder %s28, 1
      %p361 = scmp.ne.s32.totalorder %s356, %s358
      %p362 = scmp.eq.s32.totalorder %s28, 0
      %p363 = por %p361, %p362
      %p364 = scmp.ne.s32.totalorder %s356, %s358
      %p365 = scmp.eq.s32.totalorder %s33, 1
      %p366 = por %p364, %p365
      %p367 = scmp.ne.s32.totalorder %s358, %s359
      %p368 = scmp.eq.s32.totalorder %s33, 0
      %p369 = por %p367, %p368
      %p370 = scmp.ne.s32.totalorder %s358, %s359
      %p371 = scmp.eq.s32.totalorder %s34, 1
      %p372 = por %p370, %p371
      %p374 = scmp.ne.s32.totalorder %s359, %s373
      %p375 = scmp.eq.s32.totalorder %s34, 0
      %p376 = por %p374, %p375
      %s378 = sadd.s32 %s377, 1
      %p381 = scmp.eq.s32.totalorder %s28, 1
      %p382 = scmp.ne.s32.totalorder %s377, %s379
      %p383 = scmp.eq.s32.totalorder %s28, 0
      %p384 = por %p382, %p383
      %p385 = scmp.ne.s32.totalorder %s377, %s379
      %p386 = scmp.eq.s32.totalorder %s33, 1
      %p387 = por %p385, %p386
      %p388 = scmp.ne.s32.totalorder %s379, %s380
      %p389 = scmp.eq.s32.totalorder %s33, 0
      %p390 = por %p388, %p389
      %p391 = scmp.ne.s32.totalorder %s379, %s380
      %p392 = scmp.eq.s32.totalorder %s34, 1
      %p393 = por %p391, %p392
      %p395 = scmp.ne.s32.totalorder %s380, %s394
      %p396 = scmp.eq.s32.totalorder %s34, 0
      %p397 = por %p395, %p396
      %s398 = ssub.s32 %s28, %s35
      %p399 = scmp.eq.s32.totalorder %s398, 0
      %s401 = sadd.s32 %s400, 1
      %s402 = scalar_select %p399, %s400, %s401
      %p405 = pneg %p399
      %p406 = scmp.eq.s32.totalorder %s28, 1
      %p407 = por %p405, %p406
      %p408 = scmp.ne.s32.totalorder %s400, %s403
      %p409 = scmp.eq.s32.totalorder %s28, 0
      %p410 = por %p408, %p409
      %p411 = scmp.ne.s32.totalorder %s400, %s403
      %p412 = scmp.eq.s32.totalorder %s33, 1
      %p413 = por %p411, %p412
      %p414 = scmp.ne.s32.totalorder %s403, %s404
      %p415 = scmp.eq.s32.totalorder %s33, 0
      %p416 = por %p414, %p415
      %p417 = scmp.ne.s32.totalorder %s403, %s404
      %p418 = scmp.eq.s32.totalorder %s34, 1
      %p419 = por %p417, %p418
      %p421 = scmp.ne.s32.totalorder %s404, %s420
      %p422 = scmp.eq.s32.totalorder %s34, 0
      %p423 = por %p421, %p422
      %p424 = scmp.le.s32.totalorder 1, %s28
      %p425 = scmp.lt.s32.totalorder %s28, 3
      %p426 = pnand %p424, %p425
      %p427 = pneg %p426
      // Predicated region
      $region9: #{transformer_forward.1} parent=5 // pred_check
        _
      $region10: #{transformer_forward.1} parent=5 // pred_check_branch
        %429 = sbr.rel (%p426) target = $region12
      $region11: #{transformer_forward.1} parent=5 // pred_region
        %s430 = ssub.s32 %s28, 1
        // Predicated region
        $region13: #{transformer_forward.1} parent=11 // pred_check
          %p431 = pneg %p75
        $region14: #{transformer_forward.1} parent=11 // pred_check_branch
          %433 = sbr.rel (%p431) target = $region16
        $region15: #{transformer_forward.1} parent=11 // pred_region
          _
        $region16: #{transformer_forward.1} parent=11 // pred_fallthru
          _
        // Predicated region
        $region17: #{transformer_forward.1} parent=11 // pred_check
          %p434 = pneg %p96
        $region18: #{transformer_forward.1} parent=11 // pred_check_branch
          %436 = sbr.rel (%p434) target = $region20
        $region19: #{transformer_forward.1} parent=11 // pred_region
          _
        $region20: #{transformer_forward.1} parent=11 // pred_fallthru
          _
        // Predicated region
        $region21: #{transformer_forward.1} parent=11 // pred_check
          %p437 = pneg %p117
        $region22: #{transformer_forward.1} parent=11 // pred_check_branch
          %439 = sbr.rel (%p437) target = $region24
        $region23: #{transformer_forward.1} parent=11 // pred_region
          _
        $region24: #{transformer_forward.1} parent=11 // pred_fallthru
          _
        // Predicated region
        $region25: #{transformer_forward.1} parent=11 // pred_check
          %p440 = pneg %p138
        $region26: #{transformer_forward.1} parent=11 // pred_check_branch
          %442 = sbr.rel (%p440) target = $region28
        $region27: #{transformer_forward.1} parent=11 // pred_region
          _
        $region28: #{transformer_forward.1} parent=11 // pred_fallthru
          _
        // Predicated region
        $region29: #{transformer_forward.1} parent=11 // pred_check
          %p443 = pneg %p159
        $region30: #{transformer_forward.1} parent=11 // pred_check_branch
          %445 = sbr.rel (%p443) target = $region32
        $region31: #{transformer_forward.1} parent=11 // pred_region
          _
        $region32: #{transformer_forward.1} parent=11 // pred_fallthru
          _
        // Predicated region
        $region33: #{transformer_forward.1} parent=11 // pred_check
          %p446 = pneg %p180
        $region34: #{transformer_forward.1} parent=11 // pred_check_branch
          %448 = sbr.rel (%p446) target = $region36
        $region35: #{transformer_forward.1} parent=11 // pred_region
          _
        $region36: #{transformer_forward.1} parent=11 // pred_fallthru
          _
        // Predicated region
        $region37: #{transformer_forward.1} parent=11 // pred_check
          %p449 = pneg %p201
        $region38: #{transformer_forward.1} parent=11 // pred_check_branch
          %451 = sbr.rel (%p449) target = $region40
        $region39: #{transformer_forward.1} parent=11 // pred_region
          _
        $region40: #{transformer_forward.1} parent=11 // pred_fallthru
          _
        // Predicated region
        $region41: #{transformer_forward.1} parent=11 // pred_check
          %p452 = pneg %p222
        $region42: #{transformer_forward.1} parent=11 // pred_check_branch
          %454 = sbr.rel (%p452) target = $region44
        $region43: #{transformer_forward.1} parent=11 // pred_region
          _
        $region44: #{transformer_forward.1} parent=11 // pred_fallthru
          _
        // Predicated region
        $region45: #{transformer_forward.1} parent=11 // pred_check
          %p455 = pneg %p243
        $region46: #{transformer_forward.1} parent=11 // pred_check_branch
          %457 = sbr.rel (%p455) target = $region48
        $region47: #{transformer_forward.1} parent=11 // pred_region
          _
        $region48: #{transformer_forward.1} parent=11 // pred_fallthru
          _
        // Predicated region
        $region49: #{transformer_forward.1} parent=11 // pred_check
          %p458 = pneg %p264
        $region50: #{transformer_forward.1} parent=11 // pred_check_branch
          %460 = sbr.rel (%p458) target = $region52
        $region51: #{transformer_forward.1} parent=11 // pred_region
          _
        $region52: #{transformer_forward.1} parent=11 // pred_fallthru
          _
        // Predicated region
        $region53: #{transformer_forward.1} parent=11 // pred_check
          %p461 = pneg %p285
        $region54: #{transformer_forward.1} parent=11 // pred_check_branch
          %463 = sbr.rel (%p461) target = $region56
        $region55: #{transformer_forward.1} parent=11 // pred_region
          _
        $region56: #{transformer_forward.1} parent=11 // pred_fallthru
          _
        // Predicated region
        $region57: #{transformer_forward.1} parent=11 // pred_check
          %p464 = pneg %p306
        $region58: #{transformer_forward.1} parent=11 // pred_check_branch
          %466 = sbr.rel (%p464) target = $region60
        $region59: #{transformer_forward.1} parent=11 // pred_region
          _
        $region60: #{transformer_forward.1} parent=11 // pred_fallthru
          _
        // Predicated region
        $region61: #{transformer_forward.1} parent=11 // pred_check
          %p467 = pneg %p327
        $region62: #{transformer_forward.1} parent=11 // pred_check_branch
          %469 = sbr.rel (%p467) target = $region64
        $region63: #{transformer_forward.1} parent=11 // pred_region
          _
        $region64: #{transformer_forward.1} parent=11 // pred_fallthru
          _
        // Predicated region
        $region65: #{transformer_forward.1} parent=11 // pred_check
          %p470 = pneg %p348
        $region66: #{transformer_forward.1} parent=11 // pred_check_branch
          %472 = sbr.rel (%p470) target = $region68
        $region67: #{transformer_forward.1} parent=11 // pred_region
          _
        $region68: #{transformer_forward.1} parent=11 // pred_fallthru
          _
        // Predicated region
        $region69: #{transformer_forward.1} parent=11 // pred_check
          %p473 = pneg %p369
        $region70: #{transformer_forward.1} parent=11 // pred_check_branch
          %475 = sbr.rel (%p473) target = $region72
        $region71: #{transformer_forward.1} parent=11 // pred_region
          _
        $region72: #{transformer_forward.1} parent=11 // pred_fallthru
          _
        // Predicated region
        $region73: #{transformer_forward.1} parent=11 // pred_check
          %p476 = pneg %p390
        $region74: #{transformer_forward.1} parent=11 // pred_check_branch
          %478 = sbr.rel (%p476) target = $region76
        $region75: #{transformer_forward.1} parent=11 // pred_region
          _
        $region76: #{transformer_forward.1} parent=11 // pred_fallthru
          _
      $region12: #{transformer_forward.1} parent=5 // pred_fallthru
        _
      %p479 = scmp.lt.s32.totalorder %s28, 2
      // Predicated region
      $region77: #{transformer_forward.1} parent=5 // pred_check
        %p480 = pneg %p479
      $region78: #{transformer_forward.1} parent=5 // pred_check_branch
        %482 = sbr.rel (%p480) target = $region80
      $region79: #{transformer_forward.1} parent=5 // pred_region
        // Predicated region
        $region81: #{transformer_forward.1} parent=79 // pred_check
          %p483 = pneg %p48
        $region82: #{transformer_forward.1} parent=79 // pred_check_branch
          %485 = sbr.rel (%p483) target = $region84
        $region83: #{transformer_forward.1} parent=79 // pred_region
          %p486 = scmp.lt.s32.totalorder %s28, 1
          %s487 = scalar_select %p486, %s28, 1
          %s488 = smul.addr %s487, 8
          %s489 = scalar_lea.vmem %s0, %s488
        $region84: #{transformer_forward.1} parent=79 // pred_fallthru
          _
      $region80: #{transformer_forward.1} parent=5 // pred_fallthru
        _
      %p490 = scmp.le.s32.totalorder 1, %s28
      %p491 = scmp.lt.s32.totalorder %s28, 3
      %p492 = pnand %p490, %p491
      %p493 = pneg %p492
      // Predicated region
      $region85: #{transformer_forward.1} parent=5 // pred_check
        _
      $region86: #{transformer_forward.1} parent=5 // pred_check_branch
        %495 = sbr.rel (%p492) target = $region88
      $region87: #{transformer_forward.1} parent=5 // pred_region
        %s496 = ssub.s32 %s28, 1
        %p497 = scmp.lt.s32.totalorder %s33, 1
        %s498 = scalar_select %p497, %s33, 1
        %s499 = smul.addr %s498, 8
        %s500 = scalar_lea.vmem %s0, %s499
        %p501 = pneg %p54
        %p502 = pneg %p51
        %p503 = pneg %p75
        %p504 = pneg %p72
        %p505 = pneg %p96
        %p506 = pneg %p93
        %p507 = pneg %p117
        %p508 = pneg %p114
        %p509 = pneg %p138
        %p510 = pneg %p135
        %p511 = pneg %p159
        %p512 = pneg %p156
        %p513 = pneg %p180
        %p514 = pneg %p177
        %p515 = pneg %p201
        %p516 = pneg %p198
        %p517 = pneg %p222
        %p518 = pneg %p219
        %p519 = pneg %p243
        %p520 = pneg %p240
        %p521 = pneg %p264
        %p522 = pneg %p261
        %p523 = pneg %p285
        %p524 = pneg %p282
        %p525 = pneg %p306
        %p526 = pneg %p303
        %p527 = pneg %p327
        %p528 = pneg %p324
        %p529 = pneg %p348
        %p530 = pneg %p345
        %p531 = pneg %p369
        %p532 = pneg %p366
        %p533 = pneg %p390
        %p534 = pneg %p387
        %p535 = pneg %p416
        %p536 = pneg %p413
        %s537 = sand.u32 %s403, 1
        %s538 = scalar_lea.sflag [#allocation4], %s537
        %s539 = sand.u32 %s403, 1
        %s540 = scalar_lea.vmem [#allocation3], %s539
        %p541 = scmp.lt.s32.totalorder %s33, 1
        %s542 = scalar_select %p541, %s33, 1
        %s543 = smul.addr %s542, 8
        %s544 = scalar_lea.vmem %s0, %s543
        %v546 = vld [vmem:[%s544] sm:$0xff]
        %v547 = vld [vmem:[%s1] sm:$0xf]
        %v548 = vpack.c.bf16 %v546, %v546
        %v549 = vld [vmem:[%s2] sm:$0x1]
        %v551 = vlaneseq
        %v552 = vshrl.u32 %v551, 7
        %v553 = vsub.s32 0, %v552
        %v554 = vrot.slane %v549, %v553
        %vm556 = vcmask 64512
        %v558 = vsel %vm556, %v548, 0
        %vm560 = vcmask 1043456
        %v562 = vsel %vm560, %v547, 0
        %564 = vmatprep.subr.bf16.mxu0 0
        %565 = vmatpush1.bf16.msra.mxu0 %v562
        %566 = vmatprep.subr.bf16.mxu0 0
        %567 = vmatpush1.bf16.msra.mxu0 0
        %568 = vmatprep.subr.bf16.mxu0 0
        %569 = vmatpush1.bf16.msra.mxu0 0
        %570 = vmatprep.subr.bf16.mxu0 0
        %571 = vmatpush1.bf16.msra.mxu0 0
        %572 = vmatprep.subr.bf16.mxu0 0
        %573 = vmatpush1.bf16.msra.mxu0 0
        %574 = vmatprep.subr.bf16.mxu0 0
        %575 = vmatpush1.bf16.msra.mxu0 0
        %576 = vmatprep.subr.bf16.mxu0 0
        %577 = vmatpush1.bf16.msra.mxu0 0
        %578 = vmatprep.subr.bf16.mxu0 0
        %579 = vmatpush1.bf16.msra.mxu0 0
        %580 = vmatprep.subr.bf16.mxu0 0
        %581 = vmatpush1.bf16.msra.mxu0 0
        %582 = vmatprep.subr.bf16.mxu0 0
        %583 = vmatpush1.bf16.msra.mxu0 0
        %584 = vmatprep.subr.bf16.mxu0 0
        %585 = vmatpush1.bf16.msra.mxu0 0
        %586 = vmatprep.subr.bf16.mxu0 0
        %587 = vmatpush1.bf16.msra.mxu0 0
        %588 = vmatprep.subr.bf16.mxu0 0
        %589 = vmatpush1.bf16.msra.mxu0 0
        %590 = vmatprep.subr.bf16.mxu0 0
        %591 = vmatpush1.bf16.msra.mxu0 0
        %592 = vmatprep.subr.bf16.mxu0 0
        %593 = vmatpush1.bf16.msra.mxu0 0
        %594 = vmatprep.subr.bf16.mxu0 0
        %595 = vmatpush1.bf16.msra.mxu0 0
        %596 = vmatprep.mubr.bf16.mxu0 0
        %597 = vmatmul.mubr.bf16.gmra.mrb[0].mxu0 %v558
        %v598 = vpop.f32.mrb[0].mxu0
        %v599 = vadd.f32 %v554, %v598
        %v600 = vpop.f32.mrb[0].mxu0
        %v601 = vpop.f32.mrb[0].mxu0
        %v602 = vpop.f32.mrb[0].mxu0
        %603 = vdwg.mxu0
        %v604 = vld [vmem:[%s3] sm:$0xff]
        %v605 = vld [vmem:[%s3 + $0x8] sm:$0xff]
        %v606 = vld [vmem:[%s3 + $0x10] sm:$0xff]
        %v607 = vld [vmem:[%s3 + $0x18] sm:$0xff]
        %v608 = vld [vmem:[%s3 + $0x20] sm:$0xff]
        %v609 = vld [vmem:[%s3 + $0x28] sm:$0xff]
        %v610 = vld [vmem:[%s3 + $0x30] sm:$0xff]
        %v611 = vld [vmem:[%s3 + $0x38] sm:$0xff]
        %v612 = vpack.c.bf16 %v599, %v599
        %v613 = vld [vmem:[%s4] sm:$0x3]
        %v615 = vlaneseq
        %v616 = vshrl.u32 %v615, 7
        %v617 = vsub.s32 0, %v616
        %v618 = vrot.slane %v613, %v617
        %v619 = vlaneseq
        %v620 = vshrl.u32 %v619, 7
        %v621 = vsub.s32 1, %v620
        %v622 = vrot.slane %v613, %v621
        %v633 = vunpack.c.l.b16 %v604
        %v634 = vunpack.c.h.b16 %v604
        %v635 = vunpack.c.l.b16 %v605
        %v636 = vunpack.c.h.b16 %v605
        %v637 = vunpack.c.l.b16 %v606
        %v638 = vunpack.c.h.b16 %v606
        %v639 = vunpack.c.l.b16 %v607
        %v640 = vunpack.c.h.b16 %v607
        %v641 = vunpack.c.l.b16 %v608
        %v642 = vunpack.c.h.b16 %v608
        %v643 = vunpack.c.l.b16 %v609
        %v644 = vunpack.c.h.b16 %v609
        %v645 = vunpack.c.l.b16 %v610
        %v646 = vunpack.c.h.b16 %v610
        %v647 = vunpack.c.l.b16 %v611
        %v648 = vunpack.c.h.b16 %v611
        %v649 = vpack.c.b16 %v635, %v633
        %v650 = vpack.c.b16 %v636, %v634
        %v651 = vpack.c.b16 %v639, %v637
        %v652 = vpack.c.b16 %v640, %v638
        %v653 = vpack.c.b16 %v643, %v641
        %v654 = vpack.c.b16 %v644, %v642
        %v655 = vpack.c.b16 %v647, %v645
        %v656 = vpack.c.b16 %v648, %v646
        %vm665 = vcmask 523264
        %v667 = vsel %vm665, %v612, 0
        %669 = vmatprep.subr.bf16.mxu0 %v650
        %670 = vmatpush1.bf16.msra.mxu0 %v649
        %671 = vmatprep.subr.bf16.mxu0 %v652
        %672 = vmatpush1.bf16.msra.mxu0 %v651
        %673 = vmatprep.subr.bf16.mxu0 %v654
        %674 = vmatpush1.bf16.msra.mxu0 %v653
        %675 = vmatprep.subr.bf16.mxu0 %v656
        %676 = vmatpush1.bf16.msra.mxu0 %v655
        %677 = vmatprep.subr.bf16.mxu0 0
        %678 = vmatpush1.bf16.msra.mxu0 0
        %679 = vmatprep.subr.bf16.mxu0 0
        %680 = vmatpush1.bf16.msra.mxu0 0
        %681 = vmatprep.subr.bf16.mxu0 0
        %682 = vmatpush1.bf16.msra.mxu0 0
        %683 = vmatprep.subr.bf16.mxu0 0
        %684 = vmatpush1.bf16.msra.mxu0 0
        %685 = vmatprep.subr.bf16.mxu0 0
        %686 = vmatpush1.bf16.msra.mxu0 0
        %687 = vmatprep.subr.bf16.mxu0 0
        %688 = vmatpush1.bf16.msra.mxu0 0
        %689 = vmatprep.subr.bf16.mxu0 0
        %690 = vmatpush1.bf16.msra.mxu0 0
        %691 = vmatprep.subr.bf16.mxu0 0
        %692 = vmatpush1.bf16.msra.mxu0 0
        %693 = vmatprep.subr.bf16.mxu0 0
        %694 = vmatpush1.bf16.msra.mxu0 0
        %695 = vmatprep.subr.bf16.mxu0 0
        %696 = vmatpush1.bf16.msra.mxu0 0
        %697 = vmatprep.subr.bf16.mxu0 0
        %698 = vmatpush1.bf16.msra.mxu0 0
        %699 = vmatprep.subr.bf16.mxu0 0
        %700 = vmatpush1.bf16.msra.mxu0 0
        %701 = vmatprep.mubr.bf16.mxu0 0
        %702 = vmatmul.mubr.bf16.gmra.mrb[0].mxu0 %v667
        %v703 = vpop.f32.mrb[0].mxu0
        %v704 = vadd.f32 %v618, %v703
        %v705 = vpop.f32.mrb[0].mxu0
        %v706 = vadd.f32 %v622, %v705
        %v707 = vpop.f32.mrb[0].mxu0
        %v708 = vpop.f32.mrb[0].mxu0
        %709 = vdwg.mxu0
        %v710 = vmul.f32 %v704, 0.25
        %v711 = vpack.c.bf16 %v710, %v710
        %713 = vrot.lane.b32.xlu0 %v711, 112
        %v714 = vpop.permute.xlu0 %713
        %715 = vrot.lane.b32.xlu0 %v711, 96
        %v716 = vpop.permute.xlu0 %715
        %717 = vrot.lane.b32.xlu0 %v711, 80
        %v718 = vpop.permute.xlu0 %717
        %v720 = vunpack.c.l.s4 1983009808
        %v721 = vunpack.c.0.s8 %v720
        %v722 = vlaneseq
        %v723 = vshrl.u32 %v722, 7
        %v724 = vsub.s32 %v721, %v723
        %v725 = vrot.slane %v711, %v724
        %v728 = vunpack.c.l.s4 1983009808
        %v729 = vunpack.c.0.s8 %v728
        %v730 = vlaneseq
        %v731 = vshrl.u32 %v730, 7
        %v732 = vsub.s32 %v729, %v731
        %v733 = vrot.slane %v716, %v732
        %v734 = vcombine.low %v725, %v733
        %v735 = vcombine.high %v725, %v733
        %v737 = vunpack.c.l.s4 1934713408
        %v738 = vunpack.c.0.s8 %v737
        %v739 = vlaneseq
        %v740 = vshrl.u32 %v739, 7
        %v741 = vsub.s32 %v738, %v740
        %v742 = vrot.slane %v734, %v741
        %v744 = vunpack.c.l.s4 1934713408
        %v745 = vunpack.c.0.s8 %v744
        %v746 = vlaneseq
        %v747 = vshrl.u32 %v746, 7
        %v748 = vsub.s32 %v745, %v747
        %v749 = vrot.slane %v735, %v748
        %v750 = vcombine.high %v742, 0
        %v751 = vcombine.high %v749, 0
        %v754 = vunpack.c.l.s4 1983009808
        %v755 = vunpack.c.0.s8 %v754
        %v756 = vlaneseq
        %v757 = vshrl.u32 %v756, 7
        %v758 = vsub.s32 %v755, %v757
        %v759 = vrot.slane %v714, %v758
        %v762 = vunpack.c.l.s4 1983009808
        %v763 = vunpack.c.0.s8 %v762
        %v764 = vlaneseq
        %v765 = vshrl.u32 %v764, 7
        %v766 = vsub.s32 %v763, %v765
        %v767 = vrot.slane %v718, %v766
        %v768 = vcombine.low %v759, %v767
        %v769 = vcombine.high %v759, %v767
        %v771 = vunpack.c.l.s4 1934713408
        %v772 = vunpack.c.0.s8 %v771
        %v773 = vlaneseq
        %v774 = vshrl.u32 %v773, 7
        %v775 = vsub.s32 %v772, %v774
        %v776 = vrot.slane %v768, %v775
        %v778 = vunpack.c.l.s4 1934713408
        %v779 = vunpack.c.0.s8 %v778
        %v780 = vlaneseq
        %v781 = vshrl.u32 %v780, 7
        %v782 = vsub.s32 %v779, %v781
        %v783 = vrot.slane %v769, %v782
        %v784 = vcombine.high %v776, 0
        %v785 = vcombine.high %v783, 0
        %v788 = vpack.i.b16 %v776, %v742
        %v790 = vshrl.u32 %v742, 16
        %v791 = vshrl.u32 %v776, 16
        %v792 = vpack.i.b16 %v791, %v790
        %v796 = vpack.i.b16 %v784, %v750
        %v798 = vshrl.u32 %v750, 16
        %v799 = vshrl.u32 %v784, 16
        %v800 = vpack.i.b16 %v799, %v798
        %v804 = vpack.i.b16 %v783, %v749
        %v806 = vshrl.u32 %v749, 16
        %v807 = vshrl.u32 %v783, 16
        %v808 = vpack.i.b16 %v807, %v806
        %v812 = vpack.i.b16 %v785, %v751
        %v814 = vshrl.u32 %v751, 16
        %v815 = vshrl.u32 %v785, 16
        %v816 = vpack.i.b16 %v815, %v814
        %v818 = vcombine.low %v788, %v804
        %v820 = vunpack.c.l.s4 1983009808
        %v821 = vunpack.c.0.s8 %v820
        %v822 = vlaneseq
        %v823 = vshrl.u32 %v822, 7
        %v824 = vsub.s32 %v821, %v823
        %v825 = vrot.slane %v818, %v824
        %v826 = vcombine.low %v796, %v812
        %v828 = vunpack.c.l.s4 1983009808
        %v829 = vunpack.c.0.s8 %v828
        %v830 = vlaneseq
        %v831 = vshrl.u32 %v830, 7
        %v832 = vsub.s32 %v829, %v831
        %v833 = vrot.slane %v826, %v832
        %v834 = vcombine.low %v825, %v833
        %v836 = vunpack.c.l.s4 1934713408
        %v837 = vunpack.c.0.s8 %v836
        %v838 = vlaneseq
        %v839 = vshrl.u32 %v838, 7
        %v840 = vsub.s32 %v837, %v839
        %v841 = vrot.slane %v834, %v840
        %v842 = vcombine.high %v841, 0
        %v843 = vcombine.low %v792, %v808
        %v845 = vunpack.c.l.s4 1983009808
        %v846 = vunpack.c.0.s8 %v845
        %v847 = vlaneseq
        %v848 = vshrl.u32 %v847, 7
        %v849 = vsub.s32 %v846, %v848
        %v850 = vrot.slane %v843, %v849
        %v851 = vcombine.low %v800, %v816
        %v853 = vunpack.c.l.s4 1983009808
        %v854 = vunpack.c.0.s8 %v853
        %v855 = vlaneseq
        %v856 = vshrl.u32 %v855, 7
        %v857 = vsub.s32 %v854, %v856
        %v858 = vrot.slane %v851, %v857
        %v859 = vcombine.low %v850, %v858
        %v861 = vunpack.c.l.s4 1934713408
        %v862 = vunpack.c.0.s8 %v861
        %v863 = vlaneseq
        %v864 = vshrl.u32 %v863, 7
        %v865 = vsub.s32 %v862, %v864
        %v866 = vrot.slane %v859, %v865
        %v867 = vcombine.high %v866, 0
        %v870 = vpack.i.b16 %v866, %v841
        %v871 = vshrl.u32 %v841, 16
        %v872 = vshrl.u32 %v866, 16
        %v873 = vpack.i.b16 %v872, %v871
        %v876 = vpack.i.b16 %v867, %v842
        %v877 = vshrl.u32 %v842, 16
        %v878 = vshrl.u32 %v867, 16
        %v879 = vpack.i.b16 %v878, %v877
        %v880 = vpack.c.bf16 %v704, %v704
        %882 = vrot.lane.b32.xlu0 %v880, 112
        %v883 = vpop.permute.xlu0 %882
        %884 = vrot.lane.b32.xlu0 %v880, 96
        %v885 = vpop.permute.xlu0 %884
        %886 = vrot.lane.b32.xlu0 %v880, 80
        %v887 = vpop.permute.xlu0 %886
        %888 = vrot.lane.b32.xlu0 %v880, 64
        %v889 = vpop.permute.xlu0 %888
        %890 = vrot.lane.b32.xlu0 %v883, 64
        %v891 = vpop.permute.xlu0 %890
        %892 = vrot.lane.b32.xlu0 %v885, 64
        %v893 = vpop.permute.xlu0 %892
        %894 = vrot.lane.b32.xlu0 %v887, 64
        %v895 = vpop.permute.xlu0 %894
        %v898 = vunpack.c.l.s4 1983009808
        %v899 = vunpack.c.0.s8 %v898
        %v900 = vlaneseq
        %v901 = vshrl.u32 %v900, 7
        %v902 = vsub.s32 %v899, %v901
        %v903 = vrot.slane %v889, %v902
        %v906 = vunpack.c.l.s4 1983009808
        %v907 = vunpack.c.0.s8 %v906
        %v908 = vlaneseq
        %v909 = vshrl.u32 %v908, 7
        %v910 = vsub.s32 %v907, %v909
        %v911 = vrot.slane %v893, %v910
        %v912 = vcombine.low %v903, %v911
        %v913 = vcombine.high %v903, %v911
        %v915 = vunpack.c.l.s4 1934713408
        %v916 = vunpack.c.0.s8 %v915
        %v917 = vlaneseq
        %v918 = vshrl.u32 %v917, 7
        %v919 = vsub.s32 %v916, %v918
        %v920 = vrot.slane %v912, %v919
        %v922 = vunpack.c.l.s4 1934713408
        %v923 = vunpack.c.0.s8 %v922
        %v924 = vlaneseq
        %v925 = vshrl.u32 %v924, 7
        %v926 = vsub.s32 %v923, %v925
        %v927 = vrot.slane %v913, %v926
        %v928 = vcombine.high %v920, 0
        %v929 = vcombine.high %v927, 0
        %v932 = vunpack.c.l.s4 1983009808
        %v933 = vunpack.c.0.s8 %v932
        %v934 = vlaneseq
        %v935 = vshrl.u32 %v934, 7
        %v936 = vsub.s32 %v933, %v935
        %v937 = vrot.slane %v891, %v936
        %v940 = vunpack.c.l.s4 1983009808
        %v941 = vunpack.c.0.s8 %v940
        %v942 = vlaneseq
        %v943 = vshrl.u32 %v942, 7
        %v944 = vsub.s32 %v941, %v943
        %v945 = vrot.slane %v895, %v944
        %v946 = vcombine.low %v937, %v945
        %v947 = vcombine.high %v937, %v945
        %v949 = vunpack.c.l.s4 1934713408
        %v950 = vunpack.c.0.s8 %v949
        %v951 = vlaneseq
        %v952 = vshrl.u32 %v951, 7
        %v953 = vsub.s32 %v950, %v952
        %v954 = vrot.slane %v946, %v953
        %v956 = vunpack.c.l.s4 1934713408
        %v957 = vunpack.c.0.s8 %v956
        %v958 = vlaneseq
        %v959 = vshrl.u32 %v958, 7
        %v960 = vsub.s32 %v957, %v959
        %v961 = vrot.slane %v947, %v960
        %v962 = vcombine.high %v954, 0
        %v963 = vcombine.high %v961, 0
        %v966 = vpack.i.b16 %v954, %v920
        %v968 = vshrl.u32 %v920, 16
        %v969 = vshrl.u32 %v954, 16
        %v970 = vpack.i.b16 %v969, %v968
        %v974 = vpack.i.b16 %v962, %v928
        %v976 = vshrl.u32 %v928, 16
        %v977 = vshrl.u32 %v962, 16
        %v978 = vpack.i.b16 %v977, %v976
        %v982 = vpack.i.b16 %v961, %v927
        %v984 = vshrl.u32 %v927, 16
        %v985 = vshrl.u32 %v961, 16
        %v986 = vpack.i.b16 %v985, %v984
        %v990 = vpack.i.b16 %v963, %v929
        %v992 = vshrl.u32 %v929, 16
        %v993 = vshrl.u32 %v963, 16
        %v994 = vpack.i.b16 %v993, %v992
        %v996 = vcombine.low %v966, %v982
        %v998 = vunpack.c.l.s4 1983009808
        %v999 = vunpack.c.0.s8 %v998
        %v1000 = vlaneseq
        %v1001 = vshrl.u32 %v1000, 7
        %v1002 = vsub.s32 %v999, %v1001
        %v1003 = vrot.slane %v996, %v1002
        %v1004 = vcombine.low %v974, %v990
        %v1006 = vunpack.c.l.s4 1983009808
        %v1007 = vunpack.c.0.s8 %v1006
        %v1008 = vlaneseq
        %v1009 = vshrl.u32 %v1008, 7
        %v1010 = vsub.s32 %v1007, %v1009
        %v1011 = vrot.slane %v1004, %v1010
        %v1012 = vcombine.low %v1003, %v1011
        %v1014 = vunpack.c.l.s4 1934713408
        %v1015 = vunpack.c.0.s8 %v1014
        %v1016 = vlaneseq
        %v1017 = vshrl.u32 %v1016, 7
        %v1018 = vsub.s32 %v1015, %v1017
        %v1019 = vrot.slane %v1012, %v1018
        %v1020 = vcombine.high %v1019, 0
        %v1021 = vcombine.low %v970, %v986
        %v1023 = vunpack.c.l.s4 1983009808
        %v1024 = vunpack.c.0.s8 %v1023
        %v1025 = vlaneseq
        %v1026 = vshrl.u32 %v1025, 7
        %v1027 = vsub.s32 %v1024, %v1026
        %v1028 = vrot.slane %v1021, %v1027
        %v1029 = vcombine.low %v978, %v994
        %v1031 = vunpack.c.l.s4 1983009808
        %v1032 = vunpack.c.0.s8 %v1031
        %v1033 = vlaneseq
        %v1034 = vshrl.u32 %v1033, 7
        %v1035 = vsub.s32 %v1032, %v1034
        %v1036 = vrot.slane %v1029, %v1035
        %v1037 = vcombine.low %v1028, %v1036
        %v1039 = vunpack.c.l.s4 1934713408
        %v1040 = vunpack.c.0.s8 %v1039
        %v1041 = vlaneseq
        %v1042 = vshrl.u32 %v1041, 7
        %v1043 = vsub.s32 %v1040, %v1042
        %v1044 = vrot.slane %v1037, %v1043
        %v1045 = vcombine.high %v1044, 0
        %v1048 = vpack.i.b16 %v1044, %v1019
        %v1049 = vshrl.u32 %v1019, 16
        %v1050 = vshrl.u32 %v1044, 16
        %v1051 = vpack.i.b16 %v1050, %v1049
        %v1054 = vpack.i.b16 %v1045, %v1020
        %v1055 = vshrl.u32 %v1020, 16
        %v1056 = vshrl.u32 %v1045, 16
        %v1057 = vpack.i.b16 %v1056, %v1055
        %v1058 = vpack.c.bf16 %v706, %v706
        %1060 = vrot.lane.b32.xlu0 %v1058, 112
        %v1061 = vpop.permute.xlu0 %1060
        %1062 = vrot.lane.b32.xlu0 %v1058, 96
        %v1063 = vpop.permute.xlu0 %1062
        %1064 = vrot.lane.b32.xlu0 %v1058, 80
        %v1065 = vpop.permute.xlu0 %1064
        %v1067 = vunpack.c.l.s4 1983009808
        %v1068 = vunpack.c.0.s8 %v1067
        %v1069 = vlaneseq
        %v1070 = vshrl.u32 %v1069, 7
        %v1071 = vsub.s32 %v1068, %v1070
        %v1072 = vrot.slane %v1058, %v1071
        %v1075 = vunpack.c.l.s4 1983009808
        %v1076 = vunpack.c.0.s8 %v1075
        %v1077 = vlaneseq
        %v1078 = vshrl.u32 %v1077, 7
        %v1079 = vsub.s32 %v1076, %v1078
        %v1080 = vrot.slane %v1063, %v1079
        %v1081 = vcombine.low %v1072, %v1080
        %v1082 = vcombine.high %v1072, %v1080
        %v1084 = vunpack.c.l.s4 1934713408
        %v1085 = vunpack.c.0.s8 %v1084
        %v1086 = vlaneseq
        %v1087 = vshrl.u32 %v1086, 7
        %v1088 = vsub.s32 %v1085, %v1087
        %v1089 = vrot.slane %v1081, %v1088
        %v1091 = vunpack.c.l.s4 1934713408
        %v1092 = vunpack.c.0.s8 %v1091
        %v1093 = vlaneseq
        %v1094 = vshrl.u32 %v1093, 7
        %v1095 = vsub.s32 %v1092, %v1094
        %v1096 = vrot.slane %v1082, %v1095
        %v1097 = vcombine.high %v1089, 0
        %v1098 = vcombine.high %v1096, 0
        %v1101 = vunpack.c.l.s4 1983009808
        %v1102 = vunpack.c.0.s8 %v1101
        %v1103 = vlaneseq
        %v1104 = vshrl.u32 %v1103, 7
        %v1105 = vsub.s32 %v1102, %v1104
        %v1106 = vrot.slane %v1061, %v1105
        %v1109 = vunpack.c.l.s4 1983009808
        %v1110 = vunpack.c.0.s8 %v1109
        %v1111 = vlaneseq
        %v1112 = vshrl.u32 %v1111, 7
        %v1113 = vsub.s32 %v1110, %v1112
        %v1114 = vrot.slane %v1065, %v1113
        %v1115 = vcombine.low %v1106, %v1114
        %v1116 = vcombine.high %v1106, %v1114
        %v1118 = vunpack.c.l.s4 1934713408
        %v1119 = vunpack.c.0.s8 %v1118
        %v1120 = vlaneseq
        %v1121 = vshrl.u32 %v1120, 7
        %v1122 = vsub.s32 %v1119, %v1121
        %v1123 = vrot.slane %v1115, %v1122
        %v1125 = vunpack.c.l.s4 1934713408
        %v1126 = vunpack.c.0.s8 %v1125
        %v1127 = vlaneseq
        %v1128 = vshrl.u32 %v1127, 7
        %v1129 = vsub.s32 %v1126, %v1128
        %v1130 = vrot.slane %v1116, %v1129
        %v1131 = vcombine.high %v1123, 0
        %v1132 = vcombine.high %v1130, 0
        %v1135 = vpack.i.b16 %v1123, %v1089
        %v1137 = vshrl.u32 %v1089, 16
        %v1138 = vshrl.u32 %v1123, 16
        %v1139 = vpack.i.b16 %v1138, %v1137
        %v1143 = vpack.i.b16 %v1131, %v1097
        %v1145 = vshrl.u32 %v1097, 16
        %v1146 = vshrl.u32 %v1131, 16
        %v1147 = vpack.i.b16 %v1146, %v1145
        %v1151 = vpack.i.b16 %v1130, %v1096
        %v1153 = vshrl.u32 %v1096, 16
        %v1154 = vshrl.u32 %v1130, 16
        %v1155 = vpack.i.b16 %v1154, %v1153
        %v1159 = vpack.i.b16 %v1132, %v1098
        %v1161 = vshrl.u32 %v1098, 16
        %v1162 = vshrl.u32 %v1132, 16
        %v1163 = vpack.i.b16 %v1162, %v1161
        %v1165 = vcombine.low %v1135, %v1151
        %v1167 = vunpack.c.l.s4 1983009808
        %v1168 = vunpack.c.0.s8 %v1167
        %v1169 = vlaneseq
        %v1170 = vshrl.u32 %v1169, 7
        %v1171 = vsub.s32 %v1168, %v1170
        %v1172 = vrot.slane %v1165, %v1171
        %v1173 = vcombine.low %v1143, %v1159
        %v1175 = vunpack.c.l.s4 1983009808
        %v1176 = vunpack.c.0.s8 %v1175
        %v1177 = vlaneseq
        %v1178 = vshrl.u32 %v1177, 7
        %v1179 = vsub.s32 %v1176, %v1178
        %v1180 = vrot.slane %v1173, %v1179
        %v1181 = vcombine.low %v1172, %v1180
        %v1183 = vunpack.c.l.s4 1934713408
        %v1184 = vunpack.c.0.s8 %v1183
        %v1185 = vlaneseq
        %v1186 = vshrl.u32 %v1185, 7
        %v1187 = vsub.s32 %v1184, %v1186
        %v1188 = vrot.slane %v1181, %v1187
        %v1189 = vcombine.high %v1188, 0
        %v1190 = vcombine.low %v1139, %v1155
        %v1192 = vunpack.c.l.s4 1983009808
        %v1193 = vunpack.c.0.s8 %v1192
        %v1194 = vlaneseq
        %v1195 = vshrl.u32 %v1194, 7
        %v1196 = vsub.s32 %v1193, %v1195
        %v1197 = vrot.slane %v1190, %v1196
        %v1198 = vcombine.low %v1147, %v1163
        %v1200 = vunpack.c.l.s4 1983009808
        %v1201 = vunpack.c.0.s8 %v1200
        %v1202 = vlaneseq
        %v1203 = vshrl.u32 %v1202, 7
        %v1204 = vsub.s32 %v1201, %v1203
        %v1205 = vrot.slane %v1198, %v1204
        %v1206 = vcombine.low %v1197, %v1205
        %v1208 = vunpack.c.l.s4 1934713408
        %v1209 = vunpack.c.0.s8 %v1208
        %v1210 = vlaneseq
        %v1211 = vshrl.u32 %v1210, 7
        %v1212 = vsub.s32 %v1209, %v1211
        %v1213 = vrot.slane %v1206, %v1212
        %v1214 = vcombine.high %v1213, 0
        %v1217 = vpack.i.b16 %v1213, %v1188
        %v1218 = vshrl.u32 %v1188, 16
        %v1219 = vshrl.u32 %v1213, 16
        %v1220 = vpack.i.b16 %v1219, %v1218
        %v1223 = vpack.i.b16 %v1214, %v1189
        %v1224 = vshrl.u32 %v1189, 16
        %v1225 = vshrl.u32 %v1214, 16
        %v1226 = vpack.i.b16 %v1225, %v1224
        %vm1227 = vcmask 130048
        %v1229 = vsel %vm1227, %v870, 0
        %v1232 = vsel %vm1227, %v1048, 0
        %1234 = vmatprep.subr.bf16.mxu0 0
        %1235 = vmatpush1.bf16.xpose.msra.mxu0 %v1232
        %1236 = vmatprep.subr.bf16.mxu0 0
        %1237 = vmatpush1.bf16.xpose.msra.mxu0 0
        %1238 = vmatprep.subr.bf16.mxu0 0
        %1239 = vmatpush1.bf16.xpose.msra.mxu0 0
        %1240 = vmatprep.subr.bf16.mxu0 0
        %1241 = vmatpush1.bf16.xpose.msra.mxu0 0
        %1242 = vmatprep.subr.bf16.mxu0 0
        %1243 = vmatpush1.bf16.xpose.msra.mxu0 0
        %1244 = vmatprep.subr.bf16.mxu0 0
        %1245 = vmatpush1.bf16.xpose.msra.mxu0 0
        %1246 = vmatprep.subr.bf16.mxu0 0
        %1247 = vmatpush1.bf16.xpose.msra.mxu0 0
        %1248 = vmatprep.subr.bf16.mxu0 0
        %1249 = vmatpush1.bf16.xpose.msra.mxu0 0
        %1250 = vmatprep.subr.bf16.mxu0 0
        %1251 = vmatpush1.bf16.xpose.msra.mxu0 0
        %1252 = vmatprep.subr.bf16.mxu0 0
        %1253 = vmatpush1.bf16.xpose.msra.mxu0 0
        %1254 = vmatprep.subr.bf16.mxu0 0
        %1255 = vmatpush1.bf16.xpose.msra.mxu0 0
        %1256 = vmatprep.subr.bf16.mxu0 0
        %1257 = vmatpush1.bf16.xpose.msra.mxu0 0
        %1258 = vmatprep.subr.bf16.mxu0 0
        %1259 = vmatpush1.bf16.xpose.msra.mxu0 0
        %1260 = vmatprep.subr.bf16.mxu0 0
        %1261 = vmatpush1.bf16.xpose.msra.mxu0 0
        %1262 = vmatprep.subr.bf16.mxu0 0
        %1263 = vmatpush1.bf16.xpose.msra.mxu0 0
        %1264 = vmatprep.subr.bf16.mxu0 0
        %1265 = vmatpush1.bf16.xpose.msra.mxu0 0
        %1266 = vmatprep.mubr.bf16.mxu0 0
        %1267 = vmatmul.mubr.bf16.gmra.mrb[0].mxu0 %v1229
        %v1268 = vpop.f32.mrb[0].mxu0
        %v1269 = vadd.f32 0.0, %v1268
        %v1270 = vpop.f32.mrb[0].mxu0
        %v1271 = vpop.f32.mrb[0].mxu0
        %v1272 = vpop.f32.mrb[0].mxu0
        %1273 = vdwg.mxu0
        %v1275 = vsel %vm1227, %v873, 0
        %v1278 = vsel %vm1227, %v1051, 0
        %1280 = vmatprep.subr.bf16.mxu0 0
        %1281 = vmatpush1.bf16.xpose.msra.mxu0 %v1278
        %1282 = vmatprep.subr.bf16.mxu0 0
        %1283 = vmatpush1.bf16.xpose.msra.mxu0 0
        %1284 = vmatprep.subr.bf16.mxu0 0
        %1285 = vmatpush1.bf16.xpose.msra.mxu0 0
        %1286 = vmatprep.subr.bf16.mxu0 0
        %1287 = vmatpush1.bf16.xpose.msra.mxu0 0
        %1288 = vmatprep.subr.bf16.mxu0 0
        %1289 = vmatpush1.bf16.xpose.msra.mxu0 0
        %1290 = vmatprep.subr.bf16.mxu0 0
        %1291 = vmatpush1.bf16.xpose.msra.mxu0 0
        %1292 = vmatprep.subr.bf16.mxu0 0
        %1293 = vmatpush1.bf16.xpose.msra.mxu0 0
        %1294 = vmatprep.subr.bf16.mxu0 0
        %1295 = vmatpush1.bf16.xpose.msra.mxu0 0
        %1296 = vmatprep.subr.bf16.mxu0 0
        %1297 = vmatpush1.bf16.xpose.msra.mxu0 0
        %1298 = vmatprep.subr.bf16.mxu0 0
        %1299 = vmatpush1.bf16.xpose.msra.mxu0 0
        %1300 = vmatprep.subr.bf16.mxu0 0
        %1301 = vmatpush1.bf16.xpose.msra.mxu0 0
        %1302 = vmatprep.subr.bf16.mxu0 0
        %1303 = vmatpush1.bf16.xpose.msra.mxu0 0
        %1304 = vmatprep.subr.bf16.mxu0 0
        %1305 = vmatpush1.bf16.xpose.msra.mxu0 0
        %1306 = vmatprep.subr.bf16.mxu0 0
        %1307 = vmatpush1.bf16.xpose.msra.mxu0 0
        %1308 = vmatprep.subr.bf16.mxu0 0
        %1309 = vmatpush1.bf16.xpose.msra.mxu0 0
        %1310 = vmatprep.subr.bf16.mxu0 0
        %1311 = vmatpush1.bf16.xpose.msra.mxu0 0
        %1312 = vmatprep.mubr.bf16.mxu0 0
        %1313 = vmatmul.mubr.bf16.gmra.mrb[0].mxu0 %v1275
        %v1314 = vpop.f32.mrb[0].mxu0
        %v1315 = vadd.f32 0.0, %v1314
        %v1316 = vpop.f32.mrb[0].mxu0
        %v1317 = vpop.f32.mrb[0].mxu0
        %v1318 = vpop.f32.mrb[0].mxu0
        %1319 = vdwg.mxu0
        %v1321 = vsel %vm1227, %v876, 0
        %v1324 = vsel %vm1227, %v1054, 0
        %1326 = vmatprep.subr.bf16.mxu0 0
        %1327 = vmatpush1.bf16.xpose.msra.mxu0 %v1324
        %1328 = vmatprep.subr.bf16.mxu0 0
        %1329 = vmatpush1.bf16.xpose.msra.mxu0 0
        %1330 = vmatprep.subr.bf16.mxu0 0
        %1331 = vmatpush1.bf16.xpose.msra.mxu0 0
        %1332 = vmatprep.subr.bf16.mxu0 0
        %1333 = vmatpush1.bf16.xpose.msra.mxu0 0
        %1334 = vmatprep.subr.bf16.mxu0 0
        %1335 = vmatpush1.bf16.xpose.msra.mxu0 0
        %1336 = vmatprep.subr.bf16.mxu0 0
        %1337 = vmatpush1.bf16.xpose.msra.mxu0 0
        %1338 = vmatprep.subr.bf16.mxu0 0
        %1339 = vmatpush1.bf16.xpose.msra.mxu0 0
        %1340 = vmatprep.subr.bf16.mxu0 0
        %1341 = vmatpush1.bf16.xpose.msra.mxu0 0
        %1342 = vmatprep.subr.bf16.mxu0 0
        %1343 = vmatpush1.bf16.xpose.msra.mxu0 0
        %1344 = vmatprep.subr.bf16.mxu0 0
        %1345 = vmatpush1.bf16.xpose.msra.mxu0 0
        %1346 = vmatprep.subr.bf16.mxu0 0
        %1347 = vmatpush1.bf16.xpose.msra.mxu0 0
        %1348 = vmatprep.subr.bf16.mxu0 0
        %1349 = vmatpush1.bf16.xpose.msra.mxu0 0
        %1350 = vmatprep.subr.bf16.mxu0 0
        %1351 = vmatpush1.bf16.xpose.msra.mxu0 0
        %1352 = vmatprep.subr.bf16.mxu0 0
        %1353 = vmatpush1.bf16.xpose.msra.mxu0 0
        %1354 = vmatprep.subr.bf16.mxu0 0
        %1355 = vmatpush1.bf16.xpose.msra.mxu0 0
        %1356 = vmatprep.subr.bf16.mxu0 0
        %1357 = vmatpush1.bf16.xpose.msra.mxu0 0
        %1358 = vmatprep.mubr.bf16.mxu0 0
        %1359 = vmatmul.mubr.bf16.gmra.mrb[0].mxu0 %v1321
        %v1360 = vpop.f32.mrb[0].mxu0
        %v1361 = vadd.f32 0.0, %v1360
        %v1362 = vpop.f32.mrb[0].mxu0
        %v1363 = vpop.f32.mrb[0].mxu0
        %v1364 = vpop.f32.mrb[0].mxu0
        %1365 = vdwg.mxu0
        %v1367 = vsel %vm1227, %v879, 0
        %v1370 = vsel %vm1227, %v1057, 0
        %1372 = vmatprep.subr.bf16.mxu0 0
        %1373 = vmatpush1.bf16.xpose.msra.mxu0 %v1370
        %1374 = vmatprep.subr.bf16.mxu0 0
        %1375 = vmatpush1.bf16.xpose.msra.mxu0 0
        %1376 = vmatprep.subr.bf16.mxu0 0
        %1377 = vmatpush1.bf16.xpose.msra.mxu0 0
        %1378 = vmatprep.subr.bf16.mxu0 0
        %1379 = vmatpush1.bf16.xpose.msra.mxu0 0
        %1380 = vmatprep.subr.bf16.mxu0 0
        %1381 = vmatpush1.bf16.xpose.msra.mxu0 0
        %1382 = vmatprep.subr.bf16.mxu0 0
        %1383 = vmatpush1.bf16.xpose.msra.mxu0 0
        %1384 = vmatprep.subr.bf16.mxu0 0
        %1385 = vmatpush1.bf16.xpose.msra.mxu0 0
        %1386 = vmatprep.subr.bf16.mxu0 0
        %1387 = vmatpush1.bf16.xpose.msra.mxu0 0
        %1388 = vmatprep.subr.bf16.mxu0 0
        %1389 = vmatpush1.bf16.xpose.msra.mxu0 0
        %1390 = vmatprep.subr.bf16.mxu0 0
        %1391 = vmatpush1.bf16.xpose.msra.mxu0 0
        %1392 = vmatprep.subr.bf16.mxu0 0
        %1393 = vmatpush1.bf16.xpose.msra.mxu0 0
        %1394 = vmatprep.subr.bf16.mxu0 0
        %1395 = vmatpush1.bf16.xpose.msra.mxu0 0
        %1396 = vmatprep.subr.bf16.mxu0 0
        %1397 = vmatpush1.bf16.xpose.msra.mxu0 0
        %1398 = vmatprep.subr.bf16.mxu0 0
        %1399 = vmatpush1.bf16.xpose.msra.mxu0 0
        %1400 = vmatprep.subr.bf16.mxu0 0
        %1401 = vmatpush1.bf16.xpose.msra.mxu0 0
        %1402 = vmatprep.subr.bf16.mxu0 0
        %1403 = vmatpush1.bf16.xpose.msra.mxu0 0
        %1404 = vmatprep.mubr.bf16.mxu0 0
        %1405 = vmatmul.mubr.bf16.gmra.mrb[0].mxu0 %v1367
        %v1406 = vpop.f32.mrb[0].mxu0
        %v1407 = vadd.f32 0.0, %v1406
        %v1408 = vpop.f32.mrb[0].mxu0
        %v1409 = vpop.f32.mrb[0].mxu0
        %v1410 = vpop.f32.mrb[0].mxu0
        %1411 = vdwg.mxu0
        %v1412 = vsel %vm556, %v1269, -inf
        %1413 = vmax.xlane.f32.xlu0 %v1412
        %v1414 = vpop.xlane.xlu0 %1413
        %v1415 = vsel %vm556, %v1315, -inf
        %1416 = vmax.xlane.f32.xlu0 %v1415
        %v1417 = vpop.xlane.xlu0 %1416
        %v1418 = vsel %vm556, %v1361, -inf
        %1419 = vmax.xlane.f32.xlu0 %v1418
        %v1420 = vpop.xlane.xlu0 %1419
        %v1421 = vsel %vm556, %v1407, -inf
        %1422 = vmax.xlane.f32.xlu0 %v1421
        %v1423 = vpop.xlane.xlu0 %1422
        %v1424 = vsub.f32 %v1269, %v1414
        %v1425 = vsub.f32 %v1315, %v1417
        %v1426 = vsub.f32 %v1361, %v1420
        %v1427 = vsub.f32 %v1407, %v1423
        %v1428 = vmul.f32 %v1424, 1.442695
        %v1429 = vpow.pop %v1428
        %v1430 = vmul.f32 %v1425, 1.442695
        %v1431 = vpow.pop %v1430
        %v1432 = vmul.f32 %v1426, 1.442695
        %v1433 = vpow.pop %v1432
        %v1434 = vmul.f32 %v1427, 1.442695
        %v1435 = vpow.pop %v1434
        %v1436 = vsel %vm556, %v1429, 0.0
        %1437 = vadd.xlane.f32.xlu0 %v1436
        %v1438 = vpop.xlane.xlu0 %1437
        %v1439 = vsel %vm556, %v1431, 0.0
        %1440 = vadd.xlane.f32.xlu0 %v1439
        %v1441 = vpop.xlane.xlu0 %1440
        %v1442 = vsel %vm556, %v1433, 0.0
        %1443 = vadd.xlane.f32.xlu0 %v1442
        %v1444 = vpop.xlane.xlu0 %1443
        %v1445 = vsel %vm556, %v1435, 0.0
        %1446 = vadd.xlane.f32.xlu0 %v1445
        %v1447 = vpop.xlane.xlu0 %1446
        %v1448 = vrcp.pop %v1438
        %v1449 = vrcp.pop %v1441
        %v1450 = vrcp.pop %v1444
        %v1451 = vrcp.pop %v1447
        %v1452 = vmul.f32 %v1429, %v1448
        %v1453 = vmul.f32 %v1431, %v1449
        %v1454 = vmul.f32 %v1433, %v1450
        %v1455 = vmul.f32 %v1435, %v1451
        %v1456 = vpack.c.bf16 %v1452, %v1452
        %v1457 = vpack.c.bf16 %v1453, %v1453
        %v1458 = vpack.c.bf16 %v1454, %v1454
        %v1459 = vpack.c.bf16 %v1455, %v1455
        %v1461 = vsel %vm556, %v1456, 0
        %v1464 = vsel %vm560, %v1217, 0
        %1466 = vmatprep.subr.bf16.mxu0 0
        %1467 = vmatpush1.bf16.msra.mxu0 %v1464
        %1468 = vmatprep.subr.bf16.mxu0 0
        %1469 = vmatpush1.bf16.msra.mxu0 0
        %1470 = vmatprep.subr.bf16.mxu0 0
        %1471 = vmatpush1.bf16.msra.mxu0 0
        %1472 = vmatprep.subr.bf16.mxu0 0
        %1473 = vmatpush1.bf16.msra.mxu0 0
        %1474 = vmatprep.subr.bf16.mxu0 0
        %1475 = vmatpush1.bf16.msra.mxu0 0
        %1476 = vmatprep.subr.bf16.mxu0 0
        %1477 = vmatpush1.bf16.msra.mxu0 0
        %1478 = vmatprep.subr.bf16.mxu0 0
        %1479 = vmatpush1.bf16.msra.mxu0 0
        %1480 = vmatprep.subr.bf16.mxu0 0
        %1481 = vmatpush1.bf16.msra.mxu0 0
        %1482 = vmatprep.subr.bf16.mxu0 0
        %1483 = vmatpush1.bf16.msra.mxu0 0
        %1484 = vmatprep.subr.bf16.mxu0 0
        %1485 = vmatpush1.bf16.msra.mxu0 0
        %1486 = vmatprep.subr.bf16.mxu0 0
        %1487 = vmatpush1.bf16.msra.mxu0 0
        %1488 = vmatprep.subr.bf16.mxu0 0
        %1489 = vmatpush1.bf16.msra.mxu0 0
        %1490 = vmatprep.subr.bf16.mxu0 0
        %1491 = vmatpush1.bf16.msra.mxu0 0
        %1492 = vmatprep.subr.bf16.mxu0 0
        %1493 = vmatpush1.bf16.msra.mxu0 0
        %1494 = vmatprep.subr.bf16.mxu0 0
        %1495 = vmatpush1.bf16.msra.mxu0 0
        %1496 = vmatprep.subr.bf16.mxu0 0
        %1497 = vmatpush1.bf16.msra.mxu0 0
        %1498 = vmatprep.mubr.bf16.mxu0 0
        %1499 = vmatmul.mubr.bf16.gmra.mrb[0].mxu0 %v1461
        %v1500 = vpop.f32.mrb[0].mxu0
        %v1501 = vadd.f32 0.0, %v1500
        %v1502 = vpop.f32.mrb[0].mxu0
        %v1503 = vpop.f32.mrb[0].mxu0
        %v1504 = vpop.f32.mrb[0].mxu0
        %1505 = vdwg.mxu0
        %v1507 = vsel %vm556, %v1457, 0
        %v1510 = vsel %vm560, %v1220, 0
        %1512 = vmatprep.subr.bf16.mxu0 0
        %1513 = vmatpush1.bf16.msra.mxu0 %v1510
        %1514 = vmatprep.subr.bf16.mxu0 0
        %1515 = vmatpush1.bf16.msra.mxu0 0
        %1516 = vmatprep.subr.bf16.mxu0 0
        %1517 = vmatpush1.bf16.msra.mxu0 0
        %1518 = vmatprep.subr.bf16.mxu0 0
        %1519 = vmatpush1.bf16.msra.mxu0 0
        %1520 = vmatprep.subr.bf16.mxu0 0
        %1521 = vmatpush1.bf16.msra.mxu0 0
        %1522 = vmatprep.subr.bf16.mxu0 0
        %1523 = vmatpush1.bf16.msra.mxu0 0
        %1524 = vmatprep.subr.bf16.mxu0 0
        %1525 = vmatpush1.bf16.msra.mxu0 0
        %1526 = vmatprep.subr.bf16.mxu0 0
        %1527 = vmatpush1.bf16.msra.mxu0 0
        %1528 = vmatprep.subr.bf16.mxu0 0
        %1529 = vmatpush1.bf16.msra.mxu0 0
        %1530 = vmatprep.subr.bf16.mxu0 0
        %1531 = vmatpush1.bf16.msra.mxu0 0
        %1532 = vmatprep.subr.bf16.mxu0 0
        %1533 = vmatpush1.bf16.msra.mxu0 0
        %1534 = vmatprep.subr.bf16.mxu0 0
        %1535 = vmatpush1.bf16.msra.mxu0 0
        %1536 = vmatprep.subr.bf16.mxu0 0
        %1537 = vmatpush1.bf16.msra.mxu0 0
        %1538 = vmatprep.subr.bf16.mxu0 0
        %1539 = vmatpush1.bf16.msra.mxu0 0
        %1540 = vmatprep.subr.bf16.mxu0 0
        %1541 = vmatpush1.bf16.msra.mxu0 0
        %1542 = vmatprep.subr.bf16.mxu0 0
        %1543 = vmatpush1.bf16.msra.mxu0 0
        %1544 = vmatprep.mubr.bf16.mxu0 0
        %1545 = vmatmul.mubr.bf16.gmra.mrb[0].mxu0 %v1507
        %v1546 = vpop.f32.mrb[0].mxu0
        %v1547 = vadd.f32 0.0, %v1546
        %v1548 = vpop.f32.mrb[0].mxu0
        %v1549 = vpop.f32.mrb[0].mxu0
        %v1550 = vpop.f32.mrb[0].mxu0
        %1551 = vdwg.mxu0
        %v1553 = vsel %vm556, %v1458, 0
        %v1556 = vsel %vm560, %v1223, 0
        %1558 = vmatprep.subr.bf16.mxu0 0
        %1559 = vmatpush1.bf16.msra.mxu0 %v1556
        %1560 = vmatprep.subr.bf16.mxu0 0
        %1561 = vmatpush1.bf16.msra.mxu0 0
        %1562 = vmatprep.subr.bf16.mxu0 0
        %1563 = vmatpush1.bf16.msra.mxu0 0
        %1564 = vmatprep.subr.bf16.mxu0 0
        %1565 = vmatpush1.bf16.msra.mxu0 0
        %1566 = vmatprep.subr.bf16.mxu0 0
        %1567 = vmatpush1.bf16.msra.mxu0 0
        %1568 = vmatprep.subr.bf16.mxu0 0
        %1569 = vmatpush1.bf16.msra.mxu0 0
        %1570 = vmatprep.subr.bf16.mxu0 0
        %1571 = vmatpush1.bf16.msra.mxu0 0
        %1572 = vmatprep.subr.bf16.mxu0 0
        %1573 = vmatpush1.bf16.msra.mxu0 0
        %1574 = vmatprep.subr.bf16.mxu0 0
        %1575 = vmatpush1.bf16.msra.mxu0 0
        %1576 = vmatprep.subr.bf16.mxu0 0
        %1577 = vmatpush1.bf16.msra.mxu0 0
        %1578 = vmatprep.subr.bf16.mxu0 0
        %1579 = vmatpush1.bf16.msra.mxu0 0
        %1580 = vmatprep.subr.bf16.mxu0 0
        %1581 = vmatpush1.bf16.msra.mxu0 0
        %1582 = vmatprep.subr.bf16.mxu0 0
        %1583 = vmatpush1.bf16.msra.mxu0 0
        %1584 = vmatprep.subr.bf16.mxu0 0
        %1585 = vmatpush1.bf16.msra.mxu0 0
        %1586 = vmatprep.subr.bf16.mxu0 0
        %1587 = vmatpush1.bf16.msra.mxu0 0
        %1588 = vmatprep.subr.bf16.mxu0 0
        %1589 = vmatpush1.bf16.msra.mxu0 0
        %1590 = vmatprep.mubr.bf16.mxu0 0
        %1591 = vmatmul.mubr.bf16.gmra.mrb[0].mxu0 %v1553
        %v1592 = vpop.f32.mrb[0].mxu0
        %v1593 = vadd.f32 0.0, %v1592
        %v1594 = vpop.f32.mrb[0].mxu0
        %v1595 = vpop.f32.mrb[0].mxu0
        %v1596 = vpop.f32.mrb[0].mxu0
        %1597 = vdwg.mxu0
        %v1599 = vsel %vm556, %v1459, 0
        %v1602 = vsel %vm560, %v1226, 0
        %1604 = vmatprep.subr.bf16.mxu0 0
        %1605 = vmatpush1.bf16.msra.mxu0 %v1602
        %1606 = vmatprep.subr.bf16.mxu0 0
        %1607 = vmatpush1.bf16.msra.mxu0 0
        %1608 = vmatprep.subr.bf16.mxu0 0
        %1609 = vmatpush1.bf16.msra.mxu0 0
        %1610 = vmatprep.subr.bf16.mxu0 0
        %1611 = vmatpush1.bf16.msra.mxu0 0
        %1612 = vmatprep.subr.bf16.mxu0 0
        %1613 = vmatpush1.bf16.msra.mxu0 0
        %1614 = vmatprep.subr.bf16.mxu0 0
        %1615 = vmatpush1.bf16.msra.mxu0 0
        %1616 = vmatprep.subr.bf16.mxu0 0
        %1617 = vmatpush1.bf16.msra.mxu0 0
        %1618 = vmatprep.subr.bf16.mxu0 0
        %1619 = vmatpush1.bf16.msra.mxu0 0
        %1620 = vmatprep.subr.bf16.mxu0 0
        %1621 = vmatpush1.bf16.msra.mxu0 0
        %1622 = vmatprep.subr.bf16.mxu0 0
        %1623 = vmatpush1.bf16.msra.mxu0 0
        %1624 = vmatprep.subr.bf16.mxu0 0
        %1625 = vmatpush1.bf16.msra.mxu0 0
        %1626 = vmatprep.subr.bf16.mxu0 0
        %1627 = vmatpush1.bf16.msra.mxu0 0
        %1628 = vmatprep.subr.bf16.mxu0 0
        %1629 = vmatpush1.bf16.msra.mxu0 0
        %1630 = vmatprep.subr.bf16.mxu0 0
        %1631 = vmatpush1.bf16.msra.mxu0 0
        %1632 = vmatprep.subr.bf16.mxu0 0
        %1633 = vmatpush1.bf16.msra.mxu0 0
        %1634 = vmatprep.subr.bf16.mxu0 0
        %1635 = vmatpush1.bf16.msra.mxu0 0
        %1636 = vmatprep.mubr.bf16.mxu0 0
        %1637 = vmatmul.mubr.bf16.gmra.mrb[0].mxu0 %v1599
        %v1638 = vpop.f32.mrb[0].mxu0
        %v1639 = vadd.f32 0.0, %v1638
        %v1640 = vpop.f32.mrb[0].mxu0
        %v1641 = vpop.f32.mrb[0].mxu0
        %v1642 = vpop.f32.mrb[0].mxu0
        %1643 = vdwg.mxu0
        %v1644 = vcombine.low %v1501, %v1593
        %v1645 = vcombine.high %v1501, %v1593
        %v1647 = vunpack.c.l.s4 1983009808
        %v1648 = vunpack.c.0.s8 %v1647
        %v1649 = vlaneseq
        %v1650 = vshrl.u32 %v1649, 7
        %v1651 = vsub.s32 %v1648, %v1650
        %v1652 = vrot.slane %v1644, %v1651
        %v1654 = vunpack.c.l.s4 1983009808
        %v1655 = vunpack.c.0.s8 %v1654
        %v1656 = vlaneseq
        %v1657 = vshrl.u32 %v1656, 7
        %v1658 = vsub.s32 %v1655, %v1657
        %v1659 = vrot.slane %v1645, %v1658
        %v1660 = vcombine.low %v1547, %v1639
        %v1661 = vcombine.high %v1547, %v1639
        %v1663 = vunpack.c.l.s4 1983009808
        %v1664 = vunpack.c.0.s8 %v1663
        %v1665 = vlaneseq
        %v1666 = vshrl.u32 %v1665, 7
        %v1667 = vsub.s32 %v1664, %v1666
        %v1668 = vrot.slane %v1660, %v1667
        %v1670 = vunpack.c.l.s4 1983009808
        %v1671 = vunpack.c.0.s8 %v1670
        %v1672 = vlaneseq
        %v1673 = vshrl.u32 %v1672, 7
        %v1674 = vsub.s32 %v1671, %v1673
        %v1675 = vrot.slane %v1661, %v1674
        %v1676 = vcombine.low %v1652, %v1668
        %v1677 = vcombine.high %v1652, %v1668
        %v1679 = vunpack.c.l.s4 1934713408
        %v1680 = vunpack.c.0.s8 %v1679
        %v1681 = vlaneseq
        %v1682 = vshrl.u32 %v1681, 7
        %v1683 = vsub.s32 %v1680, %v1682
        %v1684 = vrot.slane %v1676, %v1683
        %v1686 = vunpack.c.l.s4 1934713408
        %v1687 = vunpack.c.0.s8 %v1686
        %v1688 = vlaneseq
        %v1689 = vshrl.u32 %v1688, 7
        %v1690 = vsub.s32 %v1687, %v1689
        %v1691 = vrot.slane %v1677, %v1690
        %v1692 = vcombine.low %v1659, %v1675
        %v1693 = vcombine.high %v1659, %v1675
        %v1695 = vunpack.c.l.s4 1934713408
        %v1696 = vunpack.c.0.s8 %v1695
        %v1697 = vlaneseq
        %v1698 = vshrl.u32 %v1697, 7
        %v1699 = vsub.s32 %v1696, %v1698
        %v1700 = vrot.slane %v1692, %v1699
        %v1702 = vunpack.c.l.s4 1934713408
        %v1703 = vunpack.c.0.s8 %v1702
        %v1704 = vlaneseq
        %v1705 = vshrl.u32 %v1704, 7
        %v1706 = vsub.s32 %v1703, %v1705
        %v1707 = vrot.slane %v1693, %v1706
        %v1708 = vcombine.high %v1684, 0.0
        %v1709 = vcombine.high %v1691, 0.0
        %v1710 = vcombine.high %v1700, 0.0
        %v1711 = vcombine.high %v1707, 0.0
        %v1712 = vcombine.low %v1684, %v1691
        %v1714 = vunpack.c.l.s4 1983009808
        %v1715 = vunpack.c.0.s8 %v1714
        %v1716 = vlaneseq
        %v1717 = vshrl.u32 %v1716, 7
        %v1718 = vsub.s32 %v1715, %v1717
        %v1719 = vrot.slane %v1712, %v1718
        %v1720 = vcombine.low %v1708, %v1709
        %v1722 = vunpack.c.l.s4 1983009808
        %v1723 = vunpack.c.0.s8 %v1722
        %v1724 = vlaneseq
        %v1725 = vshrl.u32 %v1724, 7
        %v1726 = vsub.s32 %v1723, %v1725
        %v1727 = vrot.slane %v1720, %v1726
        %v1728 = vcombine.low %v1700, %v1707
        %v1730 = vunpack.c.l.s4 1983009808
        %v1731 = vunpack.c.0.s8 %v1730
        %v1732 = vlaneseq
        %v1733 = vshrl.u32 %v1732, 7
        %v1734 = vsub.s32 %v1731, %v1733
        %v1735 = vrot.slane %v1728, %v1734
        %v1736 = vcombine.low %v1710, %v1711
        %v1738 = vunpack.c.l.s4 1983009808
        %v1739 = vunpack.c.0.s8 %v1738
        %v1740 = vlaneseq
        %v1741 = vshrl.u32 %v1740, 7
        %v1742 = vsub.s32 %v1739, %v1741
        %v1743 = vrot.slane %v1736, %v1742
        %v1744 = vcombine.low %v1719, %v1727
        %v1745 = vcombine.high %v1719, %v1727
        %v1747 = vunpack.c.l.s4 1934713408
        %v1748 = vunpack.c.0.s8 %v1747
        %v1749 = vlaneseq
        %v1750 = vshrl.u32 %v1749, 7
        %v1751 = vsub.s32 %v1748, %v1750
        %v1752 = vrot.slane %v1744, %v1751
        %v1754 = vunpack.c.l.s4 1934713408
        %v1755 = vunpack.c.0.s8 %v1754
        %v1756 = vlaneseq
        %v1757 = vshrl.u32 %v1756, 7
        %v1758 = vsub.s32 %v1755, %v1757
        %v1759 = vrot.slane %v1745, %v1758
        %v1760 = vcombine.low %v1735, %v1743
        %v1761 = vcombine.high %v1735, %v1743
        %v1763 = vunpack.c.l.s4 1934713408
        %v1764 = vunpack.c.0.s8 %v1763
        %v1765 = vlaneseq
        %v1766 = vshrl.u32 %v1765, 7
        %v1767 = vsub.s32 %v1764, %v1766
        %v1768 = vrot.slane %v1760, %v1767
        %v1770 = vunpack.c.l.s4 1934713408
        %v1771 = vunpack.c.0.s8 %v1770
        %v1772 = vlaneseq
        %v1773 = vshrl.u32 %v1772, 7
        %v1774 = vsub.s32 %v1771, %v1773
        %v1775 = vrot.slane %v1761, %v1774
        %v1776 = vcombine.low %v1752, %v1768
        %v1777 = vcombine.high %v1752, %v1768
        %v1778 = vcombine.low %v1759, %v1775
        %v1779 = vcombine.high %v1759, %v1775
        %1781 = vrot.lane.b32.xlu0 %v1777, 16
        %v1782 = vpop.permute.xlu0 %1781
        %1785 = vrot.lane.b32.xlu0 %v1778, 32
        %v1786 = vpop.permute.xlu0 %1785
        %1789 = vrot.lane.b32.xlu0 %v1779, 48
        %v1790 = vpop.permute.xlu0 %1789
        %v1792 = vsel %vm1227, %v1776, %v1782
        %vm1793 = vcmask 261120
        %v1794 = vsel %vm1793, %v1792, %v1786
        %vm1795 = vcmask 392192
        %v1796 = vsel %vm1795, %v1794, %v1790
        %v1797 = vld [vmem:[%s5] sm:$0xf]
        %v1798 = vld [vmem:[%s5 + $0x4] sm:$0xf]
        %v1799 = vld [vmem:[%s5 + $0x8] sm:$0xf]
        %v1800 = vld [vmem:[%s5 + $0xc] sm:$0xf]
        %v1801 = vld [vmem:[%s5 + $0x10] sm:$0xf]
        %v1802 = vld [vmem:[%s5 + $0x14] sm:$0xf]
        %v1803 = vld [vmem:[%s5 + $0x18] sm:$0xf]
        %v1804 = vld [vmem:[%s5 + $0x1c] sm:$0xf]
        %v1805 = vpack.c.bf16 %v1796, %v1796
        %v1806 = vld [vmem:[%s6] sm:$0x1]
        %v1808 = vlaneseq
        %v1809 = vshrl.u32 %v1808, 7
        %v1810 = vsub.s32 0, %v1809
        %v1811 = vrot.slane %v1806, %v1810
        %v1821 = vunpack.c.l.b16 %v1797
        %v1822 = vunpack.c.l.b16 %v1798
        %v1823 = vunpack.c.l.b16 %v1799
        %v1824 = vunpack.c.l.b16 %v1800
        %v1825 = vunpack.c.l.b16 %v1801
        %v1826 = vunpack.c.l.b16 %v1802
        %v1827 = vunpack.c.l.b16 %v1803
        %v1828 = vunpack.c.l.b16 %v1804
        %v1829 = vpack.c.b16 %v1822, %v1821
        %v1830 = vpack.c.b16 %v1824, %v1823
        %v1831 = vpack.c.b16 %v1826, %v1825
        %v1832 = vpack.c.b16 %v1828, %v1827
        %v1838 = vsel %vm665, %v1805, 0
        %1840 = vmatprep.subr.bf16.mxu0 0
        %1841 = vmatpush1.bf16.msra.mxu0 %v1829
        %1842 = vmatprep.subr.bf16.mxu0 0
        %1843 = vmatpush1.bf16.msra.mxu0 %v1830
        %1844 = vmatprep.subr.bf16.mxu0 0
        %1845 = vmatpush1.bf16.msra.mxu0 %v1831
        %1846 = vmatprep.subr.bf16.mxu0 0
        %1847 = vmatpush1.bf16.msra.mxu0 %v1832
        %1848 = vmatprep.subr.bf16.mxu0 0
        %1849 = vmatpush1.bf16.msra.mxu0 0
        %1850 = vmatprep.subr.bf16.mxu0 0
        %1851 = vmatpush1.bf16.msra.mxu0 0
        %1852 = vmatprep.subr.bf16.mxu0 0
        %1853 = vmatpush1.bf16.msra.mxu0 0
        %1854 = vmatprep.subr.bf16.mxu0 0
        %1855 = vmatpush1.bf16.msra.mxu0 0
        %1856 = vmatprep.subr.bf16.mxu0 0
        %1857 = vmatpush1.bf16.msra.mxu0 0
        %1858 = vmatprep.subr.bf16.mxu0 0
        %1859 = vmatpush1.bf16.msra.mxu0 0
        %1860 = vmatprep.subr.bf16.mxu0 0
        %1861 = vmatpush1.bf16.msra.mxu0 0
        %1862 = vmatprep.subr.bf16.mxu0 0
        %1863 = vmatpush1.bf16.msra.mxu0 0
        %1864 = vmatprep.subr.bf16.mxu0 0
        %1865 = vmatpush1.bf16.msra.mxu0 0
        %1866 = vmatprep.subr.bf16.mxu0 0
        %1867 = vmatpush1.bf16.msra.mxu0 0
        %1868 = vmatprep.subr.bf16.mxu0 0
        %1869 = vmatpush1.bf16.msra.mxu0 0
        %1870 = vmatprep.subr.bf16.mxu0 0
        %1871 = vmatpush1.bf16.msra.mxu0 0
        %1872 = vmatprep.mubr.bf16.mxu0 0
        %1873 = vmatmul.mubr.bf16.gmra.mrb[0].mxu0 %v1838
        %v1874 = vpop.f32.mrb[0].mxu0
        %v1875 = vadd.f32 %v1811, %v1874
        %v1876 = vpop.f32.mrb[0].mxu0
        %v1877 = vpop.f32.mrb[0].mxu0
        %v1878 = vpop.f32.mrb[0].mxu0
        %1879 = vdwg.mxu0
        %v1880 = vadd.f32 %v599, %v1875
        %v1881 = vld [vmem:[%s7] sm:$0x1]
        %v1882 = vld [vmem:[%s8] sm:$0x1]
        %v1883 = vsel %vm665, %v1880, 0.0
        %1884 = vadd.xlane.f32.xlu0 %v1883
        %v1885 = vpop.xlane.xlu0 %1884
        %v1886 = vrcp.pop 64.0
        %v1887 = vmul.f32 %v1885, %v1886
        %v1888 = vsub.f32 %v1880, %v1887
        %v1889 = vmul.f32 %v1888, %v1888
        %v1890 = vsel %vm665, %v1889, 0.0
        %1891 = vadd.xlane.f32.xlu0 %v1890
        %v1892 = vpop.xlane.xlu0 %1891
        %v1893 = vmul.f32 %v1892, %v1886
        %v1894 = vadd.f32 %v1893, 1e-05
        %v1895 = vrsqrt.pop %v1894
        %v1896 = vmul.f32 %v1888, %v1895
        %v1898 = vlaneseq
        %v1899 = vshrl.u32 %v1898, 7
        %v1900 = vsub.s32 0, %v1899
        %v1901 = vrot.slane %v1881, %v1900
        %v1903 = vmul.f32 %v1896, %v1901
        %v1905 = vlaneseq
        %v1906 = vshrl.u32 %v1905, 7
        %v1907 = vsub.s32 0, %v1906
        %v1908 = vrot.slane %v1882, %v1907
        %v1910 = vadd.f32 %v1903, %v1908
        %v1911 = vld [vmem:[%s9] sm:$0xff]
        %v1912 = vld [vmem:[%s9 + $0x8] sm:$0xff]
        %v1913 = vld [vmem:[%s9 + $0x10] sm:$0xff]
        %v1914 = vld [vmem:[%s9 + $0x18] sm:$0xff]
        %v1915 = vld [vmem:[%s9 + $0x20] sm:$0xff]
        %v1916 = vld [vmem:[%s9 + $0x28] sm:$0xff]
        %v1917 = vld [vmem:[%s9 + $0x30] sm:$0xff]
        %v1918 = vld [vmem:[%s9 + $0x38] sm:$0xff]
        %v1919 = vld [vmem:[%s9 + $0x40] sm:$0xff]
        %v1920 = vld [vmem:[%s9 + $0x48] sm:$0xff]
        %v1921 = vld [vmem:[%s9 + $0x50] sm:$0xff]
        %v1922 = vld [vmem:[%s9 + $0x58] sm:$0xff]
        %v1923 = vld [vmem:[%s9 + $0x60] sm:$0xff]
        %v1924 = vld [vmem:[%s9 + $0x68] sm:$0xff]
        %v1925 = vld [vmem:[%s9 + $0x70] sm:$0xff]
        %v1926 = vld [vmem:[%s9 + $0x78] sm:$0xff]
        %v1927 = vld [vmem:[%s9 + $0x80] sm:$0xff]
        %v1928 = vld [vmem:[%s9 + $0x88] sm:$0xff]
        %v1929 = vld [vmem:[%s9 + $0x90] sm:$0xff]
        %v1930 = vld [vmem:[%s9 + $0x98] sm:$0xff]
        %v1931 = vld [vmem:[%s9 + $0xa0] sm:$0xff]
        %v1932 = vld [vmem:[%s9 + $0xa8] sm:$0xff]
        %v1933 = vld [vmem:[%s9 + $0xb0] sm:$0xff]
        %v1934 = vld [vmem:[%s9 + $0xb8] sm:$0xff]
        %v1935 = vld [vmem:[%s9 + $0xc0] sm:$0xff]
        %v1936 = vld [vmem:[%s9 + $0xc8] sm:$0xff]
        %v1937 = vld [vmem:[%s9 + $0xd0] sm:$0xff]
        %v1938 = vld [vmem:[%s9 + $0xd8] sm:$0xff]
        %v1939 = vld [vmem:[%s9 + $0xe0] sm:$0xff]
        %v1940 = vld [vmem:[%s9 + $0xe8] sm:$0xff]
        %v1941 = vld [vmem:[%s9 + $0xf0] sm:$0xff]
        %v1942 = vld [vmem:[%s9 + $0xf8] sm:$0xff]
        %v1943 = vld [vmem:[%s9 + $0x100] sm:$0xff]
        %v1944 = vld [vmem:[%s9 + $0x108] sm:$0xff]
        %v1945 = vld [vmem:[%s9 + $0x110] sm:$0xff]
        %v1946 = vld [vmem:[%s9 + $0x118] sm:$0xff]
        %v1947 = vld [vmem:[%s9 + $0x120] sm:$0xff]
        %v1948 = vld [vmem:[%s9 + $0x128] sm:$0xff]
        %v1949 = vld [vmem:[%s9 + $0x130] sm:$0xff]
        %v1950 = vld [vmem:[%s9 + $0x138] sm:$0xff]
        %v1951 = vld [vmem:[%s9 + $0x140] sm:$0xff]
        %v1952 = vld [vmem:[%s9 + $0x148] sm:$0xff]
        %v1953 = vld [vmem:[%s9 + $0x150] sm:$0xff]
        %v1954 = vld [vmem:[%s9 + $0x158] sm:$0xff]
        %v1955 = vld [vmem:[%s9 + $0x160] sm:$0xff]
        %v1956 = vld [vmem:[%s9 + $0x168] sm:$0xff]
        %v1957 = vld [vmem:[%s9 + $0x170] sm:$0xff]
        %v1958 = vld [vmem:[%s9 + $0x178] sm:$0xff]
        %v1959 = vld [vmem:[%s9 + $0x180] sm:$0xff]
        %v1960 = vld [vmem:[%s9 + $0x188] sm:$0xff]
        %v1961 = vld [vmem:[%s9 + $0x190] sm:$0xff]
        %v1962 = vld [vmem:[%s9 + $0x198] sm:$0xff]
        %v1963 = vld [vmem:[%s9 + $0x1a0] sm:$0xff]
        %v1964 = vld [vmem:[%s9 + $0x1a8] sm:$0xff]
        %v1965 = vld [vmem:[%s9 + $0x1b0] sm:$0xff]
        %v1966 = vld [vmem:[%s9 + $0x1b8] sm:$0xff]
        %v1967 = vld [vmem:[%s9 + $0x1c0] sm:$0xff]
        %v1968 = vld [vmem:[%s9 + $0x1c8] sm:$0xff]
        %v1969 = vld [vmem:[%s9 + $0x1d0] sm:$0xff]
        %v1970 = vld [vmem:[%s9 + $0x1d8] sm:$0xff]
        %v1971 = vld [vmem:[%s9 + $0x1e0] sm:$0xff]
        %v1972 = vld [vmem:[%s9 + $0x1e8] sm:$0xff]
        %v1973 = vld [vmem:[%s9 + $0x1f0] sm:$0xff]
        %v1974 = vld [vmem:[%s9 + $0x1f8] sm:$0xff]
        %v1975 = vld [vmem:[%s10] sm:$0xff]
        %v1976 = vld [vmem:[%s10 + $0x8] sm:$0xff]
        %v1977 = vld [vmem:[%s11] sm:$0xf]
        %v1978 = vld [vmem:[%s11 + $0x4] sm:$0xf]
        %v1979 = vld [vmem:[%s11 + $0x8] sm:$0xf]
        %v1980 = vld [vmem:[%s11 + $0xc] sm:$0xf]
        %v1981 = vld [vmem:[%s11 + $0x10] sm:$0xf]
        %v1982 = vld [vmem:[%s11 + $0x14] sm:$0xf]
        %v1983 = vld [vmem:[%s11 + $0x18] sm:$0xf]
        %v1984 = vld [vmem:[%s11 + $0x1c] sm:$0xf]
        %v1985 = vld [vmem:[%s11 + $0x20] sm:$0xf]
        %v1986 = vld [vmem:[%s11 + $0x24] sm:$0xf]
        %v1987 = vld [vmem:[%s11 + $0x28] sm:$0xf]
        %v1988 = vld [vmem:[%s11 + $0x2c] sm:$0xf]
        %v1989 = vld [vmem:[%s11 + $0x30] sm:$0xf]
        %v1990 = vld [vmem:[%s11 + $0x34] sm:$0xf]
        %v1991 = vld [vmem:[%s11 + $0x38] sm:$0xf]
        %v1992 = vld [vmem:[%s11 + $0x3c] sm:$0xf]
        %v1993 = vld [vmem:[%s11 + $0x40] sm:$0xf]
        %v1994 = vld [vmem:[%s11 + $0x44] sm:$0xf]
        %v1995 = vld [vmem:[%s11 + $0x48] sm:$0xf]
        %v1996 = vld [vmem:[%s11 + $0x4c] sm:$0xf]
        %v1997 = vld [vmem:[%s11 + $0x50] sm:$0xf]
        %v1998 = vld [vmem:[%s11 + $0x54] sm:$0xf]
        %v1999 = vld [vmem:[%s11 + $0x58] sm:$0xf]
        %v2000 = vld [vmem:[%s11 + $0x5c] sm:$0xf]
        %v2001 = vld [vmem:[%s11 + $0x60] sm:$0xf]
        %v2002 = vld [vmem:[%s11 + $0x64] sm:$0xf]
        %v2003 = vld [vmem:[%s11 + $0x68] sm:$0xf]
        %v2004 = vld [vmem:[%s11 + $0x6c] sm:$0xf]
        %v2005 = vld [vmem:[%s11 + $0x70] sm:$0xf]
        %v2006 = vld [vmem:[%s11 + $0x74] sm:$0xf]
        %v2007 = vld [vmem:[%s11 + $0x78] sm:$0xf]
        %v2008 = vld [vmem:[%s11 + $0x7c] sm:$0xf]
        %v2009 = vld [vmem:[%s11 + $0x80] sm:$0xf]
        %v2010 = vld [vmem:[%s11 + $0x84] sm:$0xf]
        %v2011 = vld [vmem:[%s11 + $0x88] sm:$0xf]
        %v2012 = vld [vmem:[%s11 + $0x8c] sm:$0xf]
        %v2013 = vld [vmem:[%s11 + $0x90] sm:$0xf]
        %v2014 = vld [vmem:[%s11 + $0x94] sm:$0xf]
        %v2015 = vld [vmem:[%s11 + $0x98] sm:$0xf]
        %v2016 = vld [vmem:[%s11 + $0x9c] sm:$0xf]
        %v2017 = vld [vmem:[%s11 + $0xa0] sm:$0xf]
        %v2018 = vld [vmem:[%s11 + $0xa4] sm:$0xf]
        %v2019 = vld [vmem:[%s11 + $0xa8] sm:$0xf]
        %v2020 = vld [vmem:[%s11 + $0xac] sm:$0xf]
        %v2021 = vld [vmem:[%s11 + $0xb0] sm:$0xf]
        %v2022 = vld [vmem:[%s11 + $0xb4] sm:$0xf]
        %v2023 = vld [vmem:[%s11 + $0xb8] sm:$0xf]
        %v2024 = vld [vmem:[%s11 + $0xbc] sm:$0xf]
        %v2025 = vld [vmem:[%s11 + $0xc0] sm:$0xf]
        %v2026 = vld [vmem:[%s11 + $0xc4] sm:$0xf]
        %v2027 = vld [vmem:[%s11 + $0xc8] sm:$0xf]
        %v2028 = vld [vmem:[%s11 + $0xcc] sm:$0xf]
        %v2029 = vld [vmem:[%s11 + $0xd0] sm:$0xf]
        %v2030 = vld [vmem:[%s11 + $0xd4] sm:$0xf]
        %v2031 = vld [vmem:[%s11 + $0xd8] sm:$0xf]
        %v2032 = vld [vmem:[%s11 + $0xdc] sm:$0xf]
        %v2033 = vld [vmem:[%s11 + $0xe0] sm:$0xf]
        %v2034 = vld [vmem:[%s11 + $0xe4] sm:$0xf]
        %v2035 = vld [vmem:[%s11 + $0xe8] sm:$0xf]
        %v2036 = vld [vmem:[%s11 + $0xec] sm:$0xf]
        %v2037 = vld [vmem:[%s11 + $0xf0] sm:$0xf]
        %v2038 = vld [vmem:[%s11 + $0xf4] sm:$0xf]
        %v2039 = vld [vmem:[%s11 + $0xf8] sm:$0xf]
        %v2040 = vld [vmem:[%s11 + $0xfc] sm:$0xf]
        %v2041 = vld [vmem:[%s11 + $0x100] sm:$0xf]
        %v2042 = vld [vmem:[%s11 + $0x104] sm:$0xf]
        %v2043 = vld [vmem:[%s11 + $0x108] sm:$0xf]
        %v2044 = vld [vmem:[%s11 + $0x10c] sm:$0xf]
        %v2045 = vld [vmem:[%s11 + $0x110] sm:$0xf]
        %v2046 = vld [vmem:[%s11 + $0x114] sm:$0xf]
        %v2047 = vld [vmem:[%s11 + $0x118] sm:$0xf]
        %v2048 = vld [vmem:[%s11 + $0x11c] sm:$0xf]
        %v2049 = vld [vmem:[%s11 + $0x120] sm:$0xf]
        %v2050 = vld [vmem:[%s11 + $0x124] sm:$0xf]
        %v2051 = vld [vmem:[%s11 + $0x128] sm:$0xf]
        %v2052 = vld [vmem:[%s11 + $0x12c] sm:$0xf]
        %v2053 = vld [vmem:[%s11 + $0x130] sm:$0xf]
        %v2054 = vld [vmem:[%s11 + $0x134] sm:$0xf]
        %v2055 = vld [vmem:[%s11 + $0x138] sm:$0xf]
        %v2056 = vld [vmem:[%s11 + $0x13c] sm:$0xf]
        %v2057 = vld [vmem:[%s11 + $0x140] sm:$0xf]
        %v2058 = vld [vmem:[%s11 + $0x144] sm:$0xf]
        %v2059 = vld [vmem:[%s11 + $0x148] sm:$0xf]
        %v2060 = vld [vmem:[%s11 + $0x14c] sm:$0xf]
        %v2061 = vld [vmem:[%s11 + $0x150] sm:$0xf]
        %v2062 = vld [vmem:[%s11 + $0x154] sm:$0xf]
        %v2063 = vld [vmem:[%s11 + $0x158] sm:$0xf]
        %v2064 = vld [vmem:[%s11 + $0x15c] sm:$0xf]
        %v2065 = vld [vmem:[%s11 + $0x160] sm:$0xf]
        %v2066 = vld [vmem:[%s11 + $0x164] sm:$0xf]
        %v2067 = vld [vmem:[%s11 + $0x168] sm:$0xf]
        %v2068 = vld [vmem:[%s11 + $0x16c] sm:$0xf]
        %v2069 = vld [vmem:[%s11 + $0x170] sm:$0xf]
        %v2070 = vld [vmem:[%s11 + $0x174] sm:$0xf]
        %v2071 = vld [vmem:[%s11 + $0x178] sm:$0xf]
        %v2072 = vld [vmem:[%s11 + $0x17c] sm:$0xf]
        %v2073 = vld [vmem:[%s11 + $0x180] sm:$0xf]
        %v2074 = vld [vmem:[%s11 + $0x184] sm:$0xf]
        %v2075 = vld [vmem:[%s11 + $0x188] sm:$0xf]
        %v2076 = vld [vmem:[%s11 + $0x18c] sm:$0xf]
        %v2077 = vld [vmem:[%s11 + $0x190] sm:$0xf]
        %v2078 = vld [vmem:[%s11 + $0x194] sm:$0xf]
        %v2079 = vld [vmem:[%s11 + $0x198] sm:$0xf]
        %v2080 = vld [vmem:[%s11 + $0x19c] sm:$0xf]
        %v2081 = vld [vmem:[%s11 + $0x1a0] sm:$0xf]
        %v2082 = vld [vmem:[%s11 + $0x1a4] sm:$0xf]
        %v2083 = vld [vmem:[%s11 + $0x1a8] sm:$0xf]
        %v2084 = vld [vmem:[%s11 + $0x1ac] sm:$0xf]
        %v2085 = vld [vmem:[%s11 + $0x1b0] sm:$0xf]
        %v2086 = vld [vmem:[%s11 + $0x1b4] sm:$0xf]
        %v2087 = vld [vmem:[%s11 + $0x1b8] sm:$0xf]
        %v2088 = vld [vmem:[%s11 + $0x1bc] sm:$0xf]
        %v2089 = vld [vmem:[%s11 + $0x1c0] sm:$0xf]
        %v2090 = vld [vmem:[%s11 + $0x1c4] sm:$0xf]
        %v2091 = vld [vmem:[%s11 + $0x1c8] sm:$0xf]
        %v2092 = vld [vmem:[%s11 + $0x1cc] sm:$0xf]
        %v2093 = vld [vmem:[%s11 + $0x1d0] sm:$0xf]
        %v2094 = vld [vmem:[%s11 + $0x1d4] sm:$0xf]
        %v2095 = vld [vmem:[%s11 + $0x1d8] sm:$0xf]
        %v2096 = vld [vmem:[%s11 + $0x1dc] sm:$0xf]
        %v2097 = vld [vmem:[%s11 + $0x1e0] sm:$0xf]
        %v2098 = vld [vmem:[%s11 + $0x1e4] sm:$0xf]
        %v2099 = vld [vmem:[%s11 + $0x1e8] sm:$0xf]
        %v2100 = vld [vmem:[%s11 + $0x1ec] sm:$0xf]
        %v2101 = vld [vmem:[%s11 + $0x1f0] sm:$0xf]
        %v2102 = vld [vmem:[%s11 + $0x1f4] sm:$0xf]
        %v2103 = vld [vmem:[%s11 + $0x1f8] sm:$0xf]
        %v2104 = vld [vmem:[%s11 + $0x1fc] sm:$0xf]
        %v2105 = vld [vmem:[%s11 + $0x200] sm:$0xf]
        %v2106 = vld [vmem:[%s11 + $0x204] sm:$0xf]
        %v2107 = vld [vmem:[%s11 + $0x208] sm:$0xf]
        %v2108 = vld [vmem:[%s11 + $0x20c] sm:$0xf]
        %v2109 = vld [vmem:[%s11 + $0x210] sm:$0xf]
        %v2110 = vld [vmem:[%s11 + $0x214] sm:$0xf]
        %v2111 = vld [vmem:[%s11 + $0x218] sm:$0xf]
        %v2112 = vld [vmem:[%s11 + $0x21c] sm:$0xf]
        %v2113 = vld [vmem:[%s11 + $0x220] sm:$0xf]
        %v2114 = vld [vmem:[%s11 + $0x224] sm:$0xf]
        %v2115 = vld [vmem:[%s11 + $0x228] sm:$0xf]
        %v2116 = vld [vmem:[%s11 + $0x22c] sm:$0xf]
        %v2117 = vld [vmem:[%s11 + $0x230] sm:$0xf]
        %v2118 = vld [vmem:[%s11 + $0x234] sm:$0xf]
        %v2119 = vld [vmem:[%s11 + $0x238] sm:$0xf]
        %v2120 = vld [vmem:[%s11 + $0x23c] sm:$0xf]
        %v2121 = vld [vmem:[%s11 + $0x240] sm:$0xf]
        %v2122 = vld [vmem:[%s11 + $0x244] sm:$0xf]
        %v2123 = vld [vmem:[%s11 + $0x248] sm:$0xf]
        %v2124 = vld [vmem:[%s11 + $0x24c] sm:$0xf]
        %v2125 = vld [vmem:[%s11 + $0x250] sm:$0xf]
        %v2126 = vld [vmem:[%s11 + $0x254] sm:$0xf]
        %v2127 = vld [vmem:[%s11 + $0x258] sm:$0xf]
        %v2128 = vld [vmem:[%s11 + $0x25c] sm:$0xf]
        %v2129 = vld [vmem:[%s11 + $0x260] sm:$0xf]
        %v2130 = vld [vmem:[%s11 + $0x264] sm:$0xf]
        %v2131 = vld [vmem:[%s11 + $0x268] sm:$0xf]
        %v2132 = vld [vmem:[%s11 + $0x26c] sm:$0xf]
        %v2133 = vld [vmem:[%s11 + $0x270] sm:$0xf]
        %v2134 = vld [vmem:[%s11 + $0x274] sm:$0xf]
        %v2135 = vld [vmem:[%s11 + $0x278] sm:$0xf]
        %v2136 = vld [vmem:[%s11 + $0x27c] sm:$0xf]
        %v2137 = vld [vmem:[%s11 + $0x280] sm:$0xf]
        %v2138 = vld [vmem:[%s11 + $0x284] sm:$0xf]
        %v2139 = vld [vmem:[%s11 + $0x288] sm:$0xf]
        %v2140 = vld [vmem:[%s11 + $0x28c] sm:$0xf]
        %v2141 = vld [vmem:[%s11 + $0x290] sm:$0xf]
        %v2142 = vld [vmem:[%s11 + $0x294] sm:$0xf]
        %v2143 = vld [vmem:[%s11 + $0x298] sm:$0xf]
        %v2144 = vld [vmem:[%s11 + $0x29c] sm:$0xf]
        %v2145 = vld [vmem:[%s11 + $0x2a0] sm:$0xf]
        %v2146 = vld [vmem:[%s11 + $0x2a4] sm:$0xf]
        %v2147 = vld [vmem:[%s11 + $0x2a8] sm:$0xf]
        %v2148 = vld [vmem:[%s11 + $0x2ac] sm:$0xf]
        %v2149 = vld [vmem:[%s11 + $0x2b0] sm:$0xf]
        %v2150 = vld [vmem:[%s11 + $0x2b4] sm:$0xf]
        %v2151 = vld [vmem:[%s11 + $0x2b8] sm:$0xf]
        %v2152 = vld [vmem:[%s11 + $0x2bc] sm:$0xf]
        %v2153 = vld [vmem:[%s11 + $0x2c0] sm:$0xf]
        %v2154 = vld [vmem:[%s11 + $0x2c4] sm:$0xf]
        %v2155 = vld [vmem:[%s11 + $0x2c8] sm:$0xf]
        %v2156 = vld [vmem:[%s11 + $0x2cc] sm:$0xf]
        %v2157 = vld [vmem:[%s11 + $0x2d0] sm:$0xf]
        %v2158 = vld [vmem:[%s11 + $0x2d4] sm:$0xf]
        %v2159 = vld [vmem:[%s11 + $0x2d8] sm:$0xf]
        %v2160 = vld [vmem:[%s11 + $0x2dc] sm:$0xf]
        %v2161 = vld [vmem:[%s11 + $0x2e0] sm:$0xf]
        %v2162 = vld [vmem:[%s11 + $0x2e4] sm:$0xf]
        %v2163 = vld [vmem:[%s11 + $0x2e8] sm:$0xf]
        %v2164 = vld [vmem:[%s11 + $0x2ec] sm:$0xf]
        %v2165 = vld [vmem:[%s11 + $0x2f0] sm:$0xf]
        %v2166 = vld [vmem:[%s11 + $0x2f4] sm:$0xf]
        %v2167 = vld [vmem:[%s11 + $0x2f8] sm:$0xf]
        %v2168 = vld [vmem:[%s11 + $0x2fc] sm:$0xf]
        %v2169 = vld [vmem:[%s11 + $0x300] sm:$0xf]
        %v2170 = vld [vmem:[%s11 + $0x304] sm:$0xf]
        %v2171 = vld [vmem:[%s11 + $0x308] sm:$0xf]
        %v2172 = vld [vmem:[%s11 + $0x30c] sm:$0xf]
        %v2173 = vld [vmem:[%s11 + $0x310] sm:$0xf]
        %v2174 = vld [vmem:[%s11 + $0x314] sm:$0xf]
        %v2175 = vld [vmem:[%s11 + $0x318] sm:$0xf]
        %v2176 = vld [vmem:[%s11 + $0x31c] sm:$0xf]
        %v2177 = vld [vmem:[%s11 + $0x320] sm:$0xf]
        %v2178 = vld [vmem:[%s11 + $0x324] sm:$0xf]
        %v2179 = vld [vmem:[%s11 + $0x328] sm:$0xf]
        %v2180 = vld [vmem:[%s11 + $0x32c] sm:$0xf]
        %v2181 = vld [vmem:[%s11 + $0x330] sm:$0xf]
        %v2182 = vld [vmem:[%s11 + $0x334] sm:$0xf]
        %v2183 = vld [vmem:[%s11 + $0x338] sm:$0xf]
        %v2184 = vld [vmem:[%s11 + $0x33c] sm:$0xf]
        %v2185 = vld [vmem:[%s11 + $0x340] sm:$0xf]
        %v2186 = vld [vmem:[%s11 + $0x344] sm:$0xf]
        %v2187 = vld [vmem:[%s11 + $0x348] sm:$0xf]
        %v2188 = vld [vmem:[%s11 + $0x34c] sm:$0xf]
        %v2189 = vld [vmem:[%s11 + $0x350] sm:$0xf]
        %v2190 = vld [vmem:[%s11 + $0x354] sm:$0xf]
        %v2191 = vld [vmem:[%s11 + $0x358] sm:$0xf]
        %v2192 = vld [vmem:[%s11 + $0x35c] sm:$0xf]
        %v2193 = vld [vmem:[%s11 + $0x360] sm:$0xf]
        %v2194 = vld [vmem:[%s11 + $0x364] sm:$0xf]
        %v2195 = vld [vmem:[%s11 + $0x368] sm:$0xf]
        %v2196 = vld [vmem:[%s11 + $0x36c] sm:$0xf]
        %v2197 = vld [vmem:[%s11 + $0x370] sm:$0xf]
        %v2198 = vld [vmem:[%s11 + $0x374] sm:$0xf]
        %v2199 = vld [vmem:[%s11 + $0x378] sm:$0xf]
        %v2200 = vld [vmem:[%s11 + $0x37c] sm:$0xf]
        %v2201 = vld [vmem:[%s11 + $0x380] sm:$0xf]
        %v2202 = vld [vmem:[%s11 + $0x384] sm:$0xf]
        %v2203 = vld [vmem:[%s11 + $0x388] sm:$0xf]
        %v2204 = vld [vmem:[%s11 + $0x38c] sm:$0xf]
        %v2205 = vld [vmem:[%s11 + $0x390] sm:$0xf]
        %v2206 = vld [vmem:[%s11 + $0x394] sm:$0xf]
        %v2207 = vld [vmem:[%s11 + $0x398] sm:$0xf]
        %v2208 = vld [vmem:[%s11 + $0x39c] sm:$0xf]
        %v2209 = vld [vmem:[%s11 + $0x3a0] sm:$0xf]
        %v2210 = vld [vmem:[%s11 + $0x3a4] sm:$0xf]
        %v2211 = vld [vmem:[%s11 + $0x3a8] sm:$0xf]
        %v2212 = vld [vmem:[%s11 + $0x3ac] sm:$0xf]
        %v2213 = vld [vmem:[%s11 + $0x3b0] sm:$0xf]
        %v2214 = vld [vmem:[%s11 + $0x3b4] sm:$0xf]
        %v2215 = vld [vmem:[%s11 + $0x3b8] sm:$0xf]
        %v2216 = vld [vmem:[%s11 + $0x3bc] sm:$0xf]
        %v2217 = vld [vmem:[%s11 + $0x3c0] sm:$0xf]
        %v2218 = vld [vmem:[%s11 + $0x3c4] sm:$0xf]
        %v2219 = vld [vmem:[%s11 + $0x3c8] sm:$0xf]
        %v2220 = vld [vmem:[%s11 + $0x3cc] sm:$0xf]
        %v2221 = vld [vmem:[%s11 + $0x3d0] sm:$0xf]
        %v2222 = vld [vmem:[%s11 + $0x3d4] sm:$0xf]
        %v2223 = vld [vmem:[%s11 + $0x3d8] sm:$0xf]
        %v2224 = vld [vmem:[%s11 + $0x3dc] sm:$0xf]
        %v2225 = vld [vmem:[%s11 + $0x3e0] sm:$0xf]
        %v2226 = vld [vmem:[%s11 + $0x3e4] sm:$0xf]
        %v2227 = vld [vmem:[%s11 + $0x3e8] sm:$0xf]
        %v2228 = vld [vmem:[%s11 + $0x3ec] sm:$0xf]
        %v2229 = vld [vmem:[%s11 + $0x3f0] sm:$0xf]
        %v2230 = vld [vmem:[%s11 + $0x3f4] sm:$0xf]
        %v2231 = vld [vmem:[%s11 + $0x3f8] sm:$0xf]
        %v2232 = vld [vmem:[%s11 + $0x3fc] sm:$0xf]
        %v2233 = vld [vmem:[%s12] sm:$0x1]
        %v2234 = vpack.c.bf16 %v1910, %v1910
        %v2237 = vlaneseq
        %v2238 = vshrl.u32 %v2237, 7
        %v2239 = vsub.s32 0, %v2238
        %v2240 = vrot.slane %v1975, %v2239
        %v2241 = vlaneseq
        %v2242 = vshrl.u32 %v2241, 7
        %v2243 = vsub.s32 1, %v2242
        %v2244 = vrot.slane %v1975, %v2243
        %v2245 = vlaneseq
        %v2246 = vshrl.u32 %v2245, 7
        %v2247 = vsub.s32 2, %v2246
        %v2248 = vrot.slane %v1975, %v2247
        %v2249 = vlaneseq
        %v2250 = vshrl.u32 %v2249, 7
        %v2251 = vsub.s32 3, %v2250
        %v2252 = vrot.slane %v1975, %v2251
        %v2253 = vlaneseq
        %v2254 = vshrl.u32 %v2253, 7
        %v2255 = vsub.s32 4, %v2254
        %v2256 = vrot.slane %v1975, %v2255
        %v2257 = vlaneseq
        %v2258 = vshrl.u32 %v2257, 7
        %v2259 = vsub.s32 5, %v2258
        %v2260 = vrot.slane %v1975, %v2259
        %v2261 = vlaneseq
        %v2262 = vshrl.u32 %v2261, 7
        %v2263 = vsub.s32 6, %v2262
        %v2264 = vrot.slane %v1975, %v2263
        %v2265 = vlaneseq
        %v2266 = vshrl.u32 %v2265, 7
        %v2267 = vsub.s32 7, %v2266
        %v2268 = vrot.slane %v1975, %v2267
        %v2269 = vlaneseq
        %v2270 = vshrl.u32 %v2269, 7
        %v2271 = vsub.s32 0, %v2270
        %v2272 = vrot.slane %v1976, %v2271
        %v2273 = vlaneseq
        %v2274 = vshrl.u32 %v2273, 7
        %v2275 = vsub.s32 1, %v2274
        %v2276 = vrot.slane %v1976, %v2275
        %v2277 = vlaneseq
        %v2278 = vshrl.u32 %v2277, 7
        %v2279 = vsub.s32 2, %v2278
        %v2280 = vrot.slane %v1976, %v2279
        %v2281 = vlaneseq
        %v2282 = vshrl.u32 %v2281, 7
        %v2283 = vsub.s32 3, %v2282
        %v2284 = vrot.slane %v1976, %v2283
        %v2285 = vlaneseq
        %v2286 = vshrl.u32 %v2285, 7
        %v2287 = vsub.s32 4, %v2286
        %v2288 = vrot.slane %v1976, %v2287
        %v2289 = vlaneseq
        %v2290 = vshrl.u32 %v2289, 7
        %v2291 = vsub.s32 5, %v2290
        %v2292 = vrot.slane %v1976, %v2291
        %v2293 = vlaneseq
        %v2294 = vshrl.u32 %v2293, 7
        %v2295 = vsub.s32 6, %v2294
        %v2296 = vrot.slane %v1976, %v2295
        %v2297 = vlaneseq
        %v2298 = vshrl.u32 %v2297, 7
        %v2299 = vsub.s32 7, %v2298
        %v2300 = vrot.slane %v1976, %v2299
        %v2381 = vunpack.c.l.b16 %v1911
        %v2382 = vunpack.c.h.b16 %v1911
        %v2383 = vunpack.c.l.b16 %v1912
        %v2384 = vunpack.c.h.b16 %v1912
        %v2385 = vunpack.c.l.b16 %v1913
        %v2386 = vunpack.c.h.b16 %v1913
        %v2387 = vunpack.c.l.b16 %v1914
        %v2388 = vunpack.c.h.b16 %v1914
        %v2389 = vunpack.c.l.b16 %v1915
        %v2390 = vunpack.c.h.b16 %v1915
        %v2391 = vunpack.c.l.b16 %v1916
        %v2392 = vunpack.c.h.b16 %v1916
        %v2393 = vunpack.c.l.b16 %v1917
        %v2394 = vunpack.c.h.b16 %v1917
        %v2395 = vunpack.c.l.b16 %v1918
        %v2396 = vunpack.c.h.b16 %v1918
        %v2397 = vunpack.c.l.b16 %v1919
        %v2398 = vunpack.c.h.b16 %v1919
        %v2399 = vunpack.c.l.b16 %v1920
        %v2400 = vunpack.c.h.b16 %v1920
        %v2401 = vunpack.c.l.b16 %v1921
        %v2402 = vunpack.c.h.b16 %v1921
        %v2403 = vunpack.c.l.b16 %v1922
        %v2404 = vunpack.c.h.b16 %v1922
        %v2405 = vunpack.c.l.b16 %v1923
        %v2406 = vunpack.c.h.b16 %v1923
        %v2407 = vunpack.c.l.b16 %v1924
        %v2408 = vunpack.c.h.b16 %v1924
        %v2409 = vunpack.c.l.b16 %v1925
        %v2410 = vunpack.c.h.b16 %v1925
        %v2411 = vunpack.c.l.b16 %v1926
        %v2412 = vunpack.c.h.b16 %v1926
        %v2413 = vunpack.c.l.b16 %v1927
        %v2414 = vunpack.c.h.b16 %v1927
        %v2415 = vunpack.c.l.b16 %v1928
        %v2416 = vunpack.c.h.b16 %v1928
        %v2417 = vunpack.c.l.b16 %v1929
        %v2418 = vunpack.c.h.b16 %v1929
        %v2419 = vunpack.c.l.b16 %v1930
        %v2420 = vunpack.c.h.b16 %v1930
        %v2421 = vunpack.c.l.b16 %v1931
        %v2422 = vunpack.c.h.b16 %v1931
        %v2423 = vunpack.c.l.b16 %v1932
        %v2424 = vunpack.c.h.b16 %v1932
        %v2425 = vunpack.c.l.b16 %v1933
        %v2426 = vunpack.c.h.b16 %v1933
        %v2427 = vunpack.c.l.b16 %v1934
        %v2428 = vunpack.c.h.b16 %v1934
        %v2429 = vunpack.c.l.b16 %v1935
        %v2430 = vunpack.c.h.b16 %v1935
        %v2431 = vunpack.c.l.b16 %v1936
        %v2432 = vunpack.c.h.b16 %v1936
        %v2433 = vunpack.c.l.b16 %v1937
        %v2434 = vunpack.c.h.b16 %v1937
        %v2435 = vunpack.c.l.b16 %v1938
        %v2436 = vunpack.c.h.b16 %v1938
        %v2437 = vunpack.c.l.b16 %v1939
        %v2438 = vunpack.c.h.b16 %v1939
        %v2439 = vunpack.c.l.b16 %v1940
        %v2440 = vunpack.c.h.b16 %v1940
        %v2441 = vunpack.c.l.b16 %v1941
        %v2442 = vunpack.c.h.b16 %v1941
        %v2443 = vunpack.c.l.b16 %v1942
        %v2444 = vunpack.c.h.b16 %v1942
        %v2445 = vunpack.c.l.b16 %v1943
        %v2446 = vunpack.c.h.b16 %v1943
        %v2447 = vunpack.c.l.b16 %v1944
        %v2448 = vunpack.c.h.b16 %v1944
        %v2449 = vunpack.c.l.b16 %v1945
        %v2450 = vunpack.c.h.b16 %v1945
        %v2451 = vunpack.c.l.b16 %v1946
        %v2452 = vunpack.c.h.b16 %v1946
        %v2453 = vunpack.c.l.b16 %v1947
        %v2454 = vunpack.c.h.b16 %v1947
        %v2455 = vunpack.c.l.b16 %v1948
        %v2456 = vunpack.c.h.b16 %v1948
        %v2457 = vunpack.c.l.b16 %v1949
        %v2458 = vunpack.c.h.b16 %v1949
        %v2459 = vunpack.c.l.b16 %v1950
        %v2460 = vunpack.c.h.b16 %v1950
        %v2461 = vunpack.c.l.b16 %v1951
        %v2462 = vunpack.c.h.b16 %v1951
        %v2463 = vunpack.c.l.b16 %v1952
        %v2464 = vunpack.c.h.b16 %v1952
        %v2465 = vunpack.c.l.b16 %v1953
        %v2466 = vunpack.c.h.b16 %v1953
        %v2467 = vunpack.c.l.b16 %v1954
        %v2468 = vunpack.c.h.b16 %v1954
        %v2469 = vunpack.c.l.b16 %v1955
        %v2470 = vunpack.c.h.b16 %v1955
        %v2471 = vunpack.c.l.b16 %v1956
        %v2472 = vunpack.c.h.b16 %v1956
        %v2473 = vunpack.c.l.b16 %v1957
        %v2474 = vunpack.c.h.b16 %v1957
        %v2475 = vunpack.c.l.b16 %v1958
        %v2476 = vunpack.c.h.b16 %v1958
        %v2477 = vunpack.c.l.b16 %v1959
        %v2478 = vunpack.c.h.b16 %v1959
        %v2479 = vunpack.c.l.b16 %v1960
        %v2480 = vunpack.c.h.b16 %v1960
        %v2481 = vunpack.c.l.b16 %v1961
        %v2482 = vunpack.c.h.b16 %v1961
        %v2483 = vunpack.c.l.b16 %v1962
        %v2484 = vunpack.c.h.b16 %v1962
        %v2485 = vunpack.c.l.b16 %v1963
        %v2486 = vunpack.c.h.b16 %v1963
        %v2487 = vunpack.c.l.b16 %v1964
        %v2488 = vunpack.c.h.b16 %v1964
        %v2489 = vunpack.c.l.b16 %v1965
        %v2490 = vunpack.c.h.b16 %v1965
        %v2491 = vunpack.c.l.b16 %v1966
        %v2492 = vunpack.c.h.b16 %v1966
        %v2493 = vunpack.c.l.b16 %v1967
        %v2494 = vunpack.c.h.b16 %v1967
        %v2495 = vunpack.c.l.b16 %v1968
        %v2496 = vunpack.c.h.b16 %v1968
        %v2497 = vunpack.c.l.b16 %v1969
        %v2498 = vunpack.c.h.b16 %v1969
        %v2499 = vunpack.c.l.b16 %v1970
        %v2500 = vunpack.c.h.b16 %v1970
        %v2501 = vunpack.c.l.b16 %v1971
        %v2502 = vunpack.c.h.b16 %v1971
        %v2503 = vunpack.c.l.b16 %v1972
        %v2504 = vunpack.c.h.b16 %v1972
        %v2505 = vunpack.c.l.b16 %v1973
        %v2506 = vunpack.c.h.b16 %v1973
        %v2507 = vunpack.c.l.b16 %v1974
        %v2508 = vunpack.c.h.b16 %v1974
        %v2509 = vpack.c.b16 %v2397, %v2381
        %v2510 = vpack.c.b16 %v2398, %v2382
        %v2511 = vpack.c.b16 %v2399, %v2383
        %v2512 = vpack.c.b16 %v2400, %v2384
        %v2513 = vpack.c.b16 %v2401, %v2385
        %v2514 = vpack.c.b16 %v2402, %v2386
        %v2515 = vpack.c.b16 %v2403, %v2387
        %v2516 = vpack.c.b16 %v2404, %v2388
        %v2517 = vpack.c.b16 %v2405, %v2389
        %v2518 = vpack.c.b16 %v2406, %v2390
        %v2519 = vpack.c.b16 %v2407, %v2391
        %v2520 = vpack.c.b16 %v2408, %v2392
        %v2521 = vpack.c.b16 %v2409, %v2393
        %v2522 = vpack.c.b16 %v2410, %v2394
        %v2523 = vpack.c.b16 %v2411, %v2395
        %v2524 = vpack.c.b16 %v2412, %v2396
        %v2525 = vpack.c.b16 %v2429, %v2413
        %v2526 = vpack.c.b16 %v2430, %v2414
        %v2527 = vpack.c.b16 %v2431, %v2415
        %v2528 = vpack.c.b16 %v2432, %v2416
        %v2529 = vpack.c.b16 %v2433, %v2417
        %v2530 = vpack.c.b16 %v2434, %v2418
        %v2531 = vpack.c.b16 %v2435, %v2419
        %v2532 = vpack.c.b16 %v2436, %v2420
        %v2533 = vpack.c.b16 %v2437, %v2421
        %v2534 = vpack.c.b16 %v2438, %v2422
        %v2535 = vpack.c.b16 %v2439, %v2423
        %v2536 = vpack.c.b16 %v2440, %v2424
        %v2537 = vpack.c.b16 %v2441, %v2425
        %v2538 = vpack.c.b16 %v2442, %v2426
        %v2539 = vpack.c.b16 %v2443, %v2427
        %v2540 = vpack.c.b16 %v2444, %v2428
        %v2541 = vpack.c.b16 %v2461, %v2445
        %v2542 = vpack.c.b16 %v2462, %v2446
        %v2543 = vpack.c.b16 %v2463, %v2447
        %v2544 = vpack.c.b16 %v2464, %v2448
        %v2545 = vpack.c.b16 %v2465, %v2449
        %v2546 = vpack.c.b16 %v2466, %v2450
        %v2547 = vpack.c.b16 %v2467, %v2451
        %v2548 = vpack.c.b16 %v2468, %v2452
        %v2549 = vpack.c.b16 %v2469, %v2453
        %v2550 = vpack.c.b16 %v2470, %v2454
        %v2551 = vpack.c.b16 %v2471, %v2455
        %v2552 = vpack.c.b16 %v2472, %v2456
        %v2553 = vpack.c.b16 %v2473, %v2457
        %v2554 = vpack.c.b16 %v2474, %v2458
        %v2555 = vpack.c.b16 %v2475, %v2459
        %v2556 = vpack.c.b16 %v2476, %v2460
        %v2557 = vpack.c.b16 %v2493, %v2477
        %v2558 = vpack.c.b16 %v2494, %v2478
        %v2559 = vpack.c.b16 %v2495, %v2479
        %v2560 = vpack.c.b16 %v2496, %v2480
        %v2561 = vpack.c.b16 %v2497, %v2481
        %v2562 = vpack.c.b16 %v2498, %v2482
        %v2563 = vpack.c.b16 %v2499, %v2483
        %v2564 = vpack.c.b16 %v2500, %v2484
        %v2565 = vpack.c.b16 %v2501, %v2485
        %v2566 = vpack.c.b16 %v2502, %v2486
        %v2567 = vpack.c.b16 %v2503, %v2487
        %v2568 = vpack.c.b16 %v2504, %v2488
        %v2569 = vpack.c.b16 %v2505, %v2489
        %v2570 = vpack.c.b16 %v2506, %v2490
        %v2571 = vpack.c.b16 %v2507, %v2491
        %v2572 = vpack.c.b16 %v2508, %v2492
        %v2638 = vsel %vm665, %v2234, 0
        %2640 = vmatprep.subr.bf16.mxu0 %v2510
        %2641 = vmatpush1.bf16.msra.mxu0 %v2509
        %2642 = vmatprep.subr.bf16.mxu0 %v2526
        %2643 = vmatpush1.bf16.msra.mxu0 %v2525
        %2644 = vmatprep.subr.bf16.mxu0 %v2542
        %2645 = vmatpush1.bf16.msra.mxu0 %v2541
        %2646 = vmatprep.subr.bf16.mxu0 %v2558
        %2647 = vmatpush1.bf16.msra.mxu0 %v2557
        %2648 = vmatprep.subr.bf16.mxu0 0
        %2649 = vmatpush1.bf16.msra.mxu0 0
        %2650 = vmatprep.subr.bf16.mxu0 0
        %2651 = vmatpush1.bf16.msra.mxu0 0
        %2652 = vmatprep.subr.bf16.mxu0 0
        %2653 = vmatpush1.bf16.msra.mxu0 0
        %2654 = vmatprep.subr.bf16.mxu0 0
        %2655 = vmatpush1.bf16.msra.mxu0 0
        %2656 = vmatprep.subr.bf16.mxu0 0
        %2657 = vmatpush1.bf16.msra.mxu0 0
        %2658 = vmatprep.subr.bf16.mxu0 0
        %2659 = vmatpush1.bf16.msra.mxu0 0
        %2660 = vmatprep.subr.bf16.mxu0 0
        %2661 = vmatpush1.bf16.msra.mxu0 0
        %2662 = vmatprep.subr.bf16.mxu0 0
        %2663 = vmatpush1.bf16.msra.mxu0 0
        %2664 = vmatprep.subr.bf16.mxu0 0
        %2665 = vmatpush1.bf16.msra.mxu0 0
        %2666 = vmatprep.subr.bf16.mxu0 0
        %2667 = vmatpush1.bf16.msra.mxu0 0
        %2668 = vmatprep.subr.bf16.mxu0 0
        %2669 = vmatpush1.bf16.msra.mxu0 0
        %2670 = vmatprep.subr.bf16.mxu0 0
        %2671 = vmatpush1.bf16.msra.mxu0 0
        %2672 = vmatprep.mubr.bf16.mxu0 0
        %2673 = vmatmul.mubr.bf16.gmra.mrb[0].mxu0 %v2638
        %v2674 = vpop.f32.mrb[0].mxu0
        %v2675 = vadd.f32 %v2240, %v2674
        %v2676 = vpop.f32.mrb[0].mxu0
        %v2677 = vadd.f32 %v2244, %v2676
        %v2678 = vpop.f32.mrb[0].mxu0
        %v2679 = vpop.f32.mrb[0].mxu0
        %2680 = vdwg.mxu0
        %2681 = vmatprep.subr.bf16.mxu0 %v2512
        %2682 = vmatpush1.bf16.msra.mxu0 %v2511
        %2683 = vmatprep.subr.bf16.mxu0 %v2528
        %2684 = vmatpush1.bf16.msra.mxu0 %v2527
        %2685 = vmatprep.subr.bf16.mxu0 %v2544
        %2686 = vmatpush1.bf16.msra.mxu0 %v2543
        %2687 = vmatprep.subr.bf16.mxu0 %v2560
        %2688 = vmatpush1.bf16.msra.mxu0 %v2559
        %2689 = vmatprep.subr.bf16.mxu0 0
        %2690 = vmatpush1.bf16.msra.mxu0 0
        %2691 = vmatprep.subr.bf16.mxu0 0
        %2692 = vmatpush1.bf16.msra.mxu0 0
        %2693 = vmatprep.subr.bf16.mxu0 0
        %2694 = vmatpush1.bf16.msra.mxu0 0
        %2695 = vmatprep.subr.bf16.mxu0 0
        %2696 = vmatpush1.bf16.msra.mxu0 0
        %2697 = vmatprep.subr.bf16.mxu0 0
        %2698 = vmatpush1.bf16.msra.mxu0 0
        %2699 = vmatprep.subr.bf16.mxu0 0
        %2700 = vmatpush1.bf16.msra.mxu0 0
        %2701 = vmatprep.subr.bf16.mxu0 0
        %2702 = vmatpush1.bf16.msra.mxu0 0
        %2703 = vmatprep.subr.bf16.mxu0 0
        %2704 = vmatpush1.bf16.msra.mxu0 0
        %2705 = vmatprep.subr.bf16.mxu0 0
        %2706 = vmatpush1.bf16.msra.mxu0 0
        %2707 = vmatprep.subr.bf16.mxu0 0
        %2708 = vmatpush1.bf16.msra.mxu0 0
        %2709 = vmatprep.subr.bf16.mxu0 0
        %2710 = vmatpush1.bf16.msra.mxu0 0
        %2711 = vmatprep.subr.bf16.mxu0 0
        %2712 = vmatpush1.bf16.msra.mxu0 0
        %2713 = vmatprep.mubr.bf16.mxu0 0
        %2714 = vmatmul.mubr.bf16.gmra.mrb[0].mxu0 %v2638
        %v2715 = vpop.f32.mrb[0].mxu0
        %v2716 = vadd.f32 %v2248, %v2715
        %v2717 = vpop.f32.mrb[0].mxu0
        %v2718 = vadd.f32 %v2252, %v2717
        %v2719 = vpop.f32.mrb[0].mxu0
        %v2720 = vpop.f32.mrb[0].mxu0
        %2721 = vdwg.mxu0
        %2722 = vmatprep.subr.bf16.mxu0 %v2514
        %2723 = vmatpush1.bf16.msra.mxu0 %v2513
        %2724 = vmatprep.subr.bf16.mxu0 %v2530
        %2725 = vmatpush1.bf16.msra.mxu0 %v2529
        %2726 = vmatprep.subr.bf16.mxu0 %v2546
        %2727 = vmatpush1.bf16.msra.mxu0 %v2545
        %2728 = vmatprep.subr.bf16.mxu0 %v2562
        %2729 = vmatpush1.bf16.msra.mxu0 %v2561
        %2730 = vmatprep.subr.bf16.mxu0 0
        %2731 = vmatpush1.bf16.msra.mxu0 0
        %2732 = vmatprep.subr.bf16.mxu0 0
        %2733 = vmatpush1.bf16.msra.mxu0 0
        %2734 = vmatprep.subr.bf16.mxu0 0
        %2735 = vmatpush1.bf16.msra.mxu0 0
        %2736 = vmatprep.subr.bf16.mxu0 0
        %2737 = vmatpush1.bf16.msra.mxu0 0
        %2738 = vmatprep.subr.bf16.mxu0 0
        %2739 = vmatpush1.bf16.msra.mxu0 0
        %2740 = vmatprep.subr.bf16.mxu0 0
        %2741 = vmatpush1.bf16.msra.mxu0 0
        %2742 = vmatprep.subr.bf16.mxu0 0
        %2743 = vmatpush1.bf16.msra.mxu0 0
        %2744 = vmatprep.subr.bf16.mxu0 0
        %2745 = vmatpush1.bf16.msra.mxu0 0
        %2746 = vmatprep.subr.bf16.mxu0 0
        %2747 = vmatpush1.bf16.msra.mxu0 0
        %2748 = vmatprep.subr.bf16.mxu0 0
        %2749 = vmatpush1.bf16.msra.mxu0 0
        %2750 = vmatprep.subr.bf16.mxu0 0
        %2751 = vmatpush1.bf16.msra.mxu0 0
        %2752 = vmatprep.subr.bf16.mxu0 0
        %2753 = vmatpush1.bf16.msra.mxu0 0
        %2754 = vmatprep.mubr.bf16.mxu0 0
        %2755 = vmatmul.mubr.bf16.gmra.mrb[0].mxu0 %v2638
        %v2756 = vpop.f32.mrb[0].mxu0
        %v2757 = vadd.f32 %v2256, %v2756
        %v2758 = vpop.f32.mrb[0].mxu0
        %v2759 = vadd.f32 %v2260, %v2758
        %v2760 = vpop.f32.mrb[0].mxu0
        %v2761 = vpop.f32.mrb[0].mxu0
        %2762 = vdwg.mxu0
        %2763 = vmatprep.subr.bf16.mxu0 %v2516
        %2764 = vmatpush1.bf16.msra.mxu0 %v2515
        %2765 = vmatprep.subr.bf16.mxu0 %v2532
        %2766 = vmatpush1.bf16.msra.mxu0 %v2531
        %2767 = vmatprep.subr.bf16.mxu0 %v2548
        %2768 = vmatpush1.bf16.msra.mxu0 %v2547
        %2769 = vmatprep.subr.bf16.mxu0 %v2564
        %2770 = vmatpush1.bf16.msra.mxu0 %v2563
        %2771 = vmatprep.subr.bf16.mxu0 0
        %2772 = vmatpush1.bf16.msra.mxu0 0
        %2773 = vmatprep.subr.bf16.mxu0 0
        %2774 = vmatpush1.bf16.msra.mxu0 0
        %2775 = vmatprep.subr.bf16.mxu0 0
        %2776 = vmatpush1.bf16.msra.mxu0 0
        %2777 = vmatprep.subr.bf16.mxu0 0
        %2778 = vmatpush1.bf16.msra.mxu0 0
        %2779 = vmatprep.subr.bf16.mxu0 0
        %2780 = vmatpush1.bf16.msra.mxu0 0
        %2781 = vmatprep.subr.bf16.mxu0 0
        %2782 = vmatpush1.bf16.msra.mxu0 0
        %2783 = vmatprep.subr.bf16.mxu0 0
        %2784 = vmatpush1.bf16.msra.mxu0 0
        %2785 = vmatprep.subr.bf16.mxu0 0
        %2786 = vmatpush1.bf16.msra.mxu0 0
        %2787 = vmatprep.subr.bf16.mxu0 0
        %2788 = vmatpush1.bf16.msra.mxu0 0
        %2789 = vmatprep.subr.bf16.mxu0 0
        %2790 = vmatpush1.bf16.msra.mxu0 0
        %2791 = vmatprep.subr.bf16.mxu0 0
        %2792 = vmatpush1.bf16.msra.mxu0 0
        %2793 = vmatprep.subr.bf16.mxu0 0
        %2794 = vmatpush1.bf16.msra.mxu0 0
        %2795 = vmatprep.mubr.bf16.mxu0 0
        %2796 = vmatmul.mubr.bf16.gmra.mrb[0].mxu0 %v2638
        %v2797 = vpop.f32.mrb[0].mxu0
        %v2798 = vadd.f32 %v2264, %v2797
        %v2799 = vpop.f32.mrb[0].mxu0
        %v2800 = vadd.f32 %v2268, %v2799
        %v2801 = vpop.f32.mrb[0].mxu0
        %v2802 = vpop.f32.mrb[0].mxu0
        %2803 = vdwg.mxu0
        %2804 = vmatprep.subr.bf16.mxu0 %v2518
        %2805 = vmatpush1.bf16.msra.mxu0 %v2517
        %2806 = vmatprep.subr.bf16.mxu0 %v2534
        %2807 = vmatpush1.bf16.msra.mxu0 %v2533
        %2808 = vmatprep.subr.bf16.mxu0 %v2550
        %2809 = vmatpush1.bf16.msra.mxu0 %v2549
        %2810 = vmatprep.subr.bf16.mxu0 %v2566
        %2811 = vmatpush1.bf16.msra.mxu0 %v2565
        %2812 = vmatprep.subr.bf16.mxu0 0
        %2813 = vmatpush1.bf16.msra.mxu0 0
        %2814 = vmatprep.subr.bf16.mxu0 0
        %2815 = vmatpush1.bf16.msra.mxu0 0
        %2816 = vmatprep.subr.bf16.mxu0 0
        %2817 = vmatpush1.bf16.msra.mxu0 0
        %2818 = vmatprep.subr.bf16.mxu0 0
        %2819 = vmatpush1.bf16.msra.mxu0 0
        %2820 = vmatprep.subr.bf16.mxu0 0
        %2821 = vmatpush1.bf16.msra.mxu0 0
        %2822 = vmatprep.subr.bf16.mxu0 0
        %2823 = vmatpush1.bf16.msra.mxu0 0
        %2824 = vmatprep.subr.bf16.mxu0 0
        %2825 = vmatpush1.bf16.msra.mxu0 0
        %2826 = vmatprep.subr.bf16.mxu0 0
        %2827 = vmatpush1.bf16.msra.mxu0 0
        %2828 = vmatprep.subr.bf16.mxu0 0
        %2829 = vmatpush1.bf16.msra.mxu0 0
        %2830 = vmatprep.subr.bf16.mxu0 0
        %2831 = vmatpush1.bf16.msra.mxu0 0
        %2832 = vmatprep.subr.bf16.mxu0 0
        %2833 = vmatpush1.bf16.msra.mxu0 0
        %2834 = vmatprep.subr.bf16.mxu0 0
        %2835 = vmatpush1.bf16.msra.mxu0 0
        %2836 = vmatprep.mubr.bf16.mxu0 0
        %2837 = vmatmul.mubr.bf16.gmra.mrb[0].mxu0 %v2638
        %v2838 = vpop.f32.mrb[0].mxu0
        %v2839 = vadd.f32 %v2272, %v2838
        %v2840 = vpop.f32.mrb[0].mxu0
        %v2841 = vadd.f32 %v2276, %v2840
        %v2842 = vpop.f32.mrb[0].mxu0
        %v2843 = vpop.f32.mrb[0].mxu0
        %2844 = vdwg.mxu0
        %2845 = vmatprep.subr.bf16.mxu0 %v2520
        %2846 = vmatpush1.bf16.msra.mxu0 %v2519
        %2847 = vmatprep.subr.bf16.mxu0 %v2536
        %2848 = vmatpush1.bf16.msra.mxu0 %v2535
        %2849 = vmatprep.subr.bf16.mxu0 %v2552
        %2850 = vmatpush1.bf16.msra.mxu0 %v2551
        %2851 = vmatprep.subr.bf16.mxu0 %v2568
        %2852 = vmatpush1.bf16.msra.mxu0 %v2567
        %2853 = vmatprep.subr.bf16.mxu0 0
        %2854 = vmatpush1.bf16.msra.mxu0 0
        %2855 = vmatprep.subr.bf16.mxu0 0
        %2856 = vmatpush1.bf16.msra.mxu0 0
        %2857 = vmatprep.subr.bf16.mxu0 0
        %2858 = vmatpush1.bf16.msra.mxu0 0
        %2859 = vmatprep.subr.bf16.mxu0 0
        %2860 = vmatpush1.bf16.msra.mxu0 0
        %2861 = vmatprep.subr.bf16.mxu0 0
        %2862 = vmatpush1.bf16.msra.mxu0 0
        %2863 = vmatprep.subr.bf16.mxu0 0
        %2864 = vmatpush1.bf16.msra.mxu0 0
        %2865 = vmatprep.subr.bf16.mxu0 0
        %2866 = vmatpush1.bf16.msra.mxu0 0
        %2867 = vmatprep.subr.bf16.mxu0 0
        %2868 = vmatpush1.bf16.msra.mxu0 0
        %2869 = vmatprep.subr.bf16.mxu0 0
        %2870 = vmatpush1.bf16.msra.mxu0 0
        %2871 = vmatprep.subr.bf16.mxu0 0
        %2872 = vmatpush1.bf16.msra.mxu0 0
        %2873 = vmatprep.subr.bf16.mxu0 0
        %2874 = vmatpush1.bf16.msra.mxu0 0
        %2875 = vmatprep.subr.bf16.mxu0 0
        %2876 = vmatpush1.bf16.msra.mxu0 0
        %2877 = vmatprep.mubr.bf16.mxu0 0
        %2878 = vmatmul.mubr.bf16.gmra.mrb[0].mxu0 %v2638
        %v2879 = vpop.f32.mrb[0].mxu0
        %v2880 = vadd.f32 %v2280, %v2879
        %v2881 = vpop.f32.mrb[0].mxu0
        %v2882 = vadd.f32 %v2284, %v2881
        %v2883 = vpop.f32.mrb[0].mxu0
        %v2884 = vpop.f32.mrb[0].mxu0
        %2885 = vdwg.mxu0
        %2886 = vmatprep.subr.bf16.mxu0 %v2522
        %2887 = vmatpush1.bf16.msra.mxu0 %v2521
        %2888 = vmatprep.subr.bf16.mxu0 %v2538
        %2889 = vmatpush1.bf16.msra.mxu0 %v2537
        %2890 = vmatprep.subr.bf16.mxu0 %v2554
        %2891 = vmatpush1.bf16.msra.mxu0 %v2553
        %2892 = vmatprep.subr.bf16.mxu0 %v2570
        %2893 = vmatpush1.bf16.msra.mxu0 %v2569
        %2894 = vmatprep.subr.bf16.mxu0 0
        %2895 = vmatpush1.bf16.msra.mxu0 0
        %2896 = vmatprep.subr.bf16.mxu0 0
        %2897 = vmatpush1.bf16.msra.mxu0 0
        %2898 = vmatprep.subr.bf16.mxu0 0
        %2899 = vmatpush1.bf16.msra.mxu0 0
        %2900 = vmatprep.subr.bf16.mxu0 0
        %2901 = vmatpush1.bf16.msra.mxu0 0
        %2902 = vmatprep.subr.bf16.mxu0 0
        %2903 = vmatpush1.bf16.msra.mxu0 0
        %2904 = vmatprep.subr.bf16.mxu0 0
        %2905 = vmatpush1.bf16.msra.mxu0 0
        %2906 = vmatprep.subr.bf16.mxu0 0
        %2907 = vmatpush1.bf16.msra.mxu0 0
        %2908 = vmatprep.subr.bf16.mxu0 0
        %2909 = vmatpush1.bf16.msra.mxu0 0
        %2910 = vmatprep.subr.bf16.mxu0 0
        %2911 = vmatpush1.bf16.msra.mxu0 0
        %2912 = vmatprep.subr.bf16.mxu0 0
        %2913 = vmatpush1.bf16.msra.mxu0 0
        %2914 = vmatprep.subr.bf16.mxu0 0
        %2915 = vmatpush1.bf16.msra.mxu0 0
        %2916 = vmatprep.subr.bf16.mxu0 0
        %2917 = vmatpush1.bf16.msra.mxu0 0
        %2918 = vmatprep.mubr.bf16.mxu0 0
        %2919 = vmatmul.mubr.bf16.gmra.mrb[0].mxu0 %v2638
        %v2920 = vpop.f32.mrb[0].mxu0
        %v2921 = vadd.f32 %v2288, %v2920
        %v2922 = vpop.f32.mrb[0].mxu0
        %v2923 = vadd.f32 %v2292, %v2922
        %v2924 = vpop.f32.mrb[0].mxu0
        %v2925 = vpop.f32.mrb[0].mxu0
        %2926 = vdwg.mxu0
        %2927 = vmatprep.subr.bf16.mxu0 %v2524
        %2928 = vmatpush1.bf16.msra.mxu0 %v2523
        %2929 = vmatprep.subr.bf16.mxu0 %v2540
        %2930 = vmatpush1.bf16.msra.mxu0 %v2539
        %2931 = vmatprep.subr.bf16.mxu0 %v2556
        %2932 = vmatpush1.bf16.msra.mxu0 %v2555
        %2933 = vmatprep.subr.bf16.mxu0 %v2572
        %2934 = vmatpush1.bf16.msra.mxu0 %v2571
        %2935 = vmatprep.subr.bf16.mxu0 0
        %2936 = vmatpush1.bf16.msra.mxu0 0
        %2937 = vmatprep.subr.bf16.mxu0 0
        %2938 = vmatpush1.bf16.msra.mxu0 0
        %2939 = vmatprep.subr.bf16.mxu0 0
        %2940 = vmatpush1.bf16.msra.mxu0 0
        %2941 = vmatprep.subr.bf16.mxu0 0
        %2942 = vmatpush1.bf16.msra.mxu0 0
        %2943 = vmatprep.subr.bf16.mxu0 0
        %2944 = vmatpush1.bf16.msra.mxu0 0
        %2945 = vmatprep.subr.bf16.mxu0 0
        %2946 = vmatpush1.bf16.msra.mxu0 0
        %2947 = vmatprep.subr.bf16.mxu0 0
        %2948 = vmatpush1.bf16.msra.mxu0 0
        %2949 = vmatprep.subr.bf16.mxu0 0
        %2950 = vmatpush1.bf16.msra.mxu0 0
        %2951 = vmatprep.subr.bf16.mxu0 0
        %2952 = vmatpush1.bf16.msra.mxu0 0
        %2953 = vmatprep.subr.bf16.mxu0 0
        %2954 = vmatpush1.bf16.msra.mxu0 0
        %2955 = vmatprep.subr.bf16.mxu0 0
        %2956 = vmatpush1.bf16.msra.mxu0 0
        %2957 = vmatprep.subr.bf16.mxu0 0
        %2958 = vmatpush1.bf16.msra.mxu0 0
        %2959 = vmatprep.mubr.bf16.mxu0 0
        %2960 = vmatmul.mubr.bf16.gmra.mrb[0].mxu0 %v2638
        %v2961 = vpop.f32.mrb[0].mxu0
        %v2962 = vadd.f32 %v2296, %v2961
        %v2963 = vpop.f32.mrb[0].mxu0
        %v2964 = vadd.f32 %v2300, %v2963
        %v2965 = vpop.f32.mrb[0].mxu0
        %v2966 = vpop.f32.mrb[0].mxu0
        %2967 = vdwg.mxu0
        %v2968 = vmax.f32 %v2675, 0.0
        %v2969 = vmax.f32 %v2677, 0.0
        %v2970 = vmax.f32 %v2716, 0.0
        %v2971 = vmax.f32 %v2718, 0.0
        %v2972 = vmax.f32 %v2757, 0.0
        %v2973 = vmax.f32 %v2759, 0.0
        %v2974 = vmax.f32 %v2798, 0.0
        %v2975 = vmax.f32 %v2800, 0.0
        %v2976 = vmax.f32 %v2839, 0.0
        %v2977 = vmax.f32 %v2841, 0.0
        %v2978 = vmax.f32 %v2880, 0.0
        %v2979 = vmax.f32 %v2882, 0.0
        %v2980 = vmax.f32 %v2921, 0.0
        %v2981 = vmax.f32 %v2923, 0.0
        %v2982 = vmax.f32 %v2962, 0.0
        %v2983 = vmax.f32 %v2964, 0.0
        %v2984 = vpack.c.bf16 %v2968, %v2968
        %v2985 = vpack.c.bf16 %v2969, %v2969
        %v2986 = vpack.c.bf16 %v2970, %v2970
        %v2987 = vpack.c.bf16 %v2971, %v2971
        %v2988 = vpack.c.bf16 %v2972, %v2972
        %v2989 = vpack.c.bf16 %v2973, %v2973
        %v2990 = vpack.c.bf16 %v2974, %v2974
        %v2991 = vpack.c.bf16 %v2975, %v2975
        %v2992 = vpack.c.bf16 %v2976, %v2976
        %v2993 = vpack.c.bf16 %v2977, %v2977
        %v2994 = vpack.c.bf16 %v2978, %v2978
        %v2995 = vpack.c.bf16 %v2979, %v2979
        %v2996 = vpack.c.bf16 %v2980, %v2980
        %v2997 = vpack.c.bf16 %v2981, %v2981
        %v2998 = vpack.c.bf16 %v2982, %v2982
        %v2999 = vpack.c.bf16 %v2983, %v2983
        %v3001 = vlaneseq
        %v3002 = vshrl.u32 %v3001, 7
        %v3003 = vsub.s32 0, %v3002
        %v3004 = vrot.slane %v2233, %v3003
        %v3262 = vunpack.c.l.b16 %v1977
        %v3263 = vunpack.c.l.b16 %v1978
        %v3264 = vunpack.c.l.b16 %v1979
        %v3265 = vunpack.c.l.b16 %v1980
        %v3266 = vunpack.c.l.b16 %v1981
        %v3267 = vunpack.c.l.b16 %v1982
        %v3268 = vunpack.c.l.b16 %v1983
        %v3269 = vunpack.c.l.b16 %v1984
        %v3270 = vunpack.c.l.b16 %v1985
        %v3271 = vunpack.c.l.b16 %v1986
        %v3272 = vunpack.c.l.b16 %v1987
        %v3273 = vunpack.c.l.b16 %v1988
        %v3274 = vunpack.c.l.b16 %v1989
        %v3275 = vunpack.c.l.b16 %v1990
        %v3276 = vunpack.c.l.b16 %v1991
        %v3277 = vunpack.c.l.b16 %v1992
        %v3278 = vunpack.c.l.b16 %v1993
        %v3279 = vunpack.c.l.b16 %v1994
        %v3280 = vunpack.c.l.b16 %v1995
        %v3281 = vunpack.c.l.b16 %v1996
        %v3282 = vunpack.c.l.b16 %v1997
        %v3283 = vunpack.c.l.b16 %v1998
        %v3284 = vunpack.c.l.b16 %v1999
        %v3285 = vunpack.c.l.b16 %v2000
        %v3286 = vunpack.c.l.b16 %v2001
        %v3287 = vunpack.c.l.b16 %v2002
        %v3288 = vunpack.c.l.b16 %v2003
        %v3289 = vunpack.c.l.b16 %v2004
        %v3290 = vunpack.c.l.b16 %v2005
        %v3291 = vunpack.c.l.b16 %v2006
        %v3292 = vunpack.c.l.b16 %v2007
        %v3293 = vunpack.c.l.b16 %v2008
        %v3294 = vunpack.c.l.b16 %v2009
        %v3295 = vunpack.c.l.b16 %v2010
        %v3296 = vunpack.c.l.b16 %v2011
        %v3297 = vunpack.c.l.b16 %v2012
        %v3298 = vunpack.c.l.b16 %v2013
        %v3299 = vunpack.c.l.b16 %v2014
        %v3300 = vunpack.c.l.b16 %v2015
        %v3301 = vunpack.c.l.b16 %v2016
        %v3302 = vunpack.c.l.b16 %v2017
        %v3303 = vunpack.c.l.b16 %v2018
        %v3304 = vunpack.c.l.b16 %v2019
        %v3305 = vunpack.c.l.b16 %v2020
        %v3306 = vunpack.c.l.b16 %v2021
        %v3307 = vunpack.c.l.b16 %v2022
        %v3308 = vunpack.c.l.b16 %v2023
        %v3309 = vunpack.c.l.b16 %v2024
        %v3310 = vunpack.c.l.b16 %v2025
        %v3311 = vunpack.c.l.b16 %v2026
        %v3312 = vunpack.c.l.b16 %v2027
        %v3313 = vunpack.c.l.b16 %v2028
        %v3314 = vunpack.c.l.b16 %v2029
        %v3315 = vunpack.c.l.b16 %v2030
        %v3316 = vunpack.c.l.b16 %v2031
        %v3317 = vunpack.c.l.b16 %v2032
        %v3318 = vunpack.c.l.b16 %v2033
        %v3319 = vunpack.c.l.b16 %v2034
        %v3320 = vunpack.c.l.b16 %v2035
        %v3321 = vunpack.c.l.b16 %v2036
        %v3322 = vunpack.c.l.b16 %v2037
        %v3323 = vunpack.c.l.b16 %v2038
        %v3324 = vunpack.c.l.b16 %v2039
        %v3325 = vunpack.c.l.b16 %v2040
        %v3326 = vunpack.c.l.b16 %v2041
        %v3327 = vunpack.c.l.b16 %v2042
        %v3328 = vunpack.c.l.b16 %v2043
        %v3329 = vunpack.c.l.b16 %v2044
        %v3330 = vunpack.c.l.b16 %v2045
        %v3331 = vunpack.c.l.b16 %v2046
        %v3332 = vunpack.c.l.b16 %v2047
        %v3333 = vunpack.c.l.b16 %v2048
        %v3334 = vunpack.c.l.b16 %v2049
        %v3335 = vunpack.c.l.b16 %v2050
        %v3336 = vunpack.c.l.b16 %v2051
        %v3337 = vunpack.c.l.b16 %v2052
        %v3338 = vunpack.c.l.b16 %v2053
        %v3339 = vunpack.c.l.b16 %v2054
        %v3340 = vunpack.c.l.b16 %v2055
        %v3341 = vunpack.c.l.b16 %v2056
        %v3342 = vunpack.c.l.b16 %v2057
        %v3343 = vunpack.c.l.b16 %v2058
        %v3344 = vunpack.c.l.b16 %v2059
        %v3345 = vunpack.c.l.b16 %v2060
        %v3346 = vunpack.c.l.b16 %v2061
        %v3347 = vunpack.c.l.b16 %v2062
        %v3348 = vunpack.c.l.b16 %v2063
        %v3349 = vunpack.c.l.b16 %v2064
        %v3350 = vunpack.c.l.b16 %v2065
        %v3351 = vunpack.c.l.b16 %v2066
        %v3352 = vunpack.c.l.b16 %v2067
        %v3353 = vunpack.c.l.b16 %v2068
        %v3354 = vunpack.c.l.b16 %v2069
        %v3355 = vunpack.c.l.b16 %v2070
        %v3356 = vunpack.c.l.b16 %v2071
        %v3357 = vunpack.c.l.b16 %v2072
        %v3358 = vunpack.c.l.b16 %v2073
        %v3359 = vunpack.c.l.b16 %v2074
        %v3360 = vunpack.c.l.b16 %v2075
        %v3361 = vunpack.c.l.b16 %v2076
        %v3362 = vunpack.c.l.b16 %v2077
        %v3363 = vunpack.c.l.b16 %v2078
        %v3364 = vunpack.c.l.b16 %v2079
        %v3365 = vunpack.c.l.b16 %v2080
        %v3366 = vunpack.c.l.b16 %v2081
        %v3367 = vunpack.c.l.b16 %v2082
        %v3368 = vunpack.c.l.b16 %v2083
        %v3369 = vunpack.c.l.b16 %v2084
        %v3370 = vunpack.c.l.b16 %v2085
        %v3371 = vunpack.c.l.b16 %v2086
        %v3372 = vunpack.c.l.b16 %v2087
        %v3373 = vunpack.c.l.b16 %v2088
        %v3374 = vunpack.c.l.b16 %v2089
        %v3375 = vunpack.c.l.b16 %v2090
        %v3376 = vunpack.c.l.b16 %v2091
        %v3377 = vunpack.c.l.b16 %v2092
        %v3378 = vunpack.c.l.b16 %v2093
        %v3379 = vunpack.c.l.b16 %v2094
        %v3380 = vunpack.c.l.b16 %v2095
        %v3381 = vunpack.c.l.b16 %v2096
        %v3382 = vunpack.c.l.b16 %v2097
        %v3383 = vunpack.c.l.b16 %v2098
        %v3384 = vunpack.c.l.b16 %v2099
        %v3385 = vunpack.c.l.b16 %v2100
        %v3386 = vunpack.c.l.b16 %v2101
        %v3387 = vunpack.c.l.b16 %v2102
        %v3388 = vunpack.c.l.b16 %v2103
        %v3389 = vunpack.c.l.b16 %v2104
        %v3390 = vunpack.c.l.b16 %v2105
        %v3391 = vunpack.c.l.b16 %v2106
        %v3392 = vunpack.c.l.b16 %v2107
        %v3393 = vunpack.c.l.b16 %v2108
        %v3394 = vunpack.c.l.b16 %v2109
        %v3395 = vunpack.c.l.b16 %v2110
        %v3396 = vunpack.c.l.b16 %v2111
        %v3397 = vunpack.c.l.b16 %v2112
        %v3398 = vunpack.c.l.b16 %v2113
        %v3399 = vunpack.c.l.b16 %v2114
        %v3400 = vunpack.c.l.b16 %v2115
        %v3401 = vunpack.c.l.b16 %v2116
        %v3402 = vunpack.c.l.b16 %v2117
        %v3403 = vunpack.c.l.b16 %v2118
        %v3404 = vunpack.c.l.b16 %v2119
        %v3405 = vunpack.c.l.b16 %v2120
        %v3406 = vunpack.c.l.b16 %v2121
        %v3407 = vunpack.c.l.b16 %v2122
        %v3408 = vunpack.c.l.b16 %v2123
        %v3409 = vunpack.c.l.b16 %v2124
        %v3410 = vunpack.c.l.b16 %v2125
        %v3411 = vunpack.c.l.b16 %v2126
        %v3412 = vunpack.c.l.b16 %v2127
        %v3413 = vunpack.c.l.b16 %v2128
        %v3414 = vunpack.c.l.b16 %v2129
        %v3415 = vunpack.c.l.b16 %v2130
        %v3416 = vunpack.c.l.b16 %v2131
        %v3417 = vunpack.c.l.b16 %v2132
        %v3418 = vunpack.c.l.b16 %v2133
        %v3419 = vunpack.c.l.b16 %v2134
        %v3420 = vunpack.c.l.b16 %v2135
        %v3421 = vunpack.c.l.b16 %v2136
        %v3422 = vunpack.c.l.b16 %v2137
        %v3423 = vunpack.c.l.b16 %v2138
        %v3424 = vunpack.c.l.b16 %v2139
        %v3425 = vunpack.c.l.b16 %v2140
        %v3426 = vunpack.c.l.b16 %v2141
        %v3427 = vunpack.c.l.b16 %v2142
        %v3428 = vunpack.c.l.b16 %v2143
        %v3429 = vunpack.c.l.b16 %v2144
        %v3430 = vunpack.c.l.b16 %v2145
        %v3431 = vunpack.c.l.b16 %v2146
        %v3432 = vunpack.c.l.b16 %v2147
        %v3433 = vunpack.c.l.b16 %v2148
        %v3434 = vunpack.c.l.b16 %v2149
        %v3435 = vunpack.c.l.b16 %v2150
        %v3436 = vunpack.c.l.b16 %v2151
        %v3437 = vunpack.c.l.b16 %v2152
        %v3438 = vunpack.c.l.b16 %v2153
        %v3439 = vunpack.c.l.b16 %v2154
        %v3440 = vunpack.c.l.b16 %v2155
        %v3441 = vunpack.c.l.b16 %v2156
        %v3442 = vunpack.c.l.b16 %v2157
        %v3443 = vunpack.c.l.b16 %v2158
        %v3444 = vunpack.c.l.b16 %v2159
        %v3445 = vunpack.c.l.b16 %v2160
        %v3446 = vunpack.c.l.b16 %v2161
        %v3447 = vunpack.c.l.b16 %v2162
        %v3448 = vunpack.c.l.b16 %v2163
        %v3449 = vunpack.c.l.b16 %v2164
        %v3450 = vunpack.c.l.b16 %v2165
        %v3451 = vunpack.c.l.b16 %v2166
        %v3452 = vunpack.c.l.b16 %v2167
        %v3453 = vunpack.c.l.b16 %v2168
        %v3454 = vunpack.c.l.b16 %v2169
        %v3455 = vunpack.c.l.b16 %v2170
        %v3456 = vunpack.c.l.b16 %v2171
        %v3457 = vunpack.c.l.b16 %v2172
        %v3458 = vunpack.c.l.b16 %v2173
        %v3459 = vunpack.c.l.b16 %v2174
        %v3460 = vunpack.c.l.b16 %v2175
        %v3461 = vunpack.c.l.b16 %v2176
        %v3462 = vunpack.c.l.b16 %v2177
        %v3463 = vunpack.c.l.b16 %v2178
        %v3464 = vunpack.c.l.b16 %v2179
        %v3465 = vunpack.c.l.b16 %v2180
        %v3466 = vunpack.c.l.b16 %v2181
        %v3467 = vunpack.c.l.b16 %v2182
        %v3468 = vunpack.c.l.b16 %v2183
        %v3469 = vunpack.c.l.b16 %v2184
        %v3470 = vunpack.c.l.b16 %v2185
        %v3471 = vunpack.c.l.b16 %v2186
        %v3472 = vunpack.c.l.b16 %v2187
        %v3473 = vunpack.c.l.b16 %v2188
        %v3474 = vunpack.c.l.b16 %v2189
        %v3475 = vunpack.c.l.b16 %v2190
        %v3476 = vunpack.c.l.b16 %v2191
        %v3477 = vunpack.c.l.b16 %v2192
        %v3478 = vunpack.c.l.b16 %v2193
        %v3479 = vunpack.c.l.b16 %v2194
        %v3480 = vunpack.c.l.b16 %v2195
        %v3481 = vunpack.c.l.b16 %v2196
        %v3482 = vunpack.c.l.b16 %v2197
        %v3483 = vunpack.c.l.b16 %v2198
        %v3484 = vunpack.c.l.b16 %v2199
        %v3485 = vunpack.c.l.b16 %v2200
        %v3486 = vunpack.c.l.b16 %v2201
        %v3487 = vunpack.c.l.b16 %v2202
        %v3488 = vunpack.c.l.b16 %v2203
        %v3489 = vunpack.c.l.b16 %v2204
        %v3490 = vunpack.c.l.b16 %v2205
        %v3491 = vunpack.c.l.b16 %v2206
        %v3492 = vunpack.c.l.b16 %v2207
        %v3493 = vunpack.c.l.b16 %v2208
        %v3494 = vunpack.c.l.b16 %v2209
        %v3495 = vunpack.c.l.b16 %v2210
        %v3496 = vunpack.c.l.b16 %v2211
        %v3497 = vunpack.c.l.b16 %v2212
        %v3498 = vunpack.c.l.b16 %v2213
        %v3499 = vunpack.c.l.b16 %v2214
        %v3500 = vunpack.c.l.b16 %v2215
        %v3501 = vunpack.c.l.b16 %v2216
        %v3502 = vunpack.c.l.b16 %v2217
        %v3503 = vunpack.c.l.b16 %v2218
        %v3504 = vunpack.c.l.b16 %v2219
        %v3505 = vunpack.c.l.b16 %v2220
        %v3506 = vunpack.c.l.b16 %v2221
        %v3507 = vunpack.c.l.b16 %v2222
        %v3508 = vunpack.c.l.b16 %v2223
        %v3509 = vunpack.c.l.b16 %v2224
        %v3510 = vunpack.c.l.b16 %v2225
        %v3511 = vunpack.c.l.b16 %v2226
        %v3512 = vunpack.c.l.b16 %v2227
        %v3513 = vunpack.c.l.b16 %v2228
        %v3514 = vunpack.c.l.b16 %v2229
        %v3515 = vunpack.c.l.b16 %v2230
        %v3516 = vunpack.c.l.b16 %v2231
        %v3517 = vunpack.c.l.b16 %v2232
        %v3518 = vpack.c.b16 %v3263, %v3262
        %v3519 = vpack.c.b16 %v3265, %v3264
        %v3520 = vpack.c.b16 %v3267, %v3266
        %v3521 = vpack.c.b16 %v3269, %v3268
        %v3522 = vpack.c.b16 %v3271, %v3270
        %v3523 = vpack.c.b16 %v3273, %v3272
        %v3524 = vpack.c.b16 %v3275, %v3274
        %v3525 = vpack.c.b16 %v3277, %v3276
        %v3526 = vpack.c.b16 %v3279, %v3278
        %v3527 = vpack.c.b16 %v3281, %v3280
        %v3528 = vpack.c.b16 %v3283, %v3282
        %v3529 = vpack.c.b16 %v3285, %v3284
        %v3530 = vpack.c.b16 %v3287, %v3286
        %v3531 = vpack.c.b16 %v3289, %v3288
        %v3532 = vpack.c.b16 %v3291, %v3290
        %v3533 = vpack.c.b16 %v3293, %v3292
        %v3534 = vpack.c.b16 %v3295, %v3294
        %v3535 = vpack.c.b16 %v3297, %v3296
        %v3536 = vpack.c.b16 %v3299, %v3298
        %v3537 = vpack.c.b16 %v3301, %v3300
        %v3538 = vpack.c.b16 %v3303, %v3302
        %v3539 = vpack.c.b16 %v3305, %v3304
        %v3540 = vpack.c.b16 %v3307, %v3306
        %v3541 = vpack.c.b16 %v3309, %v3308
        %v3542 = vpack.c.b16 %v3311, %v3310
        %v3543 = vpack.c.b16 %v3313, %v3312
        %v3544 = vpack.c.b16 %v3315, %v3314
        %v3545 = vpack.c.b16 %v3317, %v3316
        %v3546 = vpack.c.b16 %v3319, %v3318
        %v3547 = vpack.c.b16 %v3321, %v3320
        %v3548 = vpack.c.b16 %v3323, %v3322
        %v3549 = vpack.c.b16 %v3325, %v3324
        %v3550 = vpack.c.b16 %v3327, %v3326
        %v3551 = vpack.c.b16 %v3329, %v3328
        %v3552 = vpack.c.b16 %v3331, %v3330
        %v3553 = vpack.c.b16 %v3333, %v3332
        %v3554 = vpack.c.b16 %v3335, %v3334
        %v3555 = vpack.c.b16 %v3337, %v3336
        %v3556 = vpack.c.b16 %v3339, %v3338
        %v3557 = vpack.c.b16 %v3341, %v3340
        %v3558 = vpack.c.b16 %v3343, %v3342
        %v3559 = vpack.c.b16 %v3345, %v3344
        %v3560 = vpack.c.b16 %v3347, %v3346
        %v3561 = vpack.c.b16 %v3349, %v3348
        %v3562 = vpack.c.b16 %v3351, %v3350
        %v3563 = vpack.c.b16 %v3353, %v3352
        %v3564 = vpack.c.b16 %v3355, %v3354
        %v3565 = vpack.c.b16 %v3357, %v3356
        %v3566 = vpack.c.b16 %v3359, %v3358
        %v3567 = vpack.c.b16 %v3361, %v3360
        %v3568 = vpack.c.b16 %v3363, %v3362
        %v3569 = vpack.c.b16 %v3365, %v3364
        %v3570 = vpack.c.b16 %v3367, %v3366
        %v3571 = vpack.c.b16 %v3369, %v3368
        %v3572 = vpack.c.b16 %v3371, %v3370
        %v3573 = vpack.c.b16 %v3373, %v3372
        %v3574 = vpack.c.b16 %v3375, %v3374
        %v3575 = vpack.c.b16 %v3377, %v3376
        %v3576 = vpack.c.b16 %v3379, %v3378
        %v3577 = vpack.c.b16 %v3381, %v3380
        %v3578 = vpack.c.b16 %v3383, %v3382
        %v3579 = vpack.c.b16 %v3385, %v3384
        %v3580 = vpack.c.b16 %v3387, %v3386
        %v3581 = vpack.c.b16 %v3389, %v3388
        %v3582 = vpack.c.b16 %v3391, %v3390
        %v3583 = vpack.c.b16 %v3393, %v3392
        %v3584 = vpack.c.b16 %v3395, %v3394
        %v3585 = vpack.c.b16 %v3397, %v3396
        %v3586 = vpack.c.b16 %v3399, %v3398
        %v3587 = vpack.c.b16 %v3401, %v3400
        %v3588 = vpack.c.b16 %v3403, %v3402
        %v3589 = vpack.c.b16 %v3405, %v3404
        %v3590 = vpack.c.b16 %v3407, %v3406
        %v3591 = vpack.c.b16 %v3409, %v3408
        %v3592 = vpack.c.b16 %v3411, %v3410
        %v3593 = vpack.c.b16 %v3413, %v3412
        %v3594 = vpack.c.b16 %v3415, %v3414
        %v3595 = vpack.c.b16 %v3417, %v3416
        %v3596 = vpack.c.b16 %v3419, %v3418
        %v3597 = vpack.c.b16 %v3421, %v3420
        %v3598 = vpack.c.b16 %v3423, %v3422
        %v3599 = vpack.c.b16 %v3425, %v3424
        %v3600 = vpack.c.b16 %v3427, %v3426
        %v3601 = vpack.c.b16 %v3429, %v3428
        %v3602 = vpack.c.b16 %v3431, %v3430
        %v3603 = vpack.c.b16 %v3433, %v3432
        %v3604 = vpack.c.b16 %v3435, %v3434
        %v3605 = vpack.c.b16 %v3437, %v3436
        %v3606 = vpack.c.b16 %v3439, %v3438
        %v3607 = vpack.c.b16 %v3441, %v3440
        %v3608 = vpack.c.b16 %v3443, %v3442
        %v3609 = vpack.c.b16 %v3445, %v3444
        %v3610 = vpack.c.b16 %v3447, %v3446
        %v3611 = vpack.c.b16 %v3449, %v3448
        %v3612 = vpack.c.b16 %v3451, %v3450
        %v3613 = vpack.c.b16 %v3453, %v3452
        %v3614 = vpack.c.b16 %v3455, %v3454
        %v3615 = vpack.c.b16 %v3457, %v3456
        %v3616 = vpack.c.b16 %v3459, %v3458
        %v3617 = vpack.c.b16 %v3461, %v3460
        %v3618 = vpack.c.b16 %v3463, %v3462
        %v3619 = vpack.c.b16 %v3465, %v3464
        %v3620 = vpack.c.b16 %v3467, %v3466
        %v3621 = vpack.c.b16 %v3469, %v3468
        %v3622 = vpack.c.b16 %v3471, %v3470
        %v3623 = vpack.c.b16 %v3473, %v3472
        %v3624 = vpack.c.b16 %v3475, %v3474
        %v3625 = vpack.c.b16 %v3477, %v3476
        %v3626 = vpack.c.b16 %v3479, %v3478
        %v3627 = vpack.c.b16 %v3481, %v3480
        %v3628 = vpack.c.b16 %v3483, %v3482
        %v3629 = vpack.c.b16 %v3485, %v3484
        %v3630 = vpack.c.b16 %v3487, %v3486
        %v3631 = vpack.c.b16 %v3489, %v3488
        %v3632 = vpack.c.b16 %v3491, %v3490
        %v3633 = vpack.c.b16 %v3493, %v3492
        %v3634 = vpack.c.b16 %v3495, %v3494
        %v3635 = vpack.c.b16 %v3497, %v3496
        %v3636 = vpack.c.b16 %v3499, %v3498
        %v3637 = vpack.c.b16 %v3501, %v3500
        %v3638 = vpack.c.b16 %v3503, %v3502
        %v3639 = vpack.c.b16 %v3505, %v3504
        %v3640 = vpack.c.b16 %v3507, %v3506
        %v3641 = vpack.c.b16 %v3509, %v3508
        %v3642 = vpack.c.b16 %v3511, %v3510
        %v3643 = vpack.c.b16 %v3513, %v3512
        %v3644 = vpack.c.b16 %v3515, %v3514
        %v3645 = vpack.c.b16 %v3517, %v3516
        %3774 = vmatprep.subr.bf16.mxu0 0
        %3775 = vmatpush1.bf16.msra.mxu0 %v3518
        %3776 = vmatprep.subr.bf16.mxu0 0
        %3777 = vmatpush1.bf16.msra.mxu0 %v3519
        %3778 = vmatprep.subr.bf16.mxu0 0
        %3779 = vmatpush1.bf16.msra.mxu0 %v3520
        %3780 = vmatprep.subr.bf16.mxu0 0
        %3781 = vmatpush1.bf16.msra.mxu0 %v3521
        %3782 = vmatprep.subr.bf16.mxu0 0
        %3783 = vmatpush1.bf16.msra.mxu0 %v3522
        %3784 = vmatprep.subr.bf16.mxu0 0
        %3785 = vmatpush1.bf16.msra.mxu0 %v3523
        %3786 = vmatprep.subr.bf16.mxu0 0
        %3787 = vmatpush1.bf16.msra.mxu0 %v3524
        %3788 = vmatprep.subr.bf16.mxu0 0
        %3789 = vmatpush1.bf16.msra.mxu0 %v3525
        %3790 = vmatprep.subr.bf16.mxu0 0
        %3791 = vmatpush1.bf16.msra.mxu0 %v3526
        %3792 = vmatprep.subr.bf16.mxu0 0
        %3793 = vmatpush1.bf16.msra.mxu0 %v3527
        %3794 = vmatprep.subr.bf16.mxu0 0
        %3795 = vmatpush1.bf16.msra.mxu0 %v3528
        %3796 = vmatprep.subr.bf16.mxu0 0
        %3797 = vmatpush1.bf16.msra.mxu0 %v3529
        %3798 = vmatprep.subr.bf16.mxu0 0
        %3799 = vmatpush1.bf16.msra.mxu0 %v3530
        %3800 = vmatprep.subr.bf16.mxu0 0
        %3801 = vmatpush1.bf16.msra.mxu0 %v3531
        %3802 = vmatprep.subr.bf16.mxu0 0
        %3803 = vmatpush1.bf16.msra.mxu0 %v3532
        %3804 = vmatprep.subr.bf16.mxu0 0
        %3805 = vmatpush1.bf16.msra.mxu0 %v3533
        %3806 = vmatprep.mubr.bf16.mxu0 %v2985
        %3807 = vmatmul.mubr.bf16.gmra.mrb[0].mxu0 %v2984
        %v3808 = vpop.f32.mrb[0].mxu0
        %v3809 = vadd.f32 %v3004, %v3808
        %v3810 = vpop.f32.mrb[0].mxu0
        %v3811 = vpop.f32.mrb[0].mxu0
        %v3812 = vpop.f32.mrb[0].mxu0
        %3813 = vdwg.mxu0
        %3814 = vmatprep.subr.bf16.mxu0 0
        %3815 = vmatpush1.bf16.msra.mxu0 %v3534
        %3816 = vmatprep.subr.bf16.mxu0 0
        %3817 = vmatpush1.bf16.msra.mxu0 %v3535
        %3818 = vmatprep.subr.bf16.mxu0 0
        %3819 = vmatpush1.bf16.msra.mxu0 %v3536
        %3820 = vmatprep.subr.bf16.mxu0 0
        %3821 = vmatpush1.bf16.msra.mxu0 %v3537
        %3822 = vmatprep.subr.bf16.mxu0 0
        %3823 = vmatpush1.bf16.msra.mxu0 %v3538
        %3824 = vmatprep.subr.bf16.mxu0 0
        %3825 = vmatpush1.bf16.msra.mxu0 %v3539
        %3826 = vmatprep.subr.bf16.mxu0 0
        %3827 = vmatpush1.bf16.msra.mxu0 %v3540
        %3828 = vmatprep.subr.bf16.mxu0 0
        %3829 = vmatpush1.bf16.msra.mxu0 %v3541
        %3830 = vmatprep.subr.bf16.mxu0 0
        %3831 = vmatpush1.bf16.msra.mxu0 %v3542
        %3832 = vmatprep.subr.bf16.mxu0 0
        %3833 = vmatpush1.bf16.msra.mxu0 %v3543
        %3834 = vmatprep.subr.bf16.mxu0 0
        %3835 = vmatpush1.bf16.msra.mxu0 %v3544
        %3836 = vmatprep.subr.bf16.mxu0 0
        %3837 = vmatpush1.bf16.msra.mxu0 %v3545
        %3838 = vmatprep.subr.bf16.mxu0 0
        %3839 = vmatpush1.bf16.msra.mxu0 %v3546
        %3840 = vmatprep.subr.bf16.mxu0 0
        %3841 = vmatpush1.bf16.msra.mxu0 %v3547
        %3842 = vmatprep.subr.bf16.mxu0 0
        %3843 = vmatpush1.bf16.msra.mxu0 %v3548
        %3844 = vmatprep.subr.bf16.mxu0 0
        %3845 = vmatpush1.bf16.msra.mxu0 %v3549
        %3846 = vmatprep.mubr.bf16.mxu0 %v2987
        %3847 = vmatmul.mubr.bf16.gmra.mrb[0].mxu0 %v2986
        %v3848 = vpop.f32.mrb[0].mxu0
        %v3849 = vadd.f32 %v3809, %v3848
        %v3850 = vpop.f32.mrb[0].mxu0
        %v3851 = vpop.f32.mrb[0].mxu0
        %v3852 = vpop.f32.mrb[0].mxu0
        %3853 = vdwg.mxu0
        %3854 = vmatprep.subr.bf16.mxu0 0
        %3855 = vmatpush1.bf16.msra.mxu0 %v3550
        %3856 = vmatprep.subr.bf16.mxu0 0
        %3857 = vmatpush1.bf16.msra.mxu0 %v3551
        %3858 = vmatprep.subr.bf16.mxu0 0
        %3859 = vmatpush1.bf16.msra.mxu0 %v3552
        %3860 = vmatprep.subr.bf16.mxu0 0
        %3861 = vmatpush1.bf16.msra.mxu0 %v3553
        %3862 = vmatprep.subr.bf16.mxu0 0
        %3863 = vmatpush1.bf16.msra.mxu0 %v3554
        %3864 = vmatprep.subr.bf16.mxu0 0
        %3865 = vmatpush1.bf16.msra.mxu0 %v3555
        %3866 = vmatprep.subr.bf16.mxu0 0
        %3867 = vmatpush1.bf16.msra.mxu0 %v3556
        %3868 = vmatprep.subr.bf16.mxu0 0
        %3869 = vmatpush1.bf16.msra.mxu0 %v3557
        %3870 = vmatprep.subr.bf16.mxu0 0
        %3871 = vmatpush1.bf16.msra.mxu0 %v3558
        %3872 = vmatprep.subr.bf16.mxu0 0
        %3873 = vmatpush1.bf16.msra.mxu0 %v3559
        %3874 = vmatprep.subr.bf16.mxu0 0
        %3875 = vmatpush1.bf16.msra.mxu0 %v3560
        %3876 = vmatprep.subr.bf16.mxu0 0
        %3877 = vmatpush1.bf16.msra.mxu0 %v3561
        %3878 = vmatprep.subr.bf16.mxu0 0
        %3879 = vmatpush1.bf16.msra.mxu0 %v3562
        %3880 = vmatprep.subr.bf16.mxu0 0
        %3881 = vmatpush1.bf16.msra.mxu0 %v3563
        %3882 = vmatprep.subr.bf16.mxu0 0
        %3883 = vmatpush1.bf16.msra.mxu0 %v3564
        %3884 = vmatprep.subr.bf16.mxu0 0
        %3885 = vmatpush1.bf16.msra.mxu0 %v3565
        %3886 = vmatprep.mubr.bf16.mxu0 %v2989
        %3887 = vmatmul.mubr.bf16.gmra.mrb[0].mxu0 %v2988
        %v3888 = vpop.f32.mrb[0].mxu0
        %v3889 = vadd.f32 %v3849, %v3888
        %v3890 = vpop.f32.mrb[0].mxu0
        %v3891 = vpop.f32.mrb[0].mxu0
        %v3892 = vpop.f32.mrb[0].mxu0
        %3893 = vdwg.mxu0
        %3894 = vmatprep.subr.bf16.mxu0 0
        %3895 = vmatpush1.bf16.msra.mxu0 %v3566
        %3896 = vmatprep.subr.bf16.mxu0 0
        %3897 = vmatpush1.bf16.msra.mxu0 %v3567
        %3898 = vmatprep.subr.bf16.mxu0 0
        %3899 = vmatpush1.bf16.msra.mxu0 %v3568
        %3900 = vmatprep.subr.bf16.mxu0 0
        %3901 = vmatpush1.bf16.msra.mxu0 %v3569
        %3902 = vmatprep.subr.bf16.mxu0 0
        %3903 = vmatpush1.bf16.msra.mxu0 %v3570
        %3904 = vmatprep.subr.bf16.mxu0 0
        %3905 = vmatpush1.bf16.msra.mxu0 %v3571
        %3906 = vmatprep.subr.bf16.mxu0 0
        %3907 = vmatpush1.bf16.msra.mxu0 %v3572
        %3908 = vmatprep.subr.bf16.mxu0 0
        %3909 = vmatpush1.bf16.msra.mxu0 %v3573
        %3910 = vmatprep.subr.bf16.mxu0 0
        %3911 = vmatpush1.bf16.msra.mxu0 %v3574
        %3912 = vmatprep.subr.bf16.mxu0 0
        %3913 = vmatpush1.bf16.msra.mxu0 %v3575
        %3914 = vmatprep.subr.bf16.mxu0 0
        %3915 = vmatpush1.bf16.msra.mxu0 %v3576
        %3916 = vmatprep.subr.bf16.mxu0 0
        %3917 = vmatpush1.bf16.msra.mxu0 %v3577
        %3918 = vmatprep.subr.bf16.mxu0 0
        %3919 = vmatpush1.bf16.msra.mxu0 %v3578
        %3920 = vmatprep.subr.bf16.mxu0 0
        %3921 = vmatpush1.bf16.msra.mxu0 %v3579
        %3922 = vmatprep.subr.bf16.mxu0 0
        %3923 = vmatpush1.bf16.msra.mxu0 %v3580
        %3924 = vmatprep.subr.bf16.mxu0 0
        %3925 = vmatpush1.bf16.msra.mxu0 %v3581
        %3926 = vmatprep.mubr.bf16.mxu0 %v2991
        %3927 = vmatmul.mubr.bf16.gmra.mrb[0].mxu0 %v2990
        %v3928 = vpop.f32.mrb[0].mxu0
        %v3929 = vadd.f32 %v3889, %v3928
        %v3930 = vpop.f32.mrb[0].mxu0
        %v3931 = vpop.f32.mrb[0].mxu0
        %v3932 = vpop.f32.mrb[0].mxu0
        %3933 = vdwg.mxu0
        %3934 = vmatprep.subr.bf16.mxu0 0
        %3935 = vmatpush1.bf16.msra.mxu0 %v3582
        %3936 = vmatprep.subr.bf16.mxu0 0
        %3937 = vmatpush1.bf16.msra.mxu0 %v3583
        %3938 = vmatprep.subr.bf16.mxu0 0
        %3939 = vmatpush1.bf16.msra.mxu0 %v3584
        %3940 = vmatprep.subr.bf16.mxu0 0
        %3941 = vmatpush1.bf16.msra.mxu0 %v3585
        %3942 = vmatprep.subr.bf16.mxu0 0
        %3943 = vmatpush1.bf16.msra.mxu0 %v3586
        %3944 = vmatprep.subr.bf16.mxu0 0
        %3945 = vmatpush1.bf16.msra.mxu0 %v3587
        %3946 = vmatprep.subr.bf16.mxu0 0
        %3947 = vmatpush1.bf16.msra.mxu0 %v3588
        %3948 = vmatprep.subr.bf16.mxu0 0
        %3949 = vmatpush1.bf16.msra.mxu0 %v3589
        %3950 = vmatprep.subr.bf16.mxu0 0
        %3951 = vmatpush1.bf16.msra.mxu0 %v3590
        %3952 = vmatprep.subr.bf16.mxu0 0
        %3953 = vmatpush1.bf16.msra.mxu0 %v3591
        %3954 = vmatprep.subr.bf16.mxu0 0
        %3955 = vmatpush1.bf16.msra.mxu0 %v3592
        %3956 = vmatprep.subr.bf16.mxu0 0
        %3957 = vmatpush1.bf16.msra.mxu0 %v3593
        %3958 = vmatprep.subr.bf16.mxu0 0
        %3959 = vmatpush1.bf16.msra.mxu0 %v3594
        %3960 = vmatprep.subr.bf16.mxu0 0
        %3961 = vmatpush1.bf16.msra.mxu0 %v3595
        %3962 = vmatprep.subr.bf16.mxu0 0
        %3963 = vmatpush1.bf16.msra.mxu0 %v3596
        %3964 = vmatprep.subr.bf16.mxu0 0
        %3965 = vmatpush1.bf16.msra.mxu0 %v3597
        %3966 = vmatprep.mubr.bf16.mxu0 %v2993
        %3967 = vmatmul.mubr.bf16.gmra.mrb[0].mxu0 %v2992
        %v3968 = vpop.f32.mrb[0].mxu0
        %v3969 = vadd.f32 %v3929, %v3968
        %v3970 = vpop.f32.mrb[0].mxu0
        %v3971 = vpop.f32.mrb[0].mxu0
        %v3972 = vpop.f32.mrb[0].mxu0
        %3973 = vdwg.mxu0
        %3974 = vmatprep.subr.bf16.mxu0 0
        %3975 = vmatpush1.bf16.msra.mxu0 %v3598
        %3976 = vmatprep.subr.bf16.mxu0 0
        %3977 = vmatpush1.bf16.msra.mxu0 %v3599
        %3978 = vmatprep.subr.bf16.mxu0 0
        %3979 = vmatpush1.bf16.msra.mxu0 %v3600
        %3980 = vmatprep.subr.bf16.mxu0 0
        %3981 = vmatpush1.bf16.msra.mxu0 %v3601
        %3982 = vmatprep.subr.bf16.mxu0 0
        %3983 = vmatpush1.bf16.msra.mxu0 %v3602
        %3984 = vmatprep.subr.bf16.mxu0 0
        %3985 = vmatpush1.bf16.msra.mxu0 %v3603
        %3986 = vmatprep.subr.bf16.mxu0 0
        %3987 = vmatpush1.bf16.msra.mxu0 %v3604
        %3988 = vmatprep.subr.bf16.mxu0 0
        %3989 = vmatpush1.bf16.msra.mxu0 %v3605
        %3990 = vmatprep.subr.bf16.mxu0 0
        %3991 = vmatpush1.bf16.msra.mxu0 %v3606
        %3992 = vmatprep.subr.bf16.mxu0 0
        %3993 = vmatpush1.bf16.msra.mxu0 %v3607
        %3994 = vmatprep.subr.bf16.mxu0 0
        %3995 = vmatpush1.bf16.msra.mxu0 %v3608
        %3996 = vmatprep.subr.bf16.mxu0 0
        %3997 = vmatpush1.bf16.msra.mxu0 %v3609
        %3998 = vmatprep.subr.bf16.mxu0 0
        %3999 = vmatpush1.bf16.msra.mxu0 %v3610
        %4000 = vmatprep.subr.bf16.mxu0 0
        %4001 = vmatpush1.bf16.msra.mxu0 %v3611
        %4002 = vmatprep.subr.bf16.mxu0 0
        %4003 = vmatpush1.bf16.msra.mxu0 %v3612
        %4004 = vmatprep.subr.bf16.mxu0 0
        %4005 = vmatpush1.bf16.msra.mxu0 %v3613
        %4006 = vmatprep.mubr.bf16.mxu0 %v2995
        %4007 = vmatmul.mubr.bf16.gmra.mrb[0].mxu0 %v2994
        %v4008 = vpop.f32.mrb[0].mxu0
        %v4009 = vadd.f32 %v3969, %v4008
        %v4010 = vpop.f32.mrb[0].mxu0
        %v4011 = vpop.f32.mrb[0].mxu0
        %v4012 = vpop.f32.mrb[0].mxu0
        %4013 = vdwg.mxu0
        %4014 = vmatprep.subr.bf16.mxu0 0
        %4015 = vmatpush1.bf16.msra.mxu0 %v3614
        %4016 = vmatprep.subr.bf16.mxu0 0
        %4017 = vmatpush1.bf16.msra.mxu0 %v3615
        %4018 = vmatprep.subr.bf16.mxu0 0
        %4019 = vmatpush1.bf16.msra.mxu0 %v3616
        %4020 = vmatprep.subr.bf16.mxu0 0
        %4021 = vmatpush1.bf16.msra.mxu0 %v3617
        %4022 = vmatprep.subr.bf16.mxu0 0
        %4023 = vmatpush1.bf16.msra.mxu0 %v3618
        %4024 = vmatprep.subr.bf16.mxu0 0
        %4025 = vmatpush1.bf16.msra.mxu0 %v3619
        %4026 = vmatprep.subr.bf16.mxu0 0
        %4027 = vmatpush1.bf16.msra.mxu0 %v3620
        %4028 = vmatprep.subr.bf16.mxu0 0
        %4029 = vmatpush1.bf16.msra.mxu0 %v3621
        %4030 = vmatprep.subr.bf16.mxu0 0
        %4031 = vmatpush1.bf16.msra.mxu0 %v3622
        %4032 = vmatprep.subr.bf16.mxu0 0
        %4033 = vmatpush1.bf16.msra.mxu0 %v3623
        %4034 = vmatprep.subr.bf16.mxu0 0
        %4035 = vmatpush1.bf16.msra.mxu0 %v3624
        %4036 = vmatprep.subr.bf16.mxu0 0
        %4037 = vmatpush1.bf16.msra.mxu0 %v3625
        %4038 = vmatprep.subr.bf16.mxu0 0
        %4039 = vmatpush1.bf16.msra.mxu0 %v3626
        %4040 = vmatprep.subr.bf16.mxu0 0
        %4041 = vmatpush1.bf16.msra.mxu0 %v3627
        %4042 = vmatprep.subr.bf16.mxu0 0
        %4043 = vmatpush1.bf16.msra.mxu0 %v3628
        %4044 = vmatprep.subr.bf16.mxu0 0
        %4045 = vmatpush1.bf16.msra.mxu0 %v3629
        %4046 = vmatprep.mubr.bf16.mxu0 %v2997
        %4047 = vmatmul.mubr.bf16.gmra.mrb[0].mxu0 %v2996
        %v4048 = vpop.f32.mrb[0].mxu0
        %v4049 = vadd.f32 %v4009, %v4048
        %v4050 = vpop.f32.mrb[0].mxu0
        %v4051 = vpop.f32.mrb[0].mxu0
        %v4052 = vpop.f32.mrb[0].mxu0
        %4053 = vdwg.mxu0
        %4054 = vmatprep.subr.bf16.mxu0 0
        %4055 = vmatpush1.bf16.msra.mxu0 %v3630
        %4056 = vmatprep.subr.bf16.mxu0 0
        %4057 = vmatpush1.bf16.msra.mxu0 %v3631
        %4058 = vmatprep.subr.bf16.mxu0 0
        %4059 = vmatpush1.bf16.msra.mxu0 %v3632
        %4060 = vmatprep.subr.bf16.mxu0 0
        %4061 = vmatpush1.bf16.msra.mxu0 %v3633
        %4062 = vmatprep.subr.bf16.mxu0 0
        %4063 = vmatpush1.bf16.msra.mxu0 %v3634
        %4064 = vmatprep.subr.bf16.mxu0 0
        %4065 = vmatpush1.bf16.msra.mxu0 %v3635
        %4066 = vmatprep.subr.bf16.mxu0 0
        %4067 = vmatpush1.bf16.msra.mxu0 %v3636
        %4068 = vmatprep.subr.bf16.mxu0 0
        %4069 = vmatpush1.bf16.msra.mxu0 %v3637
        %4070 = vmatprep.subr.bf16.mxu0 0
        %4071 = vmatpush1.bf16.msra.mxu0 %v3638
        %4072 = vmatprep.subr.bf16.mxu0 0
        %4073 = vmatpush1.bf16.msra.mxu0 %v3639
        %4074 = vmatprep.subr.bf16.mxu0 0
        %4075 = vmatpush1.bf16.msra.mxu0 %v3640
        %4076 = vmatprep.subr.bf16.mxu0 0
        %4077 = vmatpush1.bf16.msra.mxu0 %v3641
        %4078 = vmatprep.subr.bf16.mxu0 0
        %4079 = vmatpush1.bf16.msra.mxu0 %v3642
        %4080 = vmatprep.subr.bf16.mxu0 0
        %4081 = vmatpush1.bf16.msra.mxu0 %v3643
        %4082 = vmatprep.subr.bf16.mxu0 0
        %4083 = vmatpush1.bf16.msra.mxu0 %v3644
        %4084 = vmatprep.subr.bf16.mxu0 0
        %4085 = vmatpush1.bf16.msra.mxu0 %v3645
        %4086 = vmatprep.mubr.bf16.mxu0 %v2999
        %4087 = vmatmul.mubr.bf16.gmra.mrb[0].mxu0 %v2998
        %v4088 = vpop.f32.mrb[0].mxu0
        %v4089 = vadd.f32 %v4049, %v4088
        %v4090 = vpop.f32.mrb[0].mxu0
        %v4091 = vpop.f32.mrb[0].mxu0
        %v4092 = vpop.f32.mrb[0].mxu0
        %4093 = vdwg.mxu0
        %v4094 = vadd.f32 %v1910, %v4089
        %v4095 = vld [vmem:[%s13] sm:$0x1]
        %v4096 = vld [vmem:[%s14] sm:$0x1]
        %v4097 = vsel %vm665, %v4094, 0.0
        %4098 = vadd.xlane.f32.xlu0 %v4097
        %v4099 = vpop.xlane.xlu0 %4098
        %v4100 = vmul.f32 %v4099, %v1886
        %v4101 = vsub.f32 %v4094, %v4100
        %v4102 = vmul.f32 %v4101, %v4101
        %v4103 = vsel %vm665, %v4102, 0.0
        %4104 = vadd.xlane.f32.xlu0 %v4103
        %v4105 = vpop.xlane.xlu0 %4104
        %v4106 = vmul.f32 %v4105, %v1886
        %v4107 = vadd.f32 %v4106, 1e-05
        %v4108 = vrsqrt.pop %v4107
        %v4109 = vmul.f32 %v4101, %v4108
        %v4111 = vlaneseq
        %v4112 = vshrl.u32 %v4111, 7
        %v4113 = vsub.s32 0, %v4112
        %v4114 = vrot.slane %v4095, %v4113
        %v4116 = vmul.f32 %v4109, %v4114
        %v4118 = vlaneseq
        %v4119 = vshrl.u32 %v4118, 7
        %v4120 = vsub.s32 0, %v4119
        %v4121 = vrot.slane %v4096, %v4120
        %v4123 = vadd.f32 %v4116, %v4121
        %s4124 = scalar_lea.vmem %s3, 64
        %v4125 = vld [vmem:[%s4124] sm:$0xff]
        %v4126 = vld [vmem:[%s4124 + $0x8] sm:$0xff]
        %v4127 = vld [vmem:[%s4124 + $0x10] sm:$0xff]
        %v4128 = vld [vmem:[%s4124 + $0x18] sm:$0xff]
        %v4129 = vld [vmem:[%s4124 + $0x20] sm:$0xff]
        %v4130 = vld [vmem:[%s4124 + $0x28] sm:$0xff]
        %v4131 = vld [vmem:[%s4124 + $0x30] sm:$0xff]
        %v4132 = vld [vmem:[%s4124 + $0x38] sm:$0xff]
        %v4133 = vpack.c.bf16 %v4123, %v4123
        %s4134 = scalar_lea.vmem %s4, 2
        %v4135 = vld [vmem:[%s4134] sm:$0x3]
        %v4137 = vlaneseq
        %v4138 = vshrl.u32 %v4137, 7
        %v4139 = vsub.s32 0, %v4138
        %v4140 = vrot.slane %v4135, %v4139
        %v4141 = vlaneseq
        %v4142 = vshrl.u32 %v4141, 7
        %v4143 = vsub.s32 1, %v4142
        %v4144 = vrot.slane %v4135, %v4143
        %v4155 = vunpack.c.l.b16 %v4125
        %v4156 = vunpack.c.h.b16 %v4125
        %v4157 = vunpack.c.l.b16 %v4126
        %v4158 = vunpack.c.h.b16 %v4126
        %v4159 = vunpack.c.l.b16 %v4127
        %v4160 = vunpack.c.h.b16 %v4127
        %v4161 = vunpack.c.l.b16 %v4128
        %v4162 = vunpack.c.h.b16 %v4128
        %v4163 = vunpack.c.l.b16 %v4129
        %v4164 = vunpack.c.h.b16 %v4129
        %v4165 = vunpack.c.l.b16 %v4130
        %v4166 = vunpack.c.h.b16 %v4130
        %v4167 = vunpack.c.l.b16 %v4131
        %v4168 = vunpack.c.h.b16 %v4131
        %v4169 = vunpack.c.l.b16 %v4132
        %v4170 = vunpack.c.h.b16 %v4132
        %v4171 = vpack.c.b16 %v4157, %v4155
        %v4172 = vpack.c.b16 %v4158, %v4156
        %v4173 = vpack.c.b16 %v4161, %v4159
        %v4174 = vpack.c.b16 %v4162, %v4160
        %v4175 = vpack.c.b16 %v4165, %v4163
        %v4176 = vpack.c.b16 %v4166, %v4164
        %v4177 = vpack.c.b16 %v4169, %v4167
        %v4178 = vpack.c.b16 %v4170, %v4168
        %v4188 = vsel %vm665, %v4133, 0
        %4190 = vmatprep.subr.bf16.mxu0 %v4172
        %4191 = vmatpush1.bf16.msra.mxu0 %v4171
        %4192 = vmatprep.subr.bf16.mxu0 %v4174
        %4193 = vmatpush1.bf16.msra.mxu0 %v4173
        %4194 = vmatprep.subr.bf16.mxu0 %v4176
        %4195 = vmatpush1.bf16.msra.mxu0 %v4175
        %4196 = vmatprep.subr.bf16.mxu0 %v4178
        %4197 = vmatpush1.bf16.msra.mxu0 %v4177
        %4198 = vmatprep.subr.bf16.mxu0 0
        %4199 = vmatpush1.bf16.msra.mxu0 0
        %4200 = vmatprep.subr.bf16.mxu0 0
        %4201 = vmatpush1.bf16.msra.mxu0 0
        %4202 = vmatprep.subr.bf16.mxu0 0
        %4203 = vmatpush1.bf16.msra.mxu0 0
        %4204 = vmatprep.subr.bf16.mxu0 0
        %4205 = vmatpush1.bf16.msra.mxu0 0
        %4206 = vmatprep.subr.bf16.mxu0 0
        %4207 = vmatpush1.bf16.msra.mxu0 0
        %4208 = vmatprep.subr.bf16.mxu0 0
        %4209 = vmatpush1.bf16.msra.mxu0 0
        %4210 = vmatprep.subr.bf16.mxu0 0
        %4211 = vmatpush1.bf16.msra.mxu0 0
        %4212 = vmatprep.subr.bf16.mxu0 0
        %4213 = vmatpush1.bf16.msra.mxu0 0
        %4214 = vmatprep.subr.bf16.mxu0 0
        %4215 = vmatpush1.bf16.msra.mxu0 0
        %4216 = vmatprep.subr.bf16.mxu0 0
        %4217 = vmatpush1.bf16.msra.mxu0 0
        %4218 = vmatprep.subr.bf16.mxu0 0
        %4219 = vmatpush1.bf16.msra.mxu0 0
        %4220 = vmatprep.subr.bf16.mxu0 0
        %4221 = vmatpush1.bf16.msra.mxu0 0
        %4222 = vmatprep.mubr.bf16.mxu0 0
        %4223 = vmatmul.mubr.bf16.gmra.mrb[0].mxu0 %v4188
        %v4224 = vpop.f32.mrb[0].mxu0
        %v4225 = vadd.f32 %v4140, %v4224
        %v4226 = vpop.f32.mrb[0].mxu0
        %v4227 = vadd.f32 %v4144, %v4226
        %v4228 = vpop.f32.mrb[0].mxu0
        %v4229 = vpop.f32.mrb[0].mxu0
        %4230 = vdwg.mxu0
        %v4231 = vmul.f32 %v4225, 0.25
        %v4232 = vpack.c.bf16 %v4231, %v4231
        %4234 = vrot.lane.b32.xlu0 %v4232, 112
        %v4235 = vpop.permute.xlu0 %4234
        %4236 = vrot.lane.b32.xlu0 %v4232, 96
        %v4237 = vpop.permute.xlu0 %4236
        %4238 = vrot.lane.b32.xlu0 %v4232, 80
        %v4239 = vpop.permute.xlu0 %4238
        %v4241 = vunpack.c.l.s4 1983009808
        %v4242 = vunpack.c.0.s8 %v4241
        %v4243 = vlaneseq
        %v4244 = vshrl.u32 %v4243, 7
        %v4245 = vsub.s32 %v4242, %v4244
        %v4246 = vrot.slane %v4232, %v4245
        %v4249 = vunpack.c.l.s4 1983009808
        %v4250 = vunpack.c.0.s8 %v4249
        %v4251 = vlaneseq
        %v4252 = vshrl.u32 %v4251, 7
        %v4253 = vsub.s32 %v4250, %v4252
        %v4254 = vrot.slane %v4237, %v4253
        %v4255 = vcombine.low %v4246, %v4254
        %v4256 = vcombine.high %v4246, %v4254
        %v4258 = vunpack.c.l.s4 1934713408
        %v4259 = vunpack.c.0.s8 %v4258
        %v4260 = vlaneseq
        %v4261 = vshrl.u32 %v4260, 7
        %v4262 = vsub.s32 %v4259, %v4261
        %v4263 = vrot.slane %v4255, %v4262
        %v4265 = vunpack.c.l.s4 1934713408
        %v4266 = vunpack.c.0.s8 %v4265
        %v4267 = vlaneseq
        %v4268 = vshrl.u32 %v4267, 7
        %v4269 = vsub.s32 %v4266, %v4268
        %v4270 = vrot.slane %v4256, %v4269
        %v4271 = vcombine.high %v4263, 0
        %v4272 = vcombine.high %v4270, 0
        %v4275 = vunpack.c.l.s4 1983009808
        %v4276 = vunpack.c.0.s8 %v4275
        %v4277 = vlaneseq
        %v4278 = vshrl.u32 %v4277, 7
        %v4279 = vsub.s32 %v4276, %v4278
        %v4280 = vrot.slane %v4235, %v4279
        %v4283 = vunpack.c.l.s4 1983009808
        %v4284 = vunpack.c.0.s8 %v4283
        %v4285 = vlaneseq
        %v4286 = vshrl.u32 %v4285, 7
        %v4287 = vsub.s32 %v4284, %v4286
        %v4288 = vrot.slane %v4239, %v4287
        %v4289 = vcombine.low %v4280, %v4288
        %v4290 = vcombine.high %v4280, %v4288
        %v4292 = vunpack.c.l.s4 1934713408
        %v4293 = vunpack.c.0.s8 %v4292
        %v4294 = vlaneseq
        %v4295 = vshrl.u32 %v4294, 7
        %v4296 = vsub.s32 %v4293, %v4295
        %v4297 = vrot.slane %v4289, %v4296
        %v4299 = vunpack.c.l.s4 1934713408
        %v4300 = vunpack.c.0.s8 %v4299
        %v4301 = vlaneseq
        %v4302 = vshrl.u32 %v4301, 7
        %v4303 = vsub.s32 %v4300, %v4302
        %v4304 = vrot.slane %v4290, %v4303
        %v4305 = vcombine.high %v4297, 0
        %v4306 = vcombine.high %v4304, 0
        %v4309 = vpack.i.b16 %v4297, %v4263
        %v4311 = vshrl.u32 %v4263, 16
        %v4312 = vshrl.u32 %v4297, 16
        %v4313 = vpack.i.b16 %v4312, %v4311
        %v4317 = vpack.i.b16 %v4305, %v4271
        %v4319 = vshrl.u32 %v4271, 16
        %v4320 = vshrl.u32 %v4305, 16
        %v4321 = vpack.i.b16 %v4320, %v4319
        %v4325 = vpack.i.b16 %v4304, %v4270
        %v4327 = vshrl.u32 %v4270, 16
        %v4328 = vshrl.u32 %v4304, 16
        %v4329 = vpack.i.b16 %v4328, %v4327
        %v4333 = vpack.i.b16 %v4306, %v4272
        %v4335 = vshrl.u32 %v4272, 16
        %v4336 = vshrl.u32 %v4306, 16
        %v4337 = vpack.i.b16 %v4336, %v4335
        %v4339 = vcombine.low %v4309, %v4325
        %v4341 = vunpack.c.l.s4 1983009808
        %v4342 = vunpack.c.0.s8 %v4341
        %v4343 = vlaneseq
        %v4344 = vshrl.u32 %v4343, 7
        %v4345 = vsub.s32 %v4342, %v4344
        %v4346 = vrot.slane %v4339, %v4345
        %v4347 = vcombine.low %v4317, %v4333
        %v4349 = vunpack.c.l.s4 1983009808
        %v4350 = vunpack.c.0.s8 %v4349
        %v4351 = vlaneseq
        %v4352 = vshrl.u32 %v4351, 7
        %v4353 = vsub.s32 %v4350, %v4352
        %v4354 = vrot.slane %v4347, %v4353
        %v4355 = vcombine.low %v4346, %v4354
        %v4357 = vunpack.c.l.s4 1934713408
        %v4358 = vunpack.c.0.s8 %v4357
        %v4359 = vlaneseq
        %v4360 = vshrl.u32 %v4359, 7
        %v4361 = vsub.s32 %v4358, %v4360
        %v4362 = vrot.slane %v4355, %v4361
        %v4363 = vcombine.high %v4362, 0
        %v4364 = vcombine.low %v4313, %v4329
        %v4366 = vunpack.c.l.s4 1983009808
        %v4367 = vunpack.c.0.s8 %v4366
        %v4368 = vlaneseq
        %v4369 = vshrl.u32 %v4368, 7
        %v4370 = vsub.s32 %v4367, %v4369
        %v4371 = vrot.slane %v4364, %v4370
        %v4372 = vcombine.low %v4321, %v4337
        %v4374 = vunpack.c.l.s4 1983009808
        %v4375 = vunpack.c.0.s8 %v4374
        %v4376 = vlaneseq
        %v4377 = vshrl.u32 %v4376, 7
        %v4378 = vsub.s32 %v4375, %v4377
        %v4379 = vrot.slane %v4372, %v4378
        %v4380 = vcombine.low %v4371, %v4379
        %v4382 = vunpack.c.l.s4 1934713408
        %v4383 = vunpack.c.0.s8 %v4382
        %v4384 = vlaneseq
        %v4385 = vshrl.u32 %v4384, 7
        %v4386 = vsub.s32 %v4383, %v4385
        %v4387 = vrot.slane %v4380, %v4386
        %v4388 = vcombine.high %v4387, 0
        %v4391 = vpack.i.b16 %v4387, %v4362
        %v4392 = vshrl.u32 %v4362, 16
        %v4393 = vshrl.u32 %v4387, 16
        %v4394 = vpack.i.b16 %v4393, %v4392
        %v4397 = vpack.i.b16 %v4388, %v4363
        %v4398 = vshrl.u32 %v4363, 16
        %v4399 = vshrl.u32 %v4388, 16
        %v4400 = vpack.i.b16 %v4399, %v4398
        %v4401 = vpack.c.bf16 %v4225, %v4225
        %4403 = vrot.lane.b32.xlu0 %v4401, 112
        %v4404 = vpop.permute.xlu0 %4403
        %4405 = vrot.lane.b32.xlu0 %v4401, 96
        %v4406 = vpop.permute.xlu0 %4405
        %4407 = vrot.lane.b32.xlu0 %v4401, 80
        %v4408 = vpop.permute.xlu0 %4407
        %4409 = vrot.lane.b32.xlu0 %v4401, 64
        %v4410 = vpop.permute.xlu0 %4409
        %4411 = vrot.lane.b32.xlu0 %v4404, 64
        %v4412 = vpop.permute.xlu0 %4411
        %4413 = vrot.lane.b32.xlu0 %v4406, 64
        %v4414 = vpop.permute.xlu0 %4413
        %4415 = vrot.lane.b32.xlu0 %v4408, 64
        %v4416 = vpop.permute.xlu0 %4415
        %v4419 = vunpack.c.l.s4 1983009808
        %v4420 = vunpack.c.0.s8 %v4419
        %v4421 = vlaneseq
        %v4422 = vshrl.u32 %v4421, 7
        %v4423 = vsub.s32 %v4420, %v4422
        %v4424 = vrot.slane %v4410, %v4423
        %v4427 = vunpack.c.l.s4 1983009808
        %v4428 = vunpack.c.0.s8 %v4427
        %v4429 = vlaneseq
        %v4430 = vshrl.u32 %v4429, 7
        %v4431 = vsub.s32 %v4428, %v4430
        %v4432 = vrot.slane %v4414, %v4431
        %v4433 = vcombine.low %v4424, %v4432
        %v4434 = vcombine.high %v4424, %v4432
        %v4436 = vunpack.c.l.s4 1934713408
        %v4437 = vunpack.c.0.s8 %v4436
        %v4438 = vlaneseq
        %v4439 = vshrl.u32 %v4438, 7
        %v4440 = vsub.s32 %v4437, %v4439
        %v4441 = vrot.slane %v4433, %v4440
        %v4443 = vunpack.c.l.s4 1934713408
        %v4444 = vunpack.c.0.s8 %v4443
        %v4445 = vlaneseq
        %v4446 = vshrl.u32 %v4445, 7
        %v4447 = vsub.s32 %v4444, %v4446
        %v4448 = vrot.slane %v4434, %v4447
        %v4449 = vcombine.high %v4441, 0
        %v4450 = vcombine.high %v4448, 0
        %v4453 = vunpack.c.l.s4 1983009808
        %v4454 = vunpack.c.0.s8 %v4453
        %v4455 = vlaneseq
        %v4456 = vshrl.u32 %v4455, 7
        %v4457 = vsub.s32 %v4454, %v4456
        %v4458 = vrot.slane %v4412, %v4457
        %v4461 = vunpack.c.l.s4 1983009808
        %v4462 = vunpack.c.0.s8 %v4461
        %v4463 = vlaneseq
        %v4464 = vshrl.u32 %v4463, 7
        %v4465 = vsub.s32 %v4462, %v4464
        %v4466 = vrot.slane %v4416, %v4465
        %v4467 = vcombine.low %v4458, %v4466
        %v4468 = vcombine.high %v4458, %v4466
        %v4470 = vunpack.c.l.s4 1934713408
        %v4471 = vunpack.c.0.s8 %v4470
        %v4472 = vlaneseq
        %v4473 = vshrl.u32 %v4472, 7
        %v4474 = vsub.s32 %v4471, %v4473
        %v4475 = vrot.slane %v4467, %v4474
        %v4477 = vunpack.c.l.s4 1934713408
        %v4478 = vunpack.c.0.s8 %v4477
        %v4479 = vlaneseq
        %v4480 = vshrl.u32 %v4479, 7
        %v4481 = vsub.s32 %v4478, %v4480
        %v4482 = vrot.slane %v4468, %v4481
        %v4483 = vcombine.high %v4475, 0
        %v4484 = vcombine.high %v4482, 0
        %v4487 = vpack.i.b16 %v4475, %v4441
        %v4489 = vshrl.u32 %v4441, 16
        %v4490 = vshrl.u32 %v4475, 16
        %v4491 = vpack.i.b16 %v4490, %v4489
        %v4495 = vpack.i.b16 %v4483, %v4449
        %v4497 = vshrl.u32 %v4449, 16
        %v4498 = vshrl.u32 %v4483, 16
        %v4499 = vpack.i.b16 %v4498, %v4497
        %v4503 = vpack.i.b16 %v4482, %v4448
        %v4505 = vshrl.u32 %v4448, 16
        %v4506 = vshrl.u32 %v4482, 16
        %v4507 = vpack.i.b16 %v4506, %v4505
        %v4511 = vpack.i.b16 %v4484, %v4450
        %v4513 = vshrl.u32 %v4450, 16
        %v4514 = vshrl.u32 %v4484, 16
        %v4515 = vpack.i.b16 %v4514, %v4513
        %v4517 = vcombine.low %v4487, %v4503
        %v4519 = vunpack.c.l.s4 1983009808
        %v4520 = vunpack.c.0.s8 %v4519
        %v4521 = vlaneseq
        %v4522 = vshrl.u32 %v4521, 7
        %v4523 = vsub.s32 %v4520, %v4522
        %v4524 = vrot.slane %v4517, %v4523
        %v4525 = vcombine.low %v4495, %v4511
        %v4527 = vunpack.c.l.s4 1983009808
        %v4528 = vunpack.c.0.s8 %v4527
        %v4529 = vlaneseq
        %v4530 = vshrl.u32 %v4529, 7
        %v4531 = vsub.s32 %v4528, %v4530
        %v4532 = vrot.slane %v4525, %v4531
        %v4533 = vcombine.low %v4524, %v4532
        %v4535 = vunpack.c.l.s4 1934713408
        %v4536 = vunpack.c.0.s8 %v4535
        %v4537 = vlaneseq
        %v4538 = vshrl.u32 %v4537, 7
        %v4539 = vsub.s32 %v4536, %v4538
        %v4540 = vrot.slane %v4533, %v4539
        %v4541 = vcombine.high %v4540, 0
        %v4542 = vcombine.low %v4491, %v4507
        %v4544 = vunpack.c.l.s4 1983009808
        %v4545 = vunpack.c.0.s8 %v4544
        %v4546 = vlaneseq
        %v4547 = vshrl.u32 %v4546, 7
        %v4548 = vsub.s32 %v4545, %v4547
        %v4549 = vrot.slane %v4542, %v4548
        %v4550 = vcombine.low %v4499, %v4515
        %v4552 = vunpack.c.l.s4 1983009808
        %v4553 = vunpack.c.0.s8 %v4552
        %v4554 = vlaneseq
        %v4555 = vshrl.u32 %v4554, 7
        %v4556 = vsub.s32 %v4553, %v4555
        %v4557 = vrot.slane %v4550, %v4556
        %v4558 = vcombine.low %v4549, %v4557
        %v4560 = vunpack.c.l.s4 1934713408
        %v4561 = vunpack.c.0.s8 %v4560
        %v4562 = vlaneseq
        %v4563 = vshrl.u32 %v4562, 7
        %v4564 = vsub.s32 %v4561, %v4563
        %v4565 = vrot.slane %v4558, %v4564
        %v4566 = vcombine.high %v4565, 0
        %v4569 = vpack.i.b16 %v4565, %v4540
        %v4570 = vshrl.u32 %v4540, 16
        %v4571 = vshrl.u32 %v4565, 16
        %v4572 = vpack.i.b16 %v4571, %v4570
        %v4575 = vpack.i.b16 %v4566, %v4541
        %v4576 = vshrl.u32 %v4541, 16
        %v4577 = vshrl.u32 %v4566, 16
        %v4578 = vpack.i.b16 %v4577, %v4576
        %v4579 = vpack.c.bf16 %v4227, %v4227
        %4581 = vrot.lane.b32.xlu0 %v4579, 112
        %v4582 = vpop.permute.xlu0 %4581
        %4583 = vrot.lane.b32.xlu0 %v4579, 96
        %v4584 = vpop.permute.xlu0 %4583
        %4585 = vrot.lane.b32.xlu0 %v4579, 80
        %v4586 = vpop.permute.xlu0 %4585
        %v4588 = vunpack.c.l.s4 1983009808
        %v4589 = vunpack.c.0.s8 %v4588
        %v4590 = vlaneseq
        %v4591 = vshrl.u32 %v4590, 7
        %v4592 = vsub.s32 %v4589, %v4591
        %v4593 = vrot.slane %v4579, %v4592
        %v4596 = vunpack.c.l.s4 1983009808
        %v4597 = vunpack.c.0.s8 %v4596
        %v4598 = vlaneseq
        %v4599 = vshrl.u32 %v4598, 7
        %v4600 = vsub.s32 %v4597, %v4599
        %v4601 = vrot.slane %v4584, %v4600
        %v4602 = vcombine.low %v4593, %v4601
        %v4603 = vcombine.high %v4593, %v4601
        %v4605 = vunpack.c.l.s4 1934713408
        %v4606 = vunpack.c.0.s8 %v4605
        %v4607 = vlaneseq
        %v4608 = vshrl.u32 %v4607, 7
        %v4609 = vsub.s32 %v4606, %v4608
        %v4610 = vrot.slane %v4602, %v4609
        %v4612 = vunpack.c.l.s4 1934713408
        %v4613 = vunpack.c.0.s8 %v4612
        %v4614 = vlaneseq
        %v4615 = vshrl.u32 %v4614, 7
        %v4616 = vsub.s32 %v4613, %v4615
        %v4617 = vrot.slane %v4603, %v4616
        %v4618 = vcombine.high %v4610, 0
        %v4619 = vcombine.high %v4617, 0
        %v4622 = vunpack.c.l.s4 1983009808
        %v4623 = vunpack.c.0.s8 %v4622
        %v4624 = vlaneseq
        %v4625 = vshrl.u32 %v4624, 7
        %v4626 = vsub.s32 %v4623, %v4625
        %v4627 = vrot.slane %v4582, %v4626
        %v4630 = vunpack.c.l.s4 1983009808
        %v4631 = vunpack.c.0.s8 %v4630
        %v4632 = vlaneseq
        %v4633 = vshrl.u32 %v4632, 7
        %v4634 = vsub.s32 %v4631, %v4633
        %v4635 = vrot.slane %v4586, %v4634
        %v4636 = vcombine.low %v4627, %v4635
        %v4637 = vcombine.high %v4627, %v4635
        %v4639 = vunpack.c.l.s4 1934713408
        %v4640 = vunpack.c.0.s8 %v4639
        %v4641 = vlaneseq
        %v4642 = vshrl.u32 %v4641, 7
        %v4643 = vsub.s32 %v4640, %v4642
        %v4644 = vrot.slane %v4636, %v4643
        %v4646 = vunpack.c.l.s4 1934713408
        %v4647 = vunpack.c.0.s8 %v4646
        %v4648 = vlaneseq
        %v4649 = vshrl.u32 %v4648, 7
        %v4650 = vsub.s32 %v4647, %v4649
        %v4651 = vrot.slane %v4637, %v4650
        %v4652 = vcombine.high %v4644, 0
        %v4653 = vcombine.high %v4651, 0
        %v4656 = vpack.i.b16 %v4644, %v4610
        %v4658 = vshrl.u32 %v4610, 16
        %v4659 = vshrl.u32 %v4644, 16
        %v4660 = vpack.i.b16 %v4659, %v4658
        %v4664 = vpack.i.b16 %v4652, %v4618
        %v4666 = vshrl.u32 %v4618, 16
        %v4667 = vshrl.u32 %v4652, 16
        %v4668 = vpack.i.b16 %v4667, %v4666
        %v4672 = vpack.i.b16 %v4651, %v4617
        %v4674 = vshrl.u32 %v4617, 16
        %v4675 = vshrl.u32 %v4651, 16
        %v4676 = vpack.i.b16 %v4675, %v4674
        %v4680 = vpack.i.b16 %v4653, %v4619
        %v4682 = vshrl.u32 %v4619, 16
        %v4683 = vshrl.u32 %v4653, 16
        %v4684 = vpack.i.b16 %v4683, %v4682
        %v4686 = vcombine.low %v4656, %v4672
        %v4688 = vunpack.c.l.s4 1983009808
        %v4689 = vunpack.c.0.s8 %v4688
        %v4690 = vlaneseq
        %v4691 = vshrl.u32 %v4690, 7
        %v4692 = vsub.s32 %v4689, %v4691
        %v4693 = vrot.slane %v4686, %v4692
        %v4694 = vcombine.low %v4664, %v4680
        %v4696 = vunpack.c.l.s4 1983009808
        %v4697 = vunpack.c.0.s8 %v4696
        %v4698 = vlaneseq
        %v4699 = vshrl.u32 %v4698, 7
        %v4700 = vsub.s32 %v4697, %v4699
        %v4701 = vrot.slane %v4694, %v4700
        %v4702 = vcombine.low %v4693, %v4701
        %v4704 = vunpack.c.l.s4 1934713408
        %v4705 = vunpack.c.0.s8 %v4704
        %v4706 = vlaneseq
        %v4707 = vshrl.u32 %v4706, 7
        %v4708 = vsub.s32 %v4705, %v4707
        %v4709 = vrot.slane %v4702, %v4708
        %v4710 = vcombine.high %v4709, 0
        %v4711 = vcombine.low %v4660, %v4676
        %v4713 = vunpack.c.l.s4 1983009808
        %v4714 = vunpack.c.0.s8 %v4713
        %v4715 = vlaneseq
        %v4716 = vshrl.u32 %v4715, 7
        %v4717 = vsub.s32 %v4714, %v4716
        %v4718 = vrot.slane %v4711, %v4717
        %v4719 = vcombine.low %v4668, %v4684
        %v4721 = vunpack.c.l.s4 1983009808
        %v4722 = vunpack.c.0.s8 %v4721
        %v4723 = vlaneseq
        %v4724 = vshrl.u32 %v4723, 7
        %v4725 = vsub.s32 %v4722, %v4724
        %v4726 = vrot.slane %v4719, %v4725
        %v4727 = vcombine.low %v4718, %v4726
        %v4729 = vunpack.c.l.s4 1934713408
        %v4730 = vunpack.c.0.s8 %v4729
        %v4731 = vlaneseq
        %v4732 = vshrl.u32 %v4731, 7
        %v4733 = vsub.s32 %v4730, %v4732
        %v4734 = vrot.slane %v4727, %v4733
        %v4735 = vcombine.high %v4734, 0
        %v4738 = vpack.i.b16 %v4734, %v4709
        %v4739 = vshrl.u32 %v4709, 16
        %v4740 = vshrl.u32 %v4734, 16
        %v4741 = vpack.i.b16 %v4740, %v4739
        %v4744 = vpack.i.b16 %v4735, %v4710
        %v4745 = vshrl.u32 %v4710, 16
        %v4746 = vshrl.u32 %v4735, 16
        %v4747 = vpack.i.b16 %v4746, %v4745
        %v4749 = vsel %vm1227, %v4391, 0
        %v4752 = vsel %vm1227, %v4569, 0
        %4754 = vmatprep.subr.bf16.mxu0 0
        %4755 = vmatpush1.bf16.xpose.msra.mxu0 %v4752
        %4756 = vmatprep.subr.bf16.mxu0 0
        %4757 = vmatpush1.bf16.xpose.msra.mxu0 0
        %4758 = vmatprep.subr.bf16.mxu0 0
        %4759 = vmatpush1.bf16.xpose.msra.mxu0 0
        %4760 = vmatprep.subr.bf16.mxu0 0
        %4761 = vmatpush1.bf16.xpose.msra.mxu0 0
        %4762 = vmatprep.subr.bf16.mxu0 0
        %4763 = vmatpush1.bf16.xpose.msra.mxu0 0
        %4764 = vmatprep.subr.bf16.mxu0 0
        %4765 = vmatpush1.bf16.xpose.msra.mxu0 0
        %4766 = vmatprep.subr.bf16.mxu0 0
        %4767 = vmatpush1.bf16.xpose.msra.mxu0 0
        %4768 = vmatprep.subr.bf16.mxu0 0
        %4769 = vmatpush1.bf16.xpose.msra.mxu0 0
        %4770 = vmatprep.subr.bf16.mxu0 0
        %4771 = vmatpush1.bf16.xpose.msra.mxu0 0
        %4772 = vmatprep.subr.bf16.mxu0 0
        %4773 = vmatpush1.bf16.xpose.msra.mxu0 0
        %4774 = vmatprep.subr.bf16.mxu0 0
        %4775 = vmatpush1.bf16.xpose.msra.mxu0 0
        %4776 = vmatprep.subr.bf16.mxu0 0
        %4777 = vmatpush1.bf16.xpose.msra.mxu0 0
        %4778 = vmatprep.subr.bf16.mxu0 0
        %4779 = vmatpush1.bf16.xpose.msra.mxu0 0
        %4780 = vmatprep.subr.bf16.mxu0 0
        %4781 = vmatpush1.bf16.xpose.msra.mxu0 0
        %4782 = vmatprep.subr.bf16.mxu0 0
        %4783 = vmatpush1.bf16.xpose.msra.mxu0 0
        %4784 = vmatprep.subr.bf16.mxu0 0
        %4785 = vmatpush1.bf16.xpose.msra.mxu0 0
        %4786 = vmatprep.mubr.bf16.mxu0 0
        %4787 = vmatmul.mubr.bf16.gmra.mrb[0].mxu0 %v4749
        %v4788 = vpop.f32.mrb[0].mxu0
        %v4789 = vadd.f32 0.0, %v4788
        %v4790 = vpop.f32.mrb[0].mxu0
        %v4791 = vpop.f32.mrb[0].mxu0
        %v4792 = vpop.f32.mrb[0].mxu0
        %4793 = vdwg.mxu0
        %v4795 = vsel %vm1227, %v4394, 0
        %v4798 = vsel %vm1227, %v4572, 0
        %4800 = vmatprep.subr.bf16.mxu0 0
        %4801 = vmatpush1.bf16.xpose.msra.mxu0 %v4798
        %4802 = vmatprep.subr.bf16.mxu0 0
        %4803 = vmatpush1.bf16.xpose.msra.mxu0 0
        %4804 = vmatprep.subr.bf16.mxu0 0
        %4805 = vmatpush1.bf16.xpose.msra.mxu0 0
        %4806 = vmatprep.subr.bf16.mxu0 0
        %4807 = vmatpush1.bf16.xpose.msra.mxu0 0
        %4808 = vmatprep.subr.bf16.mxu0 0
        %4809 = vmatpush1.bf16.xpose.msra.mxu0 0
        %4810 = vmatprep.subr.bf16.mxu0 0
        %4811 = vmatpush1.bf16.xpose.msra.mxu0 0
        %4812 = vmatprep.subr.bf16.mxu0 0
        %4813 = vmatpush1.bf16.xpose.msra.mxu0 0
        %4814 = vmatprep.subr.bf16.mxu0 0
        %4815 = vmatpush1.bf16.xpose.msra.mxu0 0
        %4816 = vmatprep.subr.bf16.mxu0 0
        %4817 = vmatpush1.bf16.xpose.msra.mxu0 0
        %4818 = vmatprep.subr.bf16.mxu0 0
        %4819 = vmatpush1.bf16.xpose.msra.mxu0 0
        %4820 = vmatprep.subr.bf16.mxu0 0
        %4821 = vmatpush1.bf16.xpose.msra.mxu0 0
        %4822 = vmatprep.subr.bf16.mxu0 0
        %4823 = vmatpush1.bf16.xpose.msra.mxu0 0
        %4824 = vmatprep.subr.bf16.mxu0 0
        %4825 = vmatpush1.bf16.xpose.msra.mxu0 0
        %4826 = vmatprep.subr.bf16.mxu0 0
        %4827 = vmatpush1.bf16.xpose.msra.mxu0 0
        %4828 = vmatprep.subr.bf16.mxu0 0
        %4829 = vmatpush1.bf16.xpose.msra.mxu0 0
        %4830 = vmatprep.subr.bf16.mxu0 0
        %4831 = vmatpush1.bf16.xpose.msra.mxu0 0
        %4832 = vmatprep.mubr.bf16.mxu0 0
        %4833 = vmatmul.mubr.bf16.gmra.mrb[0].mxu0 %v4795
        %v4834 = vpop.f32.mrb[0].mxu0
        %v4835 = vadd.f32 0.0, %v4834
        %v4836 = vpop.f32.mrb[0].mxu0
        %v4837 = vpop.f32.mrb[0].mxu0
        %v4838 = vpop.f32.mrb[0].mxu0
        %4839 = vdwg.mxu0
        %v4841 = vsel %vm1227, %v4397, 0
        %v4844 = vsel %vm1227, %v4575, 0
        %4846 = vmatprep.subr.bf16.mxu0 0
        %4847 = vmatpush1.bf16.xpose.msra.mxu0 %v4844
        %4848 = vmatprep.subr.bf16.mxu0 0
        %4849 = vmatpush1.bf16.xpose.msra.mxu0 0
        %4850 = vmatprep.subr.bf16.mxu0 0
        %4851 = vmatpush1.bf16.xpose.msra.mxu0 0
        %4852 = vmatprep.subr.bf16.mxu0 0
        %4853 = vmatpush1.bf16.xpose.msra.mxu0 0
        %4854 = vmatprep.subr.bf16.mxu0 0
        %4855 = vmatpush1.bf16.xpose.msra.mxu0 0
        %4856 = vmatprep.subr.bf16.mxu0 0
        %4857 = vmatpush1.bf16.xpose.msra.mxu0 0
        %4858 = vmatprep.subr.bf16.mxu0 0
        %4859 = vmatpush1.bf16.xpose.msra.mxu0 0
        %4860 = vmatprep.subr.bf16.mxu0 0
        %4861 = vmatpush1.bf16.xpose.msra.mxu0 0
        %4862 = vmatprep.subr.bf16.mxu0 0
        %4863 = vmatpush1.bf16.xpose.msra.mxu0 0
        %4864 = vmatprep.subr.bf16.mxu0 0
        %4865 = vmatpush1.bf16.xpose.msra.mxu0 0
        %4866 = vmatprep.subr.bf16.mxu0 0
        %4867 = vmatpush1.bf16.xpose.msra.mxu0 0
        %4868 = vmatprep.subr.bf16.mxu0 0
        %4869 = vmatpush1.bf16.xpose.msra.mxu0 0
        %4870 = vmatprep.subr.bf16.mxu0 0
        %4871 = vmatpush1.bf16.xpose.msra.mxu0 0
        %4872 = vmatprep.subr.bf16.mxu0 0
        %4873 = vmatpush1.bf16.xpose.msra.mxu0 0
        %4874 = vmatprep.subr.bf16.mxu0 0
        %4875 = vmatpush1.bf16.xpose.msra.mxu0 0
        %4876 = vmatprep.subr.bf16.mxu0 0
        %4877 = vmatpush1.bf16.xpose.msra.mxu0 0
        %4878 = vmatprep.mubr.bf16.mxu0 0
        %4879 = vmatmul.mubr.bf16.gmra.mrb[0].mxu0 %v4841
        %v4880 = vpop.f32.mrb[0].mxu0
        %v4881 = vadd.f32 0.0, %v4880
        %v4882 = vpop.f32.mrb[0].mxu0
        %v4883 = vpop.f32.mrb[0].mxu0
        %v4884 = vpop.f32.mrb[0].mxu0
        %4885 = vdwg.mxu0
        %v4887 = vsel %vm1227, %v4400, 0
        %v4890 = vsel %vm1227, %v4578, 0
        %4892 = vmatprep.subr.bf16.mxu0 0
        %4893 = vmatpush1.bf16.xpose.msra.mxu0 %v4890
        %4894 = vmatprep.subr.bf16.mxu0 0
        %4895 = vmatpush1.bf16.xpose.msra.mxu0 0
        %4896 = vmatprep.subr.bf16.mxu0 0
        %4897 = vmatpush1.bf16.xpose.msra.mxu0 0
        %4898 = vmatprep.subr.bf16.mxu0 0
        %4899 = vmatpush1.bf16.xpose.msra.mxu0 0
        %4900 = vmatprep.subr.bf16.mxu0 0
        %4901 = vmatpush1.bf16.xpose.msra.mxu0 0
        %4902 = vmatprep.subr.bf16.mxu0 0
        %4903 = vmatpush1.bf16.xpose.msra.mxu0 0
        %4904 = vmatprep.subr.bf16.mxu0 0
        %4905 = vmatpush1.bf16.xpose.msra.mxu0 0
        %4906 = vmatprep.subr.bf16.mxu0 0
        %4907 = vmatpush1.bf16.xpose.msra.mxu0 0
        %4908 = vmatprep.subr.bf16.mxu0 0
        %4909 = vmatpush1.bf16.xpose.msra.mxu0 0
        %4910 = vmatprep.subr.bf16.mxu0 0
        %4911 = vmatpush1.bf16.xpose.msra.mxu0 0
        %4912 = vmatprep.subr.bf16.mxu0 0
        %4913 = vmatpush1.bf16.xpose.msra.mxu0 0
        %4914 = vmatprep.subr.bf16.mxu0 0
        %4915 = vmatpush1.bf16.xpose.msra.mxu0 0
        %4916 = vmatprep.subr.bf16.mxu0 0
        %4917 = vmatpush1.bf16.xpose.msra.mxu0 0
        %4918 = vmatprep.subr.bf16.mxu0 0
        %4919 = vmatpush1.bf16.xpose.msra.mxu0 0
        %4920 = vmatprep.subr.bf16.mxu0 0
        %4921 = vmatpush1.bf16.xpose.msra.mxu0 0
        %4922 = vmatprep.subr.bf16.mxu0 0
        %4923 = vmatpush1.bf16.xpose.msra.mxu0 0
        %4924 = vmatprep.mubr.bf16.mxu0 0
        %4925 = vmatmul.mubr.bf16.gmra.mrb[0].mxu0 %v4887
        %v4926 = vpop.f32.mrb[0].mxu0
        %v4927 = vadd.f32 0.0, %v4926
        %v4928 = vpop.f32.mrb[0].mxu0
        %v4929 = vpop.f32.mrb[0].mxu0
        %v4930 = vpop.f32.mrb[0].mxu0
        %4931 = vdwg.mxu0
        %v4932 = vsel %vm556, %v4789, -inf
        %4933 = vmax.xlane.f32.xlu0 %v4932
        %v4934 = vpop.xlane.xlu0 %4933
        %v4935 = vsel %vm556, %v4835, -inf
        %4936 = vmax.xlane.f32.xlu0 %v4935
        %v4937 = vpop.xlane.xlu0 %4936
        %v4938 = vsel %vm556, %v4881, -inf
        %4939 = vmax.xlane.f32.xlu0 %v4938
        %v4940 = vpop.xlane.xlu0 %4939
        %v4941 = vsel %vm556, %v4927, -inf
        %4942 = vmax.xlane.f32.xlu0 %v4941
        %v4943 = vpop.xlane.xlu0 %4942
        %v4944 = vsub.f32 %v4789, %v4934
        %v4945 = vsub.f32 %v4835, %v4937
        %v4946 = vsub.f32 %v4881, %v4940
        %v4947 = vsub.f32 %v4927, %v4943
        %v4948 = vmul.f32 %v4944, 1.442695
        %v4949 = vpow.pop %v4948
        %v4950 = vmul.f32 %v4945, 1.442695
        %v4951 = vpow.pop %v4950
        %v4952 = vmul.f32 %v4946, 1.442695
        %v4953 = vpow.pop %v4952
        %v4954 = vmul.f32 %v4947, 1.442695
        %v4955 = vpow.pop %v4954
        %v4956 = vsel %vm556, %v4949, 0.0
        %4957 = vadd.xlane.f32.xlu0 %v4956
        %v4958 = vpop.xlane.xlu0 %4957
        %v4959 = vsel %vm556, %v4951, 0.0
        %4960 = vadd.xlane.f32.xlu0 %v4959
        %v4961 = vpop.xlane.xlu0 %4960
        %v4962 = vsel %vm556, %v4953, 0.0
        %4963 = vadd.xlane.f32.xlu0 %v4962
        %v4964 = vpop.xlane.xlu0 %4963
        %v4965 = vsel %vm556, %v4955, 0.0
        %4966 = vadd.xlane.f32.xlu0 %v4965
        %v4967 = vpop.xlane.xlu0 %4966
        %v4968 = vrcp.pop %v4958
        %v4969 = vrcp.pop %v4961
        %v4970 = vrcp.pop %v4964
        %v4971 = vrcp.pop %v4967
        %v4972 = vmul.f32 %v4949, %v4968
        %v4973 = vmul.f32 %v4951, %v4969
        %v4974 = vmul.f32 %v4953, %v4970
        %v4975 = vmul.f32 %v4955, %v4971
        %v4976 = vpack.c.bf16 %v4972, %v4972
        %v4977 = vpack.c.bf16 %v4973, %v4973
        %v4978 = vpack.c.bf16 %v4974, %v4974
        %v4979 = vpack.c.bf16 %v4975, %v4975
        %v4981 = vsel %vm556, %v4976, 0
        %v4984 = vsel %vm560, %v4738, 0
        %4986 = vmatprep.subr.bf16.mxu0 0
        %4987 = vmatpush1.bf16.msra.mxu0 %v4984
        %4988 = vmatprep.subr.bf16.mxu0 0
        %4989 = vmatpush1.bf16.msra.mxu0 0
        %4990 = vmatprep.subr.bf16.mxu0 0
        %4991 = vmatpush1.bf16.msra.mxu0 0
        %4992 = vmatprep.subr.bf16.mxu0 0
        %4993 = vmatpush1.bf16.msra.mxu0 0
        %4994 = vmatprep.subr.bf16.mxu0 0
        %4995 = vmatpush1.bf16.msra.mxu0 0
        %4996 = vmatprep.subr.bf16.mxu0 0
        %4997 = vmatpush1.bf16.msra.mxu0 0
        %4998 = vmatprep.subr.bf16.mxu0 0
        %4999 = vmatpush1.bf16.msra.mxu0 0
        %5000 = vmatprep.subr.bf16.mxu0 0
        %5001 = vmatpush1.bf16.msra.mxu0 0
        %5002 = vmatprep.subr.bf16.mxu0 0
        %5003 = vmatpush1.bf16.msra.mxu0 0
        %5004 = vmatprep.subr.bf16.mxu0 0
        %5005 = vmatpush1.bf16.msra.mxu0 0
        %5006 = vmatprep.subr.bf16.mxu0 0
        %5007 = vmatpush1.bf16.msra.mxu0 0
        %5008 = vmatprep.subr.bf16.mxu0 0
        %5009 = vmatpush1.bf16.msra.mxu0 0
        %5010 = vmatprep.subr.bf16.mxu0 0
        %5011 = vmatpush1.bf16.msra.mxu0 0
        %5012 = vmatprep.subr.bf16.mxu0 0
        %5013 = vmatpush1.bf16.msra.mxu0 0
        %5014 = vmatprep.subr.bf16.mxu0 0
        %5015 = vmatpush1.bf16.msra.mxu0 0
        %5016 = vmatprep.subr.bf16.mxu0 0
        %5017 = vmatpush1.bf16.msra.mxu0 0
        %5018 = vmatprep.mubr.bf16.mxu0 0
        %5019 = vmatmul.mubr.bf16.gmra.mrb[0].mxu0 %v4981
        %v5020 = vpop.f32.mrb[0].mxu0
        %v5021 = vadd.f32 0.0, %v5020
        %v5022 = vpop.f32.mrb[0].mxu0
        %v5023 = vpop.f32.mrb[0].mxu0
        %v5024 = vpop.f32.mrb[0].mxu0
        %5025 = vdwg.mxu0
        %v5027 = vsel %vm556, %v4977, 0
        %v5030 = vsel %vm560, %v4741, 0
        %5032 = vmatprep.subr.bf16.mxu0 0
        %5033 = vmatpush1.bf16.msra.mxu0 %v5030
        %5034 = vmatprep.subr.bf16.mxu0 0
        %5035 = vmatpush1.bf16.msra.mxu0 0
        %5036 = vmatprep.subr.bf16.mxu0 0
        %5037 = vmatpush1.bf16.msra.mxu0 0
        %5038 = vmatprep.subr.bf16.mxu0 0
        %5039 = vmatpush1.bf16.msra.mxu0 0
        %5040 = vmatprep.subr.bf16.mxu0 0
        %5041 = vmatpush1.bf16.msra.mxu0 0
        %5042 = vmatprep.subr.bf16.mxu0 0
        %5043 = vmatpush1.bf16.msra.mxu0 0
        %5044 = vmatprep.subr.bf16.mxu0 0
        %5045 = vmatpush1.bf16.msra.mxu0 0
        %5046 = vmatprep.subr.bf16.mxu0 0
        %5047 = vmatpush1.bf16.msra.mxu0 0
        %5048 = vmatprep.subr.bf16.mxu0 0
        %5049 = vmatpush1.bf16.msra.mxu0 0
        %5050 = vmatprep.subr.bf16.mxu0 0
        %5051 = vmatpush1.bf16.msra.mxu0 0
        %5052 = vmatprep.subr.bf16.mxu0 0
        %5053 = vmatpush1.bf16.msra.mxu0 0
        %5054 = vmatprep.subr.bf16.mxu0 0
        %5055 = vmatpush1.bf16.msra.mxu0 0
        %5056 = vmatprep.subr.bf16.mxu0 0
        %5057 = vmatpush1.bf16.msra.mxu0 0
        %5058 = vmatprep.subr.bf16.mxu0 0
        %5059 = vmatpush1.bf16.msra.mxu0 0
        %5060 = vmatprep.subr.bf16.mxu0 0
        %5061 = vmatpush1.bf16.msra.mxu0 0
        %5062 = vmatprep.subr.bf16.mxu0 0
        %5063 = vmatpush1.bf16.msra.mxu0 0
        %5064 = vmatprep.mubr.bf16.mxu0 0
        %5065 = vmatmul.mubr.bf16.gmra.mrb[0].mxu0 %v5027
        %v5066 = vpop.f32.mrb[0].mxu0
        %v5067 = vadd.f32 0.0, %v5066
        %v5068 = vpop.f32.mrb[0].mxu0
        %v5069 = vpop.f32.mrb[0].mxu0
        %v5070 = vpop.f32.mrb[0].mxu0
        %5071 = vdwg.mxu0
        %v5073 = vsel %vm556, %v4978, 0
        %v5076 = vsel %vm560, %v4744, 0
        %5078 = vmatprep.subr.bf16.mxu0 0
        %5079 = vmatpush1.bf16.msra.mxu0 %v5076
        %5080 = vmatprep.subr.bf16.mxu0 0
        %5081 = vmatpush1.bf16.msra.mxu0 0
        %5082 = vmatprep.subr.bf16.mxu0 0
        %5083 = vmatpush1.bf16.msra.mxu0 0
        %5084 = vmatprep.subr.bf16.mxu0 0
        %5085 = vmatpush1.bf16.msra.mxu0 0
        %5086 = vmatprep.subr.bf16.mxu0 0
        %5087 = vmatpush1.bf16.msra.mxu0 0
        %5088 = vmatprep.subr.bf16.mxu0 0
        %5089 = vmatpush1.bf16.msra.mxu0 0
        %5090 = vmatprep.subr.bf16.mxu0 0
        %5091 = vmatpush1.bf16.msra.mxu0 0
        %5092 = vmatprep.subr.bf16.mxu0 0
        %5093 = vmatpush1.bf16.msra.mxu0 0
        %5094 = vmatprep.subr.bf16.mxu0 0
        %5095 = vmatpush1.bf16.msra.mxu0 0
        %5096 = vmatprep.subr.bf16.mxu0 0
        %5097 = vmatpush1.bf16.msra.mxu0 0
        %5098 = vmatprep.subr.bf16.mxu0 0
        %5099 = vmatpush1.bf16.msra.mxu0 0
        %5100 = vmatprep.subr.bf16.mxu0 0
        %5101 = vmatpush1.bf16.msra.mxu0 0
        %5102 = vmatprep.subr.bf16.mxu0 0
        %5103 = vmatpush1.bf16.msra.mxu0 0
        %5104 = vmatprep.subr.bf16.mxu0 0
        %5105 = vmatpush1.bf16.msra.mxu0 0
        %5106 = vmatprep.subr.bf16.mxu0 0
        %5107 = vmatpush1.bf16.msra.mxu0 0
        %5108 = vmatprep.subr.bf16.mxu0 0
        %5109 = vmatpush1.bf16.msra.mxu0 0
        %5110 = vmatprep.mubr.bf16.mxu0 0
        %5111 = vmatmul.mubr.bf16.gmra.mrb[0].mxu0 %v5073
        %v5112 = vpop.f32.mrb[0].mxu0
        %v5113 = vadd.f32 0.0, %v5112
        %v5114 = vpop.f32.mrb[0].mxu0
        %v5115 = vpop.f32.mrb[0].mxu0
        %v5116 = vpop.f32.mrb[0].mxu0
        %5117 = vdwg.mxu0
        %v5119 = vsel %vm556, %v4979, 0
        %v5122 = vsel %vm560, %v4747, 0
        %5124 = vmatprep.subr.bf16.mxu0 0
        %5125 = vmatpush1.bf16.msra.mxu0 %v5122
        %5126 = vmatprep.subr.bf16.mxu0 0
        %5127 = vmatpush1.bf16.msra.mxu0 0
        %5128 = vmatprep.subr.bf16.mxu0 0
        %5129 = vmatpush1.bf16.msra.mxu0 0
        %5130 = vmatprep.subr.bf16.mxu0 0
        %5131 = vmatpush1.bf16.msra.mxu0 0
        %5132 = vmatprep.subr.bf16.mxu0 0
        %5133 = vmatpush1.bf16.msra.mxu0 0
        %5134 = vmatprep.subr.bf16.mxu0 0
        %5135 = vmatpush1.bf16.msra.mxu0 0
        %5136 = vmatprep.subr.bf16.mxu0 0
        %5137 = vmatpush1.bf16.msra.mxu0 0
        %5138 = vmatprep.subr.bf16.mxu0 0
        %5139 = vmatpush1.bf16.msra.mxu0 0
        %5140 = vmatprep.subr.bf16.mxu0 0
        %5141 = vmatpush1.bf16.msra.mxu0 0
        %5142 = vmatprep.subr.bf16.mxu0 0
        %5143 = vmatpush1.bf16.msra.mxu0 0
        %5144 = vmatprep.subr.bf16.mxu0 0
        %5145 = vmatpush1.bf16.msra.mxu0 0
        %5146 = vmatprep.subr.bf16.mxu0 0
        %5147 = vmatpush1.bf16.msra.mxu0 0
        %5148 = vmatprep.subr.bf16.mxu0 0
        %5149 = vmatpush1.bf16.msra.mxu0 0
        %5150 = vmatprep.subr.bf16.mxu0 0
        %5151 = vmatpush1.bf16.msra.mxu0 0
        %5152 = vmatprep.subr.bf16.mxu0 0
        %5153 = vmatpush1.bf16.msra.mxu0 0
        %5154 = vmatprep.subr.bf16.mxu0 0
        %5155 = vmatpush1.bf16.msra.mxu0 0
        %5156 = vmatprep.mubr.bf16.mxu0 0
        %5157 = vmatmul.mubr.bf16.gmra.mrb[0].mxu0 %v5119
        %v5158 = vpop.f32.mrb[0].mxu0
        %v5159 = vadd.f32 0.0, %v5158
        %v5160 = vpop.f32.mrb[0].mxu0
        %v5161 = vpop.f32.mrb[0].mxu0
        %v5162 = vpop.f32.mrb[0].mxu0
        %5163 = vdwg.mxu0
        %v5164 = vcombine.low %v5021, %v5113
        %v5165 = vcombine.high %v5021, %v5113
        %v5167 = vunpack.c.l.s4 1983009808
        %v5168 = vunpack.c.0.s8 %v5167
        %v5169 = vlaneseq
        %v5170 = vshrl.u32 %v5169, 7
        %v5171 = vsub.s32 %v5168, %v5170
        %v5172 = vrot.slane %v5164, %v5171
        %v5174 = vunpack.c.l.s4 1983009808
        %v5175 = vunpack.c.0.s8 %v5174
        %v5176 = vlaneseq
        %v5177 = vshrl.u32 %v5176, 7
        %v5178 = vsub.s32 %v5175, %v5177
        %v5179 = vrot.slane %v5165, %v5178
        %v5180 = vcombine.low %v5067, %v5159
        %v5181 = vcombine.high %v5067, %v5159
        %v5183 = vunpack.c.l.s4 1983009808
        %v5184 = vunpack.c.0.s8 %v5183
        %v5185 = vlaneseq
        %v5186 = vshrl.u32 %v5185, 7
        %v5187 = vsub.s32 %v5184, %v5186
        %v5188 = vrot.slane %v5180, %v5187
        %v5190 = vunpack.c.l.s4 1983009808
        %v5191 = vunpack.c.0.s8 %v5190
        %v5192 = vlaneseq
        %v5193 = vshrl.u32 %v5192, 7
        %v5194 = vsub.s32 %v5191, %v5193
        %v5195 = vrot.slane %v5181, %v5194
        %v5196 = vcombine.low %v5172, %v5188
        %v5197 = vcombine.high %v5172, %v5188
        %v5199 = vunpack.c.l.s4 1934713408
        %v5200 = vunpack.c.0.s8 %v5199
        %v5201 = vlaneseq
        %v5202 = vshrl.u32 %v5201, 7
        %v5203 = vsub.s32 %v5200, %v5202
        %v5204 = vrot.slane %v5196, %v5203
        %v5206 = vunpack.c.l.s4 1934713408
        %v5207 = vunpack.c.0.s8 %v5206
        %v5208 = vlaneseq
        %v5209 = vshrl.u32 %v5208, 7
        %v5210 = vsub.s32 %v5207, %v5209
        %v5211 = vrot.slane %v5197, %v5210
        %v5212 = vcombine.low %v5179, %v5195
        %v5213 = vcombine.high %v5179, %v5195
        %v5215 = vunpack.c.l.s4 1934713408
        %v5216 = vunpack.c.0.s8 %v5215
        %v5217 = vlaneseq
        %v5218 = vshrl.u32 %v5217, 7
        %v5219 = vsub.s32 %v5216, %v5218
        %v5220 = vrot.slane %v5212, %v5219
        %v5222 = vunpack.c.l.s4 1934713408
        %v5223 = vunpack.c.0.s8 %v5222
        %v5224 = vlaneseq
        %v5225 = vshrl.u32 %v5224, 7
        %v5226 = vsub.s32 %v5223, %v5225
        %v5227 = vrot.slane %v5213, %v5226
        %v5228 = vcombine.high %v5204, 0.0
        %v5229 = vcombine.high %v5211, 0.0
        %v5230 = vcombine.high %v5220, 0.0
        %v5231 = vcombine.high %v5227, 0.0
        %v5232 = vcombine.low %v5204, %v5211
        %v5234 = vunpack.c.l.s4 1983009808
        %v5235 = vunpack.c.0.s8 %v5234
        %v5236 = vlaneseq
        %v5237 = vshrl.u32 %v5236, 7
        %v5238 = vsub.s32 %v5235, %v5237
        %v5239 = vrot.slane %v5232, %v5238
        %v5240 = vcombine.low %v5228, %v5229
        %v5242 = vunpack.c.l.s4 1983009808
        %v5243 = vunpack.c.0.s8 %v5242
        %v5244 = vlaneseq
        %v5245 = vshrl.u32 %v5244, 7
        %v5246 = vsub.s32 %v5243, %v5245
        %v5247 = vrot.slane %v5240, %v5246
        %v5248 = vcombine.low %v5220, %v5227
        %v5250 = vunpack.c.l.s4 1983009808
        %v5251 = vunpack.c.0.s8 %v5250
        %v5252 = vlaneseq
        %v5253 = vshrl.u32 %v5252, 7
        %v5254 = vsub.s32 %v5251, %v5253
        %v5255 = vrot.slane %v5248, %v5254
        %v5256 = vcombine.low %v5230, %v5231
        %v5258 = vunpack.c.l.s4 1983009808
        %v5259 = vunpack.c.0.s8 %v5258
        %v5260 = vlaneseq
        %v5261 = vshrl.u32 %v5260, 7
        %v5262 = vsub.s32 %v5259, %v5261
        %v5263 = vrot.slane %v5256, %v5262
        %v5264 = vcombine.low %v5239, %v5247
        %v5265 = vcombine.high %v5239, %v5247
        %v5267 = vunpack.c.l.s4 1934713408
        %v5268 = vunpack.c.0.s8 %v5267
        %v5269 = vlaneseq
        %v5270 = vshrl.u32 %v5269, 7
        %v5271 = vsub.s32 %v5268, %v5270
        %v5272 = vrot.slane %v5264, %v5271
        %v5274 = vunpack.c.l.s4 1934713408
        %v5275 = vunpack.c.0.s8 %v5274
        %v5276 = vlaneseq
        %v5277 = vshrl.u32 %v5276, 7
        %v5278 = vsub.s32 %v5275, %v5277
        %v5279 = vrot.slane %v5265, %v5278
        %v5280 = vcombine.low %v5255, %v5263
        %v5281 = vcombine.high %v5255, %v5263
        %v5283 = vunpack.c.l.s4 1934713408
        %v5284 = vunpack.c.0.s8 %v5283
        %v5285 = vlaneseq
        %v5286 = vshrl.u32 %v5285, 7
        %v5287 = vsub.s32 %v5284, %v5286
        %v5288 = vrot.slane %v5280, %v5287
        %v5290 = vunpack.c.l.s4 1934713408
        %v5291 = vunpack.c.0.s8 %v5290
        %v5292 = vlaneseq
        %v5293 = vshrl.u32 %v5292, 7
        %v5294 = vsub.s32 %v5291, %v5293
        %v5295 = vrot.slane %v5281, %v5294
        %v5296 = vcombine.low %v5272, %v5288
        %v5297 = vcombine.high %v5272, %v5288
        %v5298 = vcombine.low %v5279, %v5295
        %v5299 = vcombine.high %v5279, %v5295
        %5301 = vrot.lane.b32.xlu0 %v5297, 16
        %v5302 = vpop.permute.xlu0 %5301
        %5305 = vrot.lane.b32.xlu0 %v5298, 32
        %v5306 = vpop.permute.xlu0 %5305
        %5309 = vrot.lane.b32.xlu0 %v5299, 48
        %v5310 = vpop.permute.xlu0 %5309
        %v5312 = vsel %vm1227, %v5296, %v5302
        %v5313 = vsel %vm1793, %v5312, %v5306
        %v5314 = vsel %vm1795, %v5313, %v5310
        %s5315 = scalar_lea.vmem %s5, 32
        %v5316 = vld [vmem:[%s5315] sm:$0xf]
        %v5317 = vld [vmem:[%s5315 + $0x4] sm:$0xf]
        %v5318 = vld [vmem:[%s5315 + $0x8] sm:$0xf]
        %v5319 = vld [vmem:[%s5315 + $0xc] sm:$0xf]
        %v5320 = vld [vmem:[%s5315 + $0x10] sm:$0xf]
        %v5321 = vld [vmem:[%s5315 + $0x14] sm:$0xf]
        %v5322 = vld [vmem:[%s5315 + $0x18] sm:$0xf]
        %v5323 = vld [vmem:[%s5315 + $0x1c] sm:$0xf]
        %v5324 = vpack.c.bf16 %v5314, %v5314
        %s5325 = scalar_lea.vmem %s6, 1
        %v5326 = vld [vmem:[%s5325] sm:$0x1]
        %v5328 = vlaneseq
        %v5329 = vshrl.u32 %v5328, 7
        %v5330 = vsub.s32 0, %v5329
        %v5331 = vrot.slane %v5326, %v5330
        %v5341 = vunpack.c.l.b16 %v5316
        %v5342 = vunpack.c.l.b16 %v5317
        %v5343 = vunpack.c.l.b16 %v5318
        %v5344 = vunpack.c.l.b16 %v5319
        %v5345 = vunpack.c.l.b16 %v5320
        %v5346 = vunpack.c.l.b16 %v5321
        %v5347 = vunpack.c.l.b16 %v5322
        %v5348 = vunpack.c.l.b16 %v5323
        %v5349 = vpack.c.b16 %v5342, %v5341
        %v5350 = vpack.c.b16 %v5344, %v5343
        %v5351 = vpack.c.b16 %v5346, %v5345
        %v5352 = vpack.c.b16 %v5348, %v5347
        %v5358 = vsel %vm665, %v5324, 0
        %5360 = vmatprep.subr.bf16.mxu0 0
        %5361 = vmatpush1.bf16.msra.mxu0 %v5349
        %5362 = vmatprep.subr.bf16.mxu0 0
        %5363 = vmatpush1.bf16.msra.mxu0 %v5350
        %5364 = vmatprep.subr.bf16.mxu0 0
        %5365 = vmatpush1.bf16.msra.mxu0 %v5351
        %5366 = vmatprep.subr.bf16.mxu0 0
        %5367 = vmatpush1.bf16.msra.mxu0 %v5352
        %5368 = vmatprep.subr.bf16.mxu0 0
        %5369 = vmatpush1.bf16.msra.mxu0 0
        %5370 = vmatprep.subr.bf16.mxu0 0
        %5371 = vmatpush1.bf16.msra.mxu0 0
        %5372 = vmatprep.subr.bf16.mxu0 0
        %5373 = vmatpush1.bf16.msra.mxu0 0
        %5374 = vmatprep.subr.bf16.mxu0 0
        %5375 = vmatpush1.bf16.msra.mxu0 0
        %5376 = vmatprep.subr.bf16.mxu0 0
        %5377 = vmatpush1.bf16.msra.mxu0 0
        %5378 = vmatprep.subr.bf16.mxu0 0
        %5379 = vmatpush1.bf16.msra.mxu0 0
        %5380 = vmatprep.subr.bf16.mxu0 0
        %5381 = vmatpush1.bf16.msra.mxu0 0
        %5382 = vmatprep.subr.bf16.mxu0 0
        %5383 = vmatpush1.bf16.msra.mxu0 0
        %5384 = vmatprep.subr.bf16.mxu0 0
        %5385 = vmatpush1.bf16.msra.mxu0 0
        %5386 = vmatprep.subr.bf16.mxu0 0
        %5387 = vmatpush1.bf16.msra.mxu0 0
        %5388 = vmatprep.subr.bf16.mxu0 0
        %5389 = vmatpush1.bf16.msra.mxu0 0
        %5390 = vmatprep.subr.bf16.mxu0 0
        %5391 = vmatpush1.bf16.msra.mxu0 0
        %5392 = vmatprep.mubr.bf16.mxu0 0
        %5393 = vmatmul.mubr.bf16.gmra.mrb[0].mxu0 %v5358
        %v5394 = vpop.f32.mrb[0].mxu0
        %v5395 = vadd.f32 %v5331, %v5394
        %v5396 = vpop.f32.mrb[0].mxu0
        %v5397 = vpop.f32.mrb[0].mxu0
        %v5398 = vpop.f32.mrb[0].mxu0
        %5399 = vdwg.mxu0
        %v5400 = vadd.f32 %v4123, %v5395
        %s5401 = scalar_lea.vmem %s7, 1
        %v5402 = vld [vmem:[%s5401] sm:$0x1]
        %s5403 = scalar_lea.vmem %s8, 1
        %v5404 = vld [vmem:[%s5403] sm:$0x1]
        %v5405 = vsel %vm665, %v5400, 0.0
        %5406 = vadd.xlane.f32.xlu0 %v5405
        %v5407 = vpop.xlane.xlu0 %5406
        %v5408 = vmul.f32 %v5407, %v1886
        %v5409 = vsub.f32 %v5400, %v5408
        %v5410 = vmul.f32 %v5409, %v5409
        %v5411 = vsel %vm665, %v5410, 0.0
        %5412 = vadd.xlane.f32.xlu0 %v5411
        %v5413 = vpop.xlane.xlu0 %5412
        %v5414 = vmul.f32 %v5413, %v1886
        %v5415 = vadd.f32 %v5414, 1e-05
        %v5416 = vrsqrt.pop %v5415
        %v5417 = vmul.f32 %v5409, %v5416
        %v5419 = vlaneseq
        %v5420 = vshrl.u32 %v5419, 7
        %v5421 = vsub.s32 0, %v5420
        %v5422 = vrot.slane %v5402, %v5421
        %v5424 = vmul.f32 %v5417, %v5422
        %v5426 = vlaneseq
        %v5427 = vshrl.u32 %v5426, 7
        %v5428 = vsub.s32 0, %v5427
        %v5429 = vrot.slane %v5404, %v5428
        %v5431 = vadd.f32 %v5424, %v5429
        %s5432 = scalar_lea.vmem %s9, 512
        %v5433 = vld [vmem:[%s5432] sm:$0xff]
        %v5434 = vld [vmem:[%s5432 + $0x8] sm:$0xff]
        %v5435 = vld [vmem:[%s5432 + $0x10] sm:$0xff]
        %v5436 = vld [vmem:[%s5432 + $0x18] sm:$0xff]
        %v5437 = vld [vmem:[%s5432 + $0x20] sm:$0xff]
        %v5438 = vld [vmem:[%s5432 + $0x28] sm:$0xff]
        %v5439 = vld [vmem:[%s5432 + $0x30] sm:$0xff]
        %v5440 = vld [vmem:[%s5432 + $0x38] sm:$0xff]
        %v5441 = vld [vmem:[%s5432 + $0x40] sm:$0xff]
        %v5442 = vld [vmem:[%s5432 + $0x48] sm:$0xff]
        %v5443 = vld [vmem:[%s5432 + $0x50] sm:$0xff]
        %v5444 = vld [vmem:[%s5432 + $0x58] sm:$0xff]
        %v5445 = vld [vmem:[%s5432 + $0x60] sm:$0xff]
        %v5446 = vld [vmem:[%s5432 + $0x68] sm:$0xff]
        %v5447 = vld [vmem:[%s5432 + $0x70] sm:$0xff]
        %v5448 = vld [vmem:[%s5432 + $0x78] sm:$0xff]
        %v5449 = vld [vmem:[%s5432 + $0x80] sm:$0xff]
        %v5450 = vld [vmem:[%s5432 + $0x88] sm:$0xff]
        %v5451 = vld [vmem:[%s5432 + $0x90] sm:$0xff]
        %v5452 = vld [vmem:[%s5432 + $0x98] sm:$0xff]
        %v5453 = vld [vmem:[%s5432 + $0xa0] sm:$0xff]
        %v5454 = vld [vmem:[%s5432 + $0xa8] sm:$0xff]
        %v5455 = vld [vmem:[%s5432 + $0xb0] sm:$0xff]
        %v5456 = vld [vmem:[%s5432 + $0xb8] sm:$0xff]
        %v5457 = vld [vmem:[%s5432 + $0xc0] sm:$0xff]
        %v5458 = vld [vmem:[%s5432 + $0xc8] sm:$0xff]
        %v5459 = vld [vmem:[%s5432 + $0xd0] sm:$0xff]
        %v5460 = vld [vmem:[%s5432 + $0xd8] sm:$0xff]
        %v5461 = vld [vmem:[%s5432 + $0xe0] sm:$0xff]
        %v5462 = vld [vmem:[%s5432 + $0xe8] sm:$0xff]
        %v5463 = vld [vmem:[%s5432 + $0xf0] sm:$0xff]
        %v5464 = vld [vmem:[%s5432 + $0xf8] sm:$0xff]
        %v5465 = vld [vmem:[%s5432 + $0x100] sm:$0xff]
        %v5466 = vld [vmem:[%s5432 + $0x108] sm:$0xff]
        %v5467 = vld [vmem:[%s5432 + $0x110] sm:$0xff]
        %v5468 = vld [vmem:[%s5432 + $0x118] sm:$0xff]
        %v5469 = vld [vmem:[%s5432 + $0x120] sm:$0xff]
        %v5470 = vld [vmem:[%s5432 + $0x128] sm:$0xff]
        %v5471 = vld [vmem:[%s5432 + $0x130] sm:$0xff]
        %v5472 = vld [vmem:[%s5432 + $0x138] sm:$0xff]
        %v5473 = vld [vmem:[%s5432 + $0x140] sm:$0xff]
        %v5474 = vld [vmem:[%s5432 + $0x148] sm:$0xff]
        %v5475 = vld [vmem:[%s5432 + $0x150] sm:$0xff]
        %v5476 = vld [vmem:[%s5432 + $0x158] sm:$0xff]
        %v5477 = vld [vmem:[%s5432 + $0x160] sm:$0xff]
        %v5478 = vld [vmem:[%s5432 + $0x168] sm:$0xff]
        %v5479 = vld [vmem:[%s5432 + $0x170] sm:$0xff]
        %v5480 = vld [vmem:[%s5432 + $0x178] sm:$0xff]
        %v5481 = vld [vmem:[%s5432 + $0x180] sm:$0xff]
        %v5482 = vld [vmem:[%s5432 + $0x188] sm:$0xff]
        %v5483 = vld [vmem:[%s5432 + $0x190] sm:$0xff]
        %v5484 = vld [vmem:[%s5432 + $0x198] sm:$0xff]
        %v5485 = vld [vmem:[%s5432 + $0x1a0] sm:$0xff]
        %v5486 = vld [vmem:[%s5432 + $0x1a8] sm:$0xff]
        %v5487 = vld [vmem:[%s5432 + $0x1b0] sm:$0xff]
        %v5488 = vld [vmem:[%s5432 + $0x1b8] sm:$0xff]
        %v5489 = vld [vmem:[%s5432 + $0x1c0] sm:$0xff]
        %v5490 = vld [vmem:[%s5432 + $0x1c8] sm:$0xff]
        %v5491 = vld [vmem:[%s5432 + $0x1d0] sm:$0xff]
        %v5492 = vld [vmem:[%s5432 + $0x1d8] sm:$0xff]
        %v5493 = vld [vmem:[%s5432 + $0x1e0] sm:$0xff]
        %v5494 = vld [vmem:[%s5432 + $0x1e8] sm:$0xff]
        %v5495 = vld [vmem:[%s5432 + $0x1f0] sm:$0xff]
        %v5496 = vld [vmem:[%s5432 + $0x1f8] sm:$0xff]
        %s5497 = scalar_lea.vmem %s10, 16
        %v5498 = vld [vmem:[%s5497] sm:$0xff]
        %v5499 = vld [vmem:[%s5497 + $0x8] sm:$0xff]
        %s5500 = scalar_lea.vmem %s11, 1024
        %v5501 = vld [vmem:[%s5500] sm:$0xf]
        %v5502 = vld [vmem:[%s5500 + $0x4] sm:$0xf]
        %v5503 = vld [vmem:[%s5500 + $0x8] sm:$0xf]
        %v5504 = vld [vmem:[%s5500 + $0xc] sm:$0xf]
        %v5505 = vld [vmem:[%s5500 + $0x10] sm:$0xf]
        %v5506 = vld [vmem:[%s5500 + $0x14] sm:$0xf]
        %v5507 = vld [vmem:[%s5500 + $0x18] sm:$0xf]
        %v5508 = vld [vmem:[%s5500 + $0x1c] sm:$0xf]
        %v5509 = vld [vmem:[%s5500 + $0x20] sm:$0xf]
        %v5510 = vld [vmem:[%s5500 + $0x24] sm:$0xf]
        %v5511 = vld [vmem:[%s5500 + $0x28] sm:$0xf]
        %v5512 = vld [vmem:[%s5500 + $0x2c] sm:$0xf]
        %v5513 = vld [vmem:[%s5500 + $0x30] sm:$0xf]
        %v5514 = vld [vmem:[%s5500 + $0x34] sm:$0xf]
        %v5515 = vld [vmem:[%s5500 + $0x38] sm:$0xf]
        %v5516 = vld [vmem:[%s5500 + $0x3c] sm:$0xf]
        %v5517 = vld [vmem:[%s5500 + $0x40] sm:$0xf]
        %v5518 = vld [vmem:[%s5500 + $0x44] sm:$0xf]
        %v5519 = vld [vmem:[%s5500 + $0x48] sm:$0xf]
        %v5520 = vld [vmem:[%s5500 + $0x4c] sm:$0xf]
        %v5521 = vld [vmem:[%s5500 + $0x50] sm:$0xf]
        %v5522 = vld [vmem:[%s5500 + $0x54] sm:$0xf]
        %v5523 = vld [vmem:[%s5500 + $0x58] sm:$0xf]
        %v5524 = vld [vmem:[%s5500 + $0x5c] sm:$0xf]
        %v5525 = vld [vmem:[%s5500 + $0x60] sm:$0xf]
        %v5526 = vld [vmem:[%s5500 + $0x64] sm:$0xf]
        %v5527 = vld [vmem:[%s5500 + $0x68] sm:$0xf]
        %v5528 = vld [vmem:[%s5500 + $0x6c] sm:$0xf]
        %v5529 = vld [vmem:[%s5500 + $0x70] sm:$0xf]
        %v5530 = vld [vmem:[%s5500 + $0x74] sm:$0xf]
        %v5531 = vld [vmem:[%s5500 + $0x78] sm:$0xf]
        %v5532 = vld [vmem:[%s5500 + $0x7c] sm:$0xf]
        %v5533 = vld [vmem:[%s5500 + $0x80] sm:$0xf]
        %v5534 = vld [vmem:[%s5500 + $0x84] sm:$0xf]
        %v5535 = vld [vmem:[%s5500 + $0x88] sm:$0xf]
        %v5536 = vld [vmem:[%s5500 + $0x8c] sm:$0xf]
        %v5537 = vld [vmem:[%s5500 + $0x90] sm:$0xf]
        %v5538 = vld [vmem:[%s5500 + $0x94] sm:$0xf]
        %v5539 = vld [vmem:[%s5500 + $0x98] sm:$0xf]
        %v5540 = vld [vmem:[%s5500 + $0x9c] sm:$0xf]
        %v5541 = vld [vmem:[%s5500 + $0xa0] sm:$0xf]
        %v5542 = vld [vmem:[%s5500 + $0xa4] sm:$0xf]
        %v5543 = vld [vmem:[%s5500 + $0xa8] sm:$0xf]
        %v5544 = vld [vmem:[%s5500 + $0xac] sm:$0xf]
        %v5545 = vld [vmem:[%s5500 + $0xb0] sm:$0xf]
        %v5546 = vld [vmem:[%s5500 + $0xb4] sm:$0xf]
        %v5547 = vld [vmem:[%s5500 + $0xb8] sm:$0xf]
        %v5548 = vld [vmem:[%s5500 + $0xbc] sm:$0xf]
        %v5549 = vld [vmem:[%s5500 + $0xc0] sm:$0xf]
        %v5550 = vld [vmem:[%s5500 + $0xc4] sm:$0xf]
        %v5551 = vld [vmem:[%s5500 + $0xc8] sm:$0xf]
        %v5552 = vld [vmem:[%s5500 + $0xcc] sm:$0xf]
        %v5553 = vld [vmem:[%s5500 + $0xd0] sm:$0xf]
        %v5554 = vld [vmem:[%s5500 + $0xd4] sm:$0xf]
        %v5555 = vld [vmem:[%s5500 + $0xd8] sm:$0xf]
        %v5556 = vld [vmem:[%s5500 + $0xdc] sm:$0xf]
        %v5557 = vld [vmem:[%s5500 + $0xe0] sm:$0xf]
        %v5558 = vld [vmem:[%s5500 + $0xe4] sm:$0xf]
        %v5559 = vld [vmem:[%s5500 + $0xe8] sm:$0xf]
        %v5560 = vld [vmem:[%s5500 + $0xec] sm:$0xf]
        %v5561 = vld [vmem:[%s5500 + $0xf0] sm:$0xf]
        %v5562 = vld [vmem:[%s5500 + $0xf4] sm:$0xf]
        %v5563 = vld [vmem:[%s5500 + $0xf8] sm:$0xf]
        %v5564 = vld [vmem:[%s5500 + $0xfc] sm:$0xf]
        %v5565 = vld [vmem:[%s5500 + $0x100] sm:$0xf]
        %v5566 = vld [vmem:[%s5500 + $0x104] sm:$0xf]
        %v5567 = vld [vmem:[%s5500 + $0x108] sm:$0xf]
        %v5568 = vld [vmem:[%s5500 + $0x10c] sm:$0xf]
        %v5569 = vld [vmem:[%s5500 + $0x110] sm:$0xf]
        %v5570 = vld [vmem:[%s5500 + $0x114] sm:$0xf]
        %v5571 = vld [vmem:[%s5500 + $0x118] sm:$0xf]
        %v5572 = vld [vmem:[%s5500 + $0x11c] sm:$0xf]
        %v5573 = vld [vmem:[%s5500 + $0x120] sm:$0xf]
        %v5574 = vld [vmem:[%s5500 + $0x124] sm:$0xf]
        %v5575 = vld [vmem:[%s5500 + $0x128] sm:$0xf]
        %v5576 = vld [vmem:[%s5500 + $0x12c] sm:$0xf]
        %v5577 = vld [vmem:[%s5500 + $0x130] sm:$0xf]
        %v5578 = vld [vmem:[%s5500 + $0x134] sm:$0xf]
        %v5579 = vld [vmem:[%s5500 + $0x138] sm:$0xf]
        %v5580 = vld [vmem:[%s5500 + $0x13c] sm:$0xf]
        %v5581 = vld [vmem:[%s5500 + $0x140] sm:$0xf]
        %v5582 = vld [vmem:[%s5500 + $0x144] sm:$0xf]
        %v5583 = vld [vmem:[%s5500 + $0x148] sm:$0xf]
        %v5584 = vld [vmem:[%s5500 + $0x14c] sm:$0xf]
        %v5585 = vld [vmem:[%s5500 + $0x150] sm:$0xf]
        %v5586 = vld [vmem:[%s5500 + $0x154] sm:$0xf]
        %v5587 = vld [vmem:[%s5500 + $0x158] sm:$0xf]
        %v5588 = vld [vmem:[%s5500 + $0x15c] sm:$0xf]
        %v5589 = vld [vmem:[%s5500 + $0x160] sm:$0xf]
        %v5590 = vld [vmem:[%s5500 + $0x164] sm:$0xf]
        %v5591 = vld [vmem:[%s5500 + $0x168] sm:$0xf]
        %v5592 = vld [vmem:[%s5500 + $0x16c] sm:$0xf]
        %v5593 = vld [vmem:[%s5500 + $0x170] sm:$0xf]
        %v5594 = vld [vmem:[%s5500 + $0x174] sm:$0xf]
        %v5595 = vld [vmem:[%s5500 + $0x178] sm:$0xf]
        %v5596 = vld [vmem:[%s5500 + $0x17c] sm:$0xf]
        %v5597 = vld [vmem:[%s5500 + $0x180] sm:$0xf]
        %v5598 = vld [vmem:[%s5500 + $0x184] sm:$0xf]
        %v5599 = vld [vmem:[%s5500 + $0x188] sm:$0xf]
        %v5600 = vld [vmem:[%s5500 + $0x18c] sm:$0xf]
        %v5601 = vld [vmem:[%s5500 + $0x190] sm:$0xf]
        %v5602 = vld [vmem:[%s5500 + $0x194] sm:$0xf]
        %v5603 = vld [vmem:[%s5500 + $0x198] sm:$0xf]
        %v5604 = vld [vmem:[%s5500 + $0x19c] sm:$0xf]
        %v5605 = vld [vmem:[%s5500 + $0x1a0] sm:$0xf]
        %v5606 = vld [vmem:[%s5500 + $0x1a4] sm:$0xf]
        %v5607 = vld [vmem:[%s5500 + $0x1a8] sm:$0xf]
        %v5608 = vld [vmem:[%s5500 + $0x1ac] sm:$0xf]
        %v5609 = vld [vmem:[%s5500 + $0x1b0] sm:$0xf]
        %v5610 = vld [vmem:[%s5500 + $0x1b4] sm:$0xf]
        %v5611 = vld [vmem:[%s5500 + $0x1b8] sm:$0xf]
        %v5612 = vld [vmem:[%s5500 + $0x1bc] sm:$0xf]
        %v5613 = vld [vmem:[%s5500 + $0x1c0] sm:$0xf]
        %v5614 = vld [vmem:[%s5500 + $0x1c4] sm:$0xf]
        %v5615 = vld [vmem:[%s5500 + $0x1c8] sm:$0xf]
        %v5616 = vld [vmem:[%s5500 + $0x1cc] sm:$0xf]
        %v5617 = vld [vmem:[%s5500 + $0x1d0] sm:$0xf]
        %v5618 = vld [vmem:[%s5500 + $0x1d4] sm:$0xf]
        %v5619 = vld [vmem:[%s5500 + $0x1d8] sm:$0xf]
        %v5620 = vld [vmem:[%s5500 + $0x1dc] sm:$0xf]
        %v5621 = vld [vmem:[%s5500 + $0x1e0] sm:$0xf]
        %v5622 = vld [vmem:[%s5500 + $0x1e4] sm:$0xf]
        %v5623 = vld [vmem:[%s5500 + $0x1e8] sm:$0xf]
        %v5624 = vld [vmem:[%s5500 + $0x1ec] sm:$0xf]
        %v5625 = vld [vmem:[%s5500 + $0x1f0] sm:$0xf]
        %v5626 = vld [vmem:[%s5500 + $0x1f4] sm:$0xf]
        %v5627 = vld [vmem:[%s5500 + $0x1f8] sm:$0xf]
        %v5628 = vld [vmem:[%s5500 + $0x1fc] sm:$0xf]
        %v5629 = vld [vmem:[%s5500 + $0x200] sm:$0xf]
        %v5630 = vld [vmem:[%s5500 + $0x204] sm:$0xf]
        %v5631 = vld [vmem:[%s5500 + $0x208] sm:$0xf]
        %v5632 = vld [vmem:[%s5500 + $0x20c] sm:$0xf]
        %v5633 = vld [vmem:[%s5500 + $0x210] sm:$0xf]
        %v5634 = vld [vmem:[%s5500 + $0x214] sm:$0xf]
        %v5635 = vld [vmem:[%s5500 + $0x218] sm:$0xf]
        %v5636 = vld [vmem:[%s5500 + $0x21c] sm:$0xf]
        %v5637 = vld [vmem:[%s5500 + $0x220] sm:$0xf]
        %v5638 = vld [vmem:[%s5500 + $0x224] sm:$0xf]
        %v5639 = vld [vmem:[%s5500 + $0x228] sm:$0xf]
        %v5640 = vld [vmem:[%s5500 + $0x22c] sm:$0xf]
        %v5641 = vld [vmem:[%s5500 + $0x230] sm:$0xf]
        %v5642 = vld [vmem:[%s5500 + $0x234] sm:$0xf]
        %v5643 = vld [vmem:[%s5500 + $0x238] sm:$0xf]
        %v5644 = vld [vmem:[%s5500 + $0x23c] sm:$0xf]
        %v5645 = vld [vmem:[%s5500 + $0x240] sm:$0xf]
        %v5646 = vld [vmem:[%s5500 + $0x244] sm:$0xf]
        %v5647 = vld [vmem:[%s5500 + $0x248] sm:$0xf]
        %v5648 = vld [vmem:[%s5500 + $0x24c] sm:$0xf]
        %v5649 = vld [vmem:[%s5500 + $0x250] sm:$0xf]
        %v5650 = vld [vmem:[%s5500 + $0x254] sm:$0xf]
        %v5651 = vld [vmem:[%s5500 + $0x258] sm:$0xf]
        %v5652 = vld [vmem:[%s5500 + $0x25c] sm:$0xf]
        %v5653 = vld [vmem:[%s5500 + $0x260] sm:$0xf]
        %v5654 = vld [vmem:[%s5500 + $0x264] sm:$0xf]
        %v5655 = vld [vmem:[%s5500 + $0x268] sm:$0xf]
        %v5656 = vld [vmem:[%s5500 + $0x26c] sm:$0xf]
        %v5657 = vld [vmem:[%s5500 + $0x270] sm:$0xf]
        %v5658 = vld [vmem:[%s5500 + $0x274] sm:$0xf]
        %v5659 = vld [vmem:[%s5500 + $0x278] sm:$0xf]
        %v5660 = vld [vmem:[%s5500 + $0x27c] sm:$0xf]
        %v5661 = vld [vmem:[%s5500 + $0x280] sm:$0xf]
        %v5662 = vld [vmem:[%s5500 + $0x284] sm:$0xf]
        %v5663 = vld [vmem:[%s5500 + $0x288] sm:$0xf]
        %v5664 = vld [vmem:[%s5500 + $0x28c] sm:$0xf]
        %v5665 = vld [vmem:[%s5500 + $0x290] sm:$0xf]
        %v5666 = vld [vmem:[%s5500 + $0x294] sm:$0xf]
        %v5667 = vld [vmem:[%s5500 + $0x298] sm:$0xf]
        %v5668 = vld [vmem:[%s5500 + $0x29c] sm:$0xf]
        %v5669 = vld [vmem:[%s5500 + $0x2a0] sm:$0xf]
        %v5670 = vld [vmem:[%s5500 + $0x2a4] sm:$0xf]
        %v5671 = vld [vmem:[%s5500 + $0x2a8] sm:$0xf]
        %v5672 = vld [vmem:[%s5500 + $0x2ac] sm:$0xf]
        %v5673 = vld [vmem:[%s5500 + $0x2b0] sm:$0xf]
        %v5674 = vld [vmem:[%s5500 + $0x2b4] sm:$0xf]
        %v5675 = vld [vmem:[%s5500 + $0x2b8] sm:$0xf]
        %v5676 = vld [vmem:[%s5500 + $0x2bc] sm:$0xf]
        %v5677 = vld [vmem:[%s5500 + $0x2c0] sm:$0xf]
        %v5678 = vld [vmem:[%s5500 + $0x2c4] sm:$0xf]
        %v5679 = vld [vmem:[%s5500 + $0x2c8] sm:$0xf]
        %v5680 = vld [vmem:[%s5500 + $0x2cc] sm:$0xf]
        %v5681 = vld [vmem:[%s5500 + $0x2d0] sm:$0xf]
        %v5682 = vld [vmem:[%s5500 + $0x2d4] sm:$0xf]
        %v5683 = vld [vmem:[%s5500 + $0x2d8] sm:$0xf]
        %v5684 = vld [vmem:[%s5500 + $0x2dc] sm:$0xf]
        %v5685 = vld [vmem:[%s5500 + $0x2e0] sm:$0xf]
        %v5686 = vld [vmem:[%s5500 + $0x2e4] sm:$0xf]
        %v5687 = vld [vmem:[%s5500 + $0x2e8] sm:$0xf]
        %v5688 = vld [vmem:[%s5500 + $0x2ec] sm:$0xf]
        %v5689 = vld [vmem:[%s5500 + $0x2f0] sm:$0xf]
        %v5690 = vld [vmem:[%s5500 + $0x2f4] sm:$0xf]
        %v5691 = vld [vmem:[%s5500 + $0x2f8] sm:$0xf]
        %v5692 = vld [vmem:[%s5500 + $0x2fc] sm:$0xf]
        %v5693 = vld [vmem:[%s5500 + $0x300] sm:$0xf]
        %v5694 = vld [vmem:[%s5500 + $0x304] sm:$0xf]
        %v5695 = vld [vmem:[%s5500 + $0x308] sm:$0xf]
        %v5696 = vld [vmem:[%s5500 + $0x30c] sm:$0xf]
        %v5697 = vld [vmem:[%s5500 + $0x310] sm:$0xf]
        %v5698 = vld [vmem:[%s5500 + $0x314] sm:$0xf]
        %v5699 = vld [vmem:[%s5500 + $0x318] sm:$0xf]
        %v5700 = vld [vmem:[%s5500 + $0x31c] sm:$0xf]
        %v5701 = vld [vmem:[%s5500 + $0x320] sm:$0xf]
        %v5702 = vld [vmem:[%s5500 + $0x324] sm:$0xf]
        %v5703 = vld [vmem:[%s5500 + $0x328] sm:$0xf]
        %v5704 = vld [vmem:[%s5500 + $0x32c] sm:$0xf]
        %v5705 = vld [vmem:[%s5500 + $0x330] sm:$0xf]
        %v5706 = vld [vmem:[%s5500 + $0x334] sm:$0xf]
        %v5707 = vld [vmem:[%s5500 + $0x338] sm:$0xf]
        %v5708 = vld [vmem:[%s5500 + $0x33c] sm:$0xf]
        %v5709 = vld [vmem:[%s5500 + $0x340] sm:$0xf]
        %v5710 = vld [vmem:[%s5500 + $0x344] sm:$0xf]
        %v5711 = vld [vmem:[%s5500 + $0x348] sm:$0xf]
        %v5712 = vld [vmem:[%s5500 + $0x34c] sm:$0xf]
        %v5713 = vld [vmem:[%s5500 + $0x350] sm:$0xf]
        %v5714 = vld [vmem:[%s5500 + $0x354] sm:$0xf]
        %v5715 = vld [vmem:[%s5500 + $0x358] sm:$0xf]
        %v5716 = vld [vmem:[%s5500 + $0x35c] sm:$0xf]
        %v5717 = vld [vmem:[%s5500 + $0x360] sm:$0xf]
        %v5718 = vld [vmem:[%s5500 + $0x364] sm:$0xf]
        %v5719 = vld [vmem:[%s5500 + $0x368] sm:$0xf]
        %v5720 = vld [vmem:[%s5500 + $0x36c] sm:$0xf]
        %v5721 = vld [vmem:[%s5500 + $0x370] sm:$0xf]
        %v5722 = vld [vmem:[%s5500 + $0x374] sm:$0xf]
        %v5723 = vld [vmem:[%s5500 + $0x378] sm:$0xf]
        %v5724 = vld [vmem:[%s5500 + $0x37c] sm:$0xf]
        %v5725 = vld [vmem:[%s5500 + $0x380] sm:$0xf]
        %v5726 = vld [vmem:[%s5500 + $0x384] sm:$0xf]
        %v5727 = vld [vmem:[%s5500 + $0x388] sm:$0xf]
        %v5728 = vld [vmem:[%s5500 + $0x38c] sm:$0xf]
        %v5729 = vld [vmem:[%s5500 + $0x390] sm:$0xf]
        %v5730 = vld [vmem:[%s5500 + $0x394] sm:$0xf]
        %v5731 = vld [vmem:[%s5500 + $0x398] sm:$0xf]
        %v5732 = vld [vmem:[%s5500 + $0x39c] sm:$0xf]
        %v5733 = vld [vmem:[%s5500 + $0x3a0] sm:$0xf]
        %v5734 = vld [vmem:[%s5500 + $0x3a4] sm:$0xf]
        %v5735 = vld [vmem:[%s5500 + $0x3a8] sm:$0xf]
        %v5736 = vld [vmem:[%s5500 + $0x3ac] sm:$0xf]
        %v5737 = vld [vmem:[%s5500 + $0x3b0] sm:$0xf]
        %v5738 = vld [vmem:[%s5500 + $0x3b4] sm:$0xf]
        %v5739 = vld [vmem:[%s5500 + $0x3b8] sm:$0xf]
        %v5740 = vld [vmem:[%s5500 + $0x3bc] sm:$0xf]
        %v5741 = vld [vmem:[%s5500 + $0x3c0] sm:$0xf]
        %v5742 = vld [vmem:[%s5500 + $0x3c4] sm:$0xf]
        %v5743 = vld [vmem:[%s5500 + $0x3c8] sm:$0xf]
        %v5744 = vld [vmem:[%s5500 + $0x3cc] sm:$0xf]
        %v5745 = vld [vmem:[%s5500 + $0x3d0] sm:$0xf]
        %v5746 = vld [vmem:[%s5500 + $0x3d4] sm:$0xf]
        %v5747 = vld [vmem:[%s5500 + $0x3d8] sm:$0xf]
        %v5748 = vld [vmem:[%s5500 + $0x3dc] sm:$0xf]
        %v5749 = vld [vmem:[%s5500 + $0x3e0] sm:$0xf]
        %v5750 = vld [vmem:[%s5500 + $0x3e4] sm:$0xf]
        %v5751 = vld [vmem:[%s5500 + $0x3e8] sm:$0xf]
        %v5752 = vld [vmem:[%s5500 + $0x3ec] sm:$0xf]
        %v5753 = vld [vmem:[%s5500 + $0x3f0] sm:$0xf]
        %v5754 = vld [vmem:[%s5500 + $0x3f4] sm:$0xf]
        %v5755 = vld [vmem:[%s5500 + $0x3f8] sm:$0xf]
        %v5756 = vld [vmem:[%s5500 + $0x3fc] sm:$0xf]
        %s5757 = scalar_lea.vmem %s12, 1
        %v5758 = vld [vmem:[%s5757] sm:$0x1]
        %v5759 = vpack.c.bf16 %v5431, %v5431
        %v5762 = vlaneseq
        %v5763 = vshrl.u32 %v5762, 7
        %v5764 = vsub.s32 0, %v5763
        %v5765 = vrot.slane %v5498, %v5764
        %v5766 = vlaneseq
        %v5767 = vshrl.u32 %v5766, 7
        %v5768 = vsub.s32 1, %v5767
        %v5769 = vrot.slane %v5498, %v5768
        %v5770 = vlaneseq
        %v5771 = vshrl.u32 %v5770, 7
        %v5772 = vsub.s32 2, %v5771
        %v5773 = vrot.slane %v5498, %v5772
        %v5774 = vlaneseq
        %v5775 = vshrl.u32 %v5774, 7
        %v5776 = vsub.s32 3, %v5775
        %v5777 = vrot.slane %v5498, %v5776
        %v5778 = vlaneseq
        %v5779 = vshrl.u32 %v5778, 7
        %v5780 = vsub.s32 4, %v5779
        %v5781 = vrot.slane %v5498, %v5780
        %v5782 = vlaneseq
        %v5783 = vshrl.u32 %v5782, 7
        %v5784 = vsub.s32 5, %v5783
        %v5785 = vrot.slane %v5498, %v5784
        %v5786 = vlaneseq
        %v5787 = vshrl.u32 %v5786, 7
        %v5788 = vsub.s32 6, %v5787
        %v5789 = vrot.slane %v5498, %v5788
        %v5790 = vlaneseq
        %v5791 = vshrl.u32 %v5790, 7
        %v5792 = vsub.s32 7, %v5791
        %v5793 = vrot.slane %v5498, %v5792
        %v5794 = vlaneseq
        %v5795 = vshrl.u32 %v5794, 7
        %v5796 = vsub.s32 0, %v5795
        %v5797 = vrot.slane %v5499, %v5796
        %v5798 = vlaneseq
        %v5799 = vshrl.u32 %v5798, 7
        %v5800 = vsub.s32 1, %v5799
        %v5801 = vrot.slane %v5499, %v5800
        %v5802 = vlaneseq
        %v5803 = vshrl.u32 %v5802, 7
        %v5804 = vsub.s32 2, %v5803
        %v5805 = vrot.slane %v5499, %v5804
        %v5806 = vlaneseq
        %v5807 = vshrl.u32 %v5806, 7
        %v5808 = vsub.s32 3, %v5807
        %v5809 = vrot.slane %v5499, %v5808
        %v5810 = vlaneseq
        %v5811 = vshrl.u32 %v5810, 7
        %v5812 = vsub.s32 4, %v5811
        %v5813 = vrot.slane %v5499, %v5812
        %v5814 = vlaneseq
        %v5815 = vshrl.u32 %v5814, 7
        %v5816 = vsub.s32 5, %v5815
        %v5817 = vrot.slane %v5499, %v5816
        %v5818 = vlaneseq
        %v5819 = vshrl.u32 %v5818, 7
        %v5820 = vsub.s32 6, %v5819
        %v5821 = vrot.slane %v5499, %v5820
        %v5822 = vlaneseq
        %v5823 = vshrl.u32 %v5822, 7
        %v5824 = vsub.s32 7, %v5823
        %v5825 = vrot.slane %v5499, %v5824
        %v5906 = vunpack.c.l.b16 %v5433
        %v5907 = vunpack.c.h.b16 %v5433
        %v5908 = vunpack.c.l.b16 %v5434
        %v5909 = vunpack.c.h.b16 %v5434
        %v5910 = vunpack.c.l.b16 %v5435
        %v5911 = vunpack.c.h.b16 %v5435
        %v5912 = vunpack.c.l.b16 %v5436
        %v5913 = vunpack.c.h.b16 %v5436
        %v5914 = vunpack.c.l.b16 %v5437
        %v5915 = vunpack.c.h.b16 %v5437
        %v5916 = vunpack.c.l.b16 %v5438
        %v5917 = vunpack.c.h.b16 %v5438
        %v5918 = vunpack.c.l.b16 %v5439
        %v5919 = vunpack.c.h.b16 %v5439
        %v5920 = vunpack.c.l.b16 %v5440
        %v5921 = vunpack.c.h.b16 %v5440
        %v5922 = vunpack.c.l.b16 %v5441
        %v5923 = vunpack.c.h.b16 %v5441
        %v5924 = vunpack.c.l.b16 %v5442
        %v5925 = vunpack.c.h.b16 %v5442
        %v5926 = vunpack.c.l.b16 %v5443
        %v5927 = vunpack.c.h.b16 %v5443
        %v5928 = vunpack.c.l.b16 %v5444
        %v5929 = vunpack.c.h.b16 %v5444
        %v5930 = vunpack.c.l.b16 %v5445
        %v5931 = vunpack.c.h.b16 %v5445
        %v5932 = vunpack.c.l.b16 %v5446
        %v5933 = vunpack.c.h.b16 %v5446
        %v5934 = vunpack.c.l.b16 %v5447
        %v5935 = vunpack.c.h.b16 %v5447
        %v5936 = vunpack.c.l.b16 %v5448
        %v5937 = vunpack.c.h.b16 %v5448
        %v5938 = vunpack.c.l.b16 %v5449
        %v5939 = vunpack.c.h.b16 %v5449
        %v5940 = vunpack.c.l.b16 %v5450
        %v5941 = vunpack.c.h.b16 %v5450
        %v5942 = vunpack.c.l.b16 %v5451
        %v5943 = vunpack.c.h.b16 %v5451
        %v5944 = vunpack.c.l.b16 %v5452
        %v5945 = vunpack.c.h.b16 %v5452
        %v5946 = vunpack.c.l.b16 %v5453
        %v5947 = vunpack.c.h.b16 %v5453
        %v5948 = vunpack.c.l.b16 %v5454
        %v5949 = vunpack.c.h.b16 %v5454
        %v5950 = vunpack.c.l.b16 %v5455
        %v5951 = vunpack.c.h.b16 %v5455
        %v5952 = vunpack.c.l.b16 %v5456
        %v5953 = vunpack.c.h.b16 %v5456
        %v5954 = vunpack.c.l.b16 %v5457
        %v5955 = vunpack.c.h.b16 %v5457
        %v5956 = vunpack.c.l.b16 %v5458
        %v5957 = vunpack.c.h.b16 %v5458
        %v5958 = vunpack.c.l.b16 %v5459
        %v5959 = vunpack.c.h.b16 %v5459
        %v5960 = vunpack.c.l.b16 %v5460
        %v5961 = vunpack.c.h.b16 %v5460
        %v5962 = vunpack.c.l.b16 %v5461
        %v5963 = vunpack.c.h.b16 %v5461
        %v5964 = vunpack.c.l.b16 %v5462
        %v5965 = vunpack.c.h.b16 %v5462
        %v5966 = vunpack.c.l.b16 %v5463
        %v5967 = vunpack.c.h.b16 %v5463
        %v5968 = vunpack.c.l.b16 %v5464
        %v5969 = vunpack.c.h.b16 %v5464
        %v5970 = vunpack.c.l.b16 %v5465
        %v5971 = vunpack.c.h.b16 %v5465
        %v5972 = vunpack.c.l.b16 %v5466
        %v5973 = vunpack.c.h.b16 %v5466
        %v5974 = vunpack.c.l.b16 %v5467
        %v5975 = vunpack.c.h.b16 %v5467
        %v5976 = vunpack.c.l.b16 %v5468
        %v5977 = vunpack.c.h.b16 %v5468
        %v5978 = vunpack.c.l.b16 %v5469
        %v5979 = vunpack.c.h.b16 %v5469
        %v5980 = vunpack.c.l.b16 %v5470
        %v5981 = vunpack.c.h.b16 %v5470
        %v5982 = vunpack.c.l.b16 %v5471
        %v5983 = vunpack.c.h.b16 %v5471
        %v5984 = vunpack.c.l.b16 %v5472
        %v5985 = vunpack.c.h.b16 %v5472
        %v5986 = vunpack.c.l.b16 %v5473
        %v5987 = vunpack.c.h.b16 %v5473
        %v5988 = vunpack.c.l.b16 %v5474
        %v5989 = vunpack.c.h.b16 %v5474
        %v5990 = vunpack.c.l.b16 %v5475
        %v5991 = vunpack.c.h.b16 %v5475
        %v5992 = vunpack.c.l.b16 %v5476
        %v5993 = vunpack.c.h.b16 %v5476
        %v5994 = vunpack.c.l.b16 %v5477
        %v5995 = vunpack.c.h.b16 %v5477
        %v5996 = vunpack.c.l.b16 %v5478
        %v5997 = vunpack.c.h.b16 %v5478
        %v5998 = vunpack.c.l.b16 %v5479
        %v5999 = vunpack.c.h.b16 %v5479
        %v6000 = vunpack.c.l.b16 %v5480
        %v6001 = vunpack.c.h.b16 %v5480
        %v6002 = vunpack.c.l.b16 %v5481
        %v6003 = vunpack.c.h.b16 %v5481
        %v6004 = vunpack.c.l.b16 %v5482
        %v6005 = vunpack.c.h.b16 %v5482
        %v6006 = vunpack.c.l.b16 %v5483
        %v6007 = vunpack.c.h.b16 %v5483
        %v6008 = vunpack.c.l.b16 %v5484
        %v6009 = vunpack.c.h.b16 %v5484
        %v6010 = vunpack.c.l.b16 %v5485
        %v6011 = vunpack.c.h.b16 %v5485
        %v6012 = vunpack.c.l.b16 %v5486
        %v6013 = vunpack.c.h.b16 %v5486
        %v6014 = vunpack.c.l.b16 %v5487
        %v6015 = vunpack.c.h.b16 %v5487
        %v6016 = vunpack.c.l.b16 %v5488
        %v6017 = vunpack.c.h.b16 %v5488
        %v6018 = vunpack.c.l.b16 %v5489
        %v6019 = vunpack.c.h.b16 %v5489
        %v6020 = vunpack.c.l.b16 %v5490
        %v6021 = vunpack.c.h.b16 %v5490
        %v6022 = vunpack.c.l.b16 %v5491
        %v6023 = vunpack.c.h.b16 %v5491
        %v6024 = vunpack.c.l.b16 %v5492
        %v6025 = vunpack.c.h.b16 %v5492
        %v6026 = vunpack.c.l.b16 %v5493
        %v6027 = vunpack.c.h.b16 %v5493
        %v6028 = vunpack.c.l.b16 %v5494
        %v6029 = vunpack.c.h.b16 %v5494
        %v6030 = vunpack.c.l.b16 %v5495
        %v6031 = vunpack.c.h.b16 %v5495
        %v6032 = vunpack.c.l.b16 %v5496
        %v6033 = vunpack.c.h.b16 %v5496
        %v6034 = vpack.c.b16 %v5922, %v5906
        %v6035 = vpack.c.b16 %v5923, %v5907
        %v6036 = vpack.c.b16 %v5924, %v5908
        %v6037 = vpack.c.b16 %v5925, %v5909
        %v6038 = vpack.c.b16 %v5926, %v5910
        %v6039 = vpack.c.b16 %v5927, %v5911
        %v6040 = vpack.c.b16 %v5928, %v5912
        %v6041 = vpack.c.b16 %v5929, %v5913
        %v6042 = vpack.c.b16 %v5930, %v5914
        %v6043 = vpack.c.b16 %v5931, %v5915
        %v6044 = vpack.c.b16 %v5932, %v5916
        %v6045 = vpack.c.b16 %v5933, %v5917
        %v6046 = vpack.c.b16 %v5934, %v5918
        %v6047 = vpack.c.b16 %v5935, %v5919
        %v6048 = vpack.c.b16 %v5936, %v5920
        %v6049 = vpack.c.b16 %v5937, %v5921
        %v6050 = vpack.c.b16 %v5954, %v5938
        %v6051 = vpack.c.b16 %v5955, %v5939
        %v6052 = vpack.c.b16 %v5956, %v5940
        %v6053 = vpack.c.b16 %v5957, %v5941
        %v6054 = vpack.c.b16 %v5958, %v5942
        %v6055 = vpack.c.b16 %v5959, %v5943
        %v6056 = vpack.c.b16 %v5960, %v5944
        %v6057 = vpack.c.b16 %v5961, %v5945
        %v6058 = vpack.c.b16 %v5962, %v5946
        %v6059 = vpack.c.b16 %v5963, %v5947
        %v6060 = vpack.c.b16 %v5964, %v5948
        %v6061 = vpack.c.b16 %v5965, %v5949
        %v6062 = vpack.c.b16 %v5966, %v5950
        %v6063 = vpack.c.b16 %v5967, %v5951
        %v6064 = vpack.c.b16 %v5968, %v5952
        %v6065 = vpack.c.b16 %v5969, %v5953
        %v6066 = vpack.c.b16 %v5986, %v5970
        %v6067 = vpack.c.b16 %v5987, %v5971
        %v6068 = vpack.c.b16 %v5988, %v5972
        %v6069 = vpack.c.b16 %v5989, %v5973
        %v6070 = vpack.c.b16 %v5990, %v5974
        %v6071 = vpack.c.b16 %v5991, %v5975
        %v6072 = vpack.c.b16 %v5992, %v5976
        %v6073 = vpack.c.b16 %v5993, %v5977
        %v6074 = vpack.c.b16 %v5994, %v5978
        %v6075 = vpack.c.b16 %v5995, %v5979
        %v6076 = vpack.c.b16 %v5996, %v5980
        %v6077 = vpack.c.b16 %v5997, %v5981
        %v6078 = vpack.c.b16 %v5998, %v5982
        %v6079 = vpack.c.b16 %v5999, %v5983
        %v6080 = vpack.c.b16 %v6000, %v5984
        %v6081 = vpack.c.b16 %v6001, %v5985
        %v6082 = vpack.c.b16 %v6018, %v6002
        %v6083 = vpack.c.b16 %v6019, %v6003
        %v6084 = vpack.c.b16 %v6020, %v6004
        %v6085 = vpack.c.b16 %v6021, %v6005
        %v6086 = vpack.c.b16 %v6022, %v6006
        %v6087 = vpack.c.b16 %v6023, %v6007
        %v6088 = vpack.c.b16 %v6024, %v6008
        %v6089 = vpack.c.b16 %v6025, %v6009
        %v6090 = vpack.c.b16 %v6026, %v6010
        %v6091 = vpack.c.b16 %v6027, %v6011
        %v6092 = vpack.c.b16 %v6028, %v6012
        %v6093 = vpack.c.b16 %v6029, %v6013
        %v6094 = vpack.c.b16 %v6030, %v6014
        %v6095 = vpack.c.b16 %v6031, %v6015
        %v6096 = vpack.c.b16 %v6032, %v6016
        %v6097 = vpack.c.b16 %v6033, %v6017
        %v6163 = vsel %vm665, %v5759, 0
        %6165 = vmatprep.subr.bf16.mxu0 %v6035
        %6166 = vmatpush1.bf16.msra.mxu0 %v6034
        %6167 = vmatprep.subr.bf16.mxu0 %v6051
        %6168 = vmatpush1.bf16.msra.mxu0 %v6050
        %6169 = vmatprep.subr.bf16.mxu0 %v6067
        %6170 = vmatpush1.bf16.msra.mxu0 %v6066
        %6171 = vmatprep.subr.bf16.mxu0 %v6083
        %6172 = vmatpush1.bf16.msra.mxu0 %v6082
        %6173 = vmatprep.subr.bf16.mxu0 0
        %6174 = vmatpush1.bf16.msra.mxu0 0
        %6175 = vmatprep.subr.bf16.mxu0 0
        %6176 = vmatpush1.bf16.msra.mxu0 0
        %6177 = vmatprep.subr.bf16.mxu0 0
        %6178 = vmatpush1.bf16.msra.mxu0 0
        %6179 = vmatprep.subr.bf16.mxu0 0
        %6180 = vmatpush1.bf16.msra.mxu0 0
        %6181 = vmatprep.subr.bf16.mxu0 0
        %6182 = vmatpush1.bf16.msra.mxu0 0
        %6183 = vmatprep.subr.bf16.mxu0 0
        %6184 = vmatpush1.bf16.msra.mxu0 0
        %6185 = vmatprep.subr.bf16.mxu0 0
        %6186 = vmatpush1.bf16.msra.mxu0 0
        %6187 = vmatprep.subr.bf16.mxu0 0
        %6188 = vmatpush1.bf16.msra.mxu0 0
        %6189 = vmatprep.subr.bf16.mxu0 0
        %6190 = vmatpush1.bf16.msra.mxu0 0
        %6191 = vmatprep.subr.bf16.mxu0 0
        %6192 = vmatpush1.bf16.msra.mxu0 0
        %6193 = vmatprep.subr.bf16.mxu0 0
        %6194 = vmatpush1.bf16.msra.mxu0 0
        %6195 = vmatprep.subr.bf16.mxu0 0
        %6196 = vmatpush1.bf16.msra.mxu0 0
        %6197 = vmatprep.mubr.bf16.mxu0 0
        %6198 = vmatmul.mubr.bf16.gmra.mrb[0].mxu0 %v6163
        %v6199 = vpop.f32.mrb[0].mxu0
        %v6200 = vadd.f32 %v5765, %v6199
        %v6201 = vpop.f32.mrb[0].mxu0
        %v6202 = vadd.f32 %v5769, %v6201
        %v6203 = vpop.f32.mrb[0].mxu0
        %v6204 = vpop.f32.mrb[0].mxu0
        %6205 = vdwg.mxu0
        %6206 = vmatprep.subr.bf16.mxu0 %v6037
        %6207 = vmatpush1.bf16.msra.mxu0 %v6036
        %6208 = vmatprep.subr.bf16.mxu0 %v6053
        %6209 = vmatpush1.bf16.msra.mxu0 %v6052
        %6210 = vmatprep.subr.bf16.mxu0 %v6069
        %6211 = vmatpush1.bf16.msra.mxu0 %v6068
        %6212 = vmatprep.subr.bf16.mxu0 %v6085
        %6213 = vmatpush1.bf16.msra.mxu0 %v6084
        %6214 = vmatprep.subr.bf16.mxu0 0
        %6215 = vmatpush1.bf16.msra.mxu0 0
        %6216 = vmatprep.subr.bf16.mxu0 0
        %6217 = vmatpush1.bf16.msra.mxu0 0
        %6218 = vmatprep.subr.bf16.mxu0 0
        %6219 = vmatpush1.bf16.msra.mxu0 0
        %6220 = vmatprep.subr.bf16.mxu0 0
        %6221 = vmatpush1.bf16.msra.mxu0 0
        %6222 = vmatprep.subr.bf16.mxu0 0
        %6223 = vmatpush1.bf16.msra.mxu0 0
        %6224 = vmatprep.subr.bf16.mxu0 0
        %6225 = vmatpush1.bf16.msra.mxu0 0
        %6226 = vmatprep.subr.bf16.mxu0 0
        %6227 = vmatpush1.bf16.msra.mxu0 0
        %6228 = vmatprep.subr.bf16.mxu0 0
        %6229 = vmatpush1.bf16.msra.mxu0 0
        %6230 = vmatprep.subr.bf16.mxu0 0
        %6231 = vmatpush1.bf16.msra.mxu0 0
        %6232 = vmatprep.subr.bf16.mxu0 0
        %6233 = vmatpush1.bf16.msra.mxu0 0
        %6234 = vmatprep.subr.bf16.mxu0 0
        %6235 = vmatpush1.bf16.msra.mxu0 0
        %6236 = vmatprep.subr.bf16.mxu0 0
        %6237 = vmatpush1.bf16.msra.mxu0 0
        %6238 = vmatprep.mubr.bf16.mxu0 0
        %6239 = vmatmul.mubr.bf16.gmra.mrb[0].mxu0 %v6163
        %v6240 = vpop.f32.mrb[0].mxu0
        %v6241 = vadd.f32 %v5773, %v6240
        %v6242 = vpop.f32.mrb[0].mxu0
        %v6243 = vadd.f32 %v5777, %v6242
        %v6244 = vpop.f32.mrb[0].mxu0
        %v6245 = vpop.f32.mrb[0].mxu0
        %6246 = vdwg.mxu0
        %6247 = vmatprep.subr.bf16.mxu0 %v6039
        %6248 = vmatpush1.bf16.msra.mxu0 %v6038
        %6249 = vmatprep.subr.bf16.mxu0 %v6055
        %6250 = vmatpush1.bf16.msra.mxu0 %v6054
        %6251 = vmatprep.subr.bf16.mxu0 %v6071
        %6252 = vmatpush1.bf16.msra.mxu0 %v6070
        %6253 = vmatprep.subr.bf16.mxu0 %v6087
        %6254 = vmatpush1.bf16.msra.mxu0 %v6086
        %6255 = vmatprep.subr.bf16.mxu0 0
        %6256 = vmatpush1.bf16.msra.mxu0 0
        %6257 = vmatprep.subr.bf16.mxu0 0
        %6258 = vmatpush1.bf16.msra.mxu0 0
        %6259 = vmatprep.subr.bf16.mxu0 0
        %6260 = vmatpush1.bf16.msra.mxu0 0
        %6261 = vmatprep.subr.bf16.mxu0 0
        %6262 = vmatpush1.bf16.msra.mxu0 0
        %6263 = vmatprep.subr.bf16.mxu0 0
        %6264 = vmatpush1.bf16.msra.mxu0 0
        %6265 = vmatprep.subr.bf16.mxu0 0
        %6266 = vmatpush1.bf16.msra.mxu0 0
        %6267 = vmatprep.subr.bf16.mxu0 0
        %6268 = vmatpush1.bf16.msra.mxu0 0
        %6269 = vmatprep.subr.bf16.mxu0 0
        %6270 = vmatpush1.bf16.msra.mxu0 0
        %6271 = vmatprep.subr.bf16.mxu0 0
        %6272 = vmatpush1.bf16.msra.mxu0 0
        %6273 = vmatprep.subr.bf16.mxu0 0
        %6274 = vmatpush1.bf16.msra.mxu0 0
        %6275 = vmatprep.subr.bf16.mxu0 0
        %6276 = vmatpush1.bf16.msra.mxu0 0
        %6277 = vmatprep.subr.bf16.mxu0 0
        %6278 = vmatpush1.bf16.msra.mxu0 0
        %6279 = vmatprep.mubr.bf16.mxu0 0
        %6280 = vmatmul.mubr.bf16.gmra.mrb[0].mxu0 %v6163
        %v6281 = vpop.f32.mrb[0].mxu0
        %v6282 = vadd.f32 %v5781, %v6281
        %v6283 = vpop.f32.mrb[0].mxu0
        %v6284 = vadd.f32 %v5785, %v6283
        %v6285 = vpop.f32.mrb[0].mxu0
        %v6286 = vpop.f32.mrb[0].mxu0
        %6287 = vdwg.mxu0
        %6288 = vmatprep.subr.bf16.mxu0 %v6041
        %6289 = vmatpush1.bf16.msra.mxu0 %v6040
        %6290 = vmatprep.subr.bf16.mxu0 %v6057
        %6291 = vmatpush1.bf16.msra.mxu0 %v6056
        %6292 = vmatprep.subr.bf16.mxu0 %v6073
        %6293 = vmatpush1.bf16.msra.mxu0 %v6072
        %6294 = vmatprep.subr.bf16.mxu0 %v6089
        %6295 = vmatpush1.bf16.msra.mxu0 %v6088
        %6296 = vmatprep.subr.bf16.mxu0 0
        %6297 = vmatpush1.bf16.msra.mxu0 0
        %6298 = vmatprep.subr.bf16.mxu0 0
        %6299 = vmatpush1.bf16.msra.mxu0 0
        %6300 = vmatprep.subr.bf16.mxu0 0
        %6301 = vmatpush1.bf16.msra.mxu0 0
        %6302 = vmatprep.subr.bf16.mxu0 0
        %6303 = vmatpush1.bf16.msra.mxu0 0
        %6304 = vmatprep.subr.bf16.mxu0 0
        %6305 = vmatpush1.bf16.msra.mxu0 0
        %6306 = vmatprep.subr.bf16.mxu0 0
        %6307 = vmatpush1.bf16.msra.mxu0 0
        %6308 = vmatprep.subr.bf16.mxu0 0
        %6309 = vmatpush1.bf16.msra.mxu0 0
        %6310 = vmatprep.subr.bf16.mxu0 0
        %6311 = vmatpush1.bf16.msra.mxu0 0
        %6312 = vmatprep.subr.bf16.mxu0 0
        %6313 = vmatpush1.bf16.msra.mxu0 0
        %6314 = vmatprep.subr.bf16.mxu0 0
        %6315 = vmatpush1.bf16.msra.mxu0 0
        %6316 = vmatprep.subr.bf16.mxu0 0
        %6317 = vmatpush1.bf16.msra.mxu0 0
        %6318 = vmatprep.subr.bf16.mxu0 0
        %6319 = vmatpush1.bf16.msra.mxu0 0
        %6320 = vmatprep.mubr.bf16.mxu0 0
        %6321 = vmatmul.mubr.bf16.gmra.mrb[0].mxu0 %v6163
        %v6322 = vpop.f32.mrb[0].mxu0
        %v6323 = vadd.f32 %v5789, %v6322
        %v6324 = vpop.f32.mrb[0].mxu0
        %v6325 = vadd.f32 %v5793, %v6324
        %v6326 = vpop.f32.mrb[0].mxu0
        %v6327 = vpop.f32.mrb[0].mxu0
        %6328 = vdwg.mxu0
        %6329 = vmatprep.subr.bf16.mxu0 %v6043
        %6330 = vmatpush1.bf16.msra.mxu0 %v6042
        %6331 = vmatprep.subr.bf16.mxu0 %v6059
        %6332 = vmatpush1.bf16.msra.mxu0 %v6058
        %6333 = vmatprep.subr.bf16.mxu0 %v6075
        %6334 = vmatpush1.bf16.msra.mxu0 %v6074
        %6335 = vmatprep.subr.bf16.mxu0 %v6091
        %6336 = vmatpush1.bf16.msra.mxu0 %v6090
        %6337 = vmatprep.subr.bf16.mxu0 0
        %6338 = vmatpush1.bf16.msra.mxu0 0
        %6339 = vmatprep.subr.bf16.mxu0 0
        %6340 = vmatpush1.bf16.msra.mxu0 0
        %6341 = vmatprep.subr.bf16.mxu0 0
        %6342 = vmatpush1.bf16.msra.mxu0 0
        %6343 = vmatprep.subr.bf16.mxu0 0
        %6344 = vmatpush1.bf16.msra.mxu0 0
        %6345 = vmatprep.subr.bf16.mxu0 0
        %6346 = vmatpush1.bf16.msra.mxu0 0
        %6347 = vmatprep.subr.bf16.mxu0 0
        %6348 = vmatpush1.bf16.msra.mxu0 0
        %6349 = vmatprep.subr.bf16.mxu0 0
        %6350 = vmatpush1.bf16.msra.mxu0 0
        %6351 = vmatprep.subr.bf16.mxu0 0
        %6352 = vmatpush1.bf16.msra.mxu0 0
        %6353 = vmatprep.subr.bf16.mxu0 0
        %6354 = vmatpush1.bf16.msra.mxu0 0
        %6355 = vmatprep.subr.bf16.mxu0 0
        %6356 = vmatpush1.bf16.msra.mxu0 0
        %6357 = vmatprep.subr.bf16.mxu0 0
        %6358 = vmatpush1.bf16.msra.mxu0 0
        %6359 = vmatprep.subr.bf16.mxu0 0
        %6360 = vmatpush1.bf16.msra.mxu0 0
        %6361 = vmatprep.mubr.bf16.mxu0 0
        %6362 = vmatmul.mubr.bf16.gmra.mrb[0].mxu0 %v6163
        %v6363 = vpop.f32.mrb[0].mxu0
        %v6364 = vadd.f32 %v5797, %v6363
        %v6365 = vpop.f32.mrb[0].mxu0
        %v6366 = vadd.f32 %v5801, %v6365
        %v6367 = vpop.f32.mrb[0].mxu0
        %v6368 = vpop.f32.mrb[0].mxu0
        %6369 = vdwg.mxu0
        %6370 = vmatprep.subr.bf16.mxu0 %v6045
        %6371 = vmatpush1.bf16.msra.mxu0 %v6044
        %6372 = vmatprep.subr.bf16.mxu0 %v6061
        %6373 = vmatpush1.bf16.msra.mxu0 %v6060
        %6374 = vmatprep.subr.bf16.mxu0 %v6077
        %6375 = vmatpush1.bf16.msra.mxu0 %v6076
        %6376 = vmatprep.subr.bf16.mxu0 %v6093
        %6377 = vmatpush1.bf16.msra.mxu0 %v6092
        %6378 = vmatprep.subr.bf16.mxu0 0
        %6379 = vmatpush1.bf16.msra.mxu0 0
        %6380 = vmatprep.subr.bf16.mxu0 0
        %6381 = vmatpush1.bf16.msra.mxu0 0
        %6382 = vmatprep.subr.bf16.mxu0 0
        %6383 = vmatpush1.bf16.msra.mxu0 0
        %6384 = vmatprep.subr.bf16.mxu0 0
        %6385 = vmatpush1.bf16.msra.mxu0 0
        %6386 = vmatprep.subr.bf16.mxu0 0
        %6387 = vmatpush1.bf16.msra.mxu0 0
        %6388 = vmatprep.subr.bf16.mxu0 0
        %6389 = vmatpush1.bf16.msra.mxu0 0
        %6390 = vmatprep.subr.bf16.mxu0 0
        %6391 = vmatpush1.bf16.msra.mxu0 0
        %6392 = vmatprep.subr.bf16.mxu0 0
        %6393 = vmatpush1.bf16.msra.mxu0 0
        %6394 = vmatprep.subr.bf16.mxu0 0
        %6395 = vmatpush1.bf16.msra.mxu0 0
        %6396 = vmatprep.subr.bf16.mxu0 0
        %6397 = vmatpush1.bf16.msra.mxu0 0
        %6398 = vmatprep.subr.bf16.mxu0 0
        %6399 = vmatpush1.bf16.msra.mxu0 0
        %6400 = vmatprep.subr.bf16.mxu0 0
        %6401 = vmatpush1.bf16.msra.mxu0 0
        %6402 = vmatprep.mubr.bf16.mxu0 0
        %6403 = vmatmul.mubr.bf16.gmra.mrb[0].mxu0 %v6163
        %v6404 = vpop.f32.mrb[0].mxu0
        %v6405 = vadd.f32 %v5805, %v6404
        %v6406 = vpop.f32.mrb[0].mxu0
        %v6407 = vadd.f32 %v5809, %v6406
        %v6408 = vpop.f32.mrb[0].mxu0
        %v6409 = vpop.f32.mrb[0].mxu0
        %6410 = vdwg.mxu0
        %6411 = vmatprep.subr.bf16.mxu0 %v6047
        %6412 = vmatpush1.bf16.msra.mxu0 %v6046
        %6413 = vmatprep.subr.bf16.mxu0 %v6063
        %6414 = vmatpush1.bf16.msra.mxu0 %v6062
        %6415 = vmatprep.subr.bf16.mxu0 %v6079
        %6416 = vmatpush1.bf16.msra.mxu0 %v6078
        %6417 = vmatprep.subr.bf16.mxu0 %v6095
        %6418 = vmatpush1.bf16.msra.mxu0 %v6094
        %6419 = vmatprep.subr.bf16.mxu0 0
        %6420 = vmatpush1.bf16.msra.mxu0 0
        %6421 = vmatprep.subr.bf16.mxu0 0
        %6422 = vmatpush1.bf16.msra.mxu0 0
        %6423 = vmatprep.subr.bf16.mxu0 0
        %6424 = vmatpush1.bf16.msra.mxu0 0
        %6425 = vmatprep.subr.bf16.mxu0 0
        %6426 = vmatpush1.bf16.msra.mxu0 0
        %6427 = vmatprep.subr.bf16.mxu0 0
        %6428 = vmatpush1.bf16.msra.mxu0 0
        %6429 = vmatprep.subr.bf16.mxu0 0
        %6430 = vmatpush1.bf16.msra.mxu0 0
        %6431 = vmatprep.subr.bf16.mxu0 0
        %6432 = vmatpush1.bf16.msra.mxu0 0
        %6433 = vmatprep.subr.bf16.mxu0 0
        %6434 = vmatpush1.bf16.msra.mxu0 0
        %6435 = vmatprep.subr.bf16.mxu0 0
        %6436 = vmatpush1.bf16.msra.mxu0 0
        %6437 = vmatprep.subr.bf16.mxu0 0
        %6438 = vmatpush1.bf16.msra.mxu0 0
        %6439 = vmatprep.subr.bf16.mxu0 0
        %6440 = vmatpush1.bf16.msra.mxu0 0
        %6441 = vmatprep.subr.bf16.mxu0 0
        %6442 = vmatpush1.bf16.msra.mxu0 0
        %6443 = vmatprep.mubr.bf16.mxu0 0
        %6444 = vmatmul.mubr.bf16.gmra.mrb[0].mxu0 %v6163
        %v6445 = vpop.f32.mrb[0].mxu0
        %v6446 = vadd.f32 %v5813, %v6445
        %v6447 = vpop.f32.mrb[0].mxu0
        %v6448 = vadd.f32 %v5817, %v6447
        %v6449 = vpop.f32.mrb[0].mxu0
        %v6450 = vpop.f32.mrb[0].mxu0
        %6451 = vdwg.mxu0
        %6452 = vmatprep.subr.bf16.mxu0 %v6049
        %6453 = vmatpush1.bf16.msra.mxu0 %v6048
        %6454 = vmatprep.subr.bf16.mxu0 %v6065
        %6455 = vmatpush1.bf16.msra.mxu0 %v6064
        %6456 = vmatprep.subr.bf16.mxu0 %v6081
        %6457 = vmatpush1.bf16.msra.mxu0 %v6080
        %6458 = vmatprep.subr.bf16.mxu0 %v6097
        %6459 = vmatpush1.bf16.msra.mxu0 %v6096
        %6460 = vmatprep.subr.bf16.mxu0 0
        %6461 = vmatpush1.bf16.msra.mxu0 0
        %6462 = vmatprep.subr.bf16.mxu0 0
        %6463 = vmatpush1.bf16.msra.mxu0 0
        %6464 = vmatprep.subr.bf16.mxu0 0
        %6465 = vmatpush1.bf16.msra.mxu0 0
        %6466 = vmatprep.subr.bf16.mxu0 0
        %6467 = vmatpush1.bf16.msra.mxu0 0
        %6468 = vmatprep.subr.bf16.mxu0 0
        %6469 = vmatpush1.bf16.msra.mxu0 0
        %6470 = vmatprep.subr.bf16.mxu0 0
        %6471 = vmatpush1.bf16.msra.mxu0 0
        %6472 = vmatprep.subr.bf16.mxu0 0
        %6473 = vmatpush1.bf16.msra.mxu0 0
        %6474 = vmatprep.subr.bf16.mxu0 0
        %6475 = vmatpush1.bf16.msra.mxu0 0
        %6476 = vmatprep.subr.bf16.mxu0 0
        %6477 = vmatpush1.bf16.msra.mxu0 0
        %6478 = vmatprep.subr.bf16.mxu0 0
        %6479 = vmatpush1.bf16.msra.mxu0 0
        %6480 = vmatprep.subr.bf16.mxu0 0
        %6481 = vmatpush1.bf16.msra.mxu0 0
        %6482 = vmatprep.subr.bf16.mxu0 0
        %6483 = vmatpush1.bf16.msra.mxu0 0
        %6484 = vmatprep.mubr.bf16.mxu0 0
        %6485 = vmatmul.mubr.bf16.gmra.mrb[0].mxu0 %v6163
        %v6486 = vpop.f32.mrb[0].mxu0
        %v6487 = vadd.f32 %v5821, %v6486
        %v6488 = vpop.f32.mrb[0].mxu0
        %v6489 = vadd.f32 %v5825, %v6488
        %v6490 = vpop.f32.mrb[0].mxu0
        %v6491 = vpop.f32.mrb[0].mxu0
        %6492 = vdwg.mxu0
        %v6493 = vmax.f32 %v6200, 0.0
        %v6494 = vmax.f32 %v6202, 0.0
        %v6495 = vmax.f32 %v6241, 0.0
        %v6496 = vmax.f32 %v6243, 0.0
        %v6497 = vmax.f32 %v6282, 0.0
        %v6498 = vmax.f32 %v6284, 0.0
        %v6499 = vmax.f32 %v6323, 0.0
        %v6500 = vmax.f32 %v6325, 0.0
        %v6501 = vmax.f32 %v6364, 0.0
        %v6502 = vmax.f32 %v6366, 0.0
        %v6503 = vmax.f32 %v6405, 0.0
        %v6504 = vmax.f32 %v6407, 0.0
        %v6505 = vmax.f32 %v6446, 0.0
        %v6506 = vmax.f32 %v6448, 0.0
        %v6507 = vmax.f32 %v6487, 0.0
        %v6508 = vmax.f32 %v6489, 0.0
        %v6509 = vpack.c.bf16 %v6493, %v6493
        %v6510 = vpack.c.bf16 %v6494, %v6494
        %v6511 = vpack.c.bf16 %v6495, %v6495
        %v6512 = vpack.c.bf16 %v6496, %v6496
        %v6513 = vpack.c.bf16 %v6497, %v6497
        %v6514 = vpack.c.bf16 %v6498, %v6498
        %v6515 = vpack.c.bf16 %v6499, %v6499
        %v6516 = vpack.c.bf16 %v6500, %v6500
        %v6517 = vpack.c.bf16 %v6501, %v6501
        %v6518 = vpack.c.bf16 %v6502, %v6502
        %v6519 = vpack.c.bf16 %v6503, %v6503
        %v6520 = vpack.c.bf16 %v6504, %v6504
        %v6521 = vpack.c.bf16 %v6505, %v6505
        %v6522 = vpack.c.bf16 %v6506, %v6506
        %v6523 = vpack.c.bf16 %v6507, %v6507
        %v6524 = vpack.c.bf16 %v6508, %v6508
        %v6526 = vlaneseq
        %v6527 = vshrl.u32 %v6526, 7
        %v6528 = vsub.s32 0, %v6527
        %v6529 = vrot.slane %v5758, %v6528
        %v6787 = vunpack.c.l.b16 %v5501
        %v6788 = vunpack.c.l.b16 %v5502
        %v6789 = vunpack.c.l.b16 %v5503
        %v6790 = vunpack.c.l.b16 %v5504
        %v6791 = vunpack.c.l.b16 %v5505
        %v6792 = vunpack.c.l.b16 %v5506
        %v6793 = vunpack.c.l.b16 %v5507
        %v6794 = vunpack.c.l.b16 %v5508
        %v6795 = vunpack.c.l.b16 %v5509
        %v6796 = vunpack.c.l.b16 %v5510
        %v6797 = vunpack.c.l.b16 %v5511
        %v6798 = vunpack.c.l.b16 %v5512
        %v6799 = vunpack.c.l.b16 %v5513
        %v6800 = vunpack.c.l.b16 %v5514
        %v6801 = vunpack.c.l.b16 %v5515
        %v6802 = vunpack.c.l.b16 %v5516
        %v6803 = vunpack.c.l.b16 %v5517
        %v6804 = vunpack.c.l.b16 %v5518
        %v6805 = vunpack.c.l.b16 %v5519
        %v6806 = vunpack.c.l.b16 %v5520
        %v6807 = vunpack.c.l.b16 %v5521
        %v6808 = vunpack.c.l.b16 %v5522
        %v6809 = vunpack.c.l.b16 %v5523
        %v6810 = vunpack.c.l.b16 %v5524
        %v6811 = vunpack.c.l.b16 %v5525
        %v6812 = vunpack.c.l.b16 %v5526
        %v6813 = vunpack.c.l.b16 %v5527
        %v6814 = vunpack.c.l.b16 %v5528
        %v6815 = vunpack.c.l.b16 %v5529
        %v6816 = vunpack.c.l.b16 %v5530
        %v6817 = vunpack.c.l.b16 %v5531
        %v6818 = vunpack.c.l.b16 %v5532
        %v6819 = vunpack.c.l.b16 %v5533
        %v6820 = vunpack.c.l.b16 %v5534
        %v6821 = vunpack.c.l.b16 %v5535
        %v6822 = vunpack.c.l.b16 %v5536
        %v6823 = vunpack.c.l.b16 %v5537
        %v6824 = vunpack.c.l.b16 %v5538
        %v6825 = vunpack.c.l.b16 %v5539
        %v6826 = vunpack.c.l.b16 %v5540
        %v6827 = vunpack.c.l.b16 %v5541
        %v6828 = vunpack.c.l.b16 %v5542
        %v6829 = vunpack.c.l.b16 %v5543
        %v6830 = vunpack.c.l.b16 %v5544
        %v6831 = vunpack.c.l.b16 %v5545
        %v6832 = vunpack.c.l.b16 %v5546
        %v6833 = vunpack.c.l.b16 %v5547
        %v6834 = vunpack.c.l.b16 %v5548
        %v6835 = vunpack.c.l.b16 %v5549
        %v6836 = vunpack.c.l.b16 %v5550
        %v6837 = vunpack.c.l.b16 %v5551
        %v6838 = vunpack.c.l.b16 %v5552
        %v6839 = vunpack.c.l.b16 %v5553
        %v6840 = vunpack.c.l.b16 %v5554
        %v6841 = vunpack.c.l.b16 %v5555
        %v6842 = vunpack.c.l.b16 %v5556
        %v6843 = vunpack.c.l.b16 %v5557
        %v6844 = vunpack.c.l.b16 %v5558
        %v6845 = vunpack.c.l.b16 %v5559
        %v6846 = vunpack.c.l.b16 %v5560
        %v6847 = vunpack.c.l.b16 %v5561
        %v6848 = vunpack.c.l.b16 %v5562
        %v6849 = vunpack.c.l.b16 %v5563
        %v6850 = vunpack.c.l.b16 %v5564
        %v6851 = vunpack.c.l.b16 %v5565
        %v6852 = vunpack.c.l.b16 %v5566
        %v6853 = vunpack.c.l.b16 %v5567
        %v6854 = vunpack.c.l.b16 %v5568
        %v6855 = vunpack.c.l.b16 %v5569
        %v6856 = vunpack.c.l.b16 %v5570
        %v6857 = vunpack.c.l.b16 %v5571
        %v6858 = vunpack.c.l.b16 %v5572
        %v6859 = vunpack.c.l.b16 %v5573
        %v6860 = vunpack.c.l.b16 %v5574
        %v6861 = vunpack.c.l.b16 %v5575
        %v6862 = vunpack.c.l.b16 %v5576
        %v6863 = vunpack.c.l.b16 %v5577
        %v6864 = vunpack.c.l.b16 %v5578
        %v6865 = vunpack.c.l.b16 %v5579
        %v6866 = vunpack.c.l.b16 %v5580
        %v6867 = vunpack.c.l.b16 %v5581
        %v6868 = vunpack.c.l.b16 %v5582
        %v6869 = vunpack.c.l.b16 %v5583
        %v6870 = vunpack.c.l.b16 %v5584
        %v6871 = vunpack.c.l.b16 %v5585
        %v6872 = vunpack.c.l.b16 %v5586
        %v6873 = vunpack.c.l.b16 %v5587
        %v6874 = vunpack.c.l.b16 %v5588
        %v6875 = vunpack.c.l.b16 %v5589
        %v6876 = vunpack.c.l.b16 %v5590
        %v6877 = vunpack.c.l.b16 %v5591
        %v6878 = vunpack.c.l.b16 %v5592
        %v6879 = vunpack.c.l.b16 %v5593
        %v6880 = vunpack.c.l.b16 %v5594
        %v6881 = vunpack.c.l.b16 %v5595
        %v6882 = vunpack.c.l.b16 %v5596
        %v6883 = vunpack.c.l.b16 %v5597
        %v6884 = vunpack.c.l.b16 %v5598
        %v6885 = vunpack.c.l.b16 %v5599
        %v6886 = vunpack.c.l.b16 %v5600
        %v6887 = vunpack.c.l.b16 %v5601
        %v6888 = vunpack.c.l.b16 %v5602
        %v6889 = vunpack.c.l.b16 %v5603
        %v6890 = vunpack.c.l.b16 %v5604
        %v6891 = vunpack.c.l.b16 %v5605
        %v6892 = vunpack.c.l.b16 %v5606
        %v6893 = vunpack.c.l.b16 %v5607
        %v6894 = vunpack.c.l.b16 %v5608
        %v6895 = vunpack.c.l.b16 %v5609
        %v6896 = vunpack.c.l.b16 %v5610
        %v6897 = vunpack.c.l.b16 %v5611
        %v6898 = vunpack.c.l.b16 %v5612
        %v6899 = vunpack.c.l.b16 %v5613
        %v6900 = vunpack.c.l.b16 %v5614
        %v6901 = vunpack.c.l.b16 %v5615
        %v6902 = vunpack.c.l.b16 %v5616
        %v6903 = vunpack.c.l.b16 %v5617
        %v6904 = vunpack.c.l.b16 %v5618
        %v6905 = vunpack.c.l.b16 %v5619
        %v6906 = vunpack.c.l.b16 %v5620
        %v6907 = vunpack.c.l.b16 %v5621
        %v6908 = vunpack.c.l.b16 %v5622
        %v6909 = vunpack.c.l.b16 %v5623
        %v6910 = vunpack.c.l.b16 %v5624
        %v6911 = vunpack.c.l.b16 %v5625
        %v6912 = vunpack.c.l.b16 %v5626
        %v6913 = vunpack.c.l.b16 %v5627
        %v6914 = vunpack.c.l.b16 %v5628
        %v6915 = vunpack.c.l.b16 %v5629
        %v6916 = vunpack.c.l.b16 %v5630
        %v6917 = vunpack.c.l.b16 %v5631
        %v6918 = vunpack.c.l.b16 %v5632
        %v6919 = vunpack.c.l.b16 %v5633
        %v6920 = vunpack.c.l.b16 %v5634
        %v6921 = vunpack.c.l.b16 %v5635
        %v6922 = vunpack.c.l.b16 %v5636
        %v6923 = vunpack.c.l.b16 %v5637
        %v6924 = vunpack.c.l.b16 %v5638
        %v6925 = vunpack.c.l.b16 %v5639
        %v6926 = vunpack.c.l.b16 %v5640
        %v6927 = vunpack.c.l.b16 %v5641
        %v6928 = vunpack.c.l.b16 %v5642
        %v6929 = vunpack.c.l.b16 %v5643
        %v6930 = vunpack.c.l.b16 %v5644
        %v6931 = vunpack.c.l.b16 %v5645
        %v6932 = vunpack.c.l.b16 %v5646
        %v6933 = vunpack.c.l.b16 %v5647
        %v6934 = vunpack.c.l.b16 %v5648
        %v6935 = vunpack.c.l.b16 %v5649
        %v6936 = vunpack.c.l.b16 %v5650
        %v6937 = vunpack.c.l.b16 %v5651
        %v6938 = vunpack.c.l.b16 %v5652
        %v6939 = vunpack.c.l.b16 %v5653
        %v6940 = vunpack.c.l.b16 %v5654
        %v6941 = vunpack.c.l.b16 %v5655
        %v6942 = vunpack.c.l.b16 %v5656
        %v6943 = vunpack.c.l.b16 %v5657
        %v6944 = vunpack.c.l.b16 %v5658
        %v6945 = vunpack.c.l.b16 %v5659
        %v6946 = vunpack.c.l.b16 %v5660
        %v6947 = vunpack.c.l.b16 %v5661
        %v6948 = vunpack.c.l.b16 %v5662
        %v6949 = vunpack.c.l.b16 %v5663
        %v6950 = vunpack.c.l.b16 %v5664
        %v6951 = vunpack.c.l.b16 %v5665
        %v6952 = vunpack.c.l.b16 %v5666
        %v6953 = vunpack.c.l.b16 %v5667
        %v6954 = vunpack.c.l.b16 %v5668
        %v6955 = vunpack.c.l.b16 %v5669
        %v6956 = vunpack.c.l.b16 %v5670
        %v6957 = vunpack.c.l.b16 %v5671
        %v6958 = vunpack.c.l.b16 %v5672
        %v6959 = vunpack.c.l.b16 %v5673
        %v6960 = vunpack.c.l.b16 %v5674
        %v6961 = vunpack.c.l.b16 %v5675
        %v6962 = vunpack.c.l.b16 %v5676
        %v6963 = vunpack.c.l.b16 %v5677
        %v6964 = vunpack.c.l.b16 %v5678
        %v6965 = vunpack.c.l.b16 %v5679
        %v6966 = vunpack.c.l.b16 %v5680
        %v6967 = vunpack.c.l.b16 %v5681
        %v6968 = vunpack.c.l.b16 %v5682
        %v6969 = vunpack.c.l.b16 %v5683
        %v6970 = vunpack.c.l.b16 %v5684
        %v6971 = vunpack.c.l.b16 %v5685
        %v6972 = vunpack.c.l.b16 %v5686
        %v6973 = vunpack.c.l.b16 %v5687
        %v6974 = vunpack.c.l.b16 %v5688
        %v6975 = vunpack.c.l.b16 %v5689
        %v6976 = vunpack.c.l.b16 %v5690
        %v6977 = vunpack.c.l.b16 %v5691
        %v6978 = vunpack.c.l.b16 %v5692
        %v6979 = vunpack.c.l.b16 %v5693
        %v6980 = vunpack.c.l.b16 %v5694
        %v6981 = vunpack.c.l.b16 %v5695
        %v6982 = vunpack.c.l.b16 %v5696
        %v6983 = vunpack.c.l.b16 %v5697
        %v6984 = vunpack.c.l.b16 %v5698
        %v6985 = vunpack.c.l.b16 %v5699
        %v6986 = vunpack.c.l.b16 %v5700
        %v6987 = vunpack.c.l.b16 %v5701
        %v6988 = vunpack.c.l.b16 %v5702
        %v6989 = vunpack.c.l.b16 %v5703
        %v6990 = vunpack.c.l.b16 %v5704
        %v6991 = vunpack.c.l.b16 %v5705
        %v6992 = vunpack.c.l.b16 %v5706
        %v6993 = vunpack.c.l.b16 %v5707
        %v6994 = vunpack.c.l.b16 %v5708
        %v6995 = vunpack.c.l.b16 %v5709
        %v6996 = vunpack.c.l.b16 %v5710
        %v6997 = vunpack.c.l.b16 %v5711
        %v6998 = vunpack.c.l.b16 %v5712
        %v6999 = vunpack.c.l.b16 %v5713
        %v7000 = vunpack.c.l.b16 %v5714
        %v7001 = vunpack.c.l.b16 %v5715
        %v7002 = vunpack.c.l.b16 %v5716
        %v7003 = vunpack.c.l.b16 %v5717
        %v7004 = vunpack.c.l.b16 %v5718
        %v7005 = vunpack.c.l.b16 %v5719
        %v7006 = vunpack.c.l.b16 %v5720
        %v7007 = vunpack.c.l.b16 %v5721
        %v7008 = vunpack.c.l.b16 %v5722
        %v7009 = vunpack.c.l.b16 %v5723
        %v7010 = vunpack.c.l.b16 %v5724
        %v7011 = vunpack.c.l.b16 %v5725
        %v7012 = vunpack.c.l.b16 %v5726
        %v7013 = vunpack.c.l.b16 %v5727
        %v7014 = vunpack.c.l.b16 %v5728
        %v7015 = vunpack.c.l.b16 %v5729
        %v7016 = vunpack.c.l.b16 %v5730
        %v7017 = vunpack.c.l.b16 %v5731
        %v7018 = vunpack.c.l.b16 %v5732
        %v7019 = vunpack.c.l.b16 %v5733
        %v7020 = vunpack.c.l.b16 %v5734
        %v7021 = vunpack.c.l.b16 %v5735
        %v7022 = vunpack.c.l.b16 %v5736
        %v7023 = vunpack.c.l.b16 %v5737
        %v7024 = vunpack.c.l.b16 %v5738
        %v7025 = vunpack.c.l.b16 %v5739
        %v7026 = vunpack.c.l.b16 %v5740
        %v7027 = vunpack.c.l.b16 %v5741
        %v7028 = vunpack.c.l.b16 %v5742
        %v7029 = vunpack.c.l.b16 %v5743
        %v7030 = vunpack.c.l.b16 %v5744
        %v7031 = vunpack.c.l.b16 %v5745
        %v7032 = vunpack.c.l.b16 %v5746
        %v7033 = vunpack.c.l.b16 %v5747
        %v7034 = vunpack.c.l.b16 %v5748
        %v7035 = vunpack.c.l.b16 %v5749
        %v7036 = vunpack.c.l.b16 %v5750
        %v7037 = vunpack.c.l.b16 %v5751
        %v7038 = vunpack.c.l.b16 %v5752
        %v7039 = vunpack.c.l.b16 %v5753
        %v7040 = vunpack.c.l.b16 %v5754
        %v7041 = vunpack.c.l.b16 %v5755
        %v7042 = vunpack.c.l.b16 %v5756
        %v7043 = vpack.c.b16 %v6788, %v6787
        %v7044 = vpack.c.b16 %v6790, %v6789
        %v7045 = vpack.c.b16 %v6792, %v6791
        %v7046 = vpack.c.b16 %v6794, %v6793
        %v7047 = vpack.c.b16 %v6796, %v6795
        %v7048 = vpack.c.b16 %v6798, %v6797
        %v7049 = vpack.c.b16 %v6800, %v6799
        %v7050 = vpack.c.b16 %v6802, %v6801
        %v7051 = vpack.c.b16 %v6804, %v6803
        %v7052 = vpack.c.b16 %v6806, %v6805
        %v7053 = vpack.c.b16 %v6808, %v6807
        %v7054 = vpack.c.b16 %v6810, %v6809
        %v7055 = vpack.c.b16 %v6812, %v6811
        %v7056 = vpack.c.b16 %v6814, %v6813
        %v7057 = vpack.c.b16 %v6816, %v6815
        %v7058 = vpack.c.b16 %v6818, %v6817
        %v7059 = vpack.c.b16 %v6820, %v6819
        %v7060 = vpack.c.b16 %v6822, %v6821
        %v7061 = vpack.c.b16 %v6824, %v6823
        %v7062 = vpack.c.b16 %v6826, %v6825
        %v7063 = vpack.c.b16 %v6828, %v6827
        %v7064 = vpack.c.b16 %v6830, %v6829
        %v7065 = vpack.c.b16 %v6832, %v6831
        %v7066 = vpack.c.b16 %v6834, %v6833
        %v7067 = vpack.c.b16 %v6836, %v6835
        %v7068 = vpack.c.b16 %v6838, %v6837
        %v7069 = vpack.c.b16 %v6840, %v6839
        %v7070 = vpack.c.b16 %v6842, %v6841
        %v7071 = vpack.c.b16 %v6844, %v6843
        %v7072 = vpack.c.b16 %v6846, %v6845
        %v7073 = vpack.c.b16 %v6848, %v6847
        %v7074 = vpack.c.b16 %v6850, %v6849
        %v7075 = vpack.c.b16 %v6852, %v6851
        %v7076 = vpack.c.b16 %v6854, %v6853
        %v7077 = vpack.c.b16 %v6856, %v6855
        %v7078 = vpack.c.b16 %v6858, %v6857
        %v7079 = vpack.c.b16 %v6860, %v6859
        %v7080 = vpack.c.b16 %v6862, %v6861
        %v7081 = vpack.c.b16 %v6864, %v6863
        %v7082 = vpack.c.b16 %v6866, %v6865
        %v7083 = vpack.c.b16 %v6868, %v6867
        %v7084 = vpack.c.b16 %v6870, %v6869
        %v7085 = vpack.c.b16 %v6872, %v6871
        %v7086 = vpack.c.b16 %v6874, %v6873
        %v7087 = vpack.c.b16 %v6876, %v6875
        %v7088 = vpack.c.b16 %v6878, %v6877
        %v7089 = vpack.c.b16 %v6880, %v6879
        %v7090 = vpack.c.b16 %v6882, %v6881
        %v7091 = vpack.c.b16 %v6884, %v6883
        %v7092 = vpack.c.b16 %v6886, %v6885
        %v7093 = vpack.c.b16 %v6888, %v6887
        %v7094 = vpack.c.b16 %v6890, %v6889
        %v7095 = vpack.c.b16 %v6892, %v6891
        %v7096 = vpack.c.b16 %v6894, %v6893
        %v7097 = vpack.c.b16 %v6896, %v6895
        %v7098 = vpack.c.b16 %v6898, %v6897
        %v7099 = vpack.c.b16 %v6900, %v6899
        %v7100 = vpack.c.b16 %v6902, %v6901
        %v7101 = vpack.c.b16 %v6904, %v6903
        %v7102 = vpack.c.b16 %v6906, %v6905
        %v7103 = vpack.c.b16 %v6908, %v6907
        %v7104 = vpack.c.b16 %v6910, %v6909
        %v7105 = vpack.c.b16 %v6912, %v6911
        %v7106 = vpack.c.b16 %v6914, %v6913
        %v7107 = vpack.c.b16 %v6916, %v6915
        %v7108 = vpack.c.b16 %v6918, %v6917
        %v7109 = vpack.c.b16 %v6920, %v6919
        %v7110 = vpack.c.b16 %v6922, %v6921
        %v7111 = vpack.c.b16 %v6924, %v6923
        %v7112 = vpack.c.b16 %v6926, %v6925
        %v7113 = vpack.c.b16 %v6928, %v6927
        %v7114 = vpack.c.b16 %v6930, %v6929
        %v7115 = vpack.c.b16 %v6932, %v6931
        %v7116 = vpack.c.b16 %v6934, %v6933
        %v7117 = vpack.c.b16 %v6936, %v6935
        %v7118 = vpack.c.b16 %v6938, %v6937
        %v7119 = vpack.c.b16 %v6940, %v6939
        %v7120 = vpack.c.b16 %v6942, %v6941
        %v7121 = vpack.c.b16 %v6944, %v6943
        %v7122 = vpack.c.b16 %v6946, %v6945
        %v7123 = vpack.c.b16 %v6948, %v6947
        %v7124 = vpack.c.b16 %v6950, %v6949
        %v7125 = vpack.c.b16 %v6952, %v6951
        %v7126 = vpack.c.b16 %v6954, %v6953
        %v7127 = vpack.c.b16 %v6956, %v6955
        %v7128 = vpack.c.b16 %v6958, %v6957
        %v7129 = vpack.c.b16 %v6960, %v6959
        %v7130 = vpack.c.b16 %v6962, %v6961
        %v7131 = vpack.c.b16 %v6964, %v6963
        %v7132 = vpack.c.b16 %v6966, %v6965
        %v7133 = vpack.c.b16 %v6968, %v6967
        %v7134 = vpack.c.b16 %v6970, %v6969
        %v7135 = vpack.c.b16 %v6972, %v6971
        %v7136 = vpack.c.b16 %v6974, %v6973
        %v7137 = vpack.c.b16 %v6976, %v6975
        %v7138 = vpack.c.b16 %v6978, %v6977
        %v7139 = vpack.c.b16 %v6980, %v6979
        %v7140 = vpack.c.b16 %v6982, %v6981
        %v7141 = vpack.c.b16 %v6984, %v6983
        %v7142 = vpack.c.b16 %v6986, %v6985
        %v7143 = vpack.c.b16 %v6988, %v6987
        %v7144 = vpack.c.b16 %v6990, %v6989
        %v7145 = vpack.c.b16 %v6992, %v6991
        %v7146 = vpack.c.b16 %v6994, %v6993
        %v7147 = vpack.c.b16 %v6996, %v6995
        %v7148 = vpack.c.b16 %v6998, %v6997
        %v7149 = vpack.c.b16 %v7000, %v6999
        %v7150 = vpack.c.b16 %v7002, %v7001
        %v7151 = vpack.c.b16 %v7004, %v7003
        %v7152 = vpack.c.b16 %v7006, %v7005
        %v7153 = vpack.c.b16 %v7008, %v7007
        %v7154 = vpack.c.b16 %v7010, %v7009
        %v7155 = vpack.c.b16 %v7012, %v7011
        %v7156 = vpack.c.b16 %v7014, %v7013
        %v7157 = vpack.c.b16 %v7016, %v7015
        %v7158 = vpack.c.b16 %v7018, %v7017
        %v7159 = vpack.c.b16 %v7020, %v7019
        %v7160 = vpack.c.b16 %v7022, %v7021
        %v7161 = vpack.c.b16 %v7024, %v7023
        %v7162 = vpack.c.b16 %v7026, %v7025
        %v7163 = vpack.c.b16 %v7028, %v7027
        %v7164 = vpack.c.b16 %v7030, %v7029
        %v7165 = vpack.c.b16 %v7032, %v7031
        %v7166 = vpack.c.b16 %v7034, %v7033
        %v7167 = vpack.c.b16 %v7036, %v7035
        %v7168 = vpack.c.b16 %v7038, %v7037
        %v7169 = vpack.c.b16 %v7040, %v7039
        %v7170 = vpack.c.b16 %v7042, %v7041
        %7299 = vmatprep.subr.bf16.mxu0 0
        %7300 = vmatpush1.bf16.msra.mxu0 %v7043
        %7301 = vmatprep.subr.bf16.mxu0 0
        %7302 = vmatpush1.bf16.msra.mxu0 %v7044
        %7303 = vmatprep.subr.bf16.mxu0 0
        %7304 = vmatpush1.bf16.msra.mxu0 %v7045
        %7305 = vmatprep.subr.bf16.mxu0 0
        %7306 = vmatpush1.bf16.msra.mxu0 %v7046
        %7307 = vmatprep.subr.bf16.mxu0 0
        %7308 = vmatpush1.bf16.msra.mxu0 %v7047
        %7309 = vmatprep.subr.bf16.mxu0 0
        %7310 = vmatpush1.bf16.msra.mxu0 %v7048
        %7311 = vmatprep.subr.bf16.mxu0 0
        %7312 = vmatpush1.bf16.msra.mxu0 %v7049
        %7313 = vmatprep.subr.bf16.mxu0 0
        %7314 = vmatpush1.bf16.msra.mxu0 %v7050
        %7315 = vmatprep.subr.bf16.mxu0 0
        %7316 = vmatpush1.bf16.msra.mxu0 %v7051
        %7317 = vmatprep.subr.bf16.mxu0 0
        %7318 = vmatpush1.bf16.msra.mxu0 %v7052
        %7319 = vmatprep.subr.bf16.mxu0 0
        %7320 = vmatpush1.bf16.msra.mxu0 %v7053
        %7321 = vmatprep.subr.bf16.mxu0 0
        %7322 = vmatpush1.bf16.msra.mxu0 %v7054
        %7323 = vmatprep.subr.bf16.mxu0 0
        %7324 = vmatpush1.bf16.msra.mxu0 %v7055
        %7325 = vmatprep.subr.bf16.mxu0 0
        %7326 = vmatpush1.bf16.msra.mxu0 %v7056
        %7327 = vmatprep.subr.bf16.mxu0 0
        %7328 = vmatpush1.bf16.msra.mxu0 %v7057
        %7329 = vmatprep.subr.bf16.mxu0 0
        %7330 = vmatpush1.bf16.msra.mxu0 %v7058
        %7331 = vmatprep.mubr.bf16.mxu0 %v6510
        %7332 = vmatmul.mubr.bf16.gmra.mrb[0].mxu0 %v6509
        %v7333 = vpop.f32.mrb[0].mxu0
        %v7334 = vadd.f32 %v6529, %v7333
        %v7335 = vpop.f32.mrb[0].mxu0
        %v7336 = vpop.f32.mrb[0].mxu0
        %v7337 = vpop.f32.mrb[0].mxu0
        %7338 = vdwg.mxu0
        %7339 = vmatprep.subr.bf16.mxu0 0
        %7340 = vmatpush1.bf16.msra.mxu0 %v7059
        %7341 = vmatprep.subr.bf16.mxu0 0
        %7342 = vmatpush1.bf16.msra.mxu0 %v7060
        %7343 = vmatprep.subr.bf16.mxu0 0
        %7344 = vmatpush1.bf16.msra.mxu0 %v7061
        %7345 = vmatprep.subr.bf16.mxu0 0
        %7346 = vmatpush1.bf16.msra.mxu0 %v7062
        %7347 = vmatprep.subr.bf16.mxu0 0
        %7348 = vmatpush1.bf16.msra.mxu0 %v7063
        %7349 = vmatprep.subr.bf16.mxu0 0
        %7350 = vmatpush1.bf16.msra.mxu0 %v7064
        %7351 = vmatprep.subr.bf16.mxu0 0
        %7352 = vmatpush1.bf16.msra.mxu0 %v7065
        %7353 = vmatprep.subr.bf16.mxu0 0
        %7354 = vmatpush1.bf16.msra.mxu0 %v7066
        %7355 = vmatprep.subr.bf16.mxu0 0
        %7356 = vmatpush1.bf16.msra.mxu0 %v7067
        %7357 = vmatprep.subr.bf16.mxu0 0
        %7358 = vmatpush1.bf16.msra.mxu0 %v7068
        %7359 = vmatprep.subr.bf16.mxu0 0
        %7360 = vmatpush1.bf16.msra.mxu0 %v7069
        %7361 = vmatprep.subr.bf16.mxu0 0
        %7362 = vmatpush1.bf16.msra.mxu0 %v7070
        %7363 = vmatprep.subr.bf16.mxu0 0
        %7364 = vmatpush1.bf16.msra.mxu0 %v7071
        %7365 = vmatprep.subr.bf16.mxu0 0
        %7366 = vmatpush1.bf16.msra.mxu0 %v7072
        %7367 = vmatprep.subr.bf16.mxu0 0
        %7368 = vmatpush1.bf16.msra.mxu0 %v7073
        %7369 = vmatprep.subr.bf16.mxu0 0
        %7370 = vmatpush1.bf16.msra.mxu0 %v7074
        %7371 = vmatprep.mubr.bf16.mxu0 %v6512
        %7372 = vmatmul.mubr.bf16.gmra.mrb[0].mxu0 %v6511
        %v7373 = vpop.f32.mrb[0].mxu0
        %v7374 = vadd.f32 %v7334, %v7373
        %v7375 = vpop.f32.mrb[0].mxu0
        %v7376 = vpop.f32.mrb[0].mxu0
        %v7377 = vpop.f32.mrb[0].mxu0
        %7378 = vdwg.mxu0
        %7379 = vmatprep.subr.bf16.mxu0 0
        %7380 = vmatpush1.bf16.msra.mxu0 %v7075
        %7381 = vmatprep.subr.bf16.mxu0 0
        %7382 = vmatpush1.bf16.msra.mxu0 %v7076
        %7383 = vmatprep.subr.bf16.mxu0 0
        %7384 = vmatpush1.bf16.msra.mxu0 %v7077
        %7385 = vmatprep.subr.bf16.mxu0 0
        %7386 = vmatpush1.bf16.msra.mxu0 %v7078
        %7387 = vmatprep.subr.bf16.mxu0 0
        %7388 = vmatpush1.bf16.msra.mxu0 %v7079
        %7389 = vmatprep.subr.bf16.mxu0 0
        %7390 = vmatpush1.bf16.msra.mxu0 %v7080
        %7391 = vmatprep.subr.bf16.mxu0 0
        %7392 = vmatpush1.bf16.msra.mxu0 %v7081
        %7393 = vmatprep.subr.bf16.mxu0 0
        %7394 = vmatpush1.bf16.msra.mxu0 %v7082
        %7395 = vmatprep.subr.bf16.mxu0 0
        %7396 = vmatpush1.bf16.msra.mxu0 %v7083
        %7397 = vmatprep.subr.bf16.mxu0 0
        %7398 = vmatpush1.bf16.msra.mxu0 %v7084
        %7399 = vmatprep.subr.bf16.mxu0 0
        %7400 = vmatpush1.bf16.msra.mxu0 %v7085
        %7401 = vmatprep.subr.bf16.mxu0 0
        %7402 = vmatpush1.bf16.msra.mxu0 %v7086
        %7403 = vmatprep.subr.bf16.mxu0 0
        %7404 = vmatpush1.bf16.msra.mxu0 %v7087
        %7405 = vmatprep.subr.bf16.mxu0 0
        %7406 = vmatpush1.bf16.msra.mxu0 %v7088
        %7407 = vmatprep.subr.bf16.mxu0 0
        %7408 = vmatpush1.bf16.msra.mxu0 %v7089
        %7409 = vmatprep.subr.bf16.mxu0 0
        %7410 = vmatpush1.bf16.msra.mxu0 %v7090
        %7411 = vmatprep.mubr.bf16.mxu0 %v6514
        %7412 = vmatmul.mubr.bf16.gmra.mrb[0].mxu0 %v6513
        %v7413 = vpop.f32.mrb[0].mxu0
        %v7414 = vadd.f32 %v7374, %v7413
        %v7415 = vpop.f32.mrb[0].mxu0
        %v7416 = vpop.f32.mrb[0].mxu0
        %v7417 = vpop.f32.mrb[0].mxu0
        %7418 = vdwg.mxu0
        %7419 = vmatprep.subr.bf16.mxu0 0
        %7420 = vmatpush1.bf16.msra.mxu0 %v7091
        %7421 = vmatprep.subr.bf16.mxu0 0
        %7422 = vmatpush1.bf16.msra.mxu0 %v7092
        %7423 = vmatprep.subr.bf16.mxu0 0
        %7424 = vmatpush1.bf16.msra.mxu0 %v7093
        %7425 = vmatprep.subr.bf16.mxu0 0
        %7426 = vmatpush1.bf16.msra.mxu0 %v7094
        %7427 = vmatprep.subr.bf16.mxu0 0
        %7428 = vmatpush1.bf16.msra.mxu0 %v7095
        %7429 = vmatprep.subr.bf16.mxu0 0
        %7430 = vmatpush1.bf16.msra.mxu0 %v7096
        %7431 = vmatprep.subr.bf16.mxu0 0
        %7432 = vmatpush1.bf16.msra.mxu0 %v7097
        %7433 = vmatprep.subr.bf16.mxu0 0
        %7434 = vmatpush1.bf16.msra.mxu0 %v7098
        %7435 = vmatprep.subr.bf16.mxu0 0
        %7436 = vmatpush1.bf16.msra.mxu0 %v7099
        %7437 = vmatprep.subr.bf16.mxu0 0
        %7438 = vmatpush1.bf16.msra.mxu0 %v7100
        %7439 = vmatprep.subr.bf16.mxu0 0
        %7440 = vmatpush1.bf16.msra.mxu0 %v7101
        %7441 = vmatprep.subr.bf16.mxu0 0
        %7442 = vmatpush1.bf16.msra.mxu0 %v7102
        %7443 = vmatprep.subr.bf16.mxu0 0
        %7444 = vmatpush1.bf16.msra.mxu0 %v7103
        %7445 = vmatprep.subr.bf16.mxu0 0
        %7446 = vmatpush1.bf16.msra.mxu0 %v7104
        %7447 = vmatprep.subr.bf16.mxu0 0
        %7448 = vmatpush1.bf16.msra.mxu0 %v7105
        %7449 = vmatprep.subr.bf16.mxu0 0
        %7450 = vmatpush1.bf16.msra.mxu0 %v7106
        %7451 = vmatprep.mubr.bf16.mxu0 %v6516
        %7452 = vmatmul.mubr.bf16.gmra.mrb[0].mxu0 %v6515
        %v7453 = vpop.f32.mrb[0].mxu0
        %v7454 = vadd.f32 %v7414, %v7453
        %v7455 = vpop.f32.mrb[0].mxu0
        %v7456 = vpop.f32.mrb[0].mxu0
        %v7457 = vpop.f32.mrb[0].mxu0
        %7458 = vdwg.mxu0
        %7459 = vmatprep.subr.bf16.mxu0 0
        %7460 = vmatpush1.bf16.msra.mxu0 %v7107
        %7461 = vmatprep.subr.bf16.mxu0 0
        %7462 = vmatpush1.bf16.msra.mxu0 %v7108
        %7463 = vmatprep.subr.bf16.mxu0 0
        %7464 = vmatpush1.bf16.msra.mxu0 %v7109
        %7465 = vmatprep.subr.bf16.mxu0 0
        %7466 = vmatpush1.bf16.msra.mxu0 %v7110
        %7467 = vmatprep.subr.bf16.mxu0 0
        %7468 = vmatpush1.bf16.msra.mxu0 %v7111
        %7469 = vmatprep.subr.bf16.mxu0 0
        %7470 = vmatpush1.bf16.msra.mxu0 %v7112
        %7471 = vmatprep.subr.bf16.mxu0 0
        %7472 = vmatpush1.bf16.msra.mxu0 %v7113
        %7473 = vmatprep.subr.bf16.mxu0 0
        %7474 = vmatpush1.bf16.msra.mxu0 %v7114
        %7475 = vmatprep.subr.bf16.mxu0 0
        %7476 = vmatpush1.bf16.msra.mxu0 %v7115
        %7477 = vmatprep.subr.bf16.mxu0 0
        %7478 = vmatpush1.bf16.msra.mxu0 %v7116
        %7479 = vmatprep.subr.bf16.mxu0 0
        %7480 = vmatpush1.bf16.msra.mxu0 %v7117
        %7481 = vmatprep.subr.bf16.mxu0 0
        %7482 = vmatpush1.bf16.msra.mxu0 %v7118
        %7483 = vmatprep.subr.bf16.mxu0 0
        %7484 = vmatpush1.bf16.msra.mxu0 %v7119
        %7485 = vmatprep.subr.bf16.mxu0 0
        %7486 = vmatpush1.bf16.msra.mxu0 %v7120
        %7487 = vmatprep.subr.bf16.mxu0 0
        %7488 = vmatpush1.bf16.msra.mxu0 %v7121
        %7489 = vmatprep.subr.bf16.mxu0 0
        %7490 = vmatpush1.bf16.msra.mxu0 %v7122
        %7491 = vmatprep.mubr.bf16.mxu0 %v6518
        %7492 = vmatmul.mubr.bf16.gmra.mrb[0].mxu0 %v6517
        %v7493 = vpop.f32.mrb[0].mxu0
        %v7494 = vadd.f32 %v7454, %v7493
        %v7495 = vpop.f32.mrb[0].mxu0
        %v7496 = vpop.f32.mrb[0].mxu0
        %v7497 = vpop.f32.mrb[0].mxu0
        %7498 = vdwg.mxu0
        %7499 = vmatprep.subr.bf16.mxu0 0
        %7500 = vmatpush1.bf16.msra.mxu0 %v7123
        %7501 = vmatprep.subr.bf16.mxu0 0
        %7502 = vmatpush1.bf16.msra.mxu0 %v7124
        %7503 = vmatprep.subr.bf16.mxu0 0
        %7504 = vmatpush1.bf16.msra.mxu0 %v7125
        %7505 = vmatprep.subr.bf16.mxu0 0
        %7506 = vmatpush1.bf16.msra.mxu0 %v7126
        %7507 = vmatprep.subr.bf16.mxu0 0
        %7508 = vmatpush1.bf16.msra.mxu0 %v7127
        %7509 = vmatprep.subr.bf16.mxu0 0
        %7510 = vmatpush1.bf16.msra.mxu0 %v7128
        %7511 = vmatprep.subr.bf16.mxu0 0
        %7512 = vmatpush1.bf16.msra.mxu0 %v7129
        %7513 = vmatprep.subr.bf16.mxu0 0
        %7514 = vmatpush1.bf16.msra.mxu0 %v7130
        %7515 = vmatprep.subr.bf16.mxu0 0
        %7516 = vmatpush1.bf16.msra.mxu0 %v7131
        %7517 = vmatprep.subr.bf16.mxu0 0
        %7518 = vmatpush1.bf16.msra.mxu0 %v7132
        %7519 = vmatprep.subr.bf16.mxu0 0
        %7520 = vmatpush1.bf16.msra.mxu0 %v7133
        %7521 = vmatprep.subr.bf16.mxu0 0
        %7522 = vmatpush1.bf16.msra.mxu0 %v7134
        %7523 = vmatprep.subr.bf16.mxu0 0
        %7524 = vmatpush1.bf16.msra.mxu0 %v7135
        %7525 = vmatprep.subr.bf16.mxu0 0
        %7526 = vmatpush1.bf16.msra.mxu0 %v7136
        %7527 = vmatprep.subr.bf16.mxu0 0
        %7528 = vmatpush1.bf16.msra.mxu0 %v7137
        %7529 = vmatprep.subr.bf16.mxu0 0
        %7530 = vmatpush1.bf16.msra.mxu0 %v7138
        %7531 = vmatprep.mubr.bf16.mxu0 %v6520
        %7532 = vmatmul.mubr.bf16.gmra.mrb[0].mxu0 %v6519
        %v7533 = vpop.f32.mrb[0].mxu0
        %v7534 = vadd.f32 %v7494, %v7533
        %v7535 = vpop.f32.mrb[0].mxu0
        %v7536 = vpop.f32.mrb[0].mxu0
        %v7537 = vpop.f32.mrb[0].mxu0
        %7538 = vdwg.mxu0
        %7539 = vmatprep.subr.bf16.mxu0 0
        %7540 = vmatpush1.bf16.msra.mxu0 %v7139
        %7541 = vmatprep.subr.bf16.mxu0 0
        %7542 = vmatpush1.bf16.msra.mxu0 %v7140
        %7543 = vmatprep.subr.bf16.mxu0 0
        %7544 = vmatpush1.bf16.msra.mxu0 %v7141
        %7545 = vmatprep.subr.bf16.mxu0 0
        %7546 = vmatpush1.bf16.msra.mxu0 %v7142
        %7547 = vmatprep.subr.bf16.mxu0 0
        %7548 = vmatpush1.bf16.msra.mxu0 %v7143
        %7549 = vmatprep.subr.bf16.mxu0 0
        %7550 = vmatpush1.bf16.msra.mxu0 %v7144
        %7551 = vmatprep.subr.bf16.mxu0 0
        %7552 = vmatpush1.bf16.msra.mxu0 %v7145
        %7553 = vmatprep.subr.bf16.mxu0 0
        %7554 = vmatpush1.bf16.msra.mxu0 %v7146
        %7555 = vmatprep.subr.bf16.mxu0 0
        %7556 = vmatpush1.bf16.msra.mxu0 %v7147
        %7557 = vmatprep.subr.bf16.mxu0 0
        %7558 = vmatpush1.bf16.msra.mxu0 %v7148
        %7559 = vmatprep.subr.bf16.mxu0 0
        %7560 = vmatpush1.bf16.msra.mxu0 %v7149
        %7561 = vmatprep.subr.bf16.mxu0 0
        %7562 = vmatpush1.bf16.msra.mxu0 %v7150
        %7563 = vmatprep.subr.bf16.mxu0 0
        %7564 = vmatpush1.bf16.msra.mxu0 %v7151
        %7565 = vmatprep.subr.bf16.mxu0 0
        %7566 = vmatpush1.bf16.msra.mxu0 %v7152
        %7567 = vmatprep.subr.bf16.mxu0 0
        %7568 = vmatpush1.bf16.msra.mxu0 %v7153
        %7569 = vmatprep.subr.bf16.mxu0 0
        %7570 = vmatpush1.bf16.msra.mxu0 %v7154
        %7571 = vmatprep.mubr.bf16.mxu0 %v6522
        %7572 = vmatmul.mubr.bf16.gmra.mrb[0].mxu0 %v6521
        %v7573 = vpop.f32.mrb[0].mxu0
        %v7574 = vadd.f32 %v7534, %v7573
        %v7575 = vpop.f32.mrb[0].mxu0
        %v7576 = vpop.f32.mrb[0].mxu0
        %v7577 = vpop.f32.mrb[0].mxu0
        %7578 = vdwg.mxu0
        %7579 = vmatprep.subr.bf16.mxu0 0
        %7580 = vmatpush1.bf16.msra.mxu0 %v7155
        %7581 = vmatprep.subr.bf16.mxu0 0
        %7582 = vmatpush1.bf16.msra.mxu0 %v7156
        %7583 = vmatprep.subr.bf16.mxu0 0
        %7584 = vmatpush1.bf16.msra.mxu0 %v7157
        %7585 = vmatprep.subr.bf16.mxu0 0
        %7586 = vmatpush1.bf16.msra.mxu0 %v7158
        %7587 = vmatprep.subr.bf16.mxu0 0
        %7588 = vmatpush1.bf16.msra.mxu0 %v7159
        %7589 = vmatprep.subr.bf16.mxu0 0
        %7590 = vmatpush1.bf16.msra.mxu0 %v7160
        %7591 = vmatprep.subr.bf16.mxu0 0
        %7592 = vmatpush1.bf16.msra.mxu0 %v7161
        %7593 = vmatprep.subr.bf16.mxu0 0
        %7594 = vmatpush1.bf16.msra.mxu0 %v7162
        %7595 = vmatprep.subr.bf16.mxu0 0
        %7596 = vmatpush1.bf16.msra.mxu0 %v7163
        %7597 = vmatprep.subr.bf16.mxu0 0
        %7598 = vmatpush1.bf16.msra.mxu0 %v7164
        %7599 = vmatprep.subr.bf16.mxu0 0
        %7600 = vmatpush1.bf16.msra.mxu0 %v7165
        %7601 = vmatprep.subr.bf16.mxu0 0
        %7602 = vmatpush1.bf16.msra.mxu0 %v7166
        %7603 = vmatprep.subr.bf16.mxu0 0
        %7604 = vmatpush1.bf16.msra.mxu0 %v7167
        %7605 = vmatprep.subr.bf16.mxu0 0
        %7606 = vmatpush1.bf16.msra.mxu0 %v7168
        %7607 = vmatprep.subr.bf16.mxu0 0
        %7608 = vmatpush1.bf16.msra.mxu0 %v7169
        %7609 = vmatprep.subr.bf16.mxu0 0
        %7610 = vmatpush1.bf16.msra.mxu0 %v7170
        %7611 = vmatprep.mubr.bf16.mxu0 %v6524
        %7612 = vmatmul.mubr.bf16.gmra.mrb[0].mxu0 %v6523
        %v7613 = vpop.f32.mrb[0].mxu0
        %v7614 = vadd.f32 %v7574, %v7613
        %v7615 = vpop.f32.mrb[0].mxu0
        %v7616 = vpop.f32.mrb[0].mxu0
        %v7617 = vpop.f32.mrb[0].mxu0
        %7618 = vdwg.mxu0
        %v7619 = vadd.f32 %v5431, %v7614
        %s7620 = scalar_lea.vmem %s13, 1
        %v7621 = vld [vmem:[%s7620] sm:$0x1]
        %s7622 = scalar_lea.vmem %s14, 1
        %v7623 = vld [vmem:[%s7622] sm:$0x1]
        %v7624 = vsel %vm665, %v7619, 0.0
        %7625 = vadd.xlane.f32.xlu0 %v7624
        %v7626 = vpop.xlane.xlu0 %7625
        %v7627 = vmul.f32 %v7626, %v1886
        %v7628 = vsub.f32 %v7619, %v7627
        %v7629 = vmul.f32 %v7628, %v7628
        %v7630 = vsel %vm665, %v7629, 0.0
        %7631 = vadd.xlane.f32.xlu0 %v7630
        %v7632 = vpop.xlane.xlu0 %7631
        %v7633 = vmul.f32 %v7632, %v1886
        %v7634 = vadd.f32 %v7633, 1e-05
        %v7635 = vrsqrt.pop %v7634
        %v7636 = vmul.f32 %v7628, %v7635
        %v7638 = vlaneseq
        %v7639 = vshrl.u32 %v7638, 7
        %v7640 = vsub.s32 0, %v7639
        %v7641 = vrot.slane %v7621, %v7640
        %v7643 = vmul.f32 %v7636, %v7641
        %v7645 = vlaneseq
        %v7646 = vshrl.u32 %v7645, 7
        %v7647 = vsub.s32 0, %v7646
        %v7648 = vrot.slane %v7623, %v7647
        %v7650 = vadd.f32 %v7643, %v7648
        %v7651 = vld [vmem:[%s15] sm:$0x1]
        %v7653 = vlaneseq
        %v7654 = vshrl.u32 %v7653, 7
        %v7655 = vsub.s32 0, %v7654
        %v7656 = vrot.slane %v7651, %v7655
        %v7658 = vmul.f32 %v7650, %v7656
        %v7659 = vsel %vm665, %v7658, 0.0
        %7660 = vadd.xlane.f32.xlu0 %v7659
        %v7661 = vpop.xlane.xlu0 %7660
        %v7662 = vld [vmem:[#allocation2] sm:$0x1]
        %7664 = vset.pattern.permute.xlu0 0
        %7665 = vperm.xlu0 %7664, %v7662
        %v7666 = vpop.permute.xlu0 %7665
        %v7668 = vlaneseq
        %v7669 = vshrl.u32 %v7668, 7
        %v7670 = vsub.s32 0, %v7669
        %v7671 = vrot.slane %v7666, %v7670
        %v7672 = vadd.f32 %v7661, %v7671
        %v7674 = vlaneseq
        %v7675 = vand.u32 %v7674, 127
        %v7676 = vlaneseq
        %v7677 = vshrl.u32 %v7676, 7
        %v7678 = vsub.s32 %v7675, %v7677
        %v7679 = vrot.slane %v7672, %v7678
        %vm7681 = vcmask 57344
        %7682 = vst.msk [vmem:[%s540] sm:$0x1] %vm7681, %v7679
        %s7683 = sand.u32 %s403, 1
        %s7684 = scalar_lea.sflag [#allocation4], %s7683
        %s7685 = sand.u32 %s403, 1
        %s7686 = scalar_lea.vmem [#allocation3], %s7685
        // Predicated region
        $region89: #{transformer_forward.1} parent=87 // pred_check
          %p7687 = pneg %p413
        $region90: #{transformer_forward.1} parent=87 // pred_check_branch
          %7689 = sbr.rel (%p7687) target = $region92
        $region91: #{transformer_forward.1} parent=87 // pred_region
          %s7691 = ssub.s32 16, 16
          %7692 = vsyncadd %s7684, %s7691
          %s7693 = smul.addr %s33, 16
          %s7694 = scalar_lea.hbm %s17, %s7693
          %s7696 = sshll.u32 %s7686, 4
          %s7697 = int_to_ptr.vmem [resolvable:$true] %s7696
          %7699 = dma.vmem_to_hbm [thread:$0]  %s7697, 16, %s7694, %s7684
        $region92: #{transformer_forward.1} parent=87 // pred_fallthru
          _
      $region88: #{transformer_forward.1} parent=5 // pred_fallthru
        _
      %p7700 = scmp.le.s32.totalorder 2, %s28
      // Predicated region
      $region93: #{transformer_forward.1} parent=5 // pred_check
        %p7701 = pneg %p7700
      $region94: #{transformer_forward.1} parent=5 // pred_check_branch
        %7703 = sbr.rel (%p7701) target = $region96
      $region95: #{transformer_forward.1} parent=5 // pred_region
        %s7704 = ssub.s32 %s28, 2
        // Predicated region
        $region97: #{transformer_forward.1} parent=95 // pred_check
          %p7705 = pneg %p419
        $region98: #{transformer_forward.1} parent=95 // pred_check_branch
          %7707 = sbr.rel (%p7705) target = $region100
        $region99: #{transformer_forward.1} parent=95 // pred_region
          %s7708 = sand.u32 %s404, 1
          %s7709 = scalar_lea.sflag [#allocation4], %s7708
          %s7710 = sand.u32 %s404, 1
          %s7711 = scalar_lea.vmem [#allocation3], %s7710
          %7712 = dma.done %s7709, 16
        $region100: #{transformer_forward.1} parent=95 // pred_fallthru
          _
      $region96: #{transformer_forward.1} parent=5 // pred_fallthru
        _
    $region6: #{transformer_forward.1} parent=1 // loop_footer
      %s32 = sadd.s32 1, %s28
    $region7: #{transformer_forward.1} parent=1 // loop_footer_branch
      %27 = sbr.rel target = $region3
    $region8: #{transformer_forward.1} parent=1 // loop_exit
      _
    %7713 = vsyncpa [#allocation4], 1
    %s7714 = scalar_lea.sflag [#allocation4], 1
    %7715 = vsyncpa %s7714, 1

</llo_original>
